<compile_context>
chip_gen: v5e
topology: v5e:2x2
jax: 0.10.0
libtpu: 0.0.40
codegen_flags: <defaults>
</compile_context>

<pallas_src>
import functools

import jax
import jax.numpy as jnp
from jax import lax
from jax.experimental import pallas as pl
from jax.experimental.pallas import tpu as pltpu


def _block_processor_kernel(x_ref, mask_ref, w1_ref, b1_ref, wt_ref, b2_ref,
                            o_ref, s_ref, *, H, W):
    """Fused BlockProcessor step for one (batch, block) pair.

    x_ref   : [(H+3)*(W+2), Cin]   zero-padded row-flattened NHWC image (bf16)
    mask_ref: [H*(W+2), Cmid]      1.0 on valid columns (x < W), 0.0 on wrap cols
    w1_ref  : [9, Cin, Cmid]       Conv2d 3x3 weights, tap-major (bf16)
    b1_ref  : [1, Cmid]            Conv2d bias (f32)
    wt_ref  : [9, Cmid, Cout]      ConvTranspose2d weights, tap-major (bf16)
    b2_ref  : [1, Cout]            ConvTranspose2d bias (f32)
    o_ref   : [4, H*(W+2), Cout]   4 sub-pixel phases, max-accumulated over blocks
    s_ref   : [(H+2)*(W+2), Cmid]  VMEM scratch: relu(conv1), zero tail (bf16)
    """
    W2 = W + 2
    Lc = H * W2
    Cmid = w1_ref.shape[2]
    nb = pl.program_id(1)

    # ---- Conv2d(3x3, pad=1): 9 shifted-slab matmuls, f32 accumulation ----------
    acc = jnp.zeros((Lc, Cmid), jnp.float32)
    for ky in range(3):
        for kx in range(3):
            off = ky * W2 + kx
            acc = acc + jnp.dot(x_ref[pl.ds(off, Lc), :],
                                w1_ref[ky * 3 + kx],
                                preferred_element_type=jnp.float32)
    y1 = jnp.maximum(acc + b1_ref[...], 0.0)
    # zero the wrap-around columns (x >= W) so they behave as zero padding below
    y1 = (y1 * mask_ref[...]).astype(jnp.bfloat16)

    # stage into zero-tailed scratch so +1 row / +1 col taps read zeros at edges
    s_ref[pl.ds(0, Lc), :] = y1
    s_ref[pl.ds(Lc, 2 * W2), :] = jnp.zeros((2 * W2, Cmid), jnp.bfloat16)

    # ---- ConvTranspose2d(3x3, s=2, p=1, op=1): 4-phase sub-pixel decomposition --
    v00 = s_ref[pl.ds(0, Lc), :]          # y1[a,   b  ]
    v01 = s_ref[pl.ds(1, Lc), :]          # y1[a,   b+1]
    v10 = s_ref[pl.ds(W2, Lc), :]         # y1[a+1, b  ]
    v11 = s_ref[pl.ds(W2 + 1, Lc), :]     # y1[a+1, b+1]
    b2 = b2_ref[...]

    def mm(v, ky, kx):
        return jnp.dot(v, wt_ref[ky * 3 + kx], preferred_element_type=jnp.float32)

    # out[2a+dy, 2b+dx] for (dy,dx) in {0,1}^2  (torch weight index [ci,co,ky,kx])
    p_ee = jnp.maximum(mm(v00, 1, 1) + b2, 0.0)
    p_eo = jnp.maximum(mm(v01, 1, 0) + mm(v00, 1, 2) + b2, 0.0)
    p_oe = jnp.maximum(mm(v10, 0, 1) + mm(v00, 2, 1) + b2, 0.0)
    p_oo = jnp.maximum(mm(v11, 0, 0) + mm(v10, 0, 2)
                       + mm(v01, 2, 0) + mm(v00, 2, 2) + b2, 0.0)

    # ---- running max over the n_blocks (reduction) grid axis --------------------
    @pl.when(nb == 0)
    def _init():
        o_ref[0] = p_ee
        o_ref[1] = p_eo
        o_ref[2] = p_oe
        o_ref[3] = p_oo

    @pl.when(nb > 0)
    def _accum():
        o_ref[0] = jnp.maximum(o_ref[0], p_ee)
        o_ref[1] = jnp.maximum(o_ref[1], p_eo)
        o_ref[2] = jnp.maximum(o_ref[2], p_oe)
        o_ref[3] = jnp.maximum(o_ref[3], p_oo)


def block_processor_forward(params, x):
    """x: [n_blocks, batch, 512, H, W] (NCHW per block) -> [batch, 256, 2H, 2W]."""
    NB, B, Cin, H, W = x.shape
    W2 = W + 2
    Lc = H * W2
    Lx = (H + 3) * W2
    conv_w = params["conv_w"]            # [Cmid, Cin, 3, 3]  (torch Conv2d layout)
    up_w = params["up_w"]                # [Cmid, Cout, 3, 3] (torch ConvTranspose2d layout)
    Cmid = conv_w.shape[0]
    Cout = up_w.shape[1]

    # NCHW -> NHWC, zero-pad (top 1 / bottom 2 rows, 1 col each side), flatten rows.
    xh = jnp.transpose(x, (0, 1, 3, 4, 2))
    xp = jnp.pad(xh, ((0, 0), (0, 0), (1, 2), (1, 1), (0, 0)))
    x_flat = xp.reshape(NB, B, Lx, Cin).astype(jnp.bfloat16)

    # Valid-column mask for the flat-row conv output (cols W, W+1 are wrap garbage).
    mask = jnp.tile((jnp.arange(W2) < W).astype(jnp.float32), H)[:, None]
    mask = mask * jnp.ones((1, Cmid), jnp.float32)                     # [Lc, Cmid]

    # Conv2d weight [Cmid, Cin, kh, kw]        -> tap-major [9, Cin, Cmid]
    w1 = jnp.transpose(conv_w, (2, 3, 1, 0)).reshape(9, Cin, Cmid).astype(jnp.bfloat16)
    # ConvTranspose2d weight [Cmid, Cout, kh, kw] -> tap-major [9, Cmid, Cout]
    wt = jnp.transpose(up_w, (2, 3, 0, 1)).reshape(9, Cmid, Cout).astype(jnp.bfloat16)
    b1 = params["conv_b"].reshape(1, Cmid).astype(jnp.float32)
    b2 = params["up_b"].reshape(1, Cout).astype(jnp.float32)

    phases = pl.pallas_call(
        functools.partial(_block_processor_kernel, H=H, W=W),
        out_shape=jax.ShapeDtypeStruct((B, 4, Lc, Cout), jnp.float32),
        grid=(B, NB),
        in_specs=[
            pl.BlockSpec((None, None, Lx, Cin), lambda b, k: (k, b, 0, 0)),
            pl.BlockSpec((Lc, Cmid), lambda b, k: (0, 0)),
            pl.BlockSpec((9, Cin, Cmid), lambda b, k: (0, 0, 0)),
            pl.BlockSpec((1, Cmid), lambda b, k: (0, 0)),
            pl.BlockSpec((9, Cmid, Cout), lambda b, k: (0, 0, 0)),
            pl.BlockSpec((1, Cout), lambda b, k: (0, 0)),
        ],
        out_specs=pl.BlockSpec((None, 4, Lc, Cout), lambda b, k: (b, 0, 0, 0)),
        scratch_shapes=[pltpu.VMEM(((H + 2) * W2, Cmid), jnp.bfloat16)],
        compiler_params=pltpu.CompilerParams(
            dimension_semantics=("parallel", "arbitrary")),
    )(x_flat, mask, w1, b1, wt, b2)

    # [B, 4, H*W2, Cout]: drop wrap columns, pixel-shuffle the 4 phases, go NCHW.
    ph = phases.reshape(B, 2, 2, H, W2, Cout)[:, :, :, :, :W, :]       # [B,dy,dx,H,W,C]
    out = jnp.transpose(ph, (0, 3, 1, 4, 2, 5)).reshape(B, 2 * H, 2 * W, Cout)
    return jnp.transpose(out, (0, 3, 1, 2))                            # [B, Cout, 2H, 2W]


def block_processor_reference(params, x):
    """Independent pure-XLA reference (same bf16 operand / f32 accumulate recipe)."""
    NB, B, Cin, H, W = x.shape
    x2 = x.reshape(NB * B, Cin, H, W).astype(jnp.bfloat16)
    y = lax.conv_general_dilated(
        x2, params["conv_w"].astype(jnp.bfloat16),
        window_strides=(1, 1), padding=((1, 1), (1, 1)),
        dimension_numbers=("NCHW", "OIHW", "NCHW"),
        preferred_element_type=jnp.float32)
    y = jnp.maximum(y + params["conv_b"][None, :, None, None], 0.0).astype(jnp.bfloat16)
    # ConvTranspose2d(k=3,s=2,p=1,op=1) == lhs-dilated conv with flipped/transposed kernel
    w_e = jnp.transpose(params["up_w"], (1, 0, 2, 3))[:, :, ::-1, ::-1].astype(jnp.bfloat16)
    z = lax.conv_general_dilated(
        y, w_e, window_strides=(1, 1), padding=((1, 2), (1, 2)),
        lhs_dilation=(2, 2),
        dimension_numbers=("NCHW", "OIHW", "NCHW"),
        preferred_element_type=jnp.float32)
    z = jnp.maximum(z + params["up_b"][None, :, None, None], 0.0)
    z = z.reshape(NB, B, -1, 2 * H, 2 * W)
    return jnp.max(z, axis=0)


if __name__ == "__main__":
    key = jax.random.PRNGKey(0)
    k1, k2, k3, k4, kx = jax.random.split(key, 5)

    NB, B, Cin, Cmid, Cout, H, W = 4, 2, 512, 256, 256, 7, 7
    params = {
        "conv_w": 0.02 * jax.random.normal(k1, (Cmid, Cin, 3, 3), jnp.float32),
        "conv_b": 0.02 * jax.random.normal(k2, (Cmid,), jnp.float32),
        "up_w": 0.02 * jax.random.normal(k3, (Cmid, Cout, 3, 3), jnp.float32),
        "up_b": 0.02 * jax.random.normal(k4, (Cout,), jnp.float32),
    }
    x = jax.random.normal(kx, (NB, B, Cin, H, W), jnp.float32)

    out = jax.block_until_ready(jax.jit(block_processor_forward)(params, x))
    assert out.shape == (B, Cout, 2 * H, 2 * W), out.shape
    assert bool(jnp.all(jnp.isfinite(out)))

    ref = jax.block_until_ready(jax.jit(block_processor_reference)(params, x))
    err = float(jnp.max(jnp.abs(out - ref)))
    scale = float(jnp.max(jnp.abs(ref))) + 1e-6
    assert err <= 1e-2 * scale + 1e-3, (err, scale)

    print("KERNEL_OK")
</pallas_src>

<mosaic_0001>
module attributes {stable_mosaic.version = 11 : i64} {
  func.func @_block_processor_kernel(%arg0: i32, %arg1: i32, %arg2: memref<1x1x90x512xbf16, #tpu.memory_space<vmem>>, %arg3: memref<63x256xf32, #tpu.memory_space<vmem>>, %arg4: memref<9x512x256xbf16, #tpu.memory_space<vmem>>, %arg5: memref<1x256xf32, #tpu.memory_space<vmem>>, %arg6: memref<9x256x256xbf16, #tpu.memory_space<vmem>>, %arg7: memref<1x256xf32, #tpu.memory_space<vmem>>, %arg8: memref<1x4x63x256xf32, #tpu.memory_space<vmem>>, %arg9: memref<81x256xbf16, #tpu.memory_space<vmem>>) attributes {dimension_semantics = [#tpu.dimension_semantics<parallel>, #tpu.dimension_semantics<arbitrary>], iteration_bounds = array<i64: 2, 4>, scalar_prefetch = 0 : i64, scratch_operands = 1 : i64, tpu.core_type = #tpu.core_type<tc>, window_params = [{transform_indices = @transform_0, window_bounds = array<i64: 1, 1, 90, 512>}, {pipeline_mode = #tpu.pipeline_mode<synchronous>, transform_indices = @transform_1, window_bounds = array<i64: 63, 256>}, {pipeline_mode = #tpu.pipeline_mode<synchronous>, transform_indices = @transform_2, window_bounds = array<i64: 9, 512, 256>}, {pipeline_mode = #tpu.pipeline_mode<synchronous>, transform_indices = @transform_3, window_bounds = array<i64: 1, 256>}, {pipeline_mode = #tpu.pipeline_mode<synchronous>, transform_indices = @transform_4, window_bounds = array<i64: 9, 256, 256>}, {pipeline_mode = #tpu.pipeline_mode<synchronous>, transform_indices = @transform_5, window_bounds = array<i64: 1, 256>}, {transform_indices = @transform_6, window_bounds = array<i64: 1, 4, 63, 256>}]} {
    %cst = arith.constant 0.000000e+00 : f32
    %0 = vector.broadcast %cst : f32 to vector<63x256xf32>
    %c0 = arith.constant 0 : index
    %c0_0 = arith.constant 0 : index
    %c0_1 = arith.constant 0 : index
    %c0_2 = arith.constant 0 : index
    %1 = vector.load %arg2[%c0, %c0_0, %c0_1, %c0_2] : memref<1x1x90x512xbf16, #tpu.memory_space<vmem>>, vector<1x1x63x512xbf16>
    %2 = vector.shape_cast %1 : vector<1x1x63x512xbf16> to vector<63x512xbf16>
    %c0_3 = arith.constant 0 : index
    %c0_4 = arith.constant 0 : index
    %c0_5 = arith.constant 0 : index
    %3 = vector.load %arg4[%c0_3, %c0_4, %c0_5] : memref<9x512x256xbf16, #tpu.memory_space<vmem>>, vector<1x512x256xbf16>
    %4 = vector.shape_cast %3 : vector<1x512x256xbf16> to vector<512x256xbf16>
    %cst_6 = arith.constant dense<0.000000e+00> : vector<63x256xf32>
    %5 = tpu.matmul %2, %4, %cst_6 {dimension_numbers = #tpu.dot_dimension_numbers<[1], [0], [0], [1], [0, 0, 1, 1], [], []>} : vector<63x512xbf16>, vector<512x256xbf16>, vector<63x256xf32> -> vector<63x256xf32>
    %6 = arith.addf %0, %5 : vector<63x256xf32>
    %c0_7 = arith.constant 0 : index
    %c0_8 = arith.constant 0 : index
    %c1 = arith.constant 1 : index
    %c0_9 = arith.constant 0 : index
    %7 = vector.load %arg2[%c0_7, %c0_8, %c1, %c0_9] : memref<1x1x90x512xbf16, #tpu.memory_space<vmem>>, vector<1x1x63x512xbf16>
    %8 = vector.shape_cast %7 : vector<1x1x63x512xbf16> to vector<63x512xbf16>
    %c1_10 = arith.constant 1 : index
    %c0_11 = arith.constant 0 : index
    %c0_12 = arith.constant 0 : index
    %9 = vector.load %arg4[%c1_10, %c0_11, %c0_12] : memref<9x512x256xbf16, #tpu.memory_space<vmem>>, vector<1x512x256xbf16>
    %10 = vector.shape_cast %9 : vector<1x512x256xbf16> to vector<512x256xbf16>
    %cst_13 = arith.constant dense<0.000000e+00> : vector<63x256xf32>
    %11 = tpu.matmul %8, %10, %cst_13 {dimension_numbers = #tpu.dot_dimension_numbers<[1], [0], [0], [1], [0, 0, 1, 1], [], []>} : vector<63x512xbf16>, vector<512x256xbf16>, vector<63x256xf32> -> vector<63x256xf32>
    %12 = arith.addf %6, %11 : vector<63x256xf32>
    %c0_14 = arith.constant 0 : index
    %c0_15 = arith.constant 0 : index
    %c2 = arith.constant 2 : index
    %c0_16 = arith.constant 0 : index
    %13 = vector.load %arg2[%c0_14, %c0_15, %c2, %c0_16] : memref<1x1x90x512xbf16, #tpu.memory_space<vmem>>, vector<1x1x63x512xbf16>
    %14 = vector.shape_cast %13 : vector<1x1x63x512xbf16> to vector<63x512xbf16>
    %c2_17 = arith.constant 2 : index
    %c0_18 = arith.constant 0 : index
    %c0_19 = arith.constant 0 : index
    %15 = vector.load %arg4[%c2_17, %c0_18, %c0_19] : memref<9x512x256xbf16, #tpu.memory_space<vmem>>, vector<1x512x256xbf16>
    %16 = vector.shape_cast %15 : vector<1x512x256xbf16> to vector<512x256xbf16>
    %cst_20 = arith.constant dense<0.000000e+00> : vector<63x256xf32>
    %17 = tpu.matmul %14, %16, %cst_20 {dimension_numbers = #tpu.dot_dimension_numbers<[1], [0], [0], [1], [0, 0, 1, 1], [], []>} : vector<63x512xbf16>, vector<512x256xbf16>, vector<63x256xf32> -> vector<63x256xf32>
    %18 = arith.addf %12, %17 : vector<63x256xf32>
    %c0_21 = arith.constant 0 : index
    %c0_22 = arith.constant 0 : index
    %c9 = arith.constant 9 : index
    %c0_23 = arith.constant 0 : index
    %19 = vector.load %arg2[%c0_21, %c0_22, %c9, %c0_23] : memref<1x1x90x512xbf16, #tpu.memory_space<vmem>>, vector<1x1x63x512xbf16>
    %20 = vector.shape_cast %19 : vector<1x1x63x512xbf16> to vector<63x512xbf16>
    %c3 = arith.constant 3 : index
    %c0_24 = arith.constant 0 : index
    %c0_25 = arith.constant 0 : index
    %21 = vector.load %arg4[%c3, %c0_24, %c0_25] : memref<9x512x256xbf16, #tpu.memory_space<vmem>>, vector<1x512x256xbf16>
    %22 = vector.shape_cast %21 : vector<1x512x256xbf16> to vector<512x256xbf16>
    %cst_26 = arith.constant dense<0.000000e+00> : vector<63x256xf32>
    %23 = tpu.matmul %20, %22, %cst_26 {dimension_numbers = #tpu.dot_dimension_numbers<[1], [0], [0], [1], [0, 0, 1, 1], [], []>} : vector<63x512xbf16>, vector<512x256xbf16>, vector<63x256xf32> -> vector<63x256xf32>
    %24 = arith.addf %18, %23 : vector<63x256xf32>
    %c0_27 = arith.constant 0 : index
    %c0_28 = arith.constant 0 : index
    %c10 = arith.constant 10 : index
    %c0_29 = arith.constant 0 : index
    %25 = vector.load %arg2[%c0_27, %c0_28, %c10, %c0_29] : memref<1x1x90x512xbf16, #tpu.memory_space<vmem>>, vector<1x1x63x512xbf16>
    %26 = vector.shape_cast %25 : vector<1x1x63x512xbf16> to vector<63x512xbf16>
    %c4 = arith.constant 4 : index
    %c0_30 = arith.constant 0 : index
    %c0_31 = arith.constant 0 : index
    %27 = vector.load %arg4[%c4, %c0_30, %c0_31] : memref<9x512x256xbf16, #tpu.memory_space<vmem>>, vector<1x512x256xbf16>
    %28 = vector.shape_cast %27 : vector<1x512x256xbf16> to vector<512x256xbf16>
    %cst_32 = arith.constant dense<0.000000e+00> : vector<63x256xf32>
    %29 = tpu.matmul %26, %28, %cst_32 {dimension_numbers = #tpu.dot_dimension_numbers<[1], [0], [0], [1], [0, 0, 1, 1], [], []>} : vector<63x512xbf16>, vector<512x256xbf16>, vector<63x256xf32> -> vector<63x256xf32>
    %30 = arith.addf %24, %29 : vector<63x256xf32>
    %c0_33 = arith.constant 0 : index
    %c0_34 = arith.constant 0 : index
    %c11 = arith.constant 11 : index
    %c0_35 = arith.constant 0 : index
    %31 = vector.load %arg2[%c0_33, %c0_34, %c11, %c0_35] : memref<1x1x90x512xbf16, #tpu.memory_space<vmem>>, vector<1x1x63x512xbf16>
    %32 = vector.shape_cast %31 : vector<1x1x63x512xbf16> to vector<63x512xbf16>
    %c5 = arith.constant 5 : index
    %c0_36 = arith.constant 0 : index
    %c0_37 = arith.constant 0 : index
    %33 = vector.load %arg4[%c5, %c0_36, %c0_37] : memref<9x512x256xbf16, #tpu.memory_space<vmem>>, vector<1x512x256xbf16>
    %34 = vector.shape_cast %33 : vector<1x512x256xbf16> to vector<512x256xbf16>
    %cst_38 = arith.constant dense<0.000000e+00> : vector<63x256xf32>
    %35 = tpu.matmul %32, %34, %cst_38 {dimension_numbers = #tpu.dot_dimension_numbers<[1], [0], [0], [1], [0, 0, 1, 1], [], []>} : vector<63x512xbf16>, vector<512x256xbf16>, vector<63x256xf32> -> vector<63x256xf32>
    %36 = arith.addf %30, %35 : vector<63x256xf32>
    %c0_39 = arith.constant 0 : index
    %c0_40 = arith.constant 0 : index
    %c18 = arith.constant 18 : index
    %c0_41 = arith.constant 0 : index
    %37 = vector.load %arg2[%c0_39, %c0_40, %c18, %c0_41] : memref<1x1x90x512xbf16, #tpu.memory_space<vmem>>, vector<1x1x63x512xbf16>
    %38 = vector.shape_cast %37 : vector<1x1x63x512xbf16> to vector<63x512xbf16>
    %c6 = arith.constant 6 : index
    %c0_42 = arith.constant 0 : index
    %c0_43 = arith.constant 0 : index
    %39 = vector.load %arg4[%c6, %c0_42, %c0_43] : memref<9x512x256xbf16, #tpu.memory_space<vmem>>, vector<1x512x256xbf16>
    %40 = vector.shape_cast %39 : vector<1x512x256xbf16> to vector<512x256xbf16>
    %cst_44 = arith.constant dense<0.000000e+00> : vector<63x256xf32>
    %41 = tpu.matmul %38, %40, %cst_44 {dimension_numbers = #tpu.dot_dimension_numbers<[1], [0], [0], [1], [0, 0, 1, 1], [], []>} : vector<63x512xbf16>, vector<512x256xbf16>, vector<63x256xf32> -> vector<63x256xf32>
    %42 = arith.addf %36, %41 : vector<63x256xf32>
    %c0_45 = arith.constant 0 : index
    %c0_46 = arith.constant 0 : index
    %c19 = arith.constant 19 : index
    %c0_47 = arith.constant 0 : index
    %43 = vector.load %arg2[%c0_45, %c0_46, %c19, %c0_47] : memref<1x1x90x512xbf16, #tpu.memory_space<vmem>>, vector<1x1x63x512xbf16>
    %44 = vector.shape_cast %43 : vector<1x1x63x512xbf16> to vector<63x512xbf16>
    %c7 = arith.constant 7 : index
    %c0_48 = arith.constant 0 : index
    %c0_49 = arith.constant 0 : index
    %45 = vector.load %arg4[%c7, %c0_48, %c0_49] : memref<9x512x256xbf16, #tpu.memory_space<vmem>>, vector<1x512x256xbf16>
    %46 = vector.shape_cast %45 : vector<1x512x256xbf16> to vector<512x256xbf16>
    %cst_50 = arith.constant dense<0.000000e+00> : vector<63x256xf32>
    %47 = tpu.matmul %44, %46, %cst_50 {dimension_numbers = #tpu.dot_dimension_numbers<[1], [0], [0], [1], [0, 0, 1, 1], [], []>} : vector<63x512xbf16>, vector<512x256xbf16>, vector<63x256xf32> -> vector<63x256xf32>
    %48 = arith.addf %42, %47 : vector<63x256xf32>
    %c0_51 = arith.constant 0 : index
    %c0_52 = arith.constant 0 : index
    %c20 = arith.constant 20 : index
    %c0_53 = arith.constant 0 : index
    %49 = vector.load %arg2[%c0_51, %c0_52, %c20, %c0_53] : memref<1x1x90x512xbf16, #tpu.memory_space<vmem>>, vector<1x1x63x512xbf16>
    %50 = vector.shape_cast %49 : vector<1x1x63x512xbf16> to vector<63x512xbf16>
    %c8 = arith.constant 8 : index
    %c0_54 = arith.constant 0 : index
    %c0_55 = arith.constant 0 : index
    %51 = vector.load %arg4[%c8, %c0_54, %c0_55] : memref<9x512x256xbf16, #tpu.memory_space<vmem>>, vector<1x512x256xbf16>
    %52 = vector.shape_cast %51 : vector<1x512x256xbf16> to vector<512x256xbf16>
    %cst_56 = arith.constant dense<0.000000e+00> : vector<63x256xf32>
    %53 = tpu.matmul %50, %52, %cst_56 {dimension_numbers = #tpu.dot_dimension_numbers<[1], [0], [0], [1], [0, 0, 1, 1], [], []>} : vector<63x512xbf16>, vector<512x256xbf16>, vector<63x256xf32> -> vector<63x256xf32>
    %54 = arith.addf %48, %53 : vector<63x256xf32>
    %c0_57 = arith.constant 0 : index
    %c0_58 = arith.constant 0 : index
    %55 = vector.load %arg5[%c0_57, %c0_58] : memref<1x256xf32, #tpu.memory_space<vmem>>, vector<1x256xf32>
    %56 = vector.broadcast %55 : vector<1x256xf32> to vector<63x256xf32>
    %57 = arith.addf %54, %56 : vector<63x256xf32>
    %cst_59 = arith.constant 0.000000e+00 : f32
    %58 = vector.broadcast %cst_59 : f32 to vector<63x256xf32>
    %59 = arith.maximumf %57, %58 : vector<63x256xf32>
    %c0_60 = arith.constant 0 : index
    %c0_61 = arith.constant 0 : index
    %60 = vector.load %arg3[%c0_60, %c0_61] : memref<63x256xf32, #tpu.memory_space<vmem>>, vector<63x256xf32>
    %61 = arith.mulf %59, %60 : vector<63x256xf32>
    %62 = arith.truncf %61 : vector<63x256xf32> to vector<63x256xbf16>
    %c0_62 = arith.constant 0 : index
    %c0_63 = arith.constant 0 : index
    %63 = vector.load %arg9[%c0_62, %c0_63] : memref<81x256xbf16, #tpu.memory_space<vmem>>, vector<63x256xbf16>
    tpu.vector_store %arg9[%c0_62, %c0_63], %62 {strides = array<i32>} : memref<81x256xbf16, #tpu.memory_space<vmem>>, vector<63x256xbf16>,
    %cst_64 = arith.constant 0.000000e+00 : bf16
    %64 = vector.broadcast %cst_64 : bf16 to vector<18x256xbf16>
    %c63 = arith.constant 63 : index
    %c0_65 = arith.constant 0 : index
    %65 = vector.load %arg9[%c63, %c0_65] : memref<81x256xbf16, #tpu.memory_space<vmem>>, vector<18x256xbf16>
    tpu.vector_store %arg9[%c63, %c0_65], %64 {strides = array<i32>} : memref<81x256xbf16, #tpu.memory_space<vmem>>, vector<18x256xbf16>,
    %c0_66 = arith.constant 0 : index
    %c0_67 = arith.constant 0 : index
    %66 = vector.load %arg9[%c0_66, %c0_67] : memref<81x256xbf16, #tpu.memory_space<vmem>>, vector<63x256xbf16>
    %c1_68 = arith.constant 1 : index
    %c0_69 = arith.constant 0 : index
    %67 = vector.load %arg9[%c1_68, %c0_69] : memref<81x256xbf16, #tpu.memory_space<vmem>>, vector<63x256xbf16>
    %c9_70 = arith.constant 9 : index
    %c0_71 = arith.constant 0 : index
    %68 = vector.load %arg9[%c9_70, %c0_71] : memref<81x256xbf16, #tpu.memory_space<vmem>>, vector<63x256xbf16>
    %c10_72 = arith.constant 10 : index
    %c0_73 = arith.constant 0 : index
    %69 = vector.load %arg9[%c10_72, %c0_73] : memref<81x256xbf16, #tpu.memory_space<vmem>>, vector<63x256xbf16>
    %c0_74 = arith.constant 0 : index
    %c0_75 = arith.constant 0 : index
    %70 = vector.load %arg7[%c0_74, %c0_75] : memref<1x256xf32, #tpu.memory_space<vmem>>, vector<1x256xf32>
    %c4_76 = arith.constant 4 : index
    %c0_77 = arith.constant 0 : index
    %c0_78 = arith.constant 0 : index
    %71 = vector.load %arg6[%c4_76, %c0_77, %c0_78] : memref<9x256x256xbf16, #tpu.memory_space<vmem>>, vector<1x256x256xbf16>
    %72 = vector.shape_cast %71 : vector<1x256x256xbf16> to vector<256x256xbf16>
    %cst_79 = arith.constant dense<0.000000e+00> : vector<63x256xf32>
    %73 = tpu.matmul %66, %72, %cst_79 {dimension_numbers = #tpu.dot_dimension_numbers<[1], [0], [0], [1], [0, 0, 1, 1], [], []>} : vector<63x256xbf16>, vector<256x256xbf16>, vector<63x256xf32> -> vector<63x256xf32>
    %74 = vector.broadcast %70 : vector<1x256xf32> to vector<63x256xf32>
    %75 = arith.addf %73, %74 : vector<63x256xf32>
    %cst_80 = arith.constant 0.000000e+00 : f32
    %76 = vector.broadcast %cst_80 : f32 to vector<63x256xf32>
    %77 = arith.maximumf %75, %76 : vector<63x256xf32>
    %c3_81 = arith.constant 3 : index
    %c0_82 = arith.constant 0 : index
    %c0_83 = arith.constant 0 : index
    %78 = vector.load %arg6[%c3_81, %c0_82, %c0_83] : memref<9x256x256xbf16, #tpu.memory_space<vmem>>, vector<1x256x256xbf16>
    %79 = vector.shape_cast %78 : vector<1x256x256xbf16> to vector<256x256xbf16>
    %cst_84 = arith.constant dense<0.000000e+00> : vector<63x256xf32>
    %80 = tpu.matmul %67, %79, %cst_84 {dimension_numbers = #tpu.dot_dimension_numbers<[1], [0], [0], [1], [0, 0, 1, 1], [], []>} : vector<63x256xbf16>, vector<256x256xbf16>, vector<63x256xf32> -> vector<63x256xf32>
    %c5_85 = arith.constant 5 : index
    %c0_86 = arith.constant 0 : index
    %c0_87 = arith.constant 0 : index
    %81 = vector.load %arg6[%c5_85, %c0_86, %c0_87] : memref<9x256x256xbf16, #tpu.memory_space<vmem>>, vector<1x256x256xbf16>
    %82 = vector.shape_cast %81 : vector<1x256x256xbf16> to vector<256x256xbf16>
    %cst_88 = arith.constant dense<0.000000e+00> : vector<63x256xf32>
    %83 = tpu.matmul %66, %82, %cst_88 {dimension_numbers = #tpu.dot_dimension_numbers<[1], [0], [0], [1], [0, 0, 1, 1], [], []>} : vector<63x256xbf16>, vector<256x256xbf16>, vector<63x256xf32> -> vector<63x256xf32>
    %84 = arith.addf %80, %83 : vector<63x256xf32>
    %85 = vector.broadcast %70 : vector<1x256xf32> to vector<63x256xf32>
    %86 = arith.addf %84, %85 : vector<63x256xf32>
    %cst_89 = arith.constant 0.000000e+00 : f32
    %87 = vector.broadcast %cst_89 : f32 to vector<63x256xf32>
    %88 = arith.maximumf %86, %87 : vector<63x256xf32>
    %c1_90 = arith.constant 1 : index
    %c0_91 = arith.constant 0 : index
    %c0_92 = arith.constant 0 : index
    %89 = vector.load %arg6[%c1_90, %c0_91, %c0_92] : memref<9x256x256xbf16, #tpu.memory_space<vmem>>, vector<1x256x256xbf16>
    %90 = vector.shape_cast %89 : vector<1x256x256xbf16> to vector<256x256xbf16>
    %cst_93 = arith.constant dense<0.000000e+00> : vector<63x256xf32>
    %91 = tpu.matmul %68, %90, %cst_93 {dimension_numbers = #tpu.dot_dimension_numbers<[1], [0], [0], [1], [0, 0, 1, 1], [], []>} : vector<63x256xbf16>, vector<256x256xbf16>, vector<63x256xf32> -> vector<63x256xf32>
    %c7_94 = arith.constant 7 : index
    %c0_95 = arith.constant 0 : index
    %c0_96 = arith.constant 0 : index
    %92 = vector.load %arg6[%c7_94, %c0_95, %c0_96] : memref<9x256x256xbf16, #tpu.memory_space<vmem>>, vector<1x256x256xbf16>
    %93 = vector.shape_cast %92 : vector<1x256x256xbf16> to vector<256x256xbf16>
    %cst_97 = arith.constant dense<0.000000e+00> : vector<63x256xf32>
    %94 = tpu.matmul %66, %93, %cst_97 {dimension_numbers = #tpu.dot_dimension_numbers<[1], [0], [0], [1], [0, 0, 1, 1], [], []>} : vector<63x256xbf16>, vector<256x256xbf16>, vector<63x256xf32> -> vector<63x256xf32>
    %95 = arith.addf %91, %94 : vector<63x256xf32>
    %96 = vector.broadcast %70 : vector<1x256xf32> to vector<63x256xf32>
    %97 = arith.addf %95, %96 : vector<63x256xf32>
    %cst_98 = arith.constant 0.000000e+00 : f32
    %98 = vector.broadcast %cst_98 : f32 to vector<63x256xf32>
    %99 = arith.maximumf %97, %98 : vector<63x256xf32>
    %c0_99 = arith.constant 0 : index
    %c0_100 = arith.constant 0 : index
    %c0_101 = arith.constant 0 : index
    %100 = vector.load %arg6[%c0_99, %c0_100, %c0_101] : memref<9x256x256xbf16, #tpu.memory_space<vmem>>, vector<1x256x256xbf16>
    %101 = vector.shape_cast %100 : vector<1x256x256xbf16> to vector<256x256xbf16>
    %cst_102 = arith.constant dense<0.000000e+00> : vector<63x256xf32>
    %102 = tpu.matmul %69, %101, %cst_102 {dimension_numbers = #tpu.dot_dimension_numbers<[1], [0], [0], [1], [0, 0, 1, 1], [], []>} : vector<63x256xbf16>, vector<256x256xbf16>, vector<63x256xf32> -> vector<63x256xf32>
    %c2_103 = arith.constant 2 : index
    %c0_104 = arith.constant 0 : index
    %c0_105 = arith.constant 0 : index
    %103 = vector.load %arg6[%c2_103, %c0_104, %c0_105] : memref<9x256x256xbf16, #tpu.memory_space<vmem>>, vector<1x256x256xbf16>
    %104 = vector.shape_cast %103 : vector<1x256x256xbf16> to vector<256x256xbf16>
    %cst_106 = arith.constant dense<0.000000e+00> : vector<63x256xf32>
    %105 = tpu.matmul %68, %104, %cst_106 {dimension_numbers = #tpu.dot_dimension_numbers<[1], [0], [0], [1], [0, 0, 1, 1], [], []>} : vector<63x256xbf16>, vector<256x256xbf16>, vector<63x256xf32> -> vector<63x256xf32>
    %106 = arith.addf %102, %105 : vector<63x256xf32>
    %c6_107 = arith.constant 6 : index
    %c0_108 = arith.constant 0 : index
    %c0_109 = arith.constant 0 : index
    %107 = vector.load %arg6[%c6_107, %c0_108, %c0_109] : memref<9x256x256xbf16, #tpu.memory_space<vmem>>, vector<1x256x256xbf16>
    %108 = vector.shape_cast %107 : vector<1x256x256xbf16> to vector<256x256xbf16>
    %cst_110 = arith.constant dense<0.000000e+00> : vector<63x256xf32>
    %109 = tpu.matmul %67, %108, %cst_110 {dimension_numbers = #tpu.dot_dimension_numbers<[1], [0], [0], [1], [0, 0, 1, 1], [], []>} : vector<63x256xbf16>, vector<256x256xbf16>, vector<63x256xf32> -> vector<63x256xf32>
    %110 = arith.addf %106, %109 : vector<63x256xf32>
    %c8_111 = arith.constant 8 : index
    %c0_112 = arith.constant 0 : index
    %c0_113 = arith.constant 0 : index
    %111 = vector.load %arg6[%c8_111, %c0_112, %c0_113] : memref<9x256x256xbf16, #tpu.memory_space<vmem>>, vector<1x256x256xbf16>
    %112 = vector.shape_cast %111 : vector<1x256x256xbf16> to vector<256x256xbf16>
    %cst_114 = arith.constant dense<0.000000e+00> : vector<63x256xf32>
    %113 = tpu.matmul %66, %112, %cst_114 {dimension_numbers = #tpu.dot_dimension_numbers<[1], [0], [0], [1], [0, 0, 1, 1], [], []>} : vector<63x256xbf16>, vector<256x256xbf16>, vector<63x256xf32> -> vector<63x256xf32>
    %114 = arith.addf %110, %113 : vector<63x256xf32>
    %115 = vector.broadcast %70 : vector<1x256xf32> to vector<63x256xf32>
    %116 = arith.addf %114, %115 : vector<63x256xf32>
    %cst_115 = arith.constant 0.000000e+00 : f32
    %117 = vector.broadcast %cst_115 : f32 to vector<63x256xf32>
    %118 = arith.maximumf %116, %117 : vector<63x256xf32>
    %c0_i32 = arith.constant 0 : i32
    %119 = arith.cmpi eq, %arg1, %c0_i32 : i32
    %120 = arith.extui %119 : i1 to i32
    %c0_i32_116 = arith.constant 0 : i32
    %121 = arith.cmpi ne, %120, %c0_i32_116 : i32
    scf.if %121 {
      %c0_119 = arith.constant 0 : index
      %c0_120 = arith.constant 0 : index
      %c0_121 = arith.constant 0 : index
      %c0_122 = arith.constant 0 : index
      %125 = vector.load %arg8[%c0_119, %c0_120, %c0_121, %c0_122] : memref<1x4x63x256xf32, #tpu.memory_space<vmem>>, vector<1x1x63x256xf32>
      %126 = vector.shape_cast %125 : vector<1x1x63x256xf32> to vector<63x256xf32>
      %127 = vector.shape_cast %77 : vector<63x256xf32> to vector<1x1x63x256xf32>
      tpu.vector_store %arg8[%c0_119, %c0_120, %c0_121, %c0_122], %127 {strides = array<i32>} : memref<1x4x63x256xf32, #tpu.memory_space<vmem>>, vector<1x1x63x256xf32>,
      %c0_123 = arith.constant 0 : index
      %c1_124 = arith.constant 1 : index
      %c0_125 = arith.constant 0 : index
      %c0_126 = arith.constant 0 : index
      %128 = vector.load %arg8[%c0_123, %c1_124, %c0_125, %c0_126] : memref<1x4x63x256xf32, #tpu.memory_space<vmem>>, vector<1x1x63x256xf32>
      %129 = vector.shape_cast %128 : vector<1x1x63x256xf32> to vector<63x256xf32>
      %130 = vector.shape_cast %88 : vector<63x256xf32> to vector<1x1x63x256xf32>
      tpu.vector_store %arg8[%c0_123, %c1_124, %c0_125, %c0_126], %130 {strides = array<i32>} : memref<1x4x63x256xf32, #tpu.memory_space<vmem>>, vector<1x1x63x256xf32>,
      %c0_127 = arith.constant 0 : index
      %c2_128 = arith.constant 2 : index
      %c0_129 = arith.constant 0 : index
      %c0_130 = arith.constant 0 : index
      %131 = vector.load %arg8[%c0_127, %c2_128, %c0_129, %c0_130] : memref<1x4x63x256xf32, #tpu.memory_space<vmem>>, vector<1x1x63x256xf32>
      %132 = vector.shape_cast %131 : vector<1x1x63x256xf32> to vector<63x256xf32>
      %133 = vector.shape_cast %99 : vector<63x256xf32> to vector<1x1x63x256xf32>
      tpu.vector_store %arg8[%c0_127, %c2_128, %c0_129, %c0_130], %133 {strides = array<i32>} : memref<1x4x63x256xf32, #tpu.memory_space<vmem>>, vector<1x1x63x256xf32>,
      %c0_131 = arith.constant 0 : index
      %c3_132 = arith.constant 3 : index
      %c0_133 = arith.constant 0 : index
      %c0_134 = arith.constant 0 : index
      %134 = vector.load %arg8[%c0_131, %c3_132, %c0_133, %c0_134] : memref<1x4x63x256xf32, #tpu.memory_space<vmem>>, vector<1x1x63x256xf32>
      %135 = vector.shape_cast %134 : vector<1x1x63x256xf32> to vector<63x256xf32>
      %136 = vector.shape_cast %118 : vector<63x256xf32> to vector<1x1x63x256xf32>
      tpu.vector_store %arg8[%c0_131, %c3_132, %c0_133, %c0_134], %136 {strides = array<i32>} : memref<1x4x63x256xf32, #tpu.memory_space<vmem>>, vector<1x1x63x256xf32>,
    } else {
    }
    %c0_i32_117 = arith.constant 0 : i32
    %122 = arith.cmpi sgt, %arg1, %c0_i32_117 : i32
    %123 = arith.extui %122 : i1 to i32
    %c0_i32_118 = arith.constant 0 : i32
    %124 = arith.cmpi ne, %123, %c0_i32_118 : i32
    scf.if %124 {
      %c0_119 = arith.constant 0 : index
      %c0_120 = arith.constant 0 : index
      %c0_121 = arith.constant 0 : index
      %c0_122 = arith.constant 0 : index
      %125 = vector.load %arg8[%c0_119, %c0_120, %c0_121, %c0_122] : memref<1x4x63x256xf32, #tpu.memory_space<vmem>>, vector<1x1x63x256xf32>
      %126 = vector.shape_cast %125 : vector<1x1x63x256xf32> to vector<63x256xf32>
      %127 = arith.maximumf %126, %77 : vector<63x256xf32>
      %c0_123 = arith.constant 0 : index
      %c0_124 = arith.constant 0 : index
      %c0_125 = arith.constant 0 : index
      %c0_126 = arith.constant 0 : index
      %128 = vector.load %arg8[%c0_123, %c0_124, %c0_125, %c0_126] : memref<1x4x63x256xf32, #tpu.memory_space<vmem>>, vector<1x1x63x256xf32>
      %129 = vector.shape_cast %128 : vector<1x1x63x256xf32> to vector<63x256xf32>
      %130 = vector.shape_cast %127 : vector<63x256xf32> to vector<1x1x63x256xf32>
      tpu.vector_store %arg8[%c0_123, %c0_124, %c0_125, %c0_126], %130 {strides = array<i32>} : memref<1x4x63x256xf32, #tpu.memory_space<vmem>>, vector<1x1x63x256xf32>,
      %c0_127 = arith.constant 0 : index
      %c1_128 = arith.constant 1 : index
      %c0_129 = arith.constant 0 : index
      %c0_130 = arith.constant 0 : index
      %131 = vector.load %arg8[%c0_127, %c1_128, %c0_129, %c0_130] : memref<1x4x63x256xf32, #tpu.memory_space<vmem>>, vector<1x1x63x256xf32>
      %132 = vector.shape_cast %131 : vector<1x1x63x256xf32> to vector<63x256xf32>
      %133 = arith.maximumf %132, %88 : vector<63x256xf32>
      %c0_131 = arith.constant 0 : index
      %c1_132 = arith.constant 1 : index
      %c0_133 = arith.constant 0 : index
      %c0_134 = arith.constant 0 : index
      %134 = vector.load %arg8[%c0_131, %c1_132, %c0_133, %c0_134] : memref<1x4x63x256xf32, #tpu.memory_space<vmem>>, vector<1x1x63x256xf32>
      %135 = vector.shape_cast %134 : vector<1x1x63x256xf32> to vector<63x256xf32>
      %136 = vector.shape_cast %133 : vector<63x256xf32> to vector<1x1x63x256xf32>
      tpu.vector_store %arg8[%c0_131, %c1_132, %c0_133, %c0_134], %136 {strides = array<i32>} : memref<1x4x63x256xf32, #tpu.memory_space<vmem>>, vector<1x1x63x256xf32>,
      %c0_135 = arith.constant 0 : index
      %c2_136 = arith.constant 2 : index
      %c0_137 = arith.constant 0 : index
      %c0_138 = arith.constant 0 : index
      %137 = vector.load %arg8[%c0_135, %c2_136, %c0_137, %c0_138] : memref<1x4x63x256xf32, #tpu.memory_space<vmem>>, vector<1x1x63x256xf32>
      %138 = vector.shape_cast %137 : vector<1x1x63x256xf32> to vector<63x256xf32>
      %139 = arith.maximumf %138, %99 : vector<63x256xf32>
      %c0_139 = arith.constant 0 : index
      %c2_140 = arith.constant 2 : index
      %c0_141 = arith.constant 0 : index
      %c0_142 = arith.constant 0 : index
      %140 = vector.load %arg8[%c0_139, %c2_140, %c0_141, %c0_142] : memref<1x4x63x256xf32, #tpu.memory_space<vmem>>, vector<1x1x63x256xf32>
      %141 = vector.shape_cast %140 : vector<1x1x63x256xf32> to vector<63x256xf32>
      %142 = vector.shape_cast %139 : vector<63x256xf32> to vector<1x1x63x256xf32>
      tpu.vector_store %arg8[%c0_139, %c2_140, %c0_141, %c0_142], %142 {strides = array<i32>} : memref<1x4x63x256xf32, #tpu.memory_space<vmem>>, vector<1x1x63x256xf32>,
      %c0_143 = arith.constant 0 : index
      %c3_144 = arith.constant 3 : index
      %c0_145 = arith.constant 0 : index
      %c0_146 = arith.constant 0 : index
      %143 = vector.load %arg8[%c0_143, %c3_144, %c0_145, %c0_146] : memref<1x4x63x256xf32, #tpu.memory_space<vmem>>, vector<1x1x63x256xf32>
      %144 = vector.shape_cast %143 : vector<1x1x63x256xf32> to vector<63x256xf32>
      %145 = arith.maximumf %144, %118 : vector<63x256xf32>
      %c0_147 = arith.constant 0 : index
      %c3_148 = arith.constant 3 : index
      %c0_149 = arith.constant 0 : index
      %c0_150 = arith.constant 0 : index
      %146 = vector.load %arg8[%c0_147, %c3_148, %c0_149, %c0_150] : memref<1x4x63x256xf32, #tpu.memory_space<vmem>>, vector<1x1x63x256xf32>
      %147 = vector.shape_cast %146 : vector<1x1x63x256xf32> to vector<63x256xf32>
      %148 = vector.shape_cast %145 : vector<63x256xf32> to vector<1x1x63x256xf32>
      tpu.vector_store %arg8[%c0_147, %c3_148, %c0_149, %c0_150], %148 {strides = array<i32>} : memref<1x4x63x256xf32, #tpu.memory_space<vmem>>, vector<1x1x63x256xf32>,
    } else {
    }
    return
  }
  func.func @transform_0(%arg0: i32, %arg1: i32) -> (i32, i32, i32, i32) {
    %c0_i32 = arith.constant 0 : i32
    %c0_i32_0 = arith.constant 0 : i32
    %c0_i32_1 = arith.constant 0 : i32
    return %arg1, %arg0, %c0_i32, %c0_i32_0 : i32, i32, i32, i32
  }
  func.func @transform_1(%arg0: i32, %arg1: i32) -> (i32, i32) {
    %c0_i32 = arith.constant 0 : i32
    %c0_i32_0 = arith.constant 0 : i32
    %c0_i32_1 = arith.constant 0 : i32
    return %c0_i32, %c0_i32_0 : i32, i32
  }
  func.func @transform_2(%arg0: i32, %arg1: i32) -> (i32, i32, i32) {
    %c0_i32 = arith.constant 0 : i32
    %c0_i32_0 = arith.constant 0 : i32
    %c0_i32_1 = arith.constant 0 : i32
    %c0_i32_2 = arith.constant 0 : i32
    return %c0_i32, %c0_i32_0, %c0_i32_1 : i32, i32, i32
  }
  func.func @transform_3(%arg0: i32, %arg1: i32) -> (i32, i32) {
    %c0_i32 = arith.constant 0 : i32
    %c0_i32_0 = arith.constant 0 : i32
    %c0_i32_1 = arith.constant 0 : i32
    return %c0_i32, %c0_i32_0 : i32, i32
  }
  func.func @transform_4(%arg0: i32, %arg1: i32) -> (i32, i32, i32) {
    %c0_i32 = arith.constant 0 : i32
    %c0_i32_0 = arith.constant 0 : i32
    %c0_i32_1 = arith.constant 0 : i32
    %c0_i32_2 = arith.constant 0 : i32
    return %c0_i32, %c0_i32_0, %c0_i32_1 : i32, i32, i32
  }
  func.func @transform_5(%arg0: i32, %arg1: i32) -> (i32, i32) {
    %c0_i32 = arith.constant 0 : i32
    %c0_i32_0 = arith.constant 0 : i32
    %c0_i32_1 = arith.constant 0 : i32
    return %c0_i32, %c0_i32_0 : i32, i32
  }
  func.func @transform_6(%arg0: i32, %arg1: i32) -> (i32, i32, i32, i32) {
    %c0_i32 = arith.constant 0 : i32
    %c0_i32_0 = arith.constant 0 : i32
    %c0_i32_1 = arith.constant 0 : i32
    %c0_i32_2 = arith.constant 0 : i32
    return %arg0, %c0_i32, %c0_i32_0, %c0_i32_1 : i32, i32, i32, i32
  }
}

</mosaic_0001>

<llo_original>
// kernel: tile.8
$region0: #{tile.8}
  #allocation0 [shape = 's32[1]{0}', space=sflag, size = 0x4, scoped, tag = 'scoped memory for tile.8']
  %s0 = inlined_call_operand.vmem [shape: f32[9], index: 0, kind: input, shape index: {}]
  %s1 = inlined_call_operand.vmem [shape: f32[7,9], index: 1, kind: output, shape index: {}]
  // Predicated region
  $region2: #{tile.8} parent=0 // pred_check
    _
  $region3: #{tile.8} parent=0 // pred_check_branch
    %3 = sbr.rel (0) target = $region5
  $region4: #{tile.8} parent=0 // pred_region
    _
  $region5: #{tile.8} parent=0 // pred_fallthru
    _
  %v4 = vld [vmem:[%s0] ss:$0 sm:$0xff]
  %5 = vst [vmem:[%s1] sm:$0xff] %v4

// kernel: mul.4
$region0: #{mul.4}
  %s0 = inlined_call_operand.vmem [shape: f32[7,9], index: 0, kind: input, shape index: {}]
  %s1 = inlined_call_operand.vmem [shape: f32[63], index: 1, kind: output, shape index: {}]
  $region1: #{mul.4} parent=0
    #allocation0 [shape = 'u8[4096]{0}', space=vmem, size = 0x1000, scoped, tag = 'scoped mem for output reshape']
    %v2 = vld [vmem:[%s0] sm:$0x1]
    %vm3 = vcmask 72704
    %4 = vst.msk [vmem:[#allocation0] sm:$0x1] %vm3, %v2
    %s5 = scalar_lea.vmem %s0, 6
    %v6 = vld [vmem:[%s5] sm:$0x1]
    %7 = vrot.lane.b32.xlu0 %v6, 54
    %v8 = vpop.permute.xlu0 %7
    %vm9 = vcmask 515504
    %10 = vst.msk [vmem:[#allocation0] sm:$0x1] %vm9, %v8
    %s11 = scalar_lea.vmem %s0, 5
    %v12 = vld [vmem:[%s11] sm:$0x1]
    %13 = vrot.lane.b32.xlu0 %v12, 45
    %v14 = vpop.permute.xlu0 %13
    %vm15 = vcmask 441704
    %16 = vst.msk [vmem:[#allocation0] sm:$0x1] %vm15, %v14
    %s17 = scalar_lea.vmem %s0, 4
    %v18 = vld [vmem:[%s17] sm:$0x1]
    %19 = vrot.lane.b32.xlu0 %v18, 36
    %v20 = vpop.permute.xlu0 %19
    %vm21 = vcmask 367904
    %22 = vst.msk [vmem:[#allocation0] sm:$0x1] %vm21, %v20
    %s23 = scalar_lea.vmem %s0, 3
    %v24 = vld [vmem:[%s23] sm:$0x1]
    %25 = vrot.lane.b32.xlu0 %v24, 27
    %v26 = vpop.permute.xlu0 %25
    %vm27 = vcmask 294104
    %28 = vst.msk [vmem:[#allocation0] sm:$0x1] %vm27, %v26
    %s29 = scalar_lea.vmem %s0, 2
    %v30 = vld [vmem:[%s29] sm:$0x1]
    %31 = vrot.lane.b32.xlu0 %v30, 18
    %v32 = vpop.permute.xlu0 %31
    %vm33 = vcmask 220304
    %34 = vst.msk [vmem:[#allocation0] sm:$0x1] %vm33, %v32
    %s35 = scalar_lea.vmem %s0, 1
    %v36 = vld [vmem:[%s35] sm:$0x1]
    %37 = vrot.lane.b32.xlu0 %v36, 9
    %v38 = vpop.permute.xlu0 %37
    %vm39 = vcmask 146504
    %40 = vst.msk [vmem:[#allocation0] sm:$0x1] %vm39, %v38
    %s42 = ssub.s32 2, 1
    %v43 = vld [vmem:[#allocation0] sm:%s42]
    %s45 = ssub.s32 2, 1
    %46 = vst [vmem:[%s1] sm:%s45] %v43

// kernel: mul.5
$region0: #{mul.5}
  #allocation0 [shape = 's32[1]{0}', space=sflag, size = 0x4, scoped, tag = 'scoped memory for mul.5']
  %s0 = inlined_call_operand.vmem [shape: f32[63], index: 0, kind: input, shape index: {}]
  %s1 = inlined_call_operand.vmem [shape: f32[63,256], index: 1, kind: output, shape index: {}]
  // Predicated region
  $region2: #{mul.5} parent=0 // pred_check
    _
  $region3: #{mul.5} parent=0 // pred_check_branch
    %3 = sbr.rel (0) target = $region5
  $region4: #{mul.5} parent=0 // pred_region
    _
  $region5: #{mul.5} parent=0 // pred_fallthru
    _
  %v4 = vld [vmem:[%s0] ss:$0 sm:$0xff]
  %v5 = vlaneseq
  %v6 = vshrl.u32 %v5, 7
  %8 = vset.pattern.permute.xlu0 %v6
  %9 = vperm.xlu0 %8, %v4
  %v10 = vpop.permute.xlu0 %9
  %11 = vst [vmem:[%s1] sm:$0xff] %v10
  %v12 = vld [vmem:[%s0] ss:$0 sm:$0xff]
  %v13 = vlaneseq
  %v14 = vshrl.u32 %v13, 7
  %v15 = vadd.s32 %v14, 8
  %16 = vset.pattern.permute.xlu0 %v15
  %17 = vperm.xlu0 %16, %v12
  %v18 = vpop.permute.xlu0 %17
  %s19 = scalar_lea.vmem %s1, 16
  %20 = vst [vmem:[%s19] sm:$0xff] %v18
  %v21 = vld [vmem:[%s0] ss:$0 sm:$0xff]
  %v22 = vlaneseq
  %v23 = vshrl.u32 %v22, 7
  %v24 = vadd.s32 %v23, 16
  %25 = vset.pattern.permute.xlu0 %v24
  %26 = vperm.xlu0 %25, %v21
  %v27 = vpop.permute.xlu0 %26
  %s28 = scalar_lea.vmem %s1, 32
  %29 = vst [vmem:[%s28] sm:$0xff] %v27
  %v30 = vld [vmem:[%s0] ss:$0 sm:$0xff]
  %v31 = vlaneseq
  %v32 = vshrl.u32 %v31, 7
  %v33 = vadd.s32 %v32, 24
  %34 = vset.pattern.permute.xlu0 %v33
  %35 = vperm.xlu0 %34, %v30
  %v36 = vpop.permute.xlu0 %35
  %s37 = scalar_lea.vmem %s1, 48
  %38 = vst [vmem:[%s37] sm:$0xff] %v36
  %v39 = vld [vmem:[%s0] ss:$0 sm:$0xff]
  %v40 = vlaneseq
  %v41 = vshrl.u32 %v40, 7
  %v42 = vadd.s32 %v41, 32
  %43 = vset.pattern.permute.xlu0 %v42
  %44 = vperm.xlu0 %43, %v39
  %v45 = vpop.permute.xlu0 %44
  %s46 = scalar_lea.vmem %s1, 64
  %47 = vst [vmem:[%s46] sm:$0xff] %v45
  %v48 = vld [vmem:[%s0] ss:$0 sm:$0xff]
  %v49 = vlaneseq
  %v50 = vshrl.u32 %v49, 7
  %v51 = vadd.s32 %v50, 40
  %52 = vset.pattern.permute.xlu0 %v51
  %53 = vperm.xlu0 %52, %v48
  %v54 = vpop.permute.xlu0 %53
  %s55 = scalar_lea.vmem %s1, 80
  %56 = vst [vmem:[%s55] sm:$0xff] %v54
  %v57 = vld [vmem:[%s0] ss:$0 sm:$0xff]
  %v58 = vlaneseq
  %v59 = vshrl.u32 %v58, 7
  %v60 = vadd.s32 %v59, 48
  %61 = vset.pattern.permute.xlu0 %v60
  %62 = vperm.xlu0 %61, %v57
  %v63 = vpop.permute.xlu0 %62
  %s64 = scalar_lea.vmem %s1, 96
  %65 = vst [vmem:[%s64] sm:$0xff] %v63
  %v66 = vld [vmem:[%s0] ss:$0 sm:$0xff]
  %v67 = vlaneseq
  %v68 = vshrl.u32 %v67, 7
  %v69 = vadd.s32 %v68, 56
  %70 = vset.pattern.permute.xlu0 %v69
  %71 = vperm.xlu0 %70, %v66
  %v72 = vpop.permute.xlu0 %71
  %s73 = scalar_lea.vmem %s1, 112
  %74 = vst [vmem:[%s73] sm:$0xff] %v72
  %s75 = scalar_lea.vmem %s1, 8
  %76 = vst [vmem:[%s75] sm:$0xff] %v10
  %s77 = scalar_lea.vmem %s1, 24
  %78 = vst [vmem:[%s77] sm:$0xff] %v18
  %s79 = scalar_lea.vmem %s1, 40
  %80 = vst [vmem:[%s79] sm:$0xff] %v27
  %s81 = scalar_lea.vmem %s1, 56
  %82 = vst [vmem:[%s81] sm:$0xff] %v36
  %s83 = scalar_lea.vmem %s1, 72
  %84 = vst [vmem:[%s83] sm:$0xff] %v45
  %s85 = scalar_lea.vmem %s1, 88
  %86 = vst [vmem:[%s85] sm:$0xff] %v54
  %s87 = scalar_lea.vmem %s1, 104
  %88 = vst [vmem:[%s87] sm:$0xff] %v63
  %s89 = scalar_lea.vmem %s1, 120
  %90 = vst [vmem:[%s89] sm:$0xff] %v72

// kernel: block_processor_forward.1
$region0: #{block_processor_forward.1}
  #allocation0 [shape = 'u32[]', space=smem, size = 0x4, offset = 0x4, fixed_abs, tag = 'smem constant byte address 0x4 - core index']
  #allocation1 [shape = 'u32[72,128]{1,0:T(1,128)}', space=vmem, size = 0x9000, scoped, tag = 'internal scratch']
  #allocation2 [shape = 'bf16[81,256]{1,0:T(8,128)(2,1)}', space=vmem, size = 0xb000, scoped, tag = 'scratch operand']
  %s0 = inlined_call_operand.vmem [shape: bf16[4,2,90,512], index: 0, kind: input, shape index: {}]
  %s1 = inlined_call_operand.vmem [shape: f32[63,256], index: 1, kind: input, shape index: {}]
  %s2 = inlined_call_operand.vmem [shape: bf16[9,512,256], index: 2, kind: input, shape index: {}]
  %s3 = inlined_call_operand.vmem [shape: f32[1,256], index: 3, kind: input, shape index: {}]
  %s4 = inlined_call_operand.vmem [shape: bf16[9,256,256], index: 4, kind: input, shape index: {}]
  %s5 = inlined_call_operand.vmem [shape: f32[1,256], index: 5, kind: input, shape index: {}]
  %s6 = inlined_call_operand.vmem [shape: f32[2,4,63,256], index: 6, kind: output, shape index: {}]
  %s7 = sld [smem:[#allocation0]]
  $region65: #{block_processor_forward.1} parent=0
    _
  %s9 = ssub.s32 1, %s7
  %s10 = scalar_select 0, %s9, %s7
  loop: start=0, step=1, limit=10
  $region2: #{block_processor_forward.1} parent=0 // loop_pre_header
    _
  $region3: #{block_processor_forward.1} parent=0 // loop_header
    %s12 = sphi 0, %s16
    %p13 = scmp.ge.s32.totalorder %s12, 10
    %s19 = sphi 0, %s31
    %s20 = sphi 0, %s27
    %s21 = sphi 0, %s19
    %s22 = sphi 0, %s20
    %s23 = sphi 0, %s21
    %s24 = sphi 0, %s22
    %s36 = sphi 0, %s38
    %s39 = sphi 0, %s36
    %s40 = sphi 0, %s39
    %s56 = sphi 0, %s40
    %s60 = sphi 0, %s60
    %s62 = sphi 0, %s60
    %s63 = sphi 0, %s62
    %s77 = sphi 0, %s63
    %s81 = sphi 0, %s81
    %s83 = sphi 0, %s81
    %s84 = sphi 0, %s83
    %s98 = sphi 0, %s84
    %s102 = sphi 0, %s102
    %s104 = sphi 0, %s102
    %s105 = sphi 0, %s104
    %s119 = sphi 0, %s105
    %s123 = sphi 0, %s123
    %s125 = sphi 0, %s123
    %s126 = sphi 0, %s125
    %s140 = sphi 0, %s126
    %s144 = sphi 0, %s144
    %s146 = sphi 0, %s144
    %s147 = sphi 0, %s146
    %s161 = sphi 0, %s147
    %s167 = sphi 0, %s169
    %s170 = sphi 0, %s167
    %s171 = sphi 0, %s170
    %s187 = sphi 0, %s171
  $region4: #{block_processor_forward.1} parent=0 // loop_header_branch
    %15 = sbr.rel (%p13) target = $region8
  $region5: #{block_processor_forward.1} parent=0 // loop_body
    %s17 = ssub.s32 %s12, 1
    %s18 = ssub.s32 %s12, 2
    %s25 = sadd.s32 1, %s20
    %p26 = scmp.ge.s32.totalorder %s25, 4
    %s27 = scalar_select %p26, 0, %s25
    %s28 = sadd.s32 1, %s19
    %s29 = scalar_select %p26, %s28, %s19
    %p30 = scmp.ge.s32.totalorder %s29, 2
    %s31 = scalar_select %p30, 0, %s29
    %s32 = ssub.s32 %s20, %s27
    %s33 = ssub.s32 %s19, %s31
    %s34 = sor.u32 %s32, %s33
    %p35 = scmp.eq.s32.totalorder %s34, 0
    %s37 = sadd.s32 %s36, 1
    %s38 = scalar_select %p35, %s36, %s37
    %p41 = pneg %p35
    %p42 = scmp.eq.s32.totalorder %s12, 7
    %p43 = por %p41, %p42
    %p44 = scmp.ne.s32.totalorder %s36, %s39
    %p45 = scmp.eq.s32.totalorder %s12, 0
    %p46 = por %p44, %p45
    %p47 = scmp.ne.s32.totalorder %s36, %s39
    %p48 = scmp.eq.s32.totalorder %s17, 7
    %p49 = por %p47, %p48
    %p50 = scmp.ne.s32.totalorder %s39, %s40
    %p51 = scmp.eq.s32.totalorder %s17, 0
    %p52 = por %p50, %p51
    %p53 = scmp.ne.s32.totalorder %s39, %s40
    %p54 = scmp.eq.s32.totalorder %s18, 7
    %p55 = por %p53, %p54
    %p57 = scmp.ne.s32.totalorder %s40, %s56
    %p58 = scmp.eq.s32.totalorder %s18, 0
    %p59 = por %p57, %p58
    %s61 = sadd.s32 %s60, 1
    %p64 = scmp.eq.s32.totalorder %s12, 7
    %p65 = scmp.ne.s32.totalorder %s60, %s62
    %p66 = scmp.eq.s32.totalorder %s12, 0
    %p67 = por %p65, %p66
    %p68 = scmp.ne.s32.totalorder %s60, %s62
    %p69 = scmp.eq.s32.totalorder %s17, 7
    %p70 = por %p68, %p69
    %p71 = scmp.ne.s32.totalorder %s62, %s63
    %p72 = scmp.eq.s32.totalorder %s17, 0
    %p73 = por %p71, %p72
    %p74 = scmp.ne.s32.totalorder %s62, %s63
    %p75 = scmp.eq.s32.totalorder %s18, 7
    %p76 = por %p74, %p75
    %p78 = scmp.ne.s32.totalorder %s63, %s77
    %p79 = scmp.eq.s32.totalorder %s18, 0
    %p80 = por %p78, %p79
    %s82 = sadd.s32 %s81, 1
    %p85 = scmp.eq.s32.totalorder %s12, 7
    %p86 = scmp.ne.s32.totalorder %s81, %s83
    %p87 = scmp.eq.s32.totalorder %s12, 0
    %p88 = por %p86, %p87
    %p89 = scmp.ne.s32.totalorder %s81, %s83
    %p90 = scmp.eq.s32.totalorder %s17, 7
    %p91 = por %p89, %p90
    %p92 = scmp.ne.s32.totalorder %s83, %s84
    %p93 = scmp.eq.s32.totalorder %s17, 0
    %p94 = por %p92, %p93
    %p95 = scmp.ne.s32.totalorder %s83, %s84
    %p96 = scmp.eq.s32.totalorder %s18, 7
    %p97 = por %p95, %p96
    %p99 = scmp.ne.s32.totalorder %s84, %s98
    %p100 = scmp.eq.s32.totalorder %s18, 0
    %p101 = por %p99, %p100
    %s103 = sadd.s32 %s102, 1
    %p106 = scmp.eq.s32.totalorder %s12, 7
    %p107 = scmp.ne.s32.totalorder %s102, %s104
    %p108 = scmp.eq.s32.totalorder %s12, 0
    %p109 = por %p107, %p108
    %p110 = scmp.ne.s32.totalorder %s102, %s104
    %p111 = scmp.eq.s32.totalorder %s17, 7
    %p112 = por %p110, %p111
    %p113 = scmp.ne.s32.totalorder %s104, %s105
    %p114 = scmp.eq.s32.totalorder %s17, 0
    %p115 = por %p113, %p114
    %p116 = scmp.ne.s32.totalorder %s104, %s105
    %p117 = scmp.eq.s32.totalorder %s18, 7
    %p118 = por %p116, %p117
    %p120 = scmp.ne.s32.totalorder %s105, %s119
    %p121 = scmp.eq.s32.totalorder %s18, 0
    %p122 = por %p120, %p121
    %s124 = sadd.s32 %s123, 1
    %p127 = scmp.eq.s32.totalorder %s12, 7
    %p128 = scmp.ne.s32.totalorder %s123, %s125
    %p129 = scmp.eq.s32.totalorder %s12, 0
    %p130 = por %p128, %p129
    %p131 = scmp.ne.s32.totalorder %s123, %s125
    %p132 = scmp.eq.s32.totalorder %s17, 7
    %p133 = por %p131, %p132
    %p134 = scmp.ne.s32.totalorder %s125, %s126
    %p135 = scmp.eq.s32.totalorder %s17, 0
    %p136 = por %p134, %p135
    %p137 = scmp.ne.s32.totalorder %s125, %s126
    %p138 = scmp.eq.s32.totalorder %s18, 7
    %p139 = por %p137, %p138
    %p141 = scmp.ne.s32.totalorder %s126, %s140
    %p142 = scmp.eq.s32.totalorder %s18, 0
    %p143 = por %p141, %p142
    %s145 = sadd.s32 %s144, 1
    %p148 = scmp.eq.s32.totalorder %s12, 7
    %p149 = scmp.ne.s32.totalorder %s144, %s146
    %p150 = scmp.eq.s32.totalorder %s12, 0
    %p151 = por %p149, %p150
    %p152 = scmp.ne.s32.totalorder %s144, %s146
    %p153 = scmp.eq.s32.totalorder %s17, 7
    %p154 = por %p152, %p153
    %p155 = scmp.ne.s32.totalorder %s146, %s147
    %p156 = scmp.eq.s32.totalorder %s17, 0
    %p157 = por %p155, %p156
    %p158 = scmp.ne.s32.totalorder %s146, %s147
    %p159 = scmp.eq.s32.totalorder %s18, 7
    %p160 = por %p158, %p159
    %p162 = scmp.ne.s32.totalorder %s147, %s161
    %p163 = scmp.eq.s32.totalorder %s18, 0
    %p164 = por %p162, %p163
    %s165 = ssub.s32 %s19, %s31
    %p166 = scmp.eq.s32.totalorder %s165, 0
    %s168 = sadd.s32 %s167, 1
    %s169 = scalar_select %p166, %s167, %s168
    %p172 = pneg %p166
    %p173 = scmp.eq.s32.totalorder %s12, 7
    %p174 = por %p172, %p173
    %p175 = scmp.ne.s32.totalorder %s167, %s170
    %p176 = scmp.eq.s32.totalorder %s12, 0
    %p177 = por %p175, %p176
    %p178 = scmp.ne.s32.totalorder %s167, %s170
    %p179 = scmp.eq.s32.totalorder %s17, 7
    %p180 = por %p178, %p179
    %p181 = scmp.ne.s32.totalorder %s170, %s171
    %p182 = scmp.eq.s32.totalorder %s17, 0
    %p183 = por %p181, %p182
    %p184 = scmp.ne.s32.totalorder %s170, %s171
    %p185 = scmp.eq.s32.totalorder %s18, 7
    %p186 = por %p184, %p185
    %p188 = scmp.ne.s32.totalorder %s171, %s187
    %p189 = scmp.eq.s32.totalorder %s18, 0
    %p190 = por %p188, %p189
    %p191 = scmp.le.s32.totalorder 1, %s12
    %p192 = scmp.lt.s32.totalorder %s12, 9
    %p193 = pnand %p191, %p192
    %p194 = pneg %p193
    // Predicated region
    $region9: #{block_processor_forward.1} parent=5 // pred_check
      _
    $region10: #{block_processor_forward.1} parent=5 // pred_check_branch
      %196 = sbr.rel (%p193) target = $region12
    $region11: #{block_processor_forward.1} parent=5 // pred_region
      %s197 = ssub.s32 %s12, 1
      // Predicated region
      $region13: #{block_processor_forward.1} parent=11 // pred_check
        %p198 = pneg %p73
      $region14: #{block_processor_forward.1} parent=11 // pred_check_branch
        %200 = sbr.rel (%p198) target = $region16
      $region15: #{block_processor_forward.1} parent=11 // pred_region
        _
      $region16: #{block_processor_forward.1} parent=11 // pred_fallthru
        _
      // Predicated region
      $region17: #{block_processor_forward.1} parent=11 // pred_check
        %p201 = pneg %p94
      $region18: #{block_processor_forward.1} parent=11 // pred_check_branch
        %203 = sbr.rel (%p201) target = $region20
      $region19: #{block_processor_forward.1} parent=11 // pred_region
        _
      $region20: #{block_processor_forward.1} parent=11 // pred_fallthru
        _
      // Predicated region
      $region21: #{block_processor_forward.1} parent=11 // pred_check
        %p204 = pneg %p115
      $region22: #{block_processor_forward.1} parent=11 // pred_check_branch
        %206 = sbr.rel (%p204) target = $region24
      $region23: #{block_processor_forward.1} parent=11 // pred_region
        _
      $region24: #{block_processor_forward.1} parent=11 // pred_fallthru
        _
      // Predicated region
      $region25: #{block_processor_forward.1} parent=11 // pred_check
        %p207 = pneg %p136
      $region26: #{block_processor_forward.1} parent=11 // pred_check_branch
        %209 = sbr.rel (%p207) target = $region28
      $region27: #{block_processor_forward.1} parent=11 // pred_region
        _
      $region28: #{block_processor_forward.1} parent=11 // pred_fallthru
        _
      // Predicated region
      $region29: #{block_processor_forward.1} parent=11 // pred_check
        %p210 = pneg %p157
      $region30: #{block_processor_forward.1} parent=11 // pred_check_branch
        %212 = sbr.rel (%p210) target = $region32
      $region31: #{block_processor_forward.1} parent=11 // pred_region
        _
      $region32: #{block_processor_forward.1} parent=11 // pred_fallthru
        _
    $region12: #{block_processor_forward.1} parent=5 // pred_fallthru
      _
    %p213 = scmp.lt.s32.totalorder %s12, 8
    // Predicated region
    $region33: #{block_processor_forward.1} parent=5 // pred_check
      %p214 = pneg %p213
    $region34: #{block_processor_forward.1} parent=5 // pred_check_branch
      %216 = sbr.rel (%p214) target = $region36
    $region35: #{block_processor_forward.1} parent=5 // pred_region
      // Predicated region
      $region37: #{block_processor_forward.1} parent=35 // pred_check
        %p217 = pneg %p46
      $region38: #{block_processor_forward.1} parent=35 // pred_check_branch
        %219 = sbr.rel (%p217) target = $region40
      $region39: #{block_processor_forward.1} parent=35 // pred_region
        %p220 = scmp.lt.s32.totalorder %s20, 3
        %s221 = scalar_select %p220, %s20, 3
        %p222 = scmp.lt.s32.totalorder %s19, 1
        %s223 = scalar_select %p222, %s19, 1
        %s224 = smul.addr %s223, 48
        %s225 = smul.addr %s221, 96
        %s226 = sadd.s32 %s224, %s225
        %s227 = smul.addr %s226, 4
        %s228 = scalar_lea.vmem %s0, %s227
      $region40: #{block_processor_forward.1} parent=35 // pred_fallthru
        _
    $region36: #{block_processor_forward.1} parent=5 // pred_fallthru
      _
    %p229 = scmp.le.s32.totalorder 1, %s12
    %p230 = scmp.lt.s32.totalorder %s12, 9
    %p231 = pnand %p229, %p230
    %p232 = pneg %p231
    // Predicated region
    $region41: #{block_processor_forward.1} parent=5 // pred_check
      _
    $region42: #{block_processor_forward.1} parent=5 // pred_check_branch
      %234 = sbr.rel (%p231) target = $region44
    $region43: #{block_processor_forward.1} parent=5 // pred_region
      %s235 = ssub.s32 %s12, 1
      %p236 = scmp.lt.s32.totalorder %s22, 3
      %s237 = scalar_select %p236, %s22, 3
      %p238 = scmp.lt.s32.totalorder %s21, 1
      %s239 = scalar_select %p238, %s21, 1
      %s240 = smul.addr %s239, 48
      %s241 = smul.addr %s237, 96
      %s242 = sadd.s32 %s240, %s241
      %s243 = smul.addr %s242, 4
      %s244 = scalar_lea.vmem %s0, %s243
      %p245 = pneg %p52
      %p246 = pneg %p49
      %p247 = pneg %p73
      %p248 = pneg %p70
      %p249 = pneg %p94
      %p250 = pneg %p91
      %p251 = pneg %p115
      %p252 = pneg %p112
      %p253 = pneg %p136
      %p254 = pneg %p133
      %p255 = pneg %p157
      %p256 = pneg %p154
      %p257 = pneg %p183
      %p258 = pneg %p180
      %p259 = scmp.lt.s32.totalorder %s21, 1
      %s260 = scalar_select %p259, %s21, 1
      %s261 = smul.addr %s260, 64
      %s262 = smul.addr %s261, 8
      %s263 = scalar_lea.vmem %s6, %s262
      %p264 = scmp.lt.s32.totalorder %s22, 3
      %s265 = scalar_select %p264, %s22, 3
      %p266 = scmp.lt.s32.totalorder %s21, 1
      %s267 = scalar_select %p266, %s21, 1
      %s268 = smul.addr %s267, 48
      %s269 = smul.addr %s265, 96
      %s270 = sadd.s32 %s268, %s269
      %s271 = smul.addr %s270, 4
      %s272 = scalar_lea.vmem %s0, %s271
      %p273 = scmp.lt.s32.totalorder %s21, 1
      %s274 = scalar_select %p273, %s21, 1
      %s275 = smul.addr %s274, 64
      %s276 = smul.addr %s275, 8
      %s277 = scalar_lea.vmem %s6, %s276
      %v279 = vld [vmem:[%s272] sm:$0xff]
      %v280 = vld [vmem:[%s272 + $0x8] sm:$0xff]
      %v281 = vld [vmem:[%s272 + $0x10] sm:$0xff]
      %v282 = vld [vmem:[%s272 + $0x18] sm:$0xff]
      %v283 = vld [vmem:[%s272 + $0x20] sm:$0xff]
      %v284 = vld [vmem:[%s272 + $0x28] sm:$0xff]
      %v285 = vld [vmem:[%s272 + $0x30] sm:$0xff]
      %v286 = vld [vmem:[%s272 + $0x38] sm:$0xff]
      %v287 = vld [vmem:[%s272 + $0x40] sm:$0xff]
      %v288 = vld [vmem:[%s272 + $0x48] sm:$0xff]
      %v289 = vld [vmem:[%s272 + $0x50] sm:$0xff]
      %v290 = vld [vmem:[%s272 + $0x58] sm:$0xff]
      %v291 = vld [vmem:[%s272 + $0x60] sm:$0xff]
      %v292 = vld [vmem:[%s272 + $0x68] sm:$0xff]
      %v293 = vld [vmem:[%s272 + $0x70] sm:$0xff]
      %v294 = vld [vmem:[%s272 + $0x78] sm:$0xff]
      %v295 = vld [vmem:[%s2] sm:$0xff]
      %v296 = vld [vmem:[%s2 + $0x8] sm:$0xff]
      %v297 = vld [vmem:[%s2 + $0x10] sm:$0xff]
      %v298 = vld [vmem:[%s2 + $0x18] sm:$0xff]
      %v299 = vld [vmem:[%s2 + $0x20] sm:$0xff]
      %v300 = vld [vmem:[%s2 + $0x28] sm:$0xff]
      %v301 = vld [vmem:[%s2 + $0x30] sm:$0xff]
      %v302 = vld [vmem:[%s2 + $0x38] sm:$0xff]
      %v303 = vld [vmem:[%s2 + $0x40] sm:$0xff]
      %v304 = vld [vmem:[%s2 + $0x48] sm:$0xff]
      %v305 = vld [vmem:[%s2 + $0x50] sm:$0xff]
      %v306 = vld [vmem:[%s2 + $0x58] sm:$0xff]
      %v307 = vld [vmem:[%s2 + $0x60] sm:$0xff]
      %v308 = vld [vmem:[%s2 + $0x68] sm:$0xff]
      %v309 = vld [vmem:[%s2 + $0x70] sm:$0xff]
      %v310 = vld [vmem:[%s2 + $0x78] sm:$0xff]
      %v311 = vld [vmem:[%s2 + $0x80] sm:$0xff]
      %v312 = vld [vmem:[%s2 + $0x88] sm:$0xff]
      %v313 = vld [vmem:[%s2 + $0x90] sm:$0xff]
      %v314 = vld [vmem:[%s2 + $0x98] sm:$0xff]
      %v315 = vld [vmem:[%s2 + $0xa0] sm:$0xff]
      %v316 = vld [vmem:[%s2 + $0xa8] sm:$0xff]
      %v317 = vld [vmem:[%s2 + $0xb0] sm:$0xff]
      %v318 = vld [vmem:[%s2 + $0xb8] sm:$0xff]
      %v319 = vld [vmem:[%s2 + $0xc0] sm:$0xff]
      %v320 = vld [vmem:[%s2 + $0xc8] sm:$0xff]
      %v321 = vld [vmem:[%s2 + $0xd0] sm:$0xff]
      %v322 = vld [vmem:[%s2 + $0xd8] sm:$0xff]
      %v323 = vld [vmem:[%s2 + $0xe0] sm:$0xff]
      %v324 = vld [vmem:[%s2 + $0xe8] sm:$0xff]
      %v325 = vld [vmem:[%s2 + $0xf0] sm:$0xff]
      %v326 = vld [vmem:[%s2 + $0xf8] sm:$0xff]
      %v327 = vld [vmem:[%s2 + $0x100] sm:$0xff]
      %v328 = vld [vmem:[%s2 + $0x108] sm:$0xff]
      %v329 = vld [vmem:[%s2 + $0x110] sm:$0xff]
      %v330 = vld [vmem:[%s2 + $0x118] sm:$0xff]
      %v331 = vld [vmem:[%s2 + $0x120] sm:$0xff]
      %v332 = vld [vmem:[%s2 + $0x128] sm:$0xff]
      %v333 = vld [vmem:[%s2 + $0x130] sm:$0xff]
      %v334 = vld [vmem:[%s2 + $0x138] sm:$0xff]
      %v335 = vld [vmem:[%s2 + $0x140] sm:$0xff]
      %v336 = vld [vmem:[%s2 + $0x148] sm:$0xff]
      %v337 = vld [vmem:[%s2 + $0x150] sm:$0xff]
      %v338 = vld [vmem:[%s2 + $0x158] sm:$0xff]
      %v339 = vld [vmem:[%s2 + $0x160] sm:$0xff]
      %v340 = vld [vmem:[%s2 + $0x168] sm:$0xff]
      %v341 = vld [vmem:[%s2 + $0x170] sm:$0xff]
      %v342 = vld [vmem:[%s2 + $0x178] sm:$0xff]
      %v343 = vld [vmem:[%s2 + $0x180] sm:$0xff]
      %v344 = vld [vmem:[%s2 + $0x188] sm:$0xff]
      %v345 = vld [vmem:[%s2 + $0x190] sm:$0xff]
      %v346 = vld [vmem:[%s2 + $0x198] sm:$0xff]
      %v347 = vld [vmem:[%s2 + $0x1a0] sm:$0xff]
      %v348 = vld [vmem:[%s2 + $0x1a8] sm:$0xff]
      %v349 = vld [vmem:[%s2 + $0x1b0] sm:$0xff]
      %v350 = vld [vmem:[%s2 + $0x1b8] sm:$0xff]
      %v351 = vld [vmem:[%s2 + $0x1c0] sm:$0xff]
      %v352 = vld [vmem:[%s2 + $0x1c8] sm:$0xff]
      %v353 = vld [vmem:[%s2 + $0x1d0] sm:$0xff]
      %v354 = vld [vmem:[%s2 + $0x1d8] sm:$0xff]
      %v355 = vld [vmem:[%s2 + $0x1e0] sm:$0xff]
      %v356 = vld [vmem:[%s2 + $0x1e8] sm:$0xff]
      %v357 = vld [vmem:[%s2 + $0x1f0] sm:$0xff]
      %v358 = vld [vmem:[%s2 + $0x1f8] sm:$0xff]
      %s359 = scalar_lea.vmem %s2, 512
      %v360 = vld [vmem:[%s359] sm:$0xff]
      %v361 = vld [vmem:[%s359 + $0x8] sm:$0xff]
      %v362 = vld [vmem:[%s359 + $0x10] sm:$0xff]
      %v363 = vld [vmem:[%s359 + $0x18] sm:$0xff]
      %v364 = vld [vmem:[%s359 + $0x20] sm:$0xff]
      %v365 = vld [vmem:[%s359 + $0x28] sm:$0xff]
      %v366 = vld [vmem:[%s359 + $0x30] sm:$0xff]
      %v367 = vld [vmem:[%s359 + $0x38] sm:$0xff]
      %v368 = vld [vmem:[%s359 + $0x40] sm:$0xff]
      %v369 = vld [vmem:[%s359 + $0x48] sm:$0xff]
      %v370 = vld [vmem:[%s359 + $0x50] sm:$0xff]
      %v371 = vld [vmem:[%s359 + $0x58] sm:$0xff]
      %v372 = vld [vmem:[%s359 + $0x60] sm:$0xff]
      %v373 = vld [vmem:[%s359 + $0x68] sm:$0xff]
      %v374 = vld [vmem:[%s359 + $0x70] sm:$0xff]
      %v375 = vld [vmem:[%s359 + $0x78] sm:$0xff]
      %v376 = vld [vmem:[%s359 + $0x80] sm:$0xff]
      %v377 = vld [vmem:[%s359 + $0x88] sm:$0xff]
      %v378 = vld [vmem:[%s359 + $0x90] sm:$0xff]
      %v379 = vld [vmem:[%s359 + $0x98] sm:$0xff]
      %v380 = vld [vmem:[%s359 + $0xa0] sm:$0xff]
      %v381 = vld [vmem:[%s359 + $0xa8] sm:$0xff]
      %v382 = vld [vmem:[%s359 + $0xb0] sm:$0xff]
      %v383 = vld [vmem:[%s359 + $0xb8] sm:$0xff]
      %v384 = vld [vmem:[%s359 + $0xc0] sm:$0xff]
      %v385 = vld [vmem:[%s359 + $0xc8] sm:$0xff]
      %v386 = vld [vmem:[%s359 + $0xd0] sm:$0xff]
      %v387 = vld [vmem:[%s359 + $0xd8] sm:$0xff]
      %v388 = vld [vmem:[%s359 + $0xe0] sm:$0xff]
      %v389 = vld [vmem:[%s359 + $0xe8] sm:$0xff]
      %v390 = vld [vmem:[%s359 + $0xf0] sm:$0xff]
      %v391 = vld [vmem:[%s359 + $0xf8] sm:$0xff]
      %v392 = vld [vmem:[%s359 + $0x100] sm:$0xff]
      %v393 = vld [vmem:[%s359 + $0x108] sm:$0xff]
      %v394 = vld [vmem:[%s359 + $0x110] sm:$0xff]
      %v395 = vld [vmem:[%s359 + $0x118] sm:$0xff]
      %v396 = vld [vmem:[%s359 + $0x120] sm:$0xff]
      %v397 = vld [vmem:[%s359 + $0x128] sm:$0xff]
      %v398 = vld [vmem:[%s359 + $0x130] sm:$0xff]
      %v399 = vld [vmem:[%s359 + $0x138] sm:$0xff]
      %v400 = vld [vmem:[%s359 + $0x140] sm:$0xff]
      %v401 = vld [vmem:[%s359 + $0x148] sm:$0xff]
      %v402 = vld [vmem:[%s359 + $0x150] sm:$0xff]
      %v403 = vld [vmem:[%s359 + $0x158] sm:$0xff]
      %v404 = vld [vmem:[%s359 + $0x160] sm:$0xff]
      %v405 = vld [vmem:[%s359 + $0x168] sm:$0xff]
      %v406 = vld [vmem:[%s359 + $0x170] sm:$0xff]
      %v407 = vld [vmem:[%s359 + $0x178] sm:$0xff]
      %v408 = vld [vmem:[%s359 + $0x180] sm:$0xff]
      %v409 = vld [vmem:[%s359 + $0x188] sm:$0xff]
      %v410 = vld [vmem:[%s359 + $0x190] sm:$0xff]
      %v411 = vld [vmem:[%s359 + $0x198] sm:$0xff]
      %v412 = vld [vmem:[%s359 + $0x1a0] sm:$0xff]
      %v413 = vld [vmem:[%s359 + $0x1a8] sm:$0xff]
      %v414 = vld [vmem:[%s359 + $0x1b0] sm:$0xff]
      %v415 = vld [vmem:[%s359 + $0x1b8] sm:$0xff]
      %v416 = vld [vmem:[%s359 + $0x1c0] sm:$0xff]
      %v417 = vld [vmem:[%s359 + $0x1c8] sm:$0xff]
      %v418 = vld [vmem:[%s359 + $0x1d0] sm:$0xff]
      %v419 = vld [vmem:[%s359 + $0x1d8] sm:$0xff]
      %v420 = vld [vmem:[%s359 + $0x1e0] sm:$0xff]
      %v421 = vld [vmem:[%s359 + $0x1e8] sm:$0xff]
      %v422 = vld [vmem:[%s359 + $0x1f0] sm:$0xff]
      %v423 = vld [vmem:[%s359 + $0x1f8] sm:$0xff]
      %v440 = vunpack.c.l.b16 %v279
      %v441 = vunpack.c.h.b16 %v279
      %v442 = vunpack.c.l.b16 %v280
      %v443 = vunpack.c.h.b16 %v280
      %v444 = vunpack.c.l.b16 %v281
      %v445 = vunpack.c.h.b16 %v281
      %v446 = vunpack.c.l.b16 %v282
      %v447 = vunpack.c.h.b16 %v282
      %v448 = vunpack.c.l.b16 %v283
      %v449 = vunpack.c.h.b16 %v283
      %v450 = vunpack.c.l.b16 %v284
      %v451 = vunpack.c.h.b16 %v284
      %v452 = vunpack.c.l.b16 %v285
      %v453 = vunpack.c.h.b16 %v285
      %v454 = vunpack.c.l.b16 %v286
      %v455 = vunpack.c.h.b16 %v286
      %v456 = vunpack.c.l.b16 %v287
      %v457 = vunpack.c.h.b16 %v287
      %v458 = vunpack.c.l.b16 %v288
      %v459 = vunpack.c.h.b16 %v288
      %v460 = vunpack.c.l.b16 %v289
      %v461 = vunpack.c.h.b16 %v289
      %v462 = vunpack.c.l.b16 %v290
      %v463 = vunpack.c.h.b16 %v290
      %v464 = vunpack.c.l.b16 %v291
      %v465 = vunpack.c.h.b16 %v291
      %v466 = vunpack.c.l.b16 %v292
      %v467 = vunpack.c.h.b16 %v292
      %v468 = vunpack.c.l.b16 %v293
      %v469 = vunpack.c.h.b16 %v293
      %v470 = vunpack.c.l.b16 %v294
      %v471 = vunpack.c.h.b16 %v294
      %v472 = vpack.c.b16 %v444, %v440
      %v473 = vpack.c.b16 %v445, %v441
      %v474 = vpack.c.b16 %v446, %v442
      %v475 = vpack.c.b16 %v447, %v443
      %v476 = vpack.c.b16 %v452, %v448
      %v477 = vpack.c.b16 %v453, %v449
      %v478 = vpack.c.b16 %v454, %v450
      %v479 = vpack.c.b16 %v455, %v451
      %v480 = vpack.c.b16 %v460, %v456
      %v481 = vpack.c.b16 %v461, %v457
      %v482 = vpack.c.b16 %v462, %v458
      %v483 = vpack.c.b16 %v463, %v459
      %v484 = vpack.c.b16 %v468, %v464
      %v485 = vpack.c.b16 %v469, %v465
      %v486 = vpack.c.b16 %v470, %v466
      %v487 = vpack.c.b16 %v471, %v467
      %vm488 = vsmask.f32 7424
      %v490 = vshrl.u32 %v472, 16
      %v492 = vshll.u32 %v472, 16
      %v494 = vrot.slane %v492, 1
      %v495 = vor.u32 %v490, %v494
      %v497 = vshll.u32 %v476, 16
      %v499 = vrot.slane %v497, 1
      %v500 = vsel %vm488, %v495, %v499
      %v502 = vshrl.u32 %v473, 16
      %v504 = vshll.u32 %v473, 16
      %v506 = vrot.slane %v504, 1
      %v507 = vor.u32 %v502, %v506
      %v509 = vshll.u32 %v477, 16
      %v511 = vrot.slane %v509, 1
      %v512 = vsel %vm488, %v507, %v511
      %v514 = vshrl.u32 %v474, 16
      %v516 = vshll.u32 %v474, 16
      %v518 = vrot.slane %v516, 1
      %v519 = vor.u32 %v514, %v518
      %v521 = vshll.u32 %v478, 16
      %v523 = vrot.slane %v521, 1
      %v524 = vsel %vm488, %v519, %v523
      %v526 = vshrl.u32 %v475, 16
      %v528 = vshll.u32 %v475, 16
      %v530 = vrot.slane %v528, 1
      %v531 = vor.u32 %v526, %v530
      %v533 = vshll.u32 %v479, 16
      %v535 = vrot.slane %v533, 1
      %v536 = vsel %vm488, %v531, %v535
      %v537 = vshrl.u32 %v476, 16
      %v539 = vor.u32 %v537, %v499
      %v541 = vshll.u32 %v480, 16
      %v543 = vrot.slane %v541, 1
      %v544 = vsel %vm488, %v539, %v543
      %v545 = vshrl.u32 %v477, 16
      %v547 = vor.u32 %v545, %v511
      %v549 = vshll.u32 %v481, 16
      %v551 = vrot.slane %v549, 1
      %v552 = vsel %vm488, %v547, %v551
      %v553 = vshrl.u32 %v478, 16
      %v555 = vor.u32 %v553, %v523
      %v557 = vshll.u32 %v482, 16
      %v559 = vrot.slane %v557, 1
      %v560 = vsel %vm488, %v555, %v559
      %v561 = vshrl.u32 %v479, 16
      %v563 = vor.u32 %v561, %v535
      %v565 = vshll.u32 %v483, 16
      %v567 = vrot.slane %v565, 1
      %v568 = vsel %vm488, %v563, %v567
      %v569 = vshrl.u32 %v480, 16
      %v571 = vor.u32 %v569, %v543
      %v573 = vshll.u32 %v484, 16
      %v575 = vrot.slane %v573, 1
      %v576 = vsel %vm488, %v571, %v575
      %v577 = vshrl.u32 %v481, 16
      %v579 = vor.u32 %v577, %v551
      %v581 = vshll.u32 %v485, 16
      %v583 = vrot.slane %v581, 1
      %v584 = vsel %vm488, %v579, %v583
      %v585 = vshrl.u32 %v482, 16
      %v587 = vor.u32 %v585, %v559
      %v589 = vshll.u32 %v486, 16
      %v591 = vrot.slane %v589, 1
      %v592 = vsel %vm488, %v587, %v591
      %v593 = vshrl.u32 %v483, 16
      %v595 = vor.u32 %v593, %v567
      %v597 = vshll.u32 %v487, 16
      %v599 = vrot.slane %v597, 1
      %v600 = vsel %vm488, %v595, %v599
      %v601 = vshrl.u32 %v484, 16
      %v603 = vor.u32 %v601, %v575
      %v604 = vshrl.u32 %v485, 16
      %v606 = vor.u32 %v604, %v583
      %v607 = vshrl.u32 %v486, 16
      %v609 = vor.u32 %v607, %v591
      %v610 = vshrl.u32 %v487, 16
      %v612 = vor.u32 %v610, %v599
      %v693 = vunpack.c.l.b16 %v360
      %v694 = vunpack.c.h.b16 %v360
      %v695 = vunpack.c.l.b16 %v361
      %v696 = vunpack.c.h.b16 %v361
      %v697 = vunpack.c.l.b16 %v362
      %v698 = vunpack.c.h.b16 %v362
      %v699 = vunpack.c.l.b16 %v363
      %v700 = vunpack.c.h.b16 %v363
      %v701 = vunpack.c.l.b16 %v364
      %v702 = vunpack.c.h.b16 %v364
      %v703 = vunpack.c.l.b16 %v365
      %v704 = vunpack.c.h.b16 %v365
      %v705 = vunpack.c.l.b16 %v366
      %v706 = vunpack.c.h.b16 %v366
      %v707 = vunpack.c.l.b16 %v367
      %v708 = vunpack.c.h.b16 %v367
      %v709 = vunpack.c.l.b16 %v368
      %v710 = vunpack.c.h.b16 %v368
      %v711 = vunpack.c.l.b16 %v369
      %v712 = vunpack.c.h.b16 %v369
      %v713 = vunpack.c.l.b16 %v370
      %v714 = vunpack.c.h.b16 %v370
      %v715 = vunpack.c.l.b16 %v371
      %v716 = vunpack.c.h.b16 %v371
      %v717 = vunpack.c.l.b16 %v372
      %v718 = vunpack.c.h.b16 %v372
      %v719 = vunpack.c.l.b16 %v373
      %v720 = vunpack.c.h.b16 %v373
      %v721 = vunpack.c.l.b16 %v374
      %v722 = vunpack.c.h.b16 %v374
      %v723 = vunpack.c.l.b16 %v375
      %v724 = vunpack.c.h.b16 %v375
      %v725 = vunpack.c.l.b16 %v376
      %v726 = vunpack.c.h.b16 %v376
      %v727 = vunpack.c.l.b16 %v377
      %v728 = vunpack.c.h.b16 %v377
      %v729 = vunpack.c.l.b16 %v378
      %v730 = vunpack.c.h.b16 %v378
      %v731 = vunpack.c.l.b16 %v379
      %v732 = vunpack.c.h.b16 %v379
      %v733 = vunpack.c.l.b16 %v380
      %v734 = vunpack.c.h.b16 %v380
      %v735 = vunpack.c.l.b16 %v381
      %v736 = vunpack.c.h.b16 %v381
      %v737 = vunpack.c.l.b16 %v382
      %v738 = vunpack.c.h.b16 %v382
      %v739 = vunpack.c.l.b16 %v383
      %v740 = vunpack.c.h.b16 %v383
      %v741 = vunpack.c.l.b16 %v384
      %v742 = vunpack.c.h.b16 %v384
      %v743 = vunpack.c.l.b16 %v385
      %v744 = vunpack.c.h.b16 %v385
      %v745 = vunpack.c.l.b16 %v386
      %v746 = vunpack.c.h.b16 %v386
      %v747 = vunpack.c.l.b16 %v387
      %v748 = vunpack.c.h.b16 %v387
      %v749 = vunpack.c.l.b16 %v388
      %v750 = vunpack.c.h.b16 %v388
      %v751 = vunpack.c.l.b16 %v389
      %v752 = vunpack.c.h.b16 %v389
      %v753 = vunpack.c.l.b16 %v390
      %v754 = vunpack.c.h.b16 %v390
      %v755 = vunpack.c.l.b16 %v391
      %v756 = vunpack.c.h.b16 %v391
      %v757 = vunpack.c.l.b16 %v392
      %v758 = vunpack.c.h.b16 %v392
      %v759 = vunpack.c.l.b16 %v393
      %v760 = vunpack.c.h.b16 %v393
      %v761 = vunpack.c.l.b16 %v394
      %v762 = vunpack.c.h.b16 %v394
      %v763 = vunpack.c.l.b16 %v395
      %v764 = vunpack.c.h.b16 %v395
      %v765 = vunpack.c.l.b16 %v396
      %v766 = vunpack.c.h.b16 %v396
      %v767 = vunpack.c.l.b16 %v397
      %v768 = vunpack.c.h.b16 %v397
      %v769 = vunpack.c.l.b16 %v398
      %v770 = vunpack.c.h.b16 %v398
      %v771 = vunpack.c.l.b16 %v399
      %v772 = vunpack.c.h.b16 %v399
      %v773 = vunpack.c.l.b16 %v400
      %v774 = vunpack.c.h.b16 %v400
      %v775 = vunpack.c.l.b16 %v401
      %v776 = vunpack.c.h.b16 %v401
      %v777 = vunpack.c.l.b16 %v402
      %v778 = vunpack.c.h.b16 %v402
      %v779 = vunpack.c.l.b16 %v403
      %v780 = vunpack.c.h.b16 %v403
      %v781 = vunpack.c.l.b16 %v404
      %v782 = vunpack.c.h.b16 %v404
      %v783 = vunpack.c.l.b16 %v405
      %v784 = vunpack.c.h.b16 %v405
      %v785 = vunpack.c.l.b16 %v406
      %v786 = vunpack.c.h.b16 %v406
      %v787 = vunpack.c.l.b16 %v407
      %v788 = vunpack.c.h.b16 %v407
      %v789 = vunpack.c.l.b16 %v408
      %v790 = vunpack.c.h.b16 %v408
      %v791 = vunpack.c.l.b16 %v409
      %v792 = vunpack.c.h.b16 %v409
      %v793 = vunpack.c.l.b16 %v410
      %v794 = vunpack.c.h.b16 %v410
      %v795 = vunpack.c.l.b16 %v411
      %v796 = vunpack.c.h.b16 %v411
      %v797 = vunpack.c.l.b16 %v412
      %v798 = vunpack.c.h.b16 %v412
      %v799 = vunpack.c.l.b16 %v413
      %v800 = vunpack.c.h.b16 %v413
      %v801 = vunpack.c.l.b16 %v414
      %v802 = vunpack.c.h.b16 %v414
      %v803 = vunpack.c.l.b16 %v415
      %v804 = vunpack.c.h.b16 %v415
      %v805 = vunpack.c.l.b16 %v416
      %v806 = vunpack.c.h.b16 %v416
      %v807 = vunpack.c.l.b16 %v417
      %v808 = vunpack.c.h.b16 %v417
      %v809 = vunpack.c.l.b16 %v418
      %v810 = vunpack.c.h.b16 %v418
      %v811 = vunpack.c.l.b16 %v419
      %v812 = vunpack.c.h.b16 %v419
      %v813 = vunpack.c.l.b16 %v420
      %v814 = vunpack.c.h.b16 %v420
      %v815 = vunpack.c.l.b16 %v421
      %v816 = vunpack.c.h.b16 %v421
      %v817 = vunpack.c.l.b16 %v422
      %v818 = vunpack.c.h.b16 %v422
      %v819 = vunpack.c.l.b16 %v423
      %v820 = vunpack.c.h.b16 %v423
      %v821 = vpack.c.b16 %v695, %v693
      %v822 = vpack.c.b16 %v696, %v694
      %v823 = vpack.c.b16 %v699, %v697
      %v824 = vpack.c.b16 %v700, %v698
      %v825 = vpack.c.b16 %v703, %v701
      %v826 = vpack.c.b16 %v704, %v702
      %v827 = vpack.c.b16 %v707, %v705
      %v828 = vpack.c.b16 %v708, %v706
      %v829 = vpack.c.b16 %v711, %v709
      %v830 = vpack.c.b16 %v712, %v710
      %v831 = vpack.c.b16 %v715, %v713
      %v832 = vpack.c.b16 %v716, %v714
      %v833 = vpack.c.b16 %v719, %v717
      %v834 = vpack.c.b16 %v720, %v718
      %v835 = vpack.c.b16 %v723, %v721
      %v836 = vpack.c.b16 %v724, %v722
      %v837 = vpack.c.b16 %v727, %v725
      %v838 = vpack.c.b16 %v728, %v726
      %v839 = vpack.c.b16 %v731, %v729
      %v840 = vpack.c.b16 %v732, %v730
      %v841 = vpack.c.b16 %v735, %v733
      %v842 = vpack.c.b16 %v736, %v734
      %v843 = vpack.c.b16 %v739, %v737
      %v844 = vpack.c.b16 %v740, %v738
      %v845 = vpack.c.b16 %v743, %v741
      %v846 = vpack.c.b16 %v744, %v742
      %v847 = vpack.c.b16 %v747, %v745
      %v848 = vpack.c.b16 %v748, %v746
      %v849 = vpack.c.b16 %v751, %v749
      %v850 = vpack.c.b16 %v752, %v750
      %v851 = vpack.c.b16 %v755, %v753
      %v852 = vpack.c.b16 %v756, %v754
      %v853 = vpack.c.b16 %v759, %v757
      %v854 = vpack.c.b16 %v760, %v758
      %v855 = vpack.c.b16 %v763, %v761
      %v856 = vpack.c.b16 %v764, %v762
      %v857 = vpack.c.b16 %v767, %v765
      %v858 = vpack.c.b16 %v768, %v766
      %v859 = vpack.c.b16 %v771, %v769
      %v860 = vpack.c.b16 %v772, %v770
      %v861 = vpack.c.b16 %v775, %v773
      %v862 = vpack.c.b16 %v776, %v774
      %v863 = vpack.c.b16 %v779, %v777
      %v864 = vpack.c.b16 %v780, %v778
      %v865 = vpack.c.b16 %v783, %v781
      %v866 = vpack.c.b16 %v784, %v782
      %v867 = vpack.c.b16 %v787, %v785
      %v868 = vpack.c.b16 %v788, %v786
      %v869 = vpack.c.b16 %v791, %v789
      %v870 = vpack.c.b16 %v792, %v790
      %v871 = vpack.c.b16 %v795, %v793
      %v872 = vpack.c.b16 %v796, %v794
      %v873 = vpack.c.b16 %v799, %v797
      %v874 = vpack.c.b16 %v800, %v798
      %v875 = vpack.c.b16 %v803, %v801
      %v876 = vpack.c.b16 %v804, %v802
      %v877 = vpack.c.b16 %v807, %v805
      %v878 = vpack.c.b16 %v808, %v806
      %v879 = vpack.c.b16 %v811, %v809
      %v880 = vpack.c.b16 %v812, %v810
      %v881 = vpack.c.b16 %v815, %v813
      %v882 = vpack.c.b16 %v816, %v814
      %v883 = vpack.c.b16 %v819, %v817
      %v884 = vpack.c.b16 %v820, %v818
      %949 = vmatpush.bf16.msra.mxu0 %v835
      %950 = vmatpush.bf16.msra.mxu0 %v833
      %951 = vmatpush.bf16.msra.mxu0 %v831
      %952 = vmatpush.bf16.msra.mxu0 %v829
      %953 = vmatpush.bf16.msra.mxu0 %v827
      %954 = vmatpush.bf16.msra.mxu0 %v825
      %955 = vmatpush.bf16.msra.mxu0 %v823
      %956 = vmatpush.bf16.msra.mxu0 %v821
      %957 = vmatmul.bf16.gmra.mxu0 %v500
      %v958 = vpop.f32.mrf.mxu0
      %v959 = vadd.f32 0.0, %v958
      %v960 = vpop.f32.mrf.mxu0
      %v961 = vadd.f32 0.0, %v960
      %962 = vmatmul.bf16.gmra.mxu0 %v544
      %v963 = vpop.f32.mrf.mxu0
      %v964 = vadd.f32 0.0, %v963
      %v965 = vpop.f32.mrf.mxu0
      %v966 = vadd.f32 0.0, %v965
      %967 = vmatmul.bf16.gmra.mxu0 %v576
      %v968 = vpop.f32.mrf.mxu0
      %v969 = vadd.f32 0.0, %v968
      %v970 = vpop.f32.mrf.mxu0
      %v971 = vadd.f32 0.0, %v970
      %972 = vmatmul.bf16.gmra.mxu0 %v603
      %v973 = vpop.f32.mrf.mxu0
      %v974 = vadd.f32 0.0, %v973
      %v975 = vpop.f32.mrf.mxu0
      %v976 = vadd.f32 0.0, %v975
      %977 = vdwg.mxu0
      %978 = vmatpush.bf16.msra.mxu0 %v851
      %979 = vmatpush.bf16.msra.mxu0 %v849
      %980 = vmatpush.bf16.msra.mxu0 %v847
      %981 = vmatpush.bf16.msra.mxu0 %v845
      %982 = vmatpush.bf16.msra.mxu0 %v843
      %983 = vmatpush.bf16.msra.mxu0 %v841
      %984 = vmatpush.bf16.msra.mxu0 %v839
      %985 = vmatpush.bf16.msra.mxu0 %v837
      %986 = vmatmul.bf16.gmra.mxu0 %v512
      %v987 = vpop.f32.mrf.mxu0
      %v988 = vadd.f32 %v959, %v987
      %v989 = vpop.f32.mrf.mxu0
      %v990 = vadd.f32 %v961, %v989
      %991 = vmatmul.bf16.gmra.mxu0 %v552
      %v992 = vpop.f32.mrf.mxu0
      %v993 = vadd.f32 %v964, %v992
      %v994 = vpop.f32.mrf.mxu0
      %v995 = vadd.f32 %v966, %v994
      %996 = vmatmul.bf16.gmra.mxu0 %v584
      %v997 = vpop.f32.mrf.mxu0
      %v998 = vadd.f32 %v969, %v997
      %v999 = vpop.f32.mrf.mxu0
      %v1000 = vadd.f32 %v971, %v999
      %1001 = vmatmul.bf16.gmra.mxu0 %v606
      %v1002 = vpop.f32.mrf.mxu0
      %v1003 = vadd.f32 %v974, %v1002
      %v1004 = vpop.f32.mrf.mxu0
      %v1005 = vadd.f32 %v976, %v1004
      %1006 = vdwg.mxu0
      %1007 = vmatpush.bf16.msra.mxu0 %v867
      %1008 = vmatpush.bf16.msra.mxu0 %v865
      %1009 = vmatpush.bf16.msra.mxu0 %v863
      %1010 = vmatpush.bf16.msra.mxu0 %v861
      %1011 = vmatpush.bf16.msra.mxu0 %v859
      %1012 = vmatpush.bf16.msra.mxu0 %v857
      %1013 = vmatpush.bf16.msra.mxu0 %v855
      %1014 = vmatpush.bf16.msra.mxu0 %v853
      %1015 = vmatmul.bf16.gmra.mxu0 %v524
      %v1016 = vpop.f32.mrf.mxu0
      %v1017 = vadd.f32 %v988, %v1016
      %v1018 = vpop.f32.mrf.mxu0
      %v1019 = vadd.f32 %v990, %v1018
      %1020 = vmatmul.bf16.gmra.mxu0 %v560
      %v1021 = vpop.f32.mrf.mxu0
      %v1022 = vadd.f32 %v993, %v1021
      %v1023 = vpop.f32.mrf.mxu0
      %v1024 = vadd.f32 %v995, %v1023
      %1025 = vmatmul.bf16.gmra.mxu0 %v592
      %v1026 = vpop.f32.mrf.mxu0
      %v1027 = vadd.f32 %v998, %v1026
      %v1028 = vpop.f32.mrf.mxu0
      %v1029 = vadd.f32 %v1000, %v1028
      %1030 = vmatmul.bf16.gmra.mxu0 %v609
      %v1031 = vpop.f32.mrf.mxu0
      %v1032 = vadd.f32 %v1003, %v1031
      %v1033 = vpop.f32.mrf.mxu0
      %v1034 = vadd.f32 %v1005, %v1033
      %1035 = vdwg.mxu0
      %1036 = vmatpush.bf16.msra.mxu0 %v883
      %1037 = vmatpush.bf16.msra.mxu0 %v881
      %1038 = vmatpush.bf16.msra.mxu0 %v879
      %1039 = vmatpush.bf16.msra.mxu0 %v877
      %1040 = vmatpush.bf16.msra.mxu0 %v875
      %1041 = vmatpush.bf16.msra.mxu0 %v873
      %1042 = vmatpush.bf16.msra.mxu0 %v871
      %1043 = vmatpush.bf16.msra.mxu0 %v869
      %1044 = vmatmul.bf16.gmra.mxu0 %v536
      %v1045 = vpop.f32.mrf.mxu0
      %v1046 = vadd.f32 %v1017, %v1045
      %v1047 = vpop.f32.mrf.mxu0
      %v1048 = vadd.f32 %v1019, %v1047
      %1049 = vmatmul.bf16.gmra.mxu0 %v568
      %v1050 = vpop.f32.mrf.mxu0
      %v1051 = vadd.f32 %v1022, %v1050
      %v1052 = vpop.f32.mrf.mxu0
      %v1053 = vadd.f32 %v1024, %v1052
      %1054 = vmatmul.bf16.gmra.mxu0 %v600
      %v1055 = vpop.f32.mrf.mxu0
      %v1056 = vadd.f32 %v1027, %v1055
      %v1057 = vpop.f32.mrf.mxu0
      %v1058 = vadd.f32 %v1029, %v1057
      %1059 = vmatmul.bf16.gmra.mxu0 %v612
      %v1060 = vpop.f32.mrf.mxu0
      %v1061 = vadd.f32 %v1032, %v1060
      %v1062 = vpop.f32.mrf.mxu0
      %v1063 = vadd.f32 %v1034, %v1062
      %1064 = vdwg.mxu0
      %1065 = vmatpush.bf16.msra.mxu0 %v836
      %1066 = vmatpush.bf16.msra.mxu0 %v834
      %1067 = vmatpush.bf16.msra.mxu0 %v832
      %1068 = vmatpush.bf16.msra.mxu0 %v830
      %1069 = vmatpush.bf16.msra.mxu0 %v828
      %1070 = vmatpush.bf16.msra.mxu0 %v826
      %1071 = vmatpush.bf16.msra.mxu0 %v824
      %1072 = vmatpush.bf16.msra.mxu0 %v822
      %1073 = vmatmul.bf16.gmra.mxu0 %v500
      %v1074 = vpop.f32.mrf.mxu0
      %v1075 = vadd.f32 0.0, %v1074
      %v1076 = vpop.f32.mrf.mxu0
      %v1077 = vadd.f32 0.0, %v1076
      %1078 = vmatmul.bf16.gmra.mxu0 %v544
      %v1079 = vpop.f32.mrf.mxu0
      %v1080 = vadd.f32 0.0, %v1079
      %v1081 = vpop.f32.mrf.mxu0
      %v1082 = vadd.f32 0.0, %v1081
      %1083 = vmatmul.bf16.gmra.mxu0 %v576
      %v1084 = vpop.f32.mrf.mxu0
      %v1085 = vadd.f32 0.0, %v1084
      %v1086 = vpop.f32.mrf.mxu0
      %v1087 = vadd.f32 0.0, %v1086
      %1088 = vmatmul.bf16.gmra.mxu0 %v603
      %v1089 = vpop.f32.mrf.mxu0
      %v1090 = vadd.f32 0.0, %v1089
      %v1091 = vpop.f32.mrf.mxu0
      %v1092 = vadd.f32 0.0, %v1091
      %1093 = vdwg.mxu0
      %1094 = vmatpush.bf16.msra.mxu0 %v852
      %1095 = vmatpush.bf16.msra.mxu0 %v850
      %1096 = vmatpush.bf16.msra.mxu0 %v848
      %1097 = vmatpush.bf16.msra.mxu0 %v846
      %1098 = vmatpush.bf16.msra.mxu0 %v844
      %1099 = vmatpush.bf16.msra.mxu0 %v842
      %1100 = vmatpush.bf16.msra.mxu0 %v840
      %1101 = vmatpush.bf16.msra.mxu0 %v838
      %1102 = vmatmul.bf16.gmra.mxu0 %v512
      %v1103 = vpop.f32.mrf.mxu0
      %v1104 = vadd.f32 %v1075, %v1103
      %v1105 = vpop.f32.mrf.mxu0
      %v1106 = vadd.f32 %v1077, %v1105
      %1107 = vmatmul.bf16.gmra.mxu0 %v552
      %v1108 = vpop.f32.mrf.mxu0
      %v1109 = vadd.f32 %v1080, %v1108
      %v1110 = vpop.f32.mrf.mxu0
      %v1111 = vadd.f32 %v1082, %v1110
      %1112 = vmatmul.bf16.gmra.mxu0 %v584
      %v1113 = vpop.f32.mrf.mxu0
      %v1114 = vadd.f32 %v1085, %v1113
      %v1115 = vpop.f32.mrf.mxu0
      %v1116 = vadd.f32 %v1087, %v1115
      %1117 = vmatmul.bf16.gmra.mxu0 %v606
      %v1118 = vpop.f32.mrf.mxu0
      %v1119 = vadd.f32 %v1090, %v1118
      %v1120 = vpop.f32.mrf.mxu0
      %v1121 = vadd.f32 %v1092, %v1120
      %1122 = vdwg.mxu0
      %1123 = vmatpush.bf16.msra.mxu0 %v868
      %1124 = vmatpush.bf16.msra.mxu0 %v866
      %1125 = vmatpush.bf16.msra.mxu0 %v864
      %1126 = vmatpush.bf16.msra.mxu0 %v862
      %1127 = vmatpush.bf16.msra.mxu0 %v860
      %1128 = vmatpush.bf16.msra.mxu0 %v858
      %1129 = vmatpush.bf16.msra.mxu0 %v856
      %1130 = vmatpush.bf16.msra.mxu0 %v854
      %1131 = vmatmul.bf16.gmra.mxu0 %v524
      %v1132 = vpop.f32.mrf.mxu0
      %v1133 = vadd.f32 %v1104, %v1132
      %v1134 = vpop.f32.mrf.mxu0
      %v1135 = vadd.f32 %v1106, %v1134
      %1136 = vmatmul.bf16.gmra.mxu0 %v560
      %v1137 = vpop.f32.mrf.mxu0
      %v1138 = vadd.f32 %v1109, %v1137
      %v1139 = vpop.f32.mrf.mxu0
      %v1140 = vadd.f32 %v1111, %v1139
      %1141 = vmatmul.bf16.gmra.mxu0 %v592
      %v1142 = vpop.f32.mrf.mxu0
      %v1143 = vadd.f32 %v1114, %v1142
      %v1144 = vpop.f32.mrf.mxu0
      %v1145 = vadd.f32 %v1116, %v1144
      %1146 = vmatmul.bf16.gmra.mxu0 %v609
      %v1147 = vpop.f32.mrf.mxu0
      %v1148 = vadd.f32 %v1119, %v1147
      %v1149 = vpop.f32.mrf.mxu0
      %v1150 = vadd.f32 %v1121, %v1149
      %1151 = vdwg.mxu0
      %1152 = vmatpush.bf16.msra.mxu0 %v884
      %1153 = vmatpush.bf16.msra.mxu0 %v882
      %1154 = vmatpush.bf16.msra.mxu0 %v880
      %1155 = vmatpush.bf16.msra.mxu0 %v878
      %1156 = vmatpush.bf16.msra.mxu0 %v876
      %1157 = vmatpush.bf16.msra.mxu0 %v874
      %1158 = vmatpush.bf16.msra.mxu0 %v872
      %1159 = vmatpush.bf16.msra.mxu0 %v870
      %1160 = vmatmul.bf16.gmra.mxu0 %v536
      %v1161 = vpop.f32.mrf.mxu0
      %v1162 = vadd.f32 %v1133, %v1161
      %v1163 = vpop.f32.mrf.mxu0
      %v1164 = vadd.f32 %v1135, %v1163
      %1165 = vmatmul.bf16.gmra.mxu0 %v568
      %v1166 = vpop.f32.mrf.mxu0
      %v1167 = vadd.f32 %v1138, %v1166
      %v1168 = vpop.f32.mrf.mxu0
      %v1169 = vadd.f32 %v1140, %v1168
      %1170 = vmatmul.bf16.gmra.mxu0 %v600
      %v1171 = vpop.f32.mrf.mxu0
      %v1172 = vadd.f32 %v1143, %v1171
      %v1173 = vpop.f32.mrf.mxu0
      %v1174 = vadd.f32 %v1145, %v1173
      %1175 = vmatmul.bf16.gmra.mxu0 %v612
      %v1176 = vpop.f32.mrf.mxu0
      %v1177 = vadd.f32 %v1148, %v1176
      %v1178 = vpop.f32.mrf.mxu0
      %v1179 = vadd.f32 %v1150, %v1178
      %1180 = vdwg.mxu0
      %v1261 = vunpack.c.l.b16 %v295
      %v1262 = vunpack.c.h.b16 %v295
      %v1263 = vunpack.c.l.b16 %v296
      %v1264 = vunpack.c.h.b16 %v296
      %v1265 = vunpack.c.l.b16 %v297
      %v1266 = vunpack.c.h.b16 %v297
      %v1267 = vunpack.c.l.b16 %v298
      %v1268 = vunpack.c.h.b16 %v298
      %v1269 = vunpack.c.l.b16 %v299
      %v1270 = vunpack.c.h.b16 %v299
      %v1271 = vunpack.c.l.b16 %v300
      %v1272 = vunpack.c.h.b16 %v300
      %v1273 = vunpack.c.l.b16 %v301
      %v1274 = vunpack.c.h.b16 %v301
      %v1275 = vunpack.c.l.b16 %v302
      %v1276 = vunpack.c.h.b16 %v302
      %v1277 = vunpack.c.l.b16 %v303
      %v1278 = vunpack.c.h.b16 %v303
      %v1279 = vunpack.c.l.b16 %v304
      %v1280 = vunpack.c.h.b16 %v304
      %v1281 = vunpack.c.l.b16 %v305
      %v1282 = vunpack.c.h.b16 %v305
      %v1283 = vunpack.c.l.b16 %v306
      %v1284 = vunpack.c.h.b16 %v306
      %v1285 = vunpack.c.l.b16 %v307
      %v1286 = vunpack.c.h.b16 %v307
      %v1287 = vunpack.c.l.b16 %v308
      %v1288 = vunpack.c.h.b16 %v308
      %v1289 = vunpack.c.l.b16 %v309
      %v1290 = vunpack.c.h.b16 %v309
      %v1291 = vunpack.c.l.b16 %v310
      %v1292 = vunpack.c.h.b16 %v310
      %v1293 = vunpack.c.l.b16 %v311
      %v1294 = vunpack.c.h.b16 %v311
      %v1295 = vunpack.c.l.b16 %v312
      %v1296 = vunpack.c.h.b16 %v312
      %v1297 = vunpack.c.l.b16 %v313
      %v1298 = vunpack.c.h.b16 %v313
      %v1299 = vunpack.c.l.b16 %v314
      %v1300 = vunpack.c.h.b16 %v314
      %v1301 = vunpack.c.l.b16 %v315
      %v1302 = vunpack.c.h.b16 %v315
      %v1303 = vunpack.c.l.b16 %v316
      %v1304 = vunpack.c.h.b16 %v316
      %v1305 = vunpack.c.l.b16 %v317
      %v1306 = vunpack.c.h.b16 %v317
      %v1307 = vunpack.c.l.b16 %v318
      %v1308 = vunpack.c.h.b16 %v318
      %v1309 = vunpack.c.l.b16 %v319
      %v1310 = vunpack.c.h.b16 %v319
      %v1311 = vunpack.c.l.b16 %v320
      %v1312 = vunpack.c.h.b16 %v320
      %v1313 = vunpack.c.l.b16 %v321
      %v1314 = vunpack.c.h.b16 %v321
      %v1315 = vunpack.c.l.b16 %v322
      %v1316 = vunpack.c.h.b16 %v322
      %v1317 = vunpack.c.l.b16 %v323
      %v1318 = vunpack.c.h.b16 %v323
      %v1319 = vunpack.c.l.b16 %v324
      %v1320 = vunpack.c.h.b16 %v324
      %v1321 = vunpack.c.l.b16 %v325
      %v1322 = vunpack.c.h.b16 %v325
      %v1323 = vunpack.c.l.b16 %v326
      %v1324 = vunpack.c.h.b16 %v326
      %v1325 = vunpack.c.l.b16 %v327
      %v1326 = vunpack.c.h.b16 %v327
      %v1327 = vunpack.c.l.b16 %v328
      %v1328 = vunpack.c.h.b16 %v328
      %v1329 = vunpack.c.l.b16 %v329
      %v1330 = vunpack.c.h.b16 %v329
      %v1331 = vunpack.c.l.b16 %v330
      %v1332 = vunpack.c.h.b16 %v330
      %v1333 = vunpack.c.l.b16 %v331
      %v1334 = vunpack.c.h.b16 %v331
      %v1335 = vunpack.c.l.b16 %v332
      %v1336 = vunpack.c.h.b16 %v332
      %v1337 = vunpack.c.l.b16 %v333
      %v1338 = vunpack.c.h.b16 %v333
      %v1339 = vunpack.c.l.b16 %v334
      %v1340 = vunpack.c.h.b16 %v334
      %v1341 = vunpack.c.l.b16 %v335
      %v1342 = vunpack.c.h.b16 %v335
      %v1343 = vunpack.c.l.b16 %v336
      %v1344 = vunpack.c.h.b16 %v336
      %v1345 = vunpack.c.l.b16 %v337
      %v1346 = vunpack.c.h.b16 %v337
      %v1347 = vunpack.c.l.b16 %v338
      %v1348 = vunpack.c.h.b16 %v338
      %v1349 = vunpack.c.l.b16 %v339
      %v1350 = vunpack.c.h.b16 %v339
      %v1351 = vunpack.c.l.b16 %v340
      %v1352 = vunpack.c.h.b16 %v340
      %v1353 = vunpack.c.l.b16 %v341
      %v1354 = vunpack.c.h.b16 %v341
      %v1355 = vunpack.c.l.b16 %v342
      %v1356 = vunpack.c.h.b16 %v342
      %v1357 = vunpack.c.l.b16 %v343
      %v1358 = vunpack.c.h.b16 %v343
      %v1359 = vunpack.c.l.b16 %v344
      %v1360 = vunpack.c.h.b16 %v344
      %v1361 = vunpack.c.l.b16 %v345
      %v1362 = vunpack.c.h.b16 %v345
      %v1363 = vunpack.c.l.b16 %v346
      %v1364 = vunpack.c.h.b16 %v346
      %v1365 = vunpack.c.l.b16 %v347
      %v1366 = vunpack.c.h.b16 %v347
      %v1367 = vunpack.c.l.b16 %v348
      %v1368 = vunpack.c.h.b16 %v348
      %v1369 = vunpack.c.l.b16 %v349
      %v1370 = vunpack.c.h.b16 %v349
      %v1371 = vunpack.c.l.b16 %v350
      %v1372 = vunpack.c.h.b16 %v350
      %v1373 = vunpack.c.l.b16 %v351
      %v1374 = vunpack.c.h.b16 %v351
      %v1375 = vunpack.c.l.b16 %v352
      %v1376 = vunpack.c.h.b16 %v352
      %v1377 = vunpack.c.l.b16 %v353
      %v1378 = vunpack.c.h.b16 %v353
      %v1379 = vunpack.c.l.b16 %v354
      %v1380 = vunpack.c.h.b16 %v354
      %v1381 = vunpack.c.l.b16 %v355
      %v1382 = vunpack.c.h.b16 %v355
      %v1383 = vunpack.c.l.b16 %v356
      %v1384 = vunpack.c.h.b16 %v356
      %v1385 = vunpack.c.l.b16 %v357
      %v1386 = vunpack.c.h.b16 %v357
      %v1387 = vunpack.c.l.b16 %v358
      %v1388 = vunpack.c.h.b16 %v358
      %v1389 = vpack.c.b16 %v1263, %v1261
      %v1390 = vpack.c.b16 %v1264, %v1262
      %v1391 = vpack.c.b16 %v1267, %v1265
      %v1392 = vpack.c.b16 %v1268, %v1266
      %v1393 = vpack.c.b16 %v1271, %v1269
      %v1394 = vpack.c.b16 %v1272, %v1270
      %v1395 = vpack.c.b16 %v1275, %v1273
      %v1396 = vpack.c.b16 %v1276, %v1274
      %v1397 = vpack.c.b16 %v1279, %v1277
      %v1398 = vpack.c.b16 %v1280, %v1278
      %v1399 = vpack.c.b16 %v1283, %v1281
      %v1400 = vpack.c.b16 %v1284, %v1282
      %v1401 = vpack.c.b16 %v1287, %v1285
      %v1402 = vpack.c.b16 %v1288, %v1286
      %v1403 = vpack.c.b16 %v1291, %v1289
      %v1404 = vpack.c.b16 %v1292, %v1290
      %v1405 = vpack.c.b16 %v1295, %v1293
      %v1406 = vpack.c.b16 %v1296, %v1294
      %v1407 = vpack.c.b16 %v1299, %v1297
      %v1408 = vpack.c.b16 %v1300, %v1298
      %v1409 = vpack.c.b16 %v1303, %v1301
      %v1410 = vpack.c.b16 %v1304, %v1302
      %v1411 = vpack.c.b16 %v1307, %v1305
      %v1412 = vpack.c.b16 %v1308, %v1306
      %v1413 = vpack.c.b16 %v1311, %v1309
      %v1414 = vpack.c.b16 %v1312, %v1310
      %v1415 = vpack.c.b16 %v1315, %v1313
      %v1416 = vpack.c.b16 %v1316, %v1314
      %v1417 = vpack.c.b16 %v1319, %v1317
      %v1418 = vpack.c.b16 %v1320, %v1318
      %v1419 = vpack.c.b16 %v1323, %v1321
      %v1420 = vpack.c.b16 %v1324, %v1322
      %v1421 = vpack.c.b16 %v1327, %v1325
      %v1422 = vpack.c.b16 %v1328, %v1326
      %v1423 = vpack.c.b16 %v1331, %v1329
      %v1424 = vpack.c.b16 %v1332, %v1330
      %v1425 = vpack.c.b16 %v1335, %v1333
      %v1426 = vpack.c.b16 %v1336, %v1334
      %v1427 = vpack.c.b16 %v1339, %v1337
      %v1428 = vpack.c.b16 %v1340, %v1338
      %v1429 = vpack.c.b16 %v1343, %v1341
      %v1430 = vpack.c.b16 %v1344, %v1342
      %v1431 = vpack.c.b16 %v1347, %v1345
      %v1432 = vpack.c.b16 %v1348, %v1346
      %v1433 = vpack.c.b16 %v1351, %v1349
      %v1434 = vpack.c.b16 %v1352, %v1350
      %v1435 = vpack.c.b16 %v1355, %v1353
      %v1436 = vpack.c.b16 %v1356, %v1354
      %v1437 = vpack.c.b16 %v1359, %v1357
      %v1438 = vpack.c.b16 %v1360, %v1358
      %v1439 = vpack.c.b16 %v1363, %v1361
      %v1440 = vpack.c.b16 %v1364, %v1362
      %v1441 = vpack.c.b16 %v1367, %v1365
      %v1442 = vpack.c.b16 %v1368, %v1366
      %v1443 = vpack.c.b16 %v1371, %v1369
      %v1444 = vpack.c.b16 %v1372, %v1370
      %v1445 = vpack.c.b16 %v1375, %v1373
      %v1446 = vpack.c.b16 %v1376, %v1374
      %v1447 = vpack.c.b16 %v1379, %v1377
      %v1448 = vpack.c.b16 %v1380, %v1378
      %v1449 = vpack.c.b16 %v1383, %v1381
      %v1450 = vpack.c.b16 %v1384, %v1382
      %v1451 = vpack.c.b16 %v1387, %v1385
      %v1452 = vpack.c.b16 %v1388, %v1386
      %1517 = vmatpush.bf16.msra.mxu0 %v1403
      %1518 = vmatpush.bf16.msra.mxu0 %v1401
      %1519 = vmatpush.bf16.msra.mxu0 %v1399
      %1520 = vmatpush.bf16.msra.mxu0 %v1397
      %1521 = vmatpush.bf16.msra.mxu0 %v1395
      %1522 = vmatpush.bf16.msra.mxu0 %v1393
      %1523 = vmatpush.bf16.msra.mxu0 %v1391
      %1524 = vmatpush.bf16.msra.mxu0 %v1389
      %1525 = vmatmul.bf16.gmra.mxu0 %v472
      %v1526 = vpop.f32.mrf.mxu0
      %v1527 = vadd.f32 %v1046, %v1526
      %v1528 = vpop.f32.mrf.mxu0
      %v1529 = vadd.f32 %v1048, %v1528
      %1530 = vmatmul.bf16.gmra.mxu0 %v476
      %v1531 = vpop.f32.mrf.mxu0
      %v1532 = vadd.f32 %v1051, %v1531
      %v1533 = vpop.f32.mrf.mxu0
      %v1534 = vadd.f32 %v1053, %v1533
      %1535 = vmatmul.bf16.gmra.mxu0 %v480
      %v1536 = vpop.f32.mrf.mxu0
      %v1537 = vadd.f32 %v1056, %v1536
      %v1538 = vpop.f32.mrf.mxu0
      %v1539 = vadd.f32 %v1058, %v1538
      %1540 = vmatmul.bf16.gmra.mxu0 %v484
      %v1541 = vpop.f32.mrf.mxu0
      %v1542 = vadd.f32 %v1061, %v1541
      %v1543 = vpop.f32.mrf.mxu0
      %v1544 = vadd.f32 %v1063, %v1543
      %1545 = vdwg.mxu0
      %1546 = vmatpush.bf16.msra.mxu0 %v1419
      %1547 = vmatpush.bf16.msra.mxu0 %v1417
      %1548 = vmatpush.bf16.msra.mxu0 %v1415
      %1549 = vmatpush.bf16.msra.mxu0 %v1413
      %1550 = vmatpush.bf16.msra.mxu0 %v1411
      %1551 = vmatpush.bf16.msra.mxu0 %v1409
      %1552 = vmatpush.bf16.msra.mxu0 %v1407
      %1553 = vmatpush.bf16.msra.mxu0 %v1405
      %1554 = vmatmul.bf16.gmra.mxu0 %v473
      %v1555 = vpop.f32.mrf.mxu0
      %v1556 = vadd.f32 %v1527, %v1555
      %v1557 = vpop.f32.mrf.mxu0
      %v1558 = vadd.f32 %v1529, %v1557
      %1559 = vmatmul.bf16.gmra.mxu0 %v477
      %v1560 = vpop.f32.mrf.mxu0
      %v1561 = vadd.f32 %v1532, %v1560
      %v1562 = vpop.f32.mrf.mxu0
      %v1563 = vadd.f32 %v1534, %v1562
      %1564 = vmatmul.bf16.gmra.mxu0 %v481
      %v1565 = vpop.f32.mrf.mxu0
      %v1566 = vadd.f32 %v1537, %v1565
      %v1567 = vpop.f32.mrf.mxu0
      %v1568 = vadd.f32 %v1539, %v1567
      %1569 = vmatmul.bf16.gmra.mxu0 %v485
      %v1570 = vpop.f32.mrf.mxu0
      %v1571 = vadd.f32 %v1542, %v1570
      %v1572 = vpop.f32.mrf.mxu0
      %v1573 = vadd.f32 %v1544, %v1572
      %1574 = vdwg.mxu0
      %1575 = vmatpush.bf16.msra.mxu0 %v1435
      %1576 = vmatpush.bf16.msra.mxu0 %v1433
      %1577 = vmatpush.bf16.msra.mxu0 %v1431
      %1578 = vmatpush.bf16.msra.mxu0 %v1429
      %1579 = vmatpush.bf16.msra.mxu0 %v1427
      %1580 = vmatpush.bf16.msra.mxu0 %v1425
      %1581 = vmatpush.bf16.msra.mxu0 %v1423
      %1582 = vmatpush.bf16.msra.mxu0 %v1421
      %1583 = vmatmul.bf16.gmra.mxu0 %v474
      %v1584 = vpop.f32.mrf.mxu0
      %v1585 = vadd.f32 %v1556, %v1584
      %v1586 = vpop.f32.mrf.mxu0
      %v1587 = vadd.f32 %v1558, %v1586
      %1588 = vmatmul.bf16.gmra.mxu0 %v478
      %v1589 = vpop.f32.mrf.mxu0
      %v1590 = vadd.f32 %v1561, %v1589
      %v1591 = vpop.f32.mrf.mxu0
      %v1592 = vadd.f32 %v1563, %v1591
      %1593 = vmatmul.bf16.gmra.mxu0 %v482
      %v1594 = vpop.f32.mrf.mxu0
      %v1595 = vadd.f32 %v1566, %v1594
      %v1596 = vpop.f32.mrf.mxu0
      %v1597 = vadd.f32 %v1568, %v1596
      %1598 = vmatmul.bf16.gmra.mxu0 %v486
      %v1599 = vpop.f32.mrf.mxu0
      %v1600 = vadd.f32 %v1571, %v1599
      %v1601 = vpop.f32.mrf.mxu0
      %v1602 = vadd.f32 %v1573, %v1601
      %1603 = vdwg.mxu0
      %1604 = vmatpush.bf16.msra.mxu0 %v1451
      %1605 = vmatpush.bf16.msra.mxu0 %v1449
      %1606 = vmatpush.bf16.msra.mxu0 %v1447
      %1607 = vmatpush.bf16.msra.mxu0 %v1445
      %1608 = vmatpush.bf16.msra.mxu0 %v1443
      %1609 = vmatpush.bf16.msra.mxu0 %v1441
      %1610 = vmatpush.bf16.msra.mxu0 %v1439
      %1611 = vmatpush.bf16.msra.mxu0 %v1437
      %1612 = vmatmul.bf16.gmra.mxu0 %v475
      %v1613 = vpop.f32.mrf.mxu0
      %v1614 = vadd.f32 %v1585, %v1613
      %v1615 = vpop.f32.mrf.mxu0
      %v1616 = vadd.f32 %v1587, %v1615
      %1617 = vmatmul.bf16.gmra.mxu0 %v479
      %v1618 = vpop.f32.mrf.mxu0
      %v1619 = vadd.f32 %v1590, %v1618
      %v1620 = vpop.f32.mrf.mxu0
      %v1621 = vadd.f32 %v1592, %v1620
      %1622 = vmatmul.bf16.gmra.mxu0 %v483
      %v1623 = vpop.f32.mrf.mxu0
      %v1624 = vadd.f32 %v1595, %v1623
      %v1625 = vpop.f32.mrf.mxu0
      %v1626 = vadd.f32 %v1597, %v1625
      %1627 = vmatmul.bf16.gmra.mxu0 %v487
      %v1628 = vpop.f32.mrf.mxu0
      %v1629 = vadd.f32 %v1600, %v1628
      %v1630 = vpop.f32.mrf.mxu0
      %v1631 = vadd.f32 %v1602, %v1630
      %1632 = vdwg.mxu0
      %1633 = vmatpush.bf16.msra.mxu0 %v1404
      %1634 = vmatpush.bf16.msra.mxu0 %v1402
      %1635 = vmatpush.bf16.msra.mxu0 %v1400
      %1636 = vmatpush.bf16.msra.mxu0 %v1398
      %1637 = vmatpush.bf16.msra.mxu0 %v1396
      %1638 = vmatpush.bf16.msra.mxu0 %v1394
      %1639 = vmatpush.bf16.msra.mxu0 %v1392
      %1640 = vmatpush.bf16.msra.mxu0 %v1390
      %1641 = vmatmul.bf16.gmra.mxu0 %v472
      %v1642 = vpop.f32.mrf.mxu0
      %v1643 = vadd.f32 %v1162, %v1642
      %v1644 = vpop.f32.mrf.mxu0
      %v1645 = vadd.f32 %v1164, %v1644
      %1646 = vmatmul.bf16.gmra.mxu0 %v476
      %v1647 = vpop.f32.mrf.mxu0
      %v1648 = vadd.f32 %v1167, %v1647
      %v1649 = vpop.f32.mrf.mxu0
      %v1650 = vadd.f32 %v1169, %v1649
      %1651 = vmatmul.bf16.gmra.mxu0 %v480
      %v1652 = vpop.f32.mrf.mxu0
      %v1653 = vadd.f32 %v1172, %v1652
      %v1654 = vpop.f32.mrf.mxu0
      %v1655 = vadd.f32 %v1174, %v1654
      %1656 = vmatmul.bf16.gmra.mxu0 %v484
      %v1657 = vpop.f32.mrf.mxu0
      %v1658 = vadd.f32 %v1177, %v1657
      %v1659 = vpop.f32.mrf.mxu0
      %v1660 = vadd.f32 %v1179, %v1659
      %1661 = vdwg.mxu0
      %1662 = vmatpush.bf16.msra.mxu0 %v1420
      %1663 = vmatpush.bf16.msra.mxu0 %v1418
      %1664 = vmatpush.bf16.msra.mxu0 %v1416
      %1665 = vmatpush.bf16.msra.mxu0 %v1414
      %1666 = vmatpush.bf16.msra.mxu0 %v1412
      %1667 = vmatpush.bf16.msra.mxu0 %v1410
      %1668 = vmatpush.bf16.msra.mxu0 %v1408
      %1669 = vmatpush.bf16.msra.mxu0 %v1406
      %1670 = vmatmul.bf16.gmra.mxu0 %v473
      %v1671 = vpop.f32.mrf.mxu0
      %v1672 = vadd.f32 %v1643, %v1671
      %v1673 = vpop.f32.mrf.mxu0
      %v1674 = vadd.f32 %v1645, %v1673
      %1675 = vmatmul.bf16.gmra.mxu0 %v477
      %v1676 = vpop.f32.mrf.mxu0
      %v1677 = vadd.f32 %v1648, %v1676
      %v1678 = vpop.f32.mrf.mxu0
      %v1679 = vadd.f32 %v1650, %v1678
      %1680 = vmatmul.bf16.gmra.mxu0 %v481
      %v1681 = vpop.f32.mrf.mxu0
      %v1682 = vadd.f32 %v1653, %v1681
      %v1683 = vpop.f32.mrf.mxu0
      %v1684 = vadd.f32 %v1655, %v1683
      %1685 = vmatmul.bf16.gmra.mxu0 %v485
      %v1686 = vpop.f32.mrf.mxu0
      %v1687 = vadd.f32 %v1658, %v1686
      %v1688 = vpop.f32.mrf.mxu0
      %v1689 = vadd.f32 %v1660, %v1688
      %1690 = vdwg.mxu0
      %1691 = vmatpush.bf16.msra.mxu0 %v1436
      %1692 = vmatpush.bf16.msra.mxu0 %v1434
      %1693 = vmatpush.bf16.msra.mxu0 %v1432
      %1694 = vmatpush.bf16.msra.mxu0 %v1430
      %1695 = vmatpush.bf16.msra.mxu0 %v1428
      %1696 = vmatpush.bf16.msra.mxu0 %v1426
      %1697 = vmatpush.bf16.msra.mxu0 %v1424
      %1698 = vmatpush.bf16.msra.mxu0 %v1422
      %1699 = vmatmul.bf16.gmra.mxu0 %v474
      %v1700 = vpop.f32.mrf.mxu0
      %v1701 = vadd.f32 %v1672, %v1700
      %v1702 = vpop.f32.mrf.mxu0
      %v1703 = vadd.f32 %v1674, %v1702
      %1704 = vmatmul.bf16.gmra.mxu0 %v478
      %v1705 = vpop.f32.mrf.mxu0
      %v1706 = vadd.f32 %v1677, %v1705
      %v1707 = vpop.f32.mrf.mxu0
      %v1708 = vadd.f32 %v1679, %v1707
      %1709 = vmatmul.bf16.gmra.mxu0 %v482
      %v1710 = vpop.f32.mrf.mxu0
      %v1711 = vadd.f32 %v1682, %v1710
      %v1712 = vpop.f32.mrf.mxu0
      %v1713 = vadd.f32 %v1684, %v1712
      %1714 = vmatmul.bf16.gmra.mxu0 %v486
      %v1715 = vpop.f32.mrf.mxu0
      %v1716 = vadd.f32 %v1687, %v1715
      %v1717 = vpop.f32.mrf.mxu0
      %v1718 = vadd.f32 %v1689, %v1717
      %1719 = vdwg.mxu0
      %1720 = vmatpush.bf16.msra.mxu0 %v1452
      %1721 = vmatpush.bf16.msra.mxu0 %v1450
      %1722 = vmatpush.bf16.msra.mxu0 %v1448
      %1723 = vmatpush.bf16.msra.mxu0 %v1446
      %1724 = vmatpush.bf16.msra.mxu0 %v1444
      %1725 = vmatpush.bf16.msra.mxu0 %v1442
      %1726 = vmatpush.bf16.msra.mxu0 %v1440
      %1727 = vmatpush.bf16.msra.mxu0 %v1438
      %1728 = vmatmul.bf16.gmra.mxu0 %v475
      %v1729 = vpop.f32.mrf.mxu0
      %v1730 = vadd.f32 %v1701, %v1729
      %v1731 = vpop.f32.mrf.mxu0
      %v1732 = vadd.f32 %v1703, %v1731
      %1733 = vmatmul.bf16.gmra.mxu0 %v479
      %v1734 = vpop.f32.mrf.mxu0
      %v1735 = vadd.f32 %v1706, %v1734
      %v1736 = vpop.f32.mrf.mxu0
      %v1737 = vadd.f32 %v1708, %v1736
      %1738 = vmatmul.bf16.gmra.mxu0 %v483
      %v1739 = vpop.f32.mrf.mxu0
      %v1740 = vadd.f32 %v1711, %v1739
      %v1741 = vpop.f32.mrf.mxu0
      %v1742 = vadd.f32 %v1713, %v1741
      %1743 = vmatmul.bf16.gmra.mxu0 %v487
      %v1744 = vpop.f32.mrf.mxu0
      %v1745 = vadd.f32 %v1716, %v1744
      %v1746 = vpop.f32.mrf.mxu0
      %v1747 = vadd.f32 %v1718, %v1746
      %1748 = vdwg.mxu0
      %v1749 = vld [vmem:[%s272] sm:$0xee]
      %v1750 = vld [vmem:[%s272 + $0x8] sm:$0xee]
      %v1751 = vld [vmem:[%s272 + $0x10] sm:$0xff]
      %v1752 = vld [vmem:[%s272 + $0x18] sm:$0xff]
      %v1753 = vld [vmem:[%s272 + $0x20] sm:$0xff]
      %v1754 = vld [vmem:[%s272 + $0x28] sm:$0xff]
      %v1755 = vld [vmem:[%s272 + $0x30] sm:$0xff]
      %v1756 = vld [vmem:[%s272 + $0x38] sm:$0xff]
      %v1757 = vld [vmem:[%s272 + $0x40] sm:$0xff]
      %v1758 = vld [vmem:[%s272 + $0x48] sm:$0xff]
      %v1759 = vld [vmem:[%s272 + $0x50] sm:$0xff]
      %v1760 = vld [vmem:[%s272 + $0x58] sm:$0xff]
      %v1761 = vld [vmem:[%s272 + $0x60] sm:$0xff]
      %v1762 = vld [vmem:[%s272 + $0x68] sm:$0xff]
      %v1763 = vld [vmem:[%s272 + $0x70] sm:$0xff]
      %v1764 = vld [vmem:[%s272 + $0x78] sm:$0xff]
      %v1765 = vld [vmem:[%s272 + $0x80] sm:$0x11]
      %v1766 = vld [vmem:[%s272 + $0x88] sm:$0x11]
      %s1767 = scalar_lea.vmem %s2, 1024
      %v1768 = vld [vmem:[%s1767] sm:$0xff]
      %v1769 = vld [vmem:[%s1767 + $0x8] sm:$0xff]
      %v1770 = vld [vmem:[%s1767 + $0x10] sm:$0xff]
      %v1771 = vld [vmem:[%s1767 + $0x18] sm:$0xff]
      %v1772 = vld [vmem:[%s1767 + $0x20] sm:$0xff]
      %v1773 = vld [vmem:[%s1767 + $0x28] sm:$0xff]
      %v1774 = vld [vmem:[%s1767 + $0x30] sm:$0xff]
      %v1775 = vld [vmem:[%s1767 + $0x38] sm:$0xff]
      %v1776 = vld [vmem:[%s1767 + $0x40] sm:$0xff]
      %v1777 = vld [vmem:[%s1767 + $0x48] sm:$0xff]
      %v1778 = vld [vmem:[%s1767 + $0x50] sm:$0xff]
      %v1779 = vld [vmem:[%s1767 + $0x58] sm:$0xff]
      %v1780 = vld [vmem:[%s1767 + $0x60] sm:$0xff]
      %v1781 = vld [vmem:[%s1767 + $0x68] sm:$0xff]
      %v1782 = vld [vmem:[%s1767 + $0x70] sm:$0xff]
      %v1783 = vld [vmem:[%s1767 + $0x78] sm:$0xff]
      %v1784 = vld [vmem:[%s1767 + $0x80] sm:$0xff]
      %v1785 = vld [vmem:[%s1767 + $0x88] sm:$0xff]
      %v1786 = vld [vmem:[%s1767 + $0x90] sm:$0xff]
      %v1787 = vld [vmem:[%s1767 + $0x98] sm:$0xff]
      %v1788 = vld [vmem:[%s1767 + $0xa0] sm:$0xff]
      %v1789 = vld [vmem:[%s1767 + $0xa8] sm:$0xff]
      %v1790 = vld [vmem:[%s1767 + $0xb0] sm:$0xff]
      %v1791 = vld [vmem:[%s1767 + $0xb8] sm:$0xff]
      %v1792 = vld [vmem:[%s1767 + $0xc0] sm:$0xff]
      %v1793 = vld [vmem:[%s1767 + $0xc8] sm:$0xff]
      %v1794 = vld [vmem:[%s1767 + $0xd0] sm:$0xff]
      %v1795 = vld [vmem:[%s1767 + $0xd8] sm:$0xff]
      %v1796 = vld [vmem:[%s1767 + $0xe0] sm:$0xff]
      %v1797 = vld [vmem:[%s1767 + $0xe8] sm:$0xff]
      %v1798 = vld [vmem:[%s1767 + $0xf0] sm:$0xff]
      %v1799 = vld [vmem:[%s1767 + $0xf8] sm:$0xff]
      %v1800 = vld [vmem:[%s1767 + $0x100] sm:$0xff]
      %v1801 = vld [vmem:[%s1767 + $0x108] sm:$0xff]
      %v1802 = vld [vmem:[%s1767 + $0x110] sm:$0xff]
      %v1803 = vld [vmem:[%s1767 + $0x118] sm:$0xff]
      %v1804 = vld [vmem:[%s1767 + $0x120] sm:$0xff]
      %v1805 = vld [vmem:[%s1767 + $0x128] sm:$0xff]
      %v1806 = vld [vmem:[%s1767 + $0x130] sm:$0xff]
      %v1807 = vld [vmem:[%s1767 + $0x138] sm:$0xff]
      %v1808 = vld [vmem:[%s1767 + $0x140] sm:$0xff]
      %v1809 = vld [vmem:[%s1767 + $0x148] sm:$0xff]
      %v1810 = vld [vmem:[%s1767 + $0x150] sm:$0xff]
      %v1811 = vld [vmem:[%s1767 + $0x158] sm:$0xff]
      %v1812 = vld [vmem:[%s1767 + $0x160] sm:$0xff]
      %v1813 = vld [vmem:[%s1767 + $0x168] sm:$0xff]
      %v1814 = vld [vmem:[%s1767 + $0x170] sm:$0xff]
      %v1815 = vld [vmem:[%s1767 + $0x178] sm:$0xff]
      %v1816 = vld [vmem:[%s1767 + $0x180] sm:$0xff]
      %v1817 = vld [vmem:[%s1767 + $0x188] sm:$0xff]
      %v1818 = vld [vmem:[%s1767 + $0x190] sm:$0xff]
      %v1819 = vld [vmem:[%s1767 + $0x198] sm:$0xff]
      %v1820 = vld [vmem:[%s1767 + $0x1a0] sm:$0xff]
      %v1821 = vld [vmem:[%s1767 + $0x1a8] sm:$0xff]
      %v1822 = vld [vmem:[%s1767 + $0x1b0] sm:$0xff]
      %v1823 = vld [vmem:[%s1767 + $0x1b8] sm:$0xff]
      %v1824 = vld [vmem:[%s1767 + $0x1c0] sm:$0xff]
      %v1825 = vld [vmem:[%s1767 + $0x1c8] sm:$0xff]
      %v1826 = vld [vmem:[%s1767 + $0x1d0] sm:$0xff]
      %v1827 = vld [vmem:[%s1767 + $0x1d8] sm:$0xff]
      %v1828 = vld [vmem:[%s1767 + $0x1e0] sm:$0xff]
      %v1829 = vld [vmem:[%s1767 + $0x1e8] sm:$0xff]
      %v1830 = vld [vmem:[%s1767 + $0x1f0] sm:$0xff]
      %v1831 = vld [vmem:[%s1767 + $0x1f8] sm:$0xff]
      %v1850 = vunpack.c.l.b16 %v1749
      %v1851 = vunpack.c.h.b16 %v1749
      %v1852 = vunpack.c.l.b16 %v1750
      %v1853 = vunpack.c.h.b16 %v1750
      %v1854 = vunpack.c.l.b16 %v1751
      %v1855 = vunpack.c.h.b16 %v1751
      %v1856 = vunpack.c.l.b16 %v1752
      %v1857 = vunpack.c.h.b16 %v1752
      %v1858 = vunpack.c.l.b16 %v1753
      %v1859 = vunpack.c.h.b16 %v1753
      %v1860 = vunpack.c.l.b16 %v1754
      %v1861 = vunpack.c.h.b16 %v1754
      %v1862 = vunpack.c.l.b16 %v1755
      %v1863 = vunpack.c.h.b16 %v1755
      %v1864 = vunpack.c.l.b16 %v1756
      %v1865 = vunpack.c.h.b16 %v1756
      %v1866 = vunpack.c.l.b16 %v1757
      %v1867 = vunpack.c.h.b16 %v1757
      %v1868 = vunpack.c.l.b16 %v1758
      %v1869 = vunpack.c.h.b16 %v1758
      %v1870 = vunpack.c.l.b16 %v1759
      %v1871 = vunpack.c.h.b16 %v1759
      %v1872 = vunpack.c.l.b16 %v1760
      %v1873 = vunpack.c.h.b16 %v1760
      %v1874 = vunpack.c.l.b16 %v1761
      %v1875 = vunpack.c.h.b16 %v1761
      %v1876 = vunpack.c.l.b16 %v1762
      %v1877 = vunpack.c.h.b16 %v1762
      %v1878 = vunpack.c.l.b16 %v1763
      %v1879 = vunpack.c.h.b16 %v1763
      %v1880 = vunpack.c.l.b16 %v1764
      %v1881 = vunpack.c.h.b16 %v1764
      %v1882 = vunpack.c.l.b16 %v1765
      %v1883 = vunpack.c.h.b16 %v1765
      %v1884 = vunpack.c.l.b16 %v1766
      %v1885 = vunpack.c.h.b16 %v1766
      %v1886 = vpack.c.b16 %v1854, %v1850
      %v1887 = vpack.c.b16 %v1855, %v1851
      %v1888 = vpack.c.b16 %v1856, %v1852
      %v1889 = vpack.c.b16 %v1857, %v1853
      %v1890 = vpack.c.b16 %v1862, %v1858
      %v1891 = vpack.c.b16 %v1863, %v1859
      %v1892 = vpack.c.b16 %v1864, %v1860
      %v1893 = vpack.c.b16 %v1865, %v1861
      %v1894 = vpack.c.b16 %v1870, %v1866
      %v1895 = vpack.c.b16 %v1871, %v1867
      %v1896 = vpack.c.b16 %v1872, %v1868
      %v1897 = vpack.c.b16 %v1873, %v1869
      %v1898 = vpack.c.b16 %v1878, %v1874
      %v1899 = vpack.c.b16 %v1879, %v1875
      %v1900 = vpack.c.b16 %v1880, %v1876
      %v1901 = vpack.c.b16 %v1881, %v1877
      %v1902 = vpack.c.b16 %v1882, %v1882
      %v1903 = vpack.c.b16 %v1883, %v1883
      %v1904 = vpack.c.b16 %v1884, %v1884
      %v1905 = vpack.c.b16 %v1885, %v1885
      %vm1906 = vcmask 1046528
      %v1907 = vrot.slane %v1886, 1
      %v1908 = vrot.slane %v1890, 1
      %v1909 = vsel %vm1906, %v1907, %v1908
      %v1910 = vrot.slane %v1887, 1
      %v1911 = vrot.slane %v1891, 1
      %v1912 = vsel %vm1906, %v1910, %v1911
      %v1913 = vrot.slane %v1888, 1
      %v1914 = vrot.slane %v1892, 1
      %v1915 = vsel %vm1906, %v1913, %v1914
      %v1916 = vrot.slane %v1889, 1
      %v1917 = vrot.slane %v1893, 1
      %v1918 = vsel %vm1906, %v1916, %v1917
      %v1919 = vrot.slane %v1894, 1
      %v1920 = vsel %vm1906, %v1908, %v1919
      %v1921 = vrot.slane %v1895, 1
      %v1922 = vsel %vm1906, %v1911, %v1921
      %v1923 = vrot.slane %v1896, 1
      %v1924 = vsel %vm1906, %v1914, %v1923
      %v1925 = vrot.slane %v1897, 1
      %v1926 = vsel %vm1906, %v1917, %v1925
      %v1927 = vrot.slane %v1898, 1
      %v1928 = vsel %vm1906, %v1919, %v1927
      %v1929 = vrot.slane %v1899, 1
      %v1930 = vsel %vm1906, %v1921, %v1929
      %v1931 = vrot.slane %v1900, 1
      %v1932 = vsel %vm1906, %v1923, %v1931
      %v1933 = vrot.slane %v1901, 1
      %v1934 = vsel %vm1906, %v1925, %v1933
      %v1935 = vrot.slane %v1902, 1
      %v1936 = vsel %vm1906, %v1927, %v1935
      %v1937 = vrot.slane %v1903, 1
      %v1938 = vsel %vm1906, %v1929, %v1937
      %v1939 = vrot.slane %v1904, 1
      %v1940 = vsel %vm1906, %v1931, %v1939
      %v1941 = vrot.slane %v1905, 1
      %v1942 = vsel %vm1906, %v1933, %v1941
      %v2023 = vunpack.c.l.b16 %v1768
      %v2024 = vunpack.c.h.b16 %v1768
      %v2025 = vunpack.c.l.b16 %v1769
      %v2026 = vunpack.c.h.b16 %v1769
      %v2027 = vunpack.c.l.b16 %v1770
      %v2028 = vunpack.c.h.b16 %v1770
      %v2029 = vunpack.c.l.b16 %v1771
      %v2030 = vunpack.c.h.b16 %v1771
      %v2031 = vunpack.c.l.b16 %v1772
      %v2032 = vunpack.c.h.b16 %v1772
      %v2033 = vunpack.c.l.b16 %v1773
      %v2034 = vunpack.c.h.b16 %v1773
      %v2035 = vunpack.c.l.b16 %v1774
      %v2036 = vunpack.c.h.b16 %v1774
      %v2037 = vunpack.c.l.b16 %v1775
      %v2038 = vunpack.c.h.b16 %v1775
      %v2039 = vunpack.c.l.b16 %v1776
      %v2040 = vunpack.c.h.b16 %v1776
      %v2041 = vunpack.c.l.b16 %v1777
      %v2042 = vunpack.c.h.b16 %v1777
      %v2043 = vunpack.c.l.b16 %v1778
      %v2044 = vunpack.c.h.b16 %v1778
      %v2045 = vunpack.c.l.b16 %v1779
      %v2046 = vunpack.c.h.b16 %v1779
      %v2047 = vunpack.c.l.b16 %v1780
      %v2048 = vunpack.c.h.b16 %v1780
      %v2049 = vunpack.c.l.b16 %v1781
      %v2050 = vunpack.c.h.b16 %v1781
      %v2051 = vunpack.c.l.b16 %v1782
      %v2052 = vunpack.c.h.b16 %v1782
      %v2053 = vunpack.c.l.b16 %v1783
      %v2054 = vunpack.c.h.b16 %v1783
      %v2055 = vunpack.c.l.b16 %v1784
      %v2056 = vunpack.c.h.b16 %v1784
      %v2057 = vunpack.c.l.b16 %v1785
      %v2058 = vunpack.c.h.b16 %v1785
      %v2059 = vunpack.c.l.b16 %v1786
      %v2060 = vunpack.c.h.b16 %v1786
      %v2061 = vunpack.c.l.b16 %v1787
      %v2062 = vunpack.c.h.b16 %v1787
      %v2063 = vunpack.c.l.b16 %v1788
      %v2064 = vunpack.c.h.b16 %v1788
      %v2065 = vunpack.c.l.b16 %v1789
      %v2066 = vunpack.c.h.b16 %v1789
      %v2067 = vunpack.c.l.b16 %v1790
      %v2068 = vunpack.c.h.b16 %v1790
      %v2069 = vunpack.c.l.b16 %v1791
      %v2070 = vunpack.c.h.b16 %v1791
      %v2071 = vunpack.c.l.b16 %v1792
      %v2072 = vunpack.c.h.b16 %v1792
      %v2073 = vunpack.c.l.b16 %v1793
      %v2074 = vunpack.c.h.b16 %v1793
      %v2075 = vunpack.c.l.b16 %v1794
      %v2076 = vunpack.c.h.b16 %v1794
      %v2077 = vunpack.c.l.b16 %v1795
      %v2078 = vunpack.c.h.b16 %v1795
      %v2079 = vunpack.c.l.b16 %v1796
      %v2080 = vunpack.c.h.b16 %v1796
      %v2081 = vunpack.c.l.b16 %v1797
      %v2082 = vunpack.c.h.b16 %v1797
      %v2083 = vunpack.c.l.b16 %v1798
      %v2084 = vunpack.c.h.b16 %v1798
      %v2085 = vunpack.c.l.b16 %v1799
      %v2086 = vunpack.c.h.b16 %v1799
      %v2087 = vunpack.c.l.b16 %v1800
      %v2088 = vunpack.c.h.b16 %v1800
      %v2089 = vunpack.c.l.b16 %v1801
      %v2090 = vunpack.c.h.b16 %v1801
      %v2091 = vunpack.c.l.b16 %v1802
      %v2092 = vunpack.c.h.b16 %v1802
      %v2093 = vunpack.c.l.b16 %v1803
      %v2094 = vunpack.c.h.b16 %v1803
      %v2095 = vunpack.c.l.b16 %v1804
      %v2096 = vunpack.c.h.b16 %v1804
      %v2097 = vunpack.c.l.b16 %v1805
      %v2098 = vunpack.c.h.b16 %v1805
      %v2099 = vunpack.c.l.b16 %v1806
      %v2100 = vunpack.c.h.b16 %v1806
      %v2101 = vunpack.c.l.b16 %v1807
      %v2102 = vunpack.c.h.b16 %v1807
      %v2103 = vunpack.c.l.b16 %v1808
      %v2104 = vunpack.c.h.b16 %v1808
      %v2105 = vunpack.c.l.b16 %v1809
      %v2106 = vunpack.c.h.b16 %v1809
      %v2107 = vunpack.c.l.b16 %v1810
      %v2108 = vunpack.c.h.b16 %v1810
      %v2109 = vunpack.c.l.b16 %v1811
      %v2110 = vunpack.c.h.b16 %v1811
      %v2111 = vunpack.c.l.b16 %v1812
      %v2112 = vunpack.c.h.b16 %v1812
      %v2113 = vunpack.c.l.b16 %v1813
      %v2114 = vunpack.c.h.b16 %v1813
      %v2115 = vunpack.c.l.b16 %v1814
      %v2116 = vunpack.c.h.b16 %v1814
      %v2117 = vunpack.c.l.b16 %v1815
      %v2118 = vunpack.c.h.b16 %v1815
      %v2119 = vunpack.c.l.b16 %v1816
      %v2120 = vunpack.c.h.b16 %v1816
      %v2121 = vunpack.c.l.b16 %v1817
      %v2122 = vunpack.c.h.b16 %v1817
      %v2123 = vunpack.c.l.b16 %v1818
      %v2124 = vunpack.c.h.b16 %v1818
      %v2125 = vunpack.c.l.b16 %v1819
      %v2126 = vunpack.c.h.b16 %v1819
      %v2127 = vunpack.c.l.b16 %v1820
      %v2128 = vunpack.c.h.b16 %v1820
      %v2129 = vunpack.c.l.b16 %v1821
      %v2130 = vunpack.c.h.b16 %v1821
      %v2131 = vunpack.c.l.b16 %v1822
      %v2132 = vunpack.c.h.b16 %v1822
      %v2133 = vunpack.c.l.b16 %v1823
      %v2134 = vunpack.c.h.b16 %v1823
      %v2135 = vunpack.c.l.b16 %v1824
      %v2136 = vunpack.c.h.b16 %v1824
      %v2137 = vunpack.c.l.b16 %v1825
      %v2138 = vunpack.c.h.b16 %v1825
      %v2139 = vunpack.c.l.b16 %v1826
      %v2140 = vunpack.c.h.b16 %v1826
      %v2141 = vunpack.c.l.b16 %v1827
      %v2142 = vunpack.c.h.b16 %v1827
      %v2143 = vunpack.c.l.b16 %v1828
      %v2144 = vunpack.c.h.b16 %v1828
      %v2145 = vunpack.c.l.b16 %v1829
      %v2146 = vunpack.c.h.b16 %v1829
      %v2147 = vunpack.c.l.b16 %v1830
      %v2148 = vunpack.c.h.b16 %v1830
      %v2149 = vunpack.c.l.b16 %v1831
      %v2150 = vunpack.c.h.b16 %v1831
      %v2151 = vpack.c.b16 %v2025, %v2023
      %v2152 = vpack.c.b16 %v2026, %v2024
      %v2153 = vpack.c.b16 %v2029, %v2027
      %v2154 = vpack.c.b16 %v2030, %v2028
      %v2155 = vpack.c.b16 %v2033, %v2031
      %v2156 = vpack.c.b16 %v2034, %v2032
      %v2157 = vpack.c.b16 %v2037, %v2035
      %v2158 = vpack.c.b16 %v2038, %v2036
      %v2159 = vpack.c.b16 %v2041, %v2039
      %v2160 = vpack.c.b16 %v2042, %v2040
      %v2161 = vpack.c.b16 %v2045, %v2043
      %v2162 = vpack.c.b16 %v2046, %v2044
      %v2163 = vpack.c.b16 %v2049, %v2047
      %v2164 = vpack.c.b16 %v2050, %v2048
      %v2165 = vpack.c.b16 %v2053, %v2051
      %v2166 = vpack.c.b16 %v2054, %v2052
      %v2167 = vpack.c.b16 %v2057, %v2055
      %v2168 = vpack.c.b16 %v2058, %v2056
      %v2169 = vpack.c.b16 %v2061, %v2059
      %v2170 = vpack.c.b16 %v2062, %v2060
      %v2171 = vpack.c.b16 %v2065, %v2063
      %v2172 = vpack.c.b16 %v2066, %v2064
      %v2173 = vpack.c.b16 %v2069, %v2067
      %v2174 = vpack.c.b16 %v2070, %v2068
      %v2175 = vpack.c.b16 %v2073, %v2071
      %v2176 = vpack.c.b16 %v2074, %v2072
      %v2177 = vpack.c.b16 %v2077, %v2075
      %v2178 = vpack.c.b16 %v2078, %v2076
      %v2179 = vpack.c.b16 %v2081, %v2079
      %v2180 = vpack.c.b16 %v2082, %v2080
      %v2181 = vpack.c.b16 %v2085, %v2083
      %v2182 = vpack.c.b16 %v2086, %v2084
      %v2183 = vpack.c.b16 %v2089, %v2087
      %v2184 = vpack.c.b16 %v2090, %v2088
      %v2185 = vpack.c.b16 %v2093, %v2091
      %v2186 = vpack.c.b16 %v2094, %v2092
      %v2187 = vpack.c.b16 %v2097, %v2095
      %v2188 = vpack.c.b16 %v2098, %v2096
      %v2189 = vpack.c.b16 %v2101, %v2099
      %v2190 = vpack.c.b16 %v2102, %v2100
      %v2191 = vpack.c.b16 %v2105, %v2103
      %v2192 = vpack.c.b16 %v2106, %v2104
      %v2193 = vpack.c.b16 %v2109, %v2107
      %v2194 = vpack.c.b16 %v2110, %v2108
      %v2195 = vpack.c.b16 %v2113, %v2111
      %v2196 = vpack.c.b16 %v2114, %v2112
      %v2197 = vpack.c.b16 %v2117, %v2115
      %v2198 = vpack.c.b16 %v2118, %v2116
      %v2199 = vpack.c.b16 %v2121, %v2119
      %v2200 = vpack.c.b16 %v2122, %v2120
      %v2201 = vpack.c.b16 %v2125, %v2123
      %v2202 = vpack.c.b16 %v2126, %v2124
      %v2203 = vpack.c.b16 %v2129, %v2127
      %v2204 = vpack.c.b16 %v2130, %v2128
      %v2205 = vpack.c.b16 %v2133, %v2131
      %v2206 = vpack.c.b16 %v2134, %v2132
      %v2207 = vpack.c.b16 %v2137, %v2135
      %v2208 = vpack.c.b16 %v2138, %v2136
      %v2209 = vpack.c.b16 %v2141, %v2139
      %v2210 = vpack.c.b16 %v2142, %v2140
      %v2211 = vpack.c.b16 %v2145, %v2143
      %v2212 = vpack.c.b16 %v2146, %v2144
      %v2213 = vpack.c.b16 %v2149, %v2147
      %v2214 = vpack.c.b16 %v2150, %v2148
      %2279 = vmatpush.bf16.msra.mxu0 %v2165
      %2280 = vmatpush.bf16.msra.mxu0 %v2163
      %2281 = vmatpush.bf16.msra.mxu0 %v2161
      %2282 = vmatpush.bf16.msra.mxu0 %v2159
      %2283 = vmatpush.bf16.msra.mxu0 %v2157
      %2284 = vmatpush.bf16.msra.mxu0 %v2155
      %2285 = vmatpush.bf16.msra.mxu0 %v2153
      %2286 = vmatpush.bf16.msra.mxu0 %v2151
      %2287 = vmatmul.bf16.gmra.mxu0 %v1909
      %v2288 = vpop.f32.mrf.mxu0
      %v2289 = vadd.f32 0.0, %v2288
      %v2290 = vpop.f32.mrf.mxu0
      %v2291 = vadd.f32 0.0, %v2290
      %2292 = vmatmul.bf16.gmra.mxu0 %v1920
      %v2293 = vpop.f32.mrf.mxu0
      %v2294 = vadd.f32 0.0, %v2293
      %v2295 = vpop.f32.mrf.mxu0
      %v2296 = vadd.f32 0.0, %v2295
      %2297 = vmatmul.bf16.gmra.mxu0 %v1928
      %v2298 = vpop.f32.mrf.mxu0
      %v2299 = vadd.f32 0.0, %v2298
      %v2300 = vpop.f32.mrf.mxu0
      %v2301 = vadd.f32 0.0, %v2300
      %2302 = vmatmul.bf16.gmra.mxu0 %v1936
      %v2303 = vpop.f32.mrf.mxu0
      %v2304 = vadd.f32 0.0, %v2303
      %v2305 = vpop.f32.mrf.mxu0
      %v2306 = vadd.f32 0.0, %v2305
      %2307 = vdwg.mxu0
      %2308 = vmatpush.bf16.msra.mxu0 %v2181
      %2309 = vmatpush.bf16.msra.mxu0 %v2179
      %2310 = vmatpush.bf16.msra.mxu0 %v2177
      %2311 = vmatpush.bf16.msra.mxu0 %v2175
      %2312 = vmatpush.bf16.msra.mxu0 %v2173
      %2313 = vmatpush.bf16.msra.mxu0 %v2171
      %2314 = vmatpush.bf16.msra.mxu0 %v2169
      %2315 = vmatpush.bf16.msra.mxu0 %v2167
      %2316 = vmatmul.bf16.gmra.mxu0 %v1912
      %v2317 = vpop.f32.mrf.mxu0
      %v2318 = vadd.f32 %v2289, %v2317
      %v2319 = vpop.f32.mrf.mxu0
      %v2320 = vadd.f32 %v2291, %v2319
      %2321 = vmatmul.bf16.gmra.mxu0 %v1922
      %v2322 = vpop.f32.mrf.mxu0
      %v2323 = vadd.f32 %v2294, %v2322
      %v2324 = vpop.f32.mrf.mxu0
      %v2325 = vadd.f32 %v2296, %v2324
      %2326 = vmatmul.bf16.gmra.mxu0 %v1930
      %v2327 = vpop.f32.mrf.mxu0
      %v2328 = vadd.f32 %v2299, %v2327
      %v2329 = vpop.f32.mrf.mxu0
      %v2330 = vadd.f32 %v2301, %v2329
      %2331 = vmatmul.bf16.gmra.mxu0 %v1938
      %v2332 = vpop.f32.mrf.mxu0
      %v2333 = vadd.f32 %v2304, %v2332
      %v2334 = vpop.f32.mrf.mxu0
      %v2335 = vadd.f32 %v2306, %v2334
      %2336 = vdwg.mxu0
      %2337 = vmatpush.bf16.msra.mxu0 %v2197
      %2338 = vmatpush.bf16.msra.mxu0 %v2195
      %2339 = vmatpush.bf16.msra.mxu0 %v2193
      %2340 = vmatpush.bf16.msra.mxu0 %v2191
      %2341 = vmatpush.bf16.msra.mxu0 %v2189
      %2342 = vmatpush.bf16.msra.mxu0 %v2187
      %2343 = vmatpush.bf16.msra.mxu0 %v2185
      %2344 = vmatpush.bf16.msra.mxu0 %v2183
      %2345 = vmatmul.bf16.gmra.mxu0 %v1915
      %v2346 = vpop.f32.mrf.mxu0
      %v2347 = vadd.f32 %v2318, %v2346
      %v2348 = vpop.f32.mrf.mxu0
      %v2349 = vadd.f32 %v2320, %v2348
      %2350 = vmatmul.bf16.gmra.mxu0 %v1924
      %v2351 = vpop.f32.mrf.mxu0
      %v2352 = vadd.f32 %v2323, %v2351
      %v2353 = vpop.f32.mrf.mxu0
      %v2354 = vadd.f32 %v2325, %v2353
      %2355 = vmatmul.bf16.gmra.mxu0 %v1932
      %v2356 = vpop.f32.mrf.mxu0
      %v2357 = vadd.f32 %v2328, %v2356
      %v2358 = vpop.f32.mrf.mxu0
      %v2359 = vadd.f32 %v2330, %v2358
      %2360 = vmatmul.bf16.gmra.mxu0 %v1940
      %v2361 = vpop.f32.mrf.mxu0
      %v2362 = vadd.f32 %v2333, %v2361
      %v2363 = vpop.f32.mrf.mxu0
      %v2364 = vadd.f32 %v2335, %v2363
      %2365 = vdwg.mxu0
      %2366 = vmatpush.bf16.msra.mxu0 %v2213
      %2367 = vmatpush.bf16.msra.mxu0 %v2211
      %2368 = vmatpush.bf16.msra.mxu0 %v2209
      %2369 = vmatpush.bf16.msra.mxu0 %v2207
      %2370 = vmatpush.bf16.msra.mxu0 %v2205
      %2371 = vmatpush.bf16.msra.mxu0 %v2203
      %2372 = vmatpush.bf16.msra.mxu0 %v2201
      %2373 = vmatpush.bf16.msra.mxu0 %v2199
      %2374 = vmatmul.bf16.gmra.mxu0 %v1918
      %v2375 = vpop.f32.mrf.mxu0
      %v2376 = vadd.f32 %v2347, %v2375
      %v2377 = vpop.f32.mrf.mxu0
      %v2378 = vadd.f32 %v2349, %v2377
      %2379 = vmatmul.bf16.gmra.mxu0 %v1926
      %v2380 = vpop.f32.mrf.mxu0
      %v2381 = vadd.f32 %v2352, %v2380
      %v2382 = vpop.f32.mrf.mxu0
      %v2383 = vadd.f32 %v2354, %v2382
      %2384 = vmatmul.bf16.gmra.mxu0 %v1934
      %v2385 = vpop.f32.mrf.mxu0
      %v2386 = vadd.f32 %v2357, %v2385
      %v2387 = vpop.f32.mrf.mxu0
      %v2388 = vadd.f32 %v2359, %v2387
      %2389 = vmatmul.bf16.gmra.mxu0 %v1942
      %v2390 = vpop.f32.mrf.mxu0
      %v2391 = vadd.f32 %v2362, %v2390
      %v2392 = vpop.f32.mrf.mxu0
      %v2393 = vadd.f32 %v2364, %v2392
      %2394 = vdwg.mxu0
      %2395 = vmatpush.bf16.msra.mxu0 %v2166
      %2396 = vmatpush.bf16.msra.mxu0 %v2164
      %2397 = vmatpush.bf16.msra.mxu0 %v2162
      %2398 = vmatpush.bf16.msra.mxu0 %v2160
      %2399 = vmatpush.bf16.msra.mxu0 %v2158
      %2400 = vmatpush.bf16.msra.mxu0 %v2156
      %2401 = vmatpush.bf16.msra.mxu0 %v2154
      %2402 = vmatpush.bf16.msra.mxu0 %v2152
      %2403 = vmatmul.bf16.gmra.mxu0 %v1909
      %v2404 = vpop.f32.mrf.mxu0
      %v2405 = vadd.f32 0.0, %v2404
      %v2406 = vpop.f32.mrf.mxu0
      %v2407 = vadd.f32 0.0, %v2406
      %2408 = vmatmul.bf16.gmra.mxu0 %v1920
      %v2409 = vpop.f32.mrf.mxu0
      %v2410 = vadd.f32 0.0, %v2409
      %v2411 = vpop.f32.mrf.mxu0
      %v2412 = vadd.f32 0.0, %v2411
      %2413 = vmatmul.bf16.gmra.mxu0 %v1928
      %v2414 = vpop.f32.mrf.mxu0
      %v2415 = vadd.f32 0.0, %v2414
      %v2416 = vpop.f32.mrf.mxu0
      %v2417 = vadd.f32 0.0, %v2416
      %2418 = vmatmul.bf16.gmra.mxu0 %v1936
      %v2419 = vpop.f32.mrf.mxu0
      %v2420 = vadd.f32 0.0, %v2419
      %v2421 = vpop.f32.mrf.mxu0
      %v2422 = vadd.f32 0.0, %v2421
      %2423 = vdwg.mxu0
      %2424 = vmatpush.bf16.msra.mxu0 %v2182
      %2425 = vmatpush.bf16.msra.mxu0 %v2180
      %2426 = vmatpush.bf16.msra.mxu0 %v2178
      %2427 = vmatpush.bf16.msra.mxu0 %v2176
      %2428 = vmatpush.bf16.msra.mxu0 %v2174
      %2429 = vmatpush.bf16.msra.mxu0 %v2172
      %2430 = vmatpush.bf16.msra.mxu0 %v2170
      %2431 = vmatpush.bf16.msra.mxu0 %v2168
      %2432 = vmatmul.bf16.gmra.mxu0 %v1912
      %v2433 = vpop.f32.mrf.mxu0
      %v2434 = vadd.f32 %v2405, %v2433
      %v2435 = vpop.f32.mrf.mxu0
      %v2436 = vadd.f32 %v2407, %v2435
      %2437 = vmatmul.bf16.gmra.mxu0 %v1922
      %v2438 = vpop.f32.mrf.mxu0
      %v2439 = vadd.f32 %v2410, %v2438
      %v2440 = vpop.f32.mrf.mxu0
      %v2441 = vadd.f32 %v2412, %v2440
      %2442 = vmatmul.bf16.gmra.mxu0 %v1930
      %v2443 = vpop.f32.mrf.mxu0
      %v2444 = vadd.f32 %v2415, %v2443
      %v2445 = vpop.f32.mrf.mxu0
      %v2446 = vadd.f32 %v2417, %v2445
      %2447 = vmatmul.bf16.gmra.mxu0 %v1938
      %v2448 = vpop.f32.mrf.mxu0
      %v2449 = vadd.f32 %v2420, %v2448
      %v2450 = vpop.f32.mrf.mxu0
      %v2451 = vadd.f32 %v2422, %v2450
      %2452 = vdwg.mxu0
      %2453 = vmatpush.bf16.msra.mxu0 %v2198
      %2454 = vmatpush.bf16.msra.mxu0 %v2196
      %2455 = vmatpush.bf16.msra.mxu0 %v2194
      %2456 = vmatpush.bf16.msra.mxu0 %v2192
      %2457 = vmatpush.bf16.msra.mxu0 %v2190
      %2458 = vmatpush.bf16.msra.mxu0 %v2188
      %2459 = vmatpush.bf16.msra.mxu0 %v2186
      %2460 = vmatpush.bf16.msra.mxu0 %v2184
      %2461 = vmatmul.bf16.gmra.mxu0 %v1915
      %v2462 = vpop.f32.mrf.mxu0
      %v2463 = vadd.f32 %v2434, %v2462
      %v2464 = vpop.f32.mrf.mxu0
      %v2465 = vadd.f32 %v2436, %v2464
      %2466 = vmatmul.bf16.gmra.mxu0 %v1924
      %v2467 = vpop.f32.mrf.mxu0
      %v2468 = vadd.f32 %v2439, %v2467
      %v2469 = vpop.f32.mrf.mxu0
      %v2470 = vadd.f32 %v2441, %v2469
      %2471 = vmatmul.bf16.gmra.mxu0 %v1932
      %v2472 = vpop.f32.mrf.mxu0
      %v2473 = vadd.f32 %v2444, %v2472
      %v2474 = vpop.f32.mrf.mxu0
      %v2475 = vadd.f32 %v2446, %v2474
      %2476 = vmatmul.bf16.gmra.mxu0 %v1940
      %v2477 = vpop.f32.mrf.mxu0
      %v2478 = vadd.f32 %v2449, %v2477
      %v2479 = vpop.f32.mrf.mxu0
      %v2480 = vadd.f32 %v2451, %v2479
      %2481 = vdwg.mxu0
      %2482 = vmatpush.bf16.msra.mxu0 %v2214
      %2483 = vmatpush.bf16.msra.mxu0 %v2212
      %2484 = vmatpush.bf16.msra.mxu0 %v2210
      %2485 = vmatpush.bf16.msra.mxu0 %v2208
      %2486 = vmatpush.bf16.msra.mxu0 %v2206
      %2487 = vmatpush.bf16.msra.mxu0 %v2204
      %2488 = vmatpush.bf16.msra.mxu0 %v2202
      %2489 = vmatpush.bf16.msra.mxu0 %v2200
      %2490 = vmatmul.bf16.gmra.mxu0 %v1918
      %v2491 = vpop.f32.mrf.mxu0
      %v2492 = vadd.f32 %v2463, %v2491
      %v2493 = vpop.f32.mrf.mxu0
      %v2494 = vadd.f32 %v2465, %v2493
      %2495 = vmatmul.bf16.gmra.mxu0 %v1926
      %v2496 = vpop.f32.mrf.mxu0
      %v2497 = vadd.f32 %v2468, %v2496
      %v2498 = vpop.f32.mrf.mxu0
      %v2499 = vadd.f32 %v2470, %v2498
      %2500 = vmatmul.bf16.gmra.mxu0 %v1934
      %v2501 = vpop.f32.mrf.mxu0
      %v2502 = vadd.f32 %v2473, %v2501
      %v2503 = vpop.f32.mrf.mxu0
      %v2504 = vadd.f32 %v2475, %v2503
      %2505 = vmatmul.bf16.gmra.mxu0 %v1942
      %v2506 = vpop.f32.mrf.mxu0
      %v2507 = vadd.f32 %v2478, %v2506
      %v2508 = vpop.f32.mrf.mxu0
      %v2509 = vadd.f32 %v2480, %v2508
      %2510 = vdwg.mxu0
      %v2511 = vadd.f32 %v1614, %v2376
      %v2512 = vadd.f32 %v1730, %v2492
      %v2513 = vadd.f32 %v1616, %v2378
      %v2514 = vadd.f32 %v1732, %v2494
      %v2515 = vadd.f32 %v1619, %v2381
      %v2516 = vadd.f32 %v1735, %v2497
      %v2517 = vadd.f32 %v1621, %v2383
      %v2518 = vadd.f32 %v1737, %v2499
      %v2519 = vadd.f32 %v1624, %v2386
      %v2520 = vadd.f32 %v1740, %v2502
      %v2521 = vadd.f32 %v1626, %v2388
      %v2522 = vadd.f32 %v1742, %v2504
      %v2523 = vadd.f32 %v1629, %v2391
      %v2524 = vadd.f32 %v1745, %v2507
      %v2525 = vadd.f32 %v1631, %v2393
      %v2526 = vadd.f32 %v1747, %v2509
      %v2527 = vld [vmem:[%s272 + $0x80] sm:$0xff]
      %v2528 = vld [vmem:[%s272 + $0x88] sm:$0xff]
      %s2529 = scalar_lea.vmem %s2, 1536
      %v2530 = vld [vmem:[%s2529] sm:$0xff]
      %v2531 = vld [vmem:[%s2529 + $0x8] sm:$0xff]
      %v2532 = vld [vmem:[%s2529 + $0x10] sm:$0xff]
      %v2533 = vld [vmem:[%s2529 + $0x18] sm:$0xff]
      %v2534 = vld [vmem:[%s2529 + $0x20] sm:$0xff]
      %v2535 = vld [vmem:[%s2529 + $0x28] sm:$0xff]
      %v2536 = vld [vmem:[%s2529 + $0x30] sm:$0xff]
      %v2537 = vld [vmem:[%s2529 + $0x38] sm:$0xff]
      %v2538 = vld [vmem:[%s2529 + $0x40] sm:$0xff]
      %v2539 = vld [vmem:[%s2529 + $0x48] sm:$0xff]
      %v2540 = vld [vmem:[%s2529 + $0x50] sm:$0xff]
      %v2541 = vld [vmem:[%s2529 + $0x58] sm:$0xff]
      %v2542 = vld [vmem:[%s2529 + $0x60] sm:$0xff]
      %v2543 = vld [vmem:[%s2529 + $0x68] sm:$0xff]
      %v2544 = vld [vmem:[%s2529 + $0x70] sm:$0xff]
      %v2545 = vld [vmem:[%s2529 + $0x78] sm:$0xff]
      %v2546 = vld [vmem:[%s2529 + $0x80] sm:$0xff]
      %v2547 = vld [vmem:[%s2529 + $0x88] sm:$0xff]
      %v2548 = vld [vmem:[%s2529 + $0x90] sm:$0xff]
      %v2549 = vld [vmem:[%s2529 + $0x98] sm:$0xff]
      %v2550 = vld [vmem:[%s2529 + $0xa0] sm:$0xff]
      %v2551 = vld [vmem:[%s2529 + $0xa8] sm:$0xff]
      %v2552 = vld [vmem:[%s2529 + $0xb0] sm:$0xff]
      %v2553 = vld [vmem:[%s2529 + $0xb8] sm:$0xff]
      %v2554 = vld [vmem:[%s2529 + $0xc0] sm:$0xff]
      %v2555 = vld [vmem:[%s2529 + $0xc8] sm:$0xff]
      %v2556 = vld [vmem:[%s2529 + $0xd0] sm:$0xff]
      %v2557 = vld [vmem:[%s2529 + $0xd8] sm:$0xff]
      %v2558 = vld [vmem:[%s2529 + $0xe0] sm:$0xff]
      %v2559 = vld [vmem:[%s2529 + $0xe8] sm:$0xff]
      %v2560 = vld [vmem:[%s2529 + $0xf0] sm:$0xff]
      %v2561 = vld [vmem:[%s2529 + $0xf8] sm:$0xff]
      %v2562 = vld [vmem:[%s2529 + $0x100] sm:$0xff]
      %v2563 = vld [vmem:[%s2529 + $0x108] sm:$0xff]
      %v2564 = vld [vmem:[%s2529 + $0x110] sm:$0xff]
      %v2565 = vld [vmem:[%s2529 + $0x118] sm:$0xff]
      %v2566 = vld [vmem:[%s2529 + $0x120] sm:$0xff]
      %v2567 = vld [vmem:[%s2529 + $0x128] sm:$0xff]
      %v2568 = vld [vmem:[%s2529 + $0x130] sm:$0xff]
      %v2569 = vld [vmem:[%s2529 + $0x138] sm:$0xff]
      %v2570 = vld [vmem:[%s2529 + $0x140] sm:$0xff]
      %v2571 = vld [vmem:[%s2529 + $0x148] sm:$0xff]
      %v2572 = vld [vmem:[%s2529 + $0x150] sm:$0xff]
      %v2573 = vld [vmem:[%s2529 + $0x158] sm:$0xff]
      %v2574 = vld [vmem:[%s2529 + $0x160] sm:$0xff]
      %v2575 = vld [vmem:[%s2529 + $0x168] sm:$0xff]
      %v2576 = vld [vmem:[%s2529 + $0x170] sm:$0xff]
      %v2577 = vld [vmem:[%s2529 + $0x178] sm:$0xff]
      %v2578 = vld [vmem:[%s2529 + $0x180] sm:$0xff]
      %v2579 = vld [vmem:[%s2529 + $0x188] sm:$0xff]
      %v2580 = vld [vmem:[%s2529 + $0x190] sm:$0xff]
      %v2581 = vld [vmem:[%s2529 + $0x198] sm:$0xff]
      %v2582 = vld [vmem:[%s2529 + $0x1a0] sm:$0xff]
      %v2583 = vld [vmem:[%s2529 + $0x1a8] sm:$0xff]
      %v2584 = vld [vmem:[%s2529 + $0x1b0] sm:$0xff]
      %v2585 = vld [vmem:[%s2529 + $0x1b8] sm:$0xff]
      %v2586 = vld [vmem:[%s2529 + $0x1c0] sm:$0xff]
      %v2587 = vld [vmem:[%s2529 + $0x1c8] sm:$0xff]
      %v2588 = vld [vmem:[%s2529 + $0x1d0] sm:$0xff]
      %v2589 = vld [vmem:[%s2529 + $0x1d8] sm:$0xff]
      %v2590 = vld [vmem:[%s2529 + $0x1e0] sm:$0xff]
      %v2591 = vld [vmem:[%s2529 + $0x1e8] sm:$0xff]
      %v2592 = vld [vmem:[%s2529 + $0x1f0] sm:$0xff]
      %v2593 = vld [vmem:[%s2529 + $0x1f8] sm:$0xff]
      %v2596 = vunpack.c.l.b16 %v2527
      %v2597 = vunpack.c.h.b16 %v2527
      %v2598 = vunpack.c.l.b16 %v2528
      %v2599 = vunpack.c.h.b16 %v2528
      %v2600 = vpack.c.b16 %v1858, %v1854
      %v2601 = vpack.c.b16 %v1859, %v1855
      %v2602 = vpack.c.b16 %v1860, %v1856
      %v2603 = vpack.c.b16 %v1861, %v1857
      %v2604 = vpack.c.b16 %v1866, %v1862
      %v2605 = vpack.c.b16 %v1867, %v1863
      %v2606 = vpack.c.b16 %v1868, %v1864
      %v2607 = vpack.c.b16 %v1869, %v1865
      %v2608 = vpack.c.b16 %v1874, %v1870
      %v2609 = vpack.c.b16 %v1875, %v1871
      %v2610 = vpack.c.b16 %v1876, %v1872
      %v2611 = vpack.c.b16 %v1877, %v1873
      %v2612 = vpack.c.b16 %v2596, %v1878
      %v2613 = vpack.c.b16 %v2597, %v1879
      %v2614 = vpack.c.b16 %v2598, %v1880
      %v2615 = vpack.c.b16 %v2599, %v1881
      %v2617 = vshrl.u32 %v2600, 16
      %v2619 = vshll.u32 %v2600, 16
      %v2621 = vrot.slane %v2619, 1
      %v2622 = vor.u32 %v2617, %v2621
      %v2624 = vshll.u32 %v2604, 16
      %v2626 = vrot.slane %v2624, 1
      %v2627 = vsel %vm488, %v2622, %v2626
      %v2629 = vshrl.u32 %v2601, 16
      %v2631 = vshll.u32 %v2601, 16
      %v2633 = vrot.slane %v2631, 1
      %v2634 = vor.u32 %v2629, %v2633
      %v2636 = vshll.u32 %v2605, 16
      %v2638 = vrot.slane %v2636, 1
      %v2639 = vsel %vm488, %v2634, %v2638
      %v2641 = vshrl.u32 %v2602, 16
      %v2643 = vshll.u32 %v2602, 16
      %v2645 = vrot.slane %v2643, 1
      %v2646 = vor.u32 %v2641, %v2645
      %v2648 = vshll.u32 %v2606, 16
      %v2650 = vrot.slane %v2648, 1
      %v2651 = vsel %vm488, %v2646, %v2650
      %v2653 = vshrl.u32 %v2603, 16
      %v2655 = vshll.u32 %v2603, 16
      %v2657 = vrot.slane %v2655, 1
      %v2658 = vor.u32 %v2653, %v2657
      %v2660 = vshll.u32 %v2607, 16
      %v2662 = vrot.slane %v2660, 1
      %v2663 = vsel %vm488, %v2658, %v2662
      %v2664 = vshrl.u32 %v2604, 16
      %v2666 = vor.u32 %v2664, %v2626
      %v2668 = vshll.u32 %v2608, 16
      %v2670 = vrot.slane %v2668, 1
      %v2671 = vsel %vm488, %v2666, %v2670
      %v2672 = vshrl.u32 %v2605, 16
      %v2674 = vor.u32 %v2672, %v2638
      %v2676 = vshll.u32 %v2609, 16
      %v2678 = vrot.slane %v2676, 1
      %v2679 = vsel %vm488, %v2674, %v2678
      %v2680 = vshrl.u32 %v2606, 16
      %v2682 = vor.u32 %v2680, %v2650
      %v2684 = vshll.u32 %v2610, 16
      %v2686 = vrot.slane %v2684, 1
      %v2687 = vsel %vm488, %v2682, %v2686
      %v2688 = vshrl.u32 %v2607, 16
      %v2690 = vor.u32 %v2688, %v2662
      %v2692 = vshll.u32 %v2611, 16
      %v2694 = vrot.slane %v2692, 1
      %v2695 = vsel %vm488, %v2690, %v2694
      %v2696 = vshrl.u32 %v2608, 16
      %v2698 = vor.u32 %v2696, %v2670
      %v2700 = vshll.u32 %v2612, 16
      %v2702 = vrot.slane %v2700, 1
      %v2703 = vsel %vm488, %v2698, %v2702
      %v2704 = vshrl.u32 %v2609, 16
      %v2706 = vor.u32 %v2704, %v2678
      %v2708 = vshll.u32 %v2613, 16
      %v2710 = vrot.slane %v2708, 1
      %v2711 = vsel %vm488, %v2706, %v2710
      %v2712 = vshrl.u32 %v2610, 16
      %v2714 = vor.u32 %v2712, %v2686
      %v2716 = vshll.u32 %v2614, 16
      %v2718 = vrot.slane %v2716, 1
      %v2719 = vsel %vm488, %v2714, %v2718
      %v2720 = vshrl.u32 %v2611, 16
      %v2722 = vor.u32 %v2720, %v2694
      %v2724 = vshll.u32 %v2615, 16
      %v2726 = vrot.slane %v2724, 1
      %v2727 = vsel %vm488, %v2722, %v2726
      %v2728 = vshrl.u32 %v2612, 16
      %v2730 = vor.u32 %v2728, %v2702
      %v2731 = vshrl.u32 %v2613, 16
      %v2733 = vor.u32 %v2731, %v2710
      %v2734 = vshrl.u32 %v2614, 16
      %v2736 = vor.u32 %v2734, %v2718
      %v2737 = vshrl.u32 %v2615, 16
      %v2739 = vor.u32 %v2737, %v2726
      %v2820 = vunpack.c.l.b16 %v2530
      %v2821 = vunpack.c.h.b16 %v2530
      %v2822 = vunpack.c.l.b16 %v2531
      %v2823 = vunpack.c.h.b16 %v2531
      %v2824 = vunpack.c.l.b16 %v2532
      %v2825 = vunpack.c.h.b16 %v2532
      %v2826 = vunpack.c.l.b16 %v2533
      %v2827 = vunpack.c.h.b16 %v2533
      %v2828 = vunpack.c.l.b16 %v2534
      %v2829 = vunpack.c.h.b16 %v2534
      %v2830 = vunpack.c.l.b16 %v2535
      %v2831 = vunpack.c.h.b16 %v2535
      %v2832 = vunpack.c.l.b16 %v2536
      %v2833 = vunpack.c.h.b16 %v2536
      %v2834 = vunpack.c.l.b16 %v2537
      %v2835 = vunpack.c.h.b16 %v2537
      %v2836 = vunpack.c.l.b16 %v2538
      %v2837 = vunpack.c.h.b16 %v2538
      %v2838 = vunpack.c.l.b16 %v2539
      %v2839 = vunpack.c.h.b16 %v2539
      %v2840 = vunpack.c.l.b16 %v2540
      %v2841 = vunpack.c.h.b16 %v2540
      %v2842 = vunpack.c.l.b16 %v2541
      %v2843 = vunpack.c.h.b16 %v2541
      %v2844 = vunpack.c.l.b16 %v2542
      %v2845 = vunpack.c.h.b16 %v2542
      %v2846 = vunpack.c.l.b16 %v2543
      %v2847 = vunpack.c.h.b16 %v2543
      %v2848 = vunpack.c.l.b16 %v2544
      %v2849 = vunpack.c.h.b16 %v2544
      %v2850 = vunpack.c.l.b16 %v2545
      %v2851 = vunpack.c.h.b16 %v2545
      %v2852 = vunpack.c.l.b16 %v2546
      %v2853 = vunpack.c.h.b16 %v2546
      %v2854 = vunpack.c.l.b16 %v2547
      %v2855 = vunpack.c.h.b16 %v2547
      %v2856 = vunpack.c.l.b16 %v2548
      %v2857 = vunpack.c.h.b16 %v2548
      %v2858 = vunpack.c.l.b16 %v2549
      %v2859 = vunpack.c.h.b16 %v2549
      %v2860 = vunpack.c.l.b16 %v2550
      %v2861 = vunpack.c.h.b16 %v2550
      %v2862 = vunpack.c.l.b16 %v2551
      %v2863 = vunpack.c.h.b16 %v2551
      %v2864 = vunpack.c.l.b16 %v2552
      %v2865 = vunpack.c.h.b16 %v2552
      %v2866 = vunpack.c.l.b16 %v2553
      %v2867 = vunpack.c.h.b16 %v2553
      %v2868 = vunpack.c.l.b16 %v2554
      %v2869 = vunpack.c.h.b16 %v2554
      %v2870 = vunpack.c.l.b16 %v2555
      %v2871 = vunpack.c.h.b16 %v2555
      %v2872 = vunpack.c.l.b16 %v2556
      %v2873 = vunpack.c.h.b16 %v2556
      %v2874 = vunpack.c.l.b16 %v2557
      %v2875 = vunpack.c.h.b16 %v2557
      %v2876 = vunpack.c.l.b16 %v2558
      %v2877 = vunpack.c.h.b16 %v2558
      %v2878 = vunpack.c.l.b16 %v2559
      %v2879 = vunpack.c.h.b16 %v2559
      %v2880 = vunpack.c.l.b16 %v2560
      %v2881 = vunpack.c.h.b16 %v2560
      %v2882 = vunpack.c.l.b16 %v2561
      %v2883 = vunpack.c.h.b16 %v2561
      %v2884 = vunpack.c.l.b16 %v2562
      %v2885 = vunpack.c.h.b16 %v2562
      %v2886 = vunpack.c.l.b16 %v2563
      %v2887 = vunpack.c.h.b16 %v2563
      %v2888 = vunpack.c.l.b16 %v2564
      %v2889 = vunpack.c.h.b16 %v2564
      %v2890 = vunpack.c.l.b16 %v2565
      %v2891 = vunpack.c.h.b16 %v2565
      %v2892 = vunpack.c.l.b16 %v2566
      %v2893 = vunpack.c.h.b16 %v2566
      %v2894 = vunpack.c.l.b16 %v2567
      %v2895 = vunpack.c.h.b16 %v2567
      %v2896 = vunpack.c.l.b16 %v2568
      %v2897 = vunpack.c.h.b16 %v2568
      %v2898 = vunpack.c.l.b16 %v2569
      %v2899 = vunpack.c.h.b16 %v2569
      %v2900 = vunpack.c.l.b16 %v2570
      %v2901 = vunpack.c.h.b16 %v2570
      %v2902 = vunpack.c.l.b16 %v2571
      %v2903 = vunpack.c.h.b16 %v2571
      %v2904 = vunpack.c.l.b16 %v2572
      %v2905 = vunpack.c.h.b16 %v2572
      %v2906 = vunpack.c.l.b16 %v2573
      %v2907 = vunpack.c.h.b16 %v2573
      %v2908 = vunpack.c.l.b16 %v2574
      %v2909 = vunpack.c.h.b16 %v2574
      %v2910 = vunpack.c.l.b16 %v2575
      %v2911 = vunpack.c.h.b16 %v2575
      %v2912 = vunpack.c.l.b16 %v2576
      %v2913 = vunpack.c.h.b16 %v2576
      %v2914 = vunpack.c.l.b16 %v2577
      %v2915 = vunpack.c.h.b16 %v2577
      %v2916 = vunpack.c.l.b16 %v2578
      %v2917 = vunpack.c.h.b16 %v2578
      %v2918 = vunpack.c.l.b16 %v2579
      %v2919 = vunpack.c.h.b16 %v2579
      %v2920 = vunpack.c.l.b16 %v2580
      %v2921 = vunpack.c.h.b16 %v2580
      %v2922 = vunpack.c.l.b16 %v2581
      %v2923 = vunpack.c.h.b16 %v2581
      %v2924 = vunpack.c.l.b16 %v2582
      %v2925 = vunpack.c.h.b16 %v2582
      %v2926 = vunpack.c.l.b16 %v2583
      %v2927 = vunpack.c.h.b16 %v2583
      %v2928 = vunpack.c.l.b16 %v2584
      %v2929 = vunpack.c.h.b16 %v2584
      %v2930 = vunpack.c.l.b16 %v2585
      %v2931 = vunpack.c.h.b16 %v2585
      %v2932 = vunpack.c.l.b16 %v2586
      %v2933 = vunpack.c.h.b16 %v2586
      %v2934 = vunpack.c.l.b16 %v2587
      %v2935 = vunpack.c.h.b16 %v2587
      %v2936 = vunpack.c.l.b16 %v2588
      %v2937 = vunpack.c.h.b16 %v2588
      %v2938 = vunpack.c.l.b16 %v2589
      %v2939 = vunpack.c.h.b16 %v2589
      %v2940 = vunpack.c.l.b16 %v2590
      %v2941 = vunpack.c.h.b16 %v2590
      %v2942 = vunpack.c.l.b16 %v2591
      %v2943 = vunpack.c.h.b16 %v2591
      %v2944 = vunpack.c.l.b16 %v2592
      %v2945 = vunpack.c.h.b16 %v2592
      %v2946 = vunpack.c.l.b16 %v2593
      %v2947 = vunpack.c.h.b16 %v2593
      %v2948 = vpack.c.b16 %v2822, %v2820
      %v2949 = vpack.c.b16 %v2823, %v2821
      %v2950 = vpack.c.b16 %v2826, %v2824
      %v2951 = vpack.c.b16 %v2827, %v2825
      %v2952 = vpack.c.b16 %v2830, %v2828
      %v2953 = vpack.c.b16 %v2831, %v2829
      %v2954 = vpack.c.b16 %v2834, %v2832
      %v2955 = vpack.c.b16 %v2835, %v2833
      %v2956 = vpack.c.b16 %v2838, %v2836
      %v2957 = vpack.c.b16 %v2839, %v2837
      %v2958 = vpack.c.b16 %v2842, %v2840
      %v2959 = vpack.c.b16 %v2843, %v2841
      %v2960 = vpack.c.b16 %v2846, %v2844
      %v2961 = vpack.c.b16 %v2847, %v2845
      %v2962 = vpack.c.b16 %v2850, %v2848
      %v2963 = vpack.c.b16 %v2851, %v2849
      %v2964 = vpack.c.b16 %v2854, %v2852
      %v2965 = vpack.c.b16 %v2855, %v2853
      %v2966 = vpack.c.b16 %v2858, %v2856
      %v2967 = vpack.c.b16 %v2859, %v2857
      %v2968 = vpack.c.b16 %v2862, %v2860
      %v2969 = vpack.c.b16 %v2863, %v2861
      %v2970 = vpack.c.b16 %v2866, %v2864
      %v2971 = vpack.c.b16 %v2867, %v2865
      %v2972 = vpack.c.b16 %v2870, %v2868
      %v2973 = vpack.c.b16 %v2871, %v2869
      %v2974 = vpack.c.b16 %v2874, %v2872
      %v2975 = vpack.c.b16 %v2875, %v2873
      %v2976 = vpack.c.b16 %v2878, %v2876
      %v2977 = vpack.c.b16 %v2879, %v2877
      %v2978 = vpack.c.b16 %v2882, %v2880
      %v2979 = vpack.c.b16 %v2883, %v2881
      %v2980 = vpack.c.b16 %v2886, %v2884
      %v2981 = vpack.c.b16 %v2887, %v2885
      %v2982 = vpack.c.b16 %v2890, %v2888
      %v2983 = vpack.c.b16 %v2891, %v2889
      %v2984 = vpack.c.b16 %v2894, %v2892
      %v2985 = vpack.c.b16 %v2895, %v2893
      %v2986 = vpack.c.b16 %v2898, %v2896
      %v2987 = vpack.c.b16 %v2899, %v2897
      %v2988 = vpack.c.b16 %v2902, %v2900
      %v2989 = vpack.c.b16 %v2903, %v2901
      %v2990 = vpack.c.b16 %v2906, %v2904
      %v2991 = vpack.c.b16 %v2907, %v2905
      %v2992 = vpack.c.b16 %v2910, %v2908
      %v2993 = vpack.c.b16 %v2911, %v2909
      %v2994 = vpack.c.b16 %v2914, %v2912
      %v2995 = vpack.c.b16 %v2915, %v2913
      %v2996 = vpack.c.b16 %v2918, %v2916
      %v2997 = vpack.c.b16 %v2919, %v2917
      %v2998 = vpack.c.b16 %v2922, %v2920
      %v2999 = vpack.c.b16 %v2923, %v2921
      %v3000 = vpack.c.b16 %v2926, %v2924
      %v3001 = vpack.c.b16 %v2927, %v2925
      %v3002 = vpack.c.b16 %v2930, %v2928
      %v3003 = vpack.c.b16 %v2931, %v2929
      %v3004 = vpack.c.b16 %v2934, %v2932
      %v3005 = vpack.c.b16 %v2935, %v2933
      %v3006 = vpack.c.b16 %v2938, %v2936
      %v3007 = vpack.c.b16 %v2939, %v2937
      %v3008 = vpack.c.b16 %v2942, %v2940
      %v3009 = vpack.c.b16 %v2943, %v2941
      %v3010 = vpack.c.b16 %v2946, %v2944
      %v3011 = vpack.c.b16 %v2947, %v2945
      %3076 = vmatpush.bf16.msra.mxu0 %v2962
      %3077 = vmatpush.bf16.msra.mxu0 %v2960
      %3078 = vmatpush.bf16.msra.mxu0 %v2958
      %3079 = vmatpush.bf16.msra.mxu0 %v2956
      %3080 = vmatpush.bf16.msra.mxu0 %v2954
      %3081 = vmatpush.bf16.msra.mxu0 %v2952
      %3082 = vmatpush.bf16.msra.mxu0 %v2950
      %3083 = vmatpush.bf16.msra.mxu0 %v2948
      %3084 = vmatmul.bf16.gmra.mxu0 %v2627
      %v3085 = vpop.f32.mrf.mxu0
      %v3086 = vadd.f32 0.0, %v3085
      %v3087 = vpop.f32.mrf.mxu0
      %v3088 = vadd.f32 0.0, %v3087
      %3089 = vmatmul.bf16.gmra.mxu0 %v2671
      %v3090 = vpop.f32.mrf.mxu0
      %v3091 = vadd.f32 0.0, %v3090
      %v3092 = vpop.f32.mrf.mxu0
      %v3093 = vadd.f32 0.0, %v3092
      %3094 = vmatmul.bf16.gmra.mxu0 %v2703
      %v3095 = vpop.f32.mrf.mxu0
      %v3096 = vadd.f32 0.0, %v3095
      %v3097 = vpop.f32.mrf.mxu0
      %v3098 = vadd.f32 0.0, %v3097
      %3099 = vmatmul.bf16.gmra.mxu0 %v2730
      %v3100 = vpop.f32.mrf.mxu0
      %v3101 = vadd.f32 0.0, %v3100
      %v3102 = vpop.f32.mrf.mxu0
      %v3103 = vadd.f32 0.0, %v3102
      %3104 = vdwg.mxu0
      %3105 = vmatpush.bf16.msra.mxu0 %v2978
      %3106 = vmatpush.bf16.msra.mxu0 %v2976
      %3107 = vmatpush.bf16.msra.mxu0 %v2974
      %3108 = vmatpush.bf16.msra.mxu0 %v2972
      %3109 = vmatpush.bf16.msra.mxu0 %v2970
      %3110 = vmatpush.bf16.msra.mxu0 %v2968
      %3111 = vmatpush.bf16.msra.mxu0 %v2966
      %3112 = vmatpush.bf16.msra.mxu0 %v2964
      %3113 = vmatmul.bf16.gmra.mxu0 %v2639
      %v3114 = vpop.f32.mrf.mxu0
      %v3115 = vadd.f32 %v3086, %v3114
      %v3116 = vpop.f32.mrf.mxu0
      %v3117 = vadd.f32 %v3088, %v3116
      %3118 = vmatmul.bf16.gmra.mxu0 %v2679
      %v3119 = vpop.f32.mrf.mxu0
      %v3120 = vadd.f32 %v3091, %v3119
      %v3121 = vpop.f32.mrf.mxu0
      %v3122 = vadd.f32 %v3093, %v3121
      %3123 = vmatmul.bf16.gmra.mxu0 %v2711
      %v3124 = vpop.f32.mrf.mxu0
      %v3125 = vadd.f32 %v3096, %v3124
      %v3126 = vpop.f32.mrf.mxu0
      %v3127 = vadd.f32 %v3098, %v3126
      %3128 = vmatmul.bf16.gmra.mxu0 %v2733
      %v3129 = vpop.f32.mrf.mxu0
      %v3130 = vadd.f32 %v3101, %v3129
      %v3131 = vpop.f32.mrf.mxu0
      %v3132 = vadd.f32 %v3103, %v3131
      %3133 = vdwg.mxu0
      %3134 = vmatpush.bf16.msra.mxu0 %v2994
      %3135 = vmatpush.bf16.msra.mxu0 %v2992
      %3136 = vmatpush.bf16.msra.mxu0 %v2990
      %3137 = vmatpush.bf16.msra.mxu0 %v2988
      %3138 = vmatpush.bf16.msra.mxu0 %v2986
      %3139 = vmatpush.bf16.msra.mxu0 %v2984
      %3140 = vmatpush.bf16.msra.mxu0 %v2982
      %3141 = vmatpush.bf16.msra.mxu0 %v2980
      %3142 = vmatmul.bf16.gmra.mxu0 %v2651
      %v3143 = vpop.f32.mrf.mxu0
      %v3144 = vadd.f32 %v3115, %v3143
      %v3145 = vpop.f32.mrf.mxu0
      %v3146 = vadd.f32 %v3117, %v3145
      %3147 = vmatmul.bf16.gmra.mxu0 %v2687
      %v3148 = vpop.f32.mrf.mxu0
      %v3149 = vadd.f32 %v3120, %v3148
      %v3150 = vpop.f32.mrf.mxu0
      %v3151 = vadd.f32 %v3122, %v3150
      %3152 = vmatmul.bf16.gmra.mxu0 %v2719
      %v3153 = vpop.f32.mrf.mxu0
      %v3154 = vadd.f32 %v3125, %v3153
      %v3155 = vpop.f32.mrf.mxu0
      %v3156 = vadd.f32 %v3127, %v3155
      %3157 = vmatmul.bf16.gmra.mxu0 %v2736
      %v3158 = vpop.f32.mrf.mxu0
      %v3159 = vadd.f32 %v3130, %v3158
      %v3160 = vpop.f32.mrf.mxu0
      %v3161 = vadd.f32 %v3132, %v3160
      %3162 = vdwg.mxu0
      %3163 = vmatpush.bf16.msra.mxu0 %v3010
      %3164 = vmatpush.bf16.msra.mxu0 %v3008
      %3165 = vmatpush.bf16.msra.mxu0 %v3006
      %3166 = vmatpush.bf16.msra.mxu0 %v3004
      %3167 = vmatpush.bf16.msra.mxu0 %v3002
      %3168 = vmatpush.bf16.msra.mxu0 %v3000
      %3169 = vmatpush.bf16.msra.mxu0 %v2998
      %3170 = vmatpush.bf16.msra.mxu0 %v2996
      %3171 = vmatmul.bf16.gmra.mxu0 %v2663
      %v3172 = vpop.f32.mrf.mxu0
      %v3173 = vadd.f32 %v3144, %v3172
      %v3174 = vpop.f32.mrf.mxu0
      %v3175 = vadd.f32 %v3146, %v3174
      %3176 = vmatmul.bf16.gmra.mxu0 %v2695
      %v3177 = vpop.f32.mrf.mxu0
      %v3178 = vadd.f32 %v3149, %v3177
      %v3179 = vpop.f32.mrf.mxu0
      %v3180 = vadd.f32 %v3151, %v3179
      %3181 = vmatmul.bf16.gmra.mxu0 %v2727
      %v3182 = vpop.f32.mrf.mxu0
      %v3183 = vadd.f32 %v3154, %v3182
      %v3184 = vpop.f32.mrf.mxu0
      %v3185 = vadd.f32 %v3156, %v3184
      %3186 = vmatmul.bf16.gmra.mxu0 %v2739
      %v3187 = vpop.f32.mrf.mxu0
      %v3188 = vadd.f32 %v3159, %v3187
      %v3189 = vpop.f32.mrf.mxu0
      %v3190 = vadd.f32 %v3161, %v3189
      %3191 = vdwg.mxu0
      %3192 = vmatpush.bf16.msra.mxu0 %v2963
      %3193 = vmatpush.bf16.msra.mxu0 %v2961
      %3194 = vmatpush.bf16.msra.mxu0 %v2959
      %3195 = vmatpush.bf16.msra.mxu0 %v2957
      %3196 = vmatpush.bf16.msra.mxu0 %v2955
      %3197 = vmatpush.bf16.msra.mxu0 %v2953
      %3198 = vmatpush.bf16.msra.mxu0 %v2951
      %3199 = vmatpush.bf16.msra.mxu0 %v2949
      %3200 = vmatmul.bf16.gmra.mxu0 %v2627
      %v3201 = vpop.f32.mrf.mxu0
      %v3202 = vadd.f32 0.0, %v3201
      %v3203 = vpop.f32.mrf.mxu0
      %v3204 = vadd.f32 0.0, %v3203
      %3205 = vmatmul.bf16.gmra.mxu0 %v2671
      %v3206 = vpop.f32.mrf.mxu0
      %v3207 = vadd.f32 0.0, %v3206
      %v3208 = vpop.f32.mrf.mxu0
      %v3209 = vadd.f32 0.0, %v3208
      %3210 = vmatmul.bf16.gmra.mxu0 %v2703
      %v3211 = vpop.f32.mrf.mxu0
      %v3212 = vadd.f32 0.0, %v3211
      %v3213 = vpop.f32.mrf.mxu0
      %v3214 = vadd.f32 0.0, %v3213
      %3215 = vmatmul.bf16.gmra.mxu0 %v2730
      %v3216 = vpop.f32.mrf.mxu0
      %v3217 = vadd.f32 0.0, %v3216
      %v3218 = vpop.f32.mrf.mxu0
      %v3219 = vadd.f32 0.0, %v3218
      %3220 = vdwg.mxu0
      %3221 = vmatpush.bf16.msra.mxu0 %v2979
      %3222 = vmatpush.bf16.msra.mxu0 %v2977
      %3223 = vmatpush.bf16.msra.mxu0 %v2975
      %3224 = vmatpush.bf16.msra.mxu0 %v2973
      %3225 = vmatpush.bf16.msra.mxu0 %v2971
      %3226 = vmatpush.bf16.msra.mxu0 %v2969
      %3227 = vmatpush.bf16.msra.mxu0 %v2967
      %3228 = vmatpush.bf16.msra.mxu0 %v2965
      %3229 = vmatmul.bf16.gmra.mxu0 %v2639
      %v3230 = vpop.f32.mrf.mxu0
      %v3231 = vadd.f32 %v3202, %v3230
      %v3232 = vpop.f32.mrf.mxu0
      %v3233 = vadd.f32 %v3204, %v3232
      %3234 = vmatmul.bf16.gmra.mxu0 %v2679
      %v3235 = vpop.f32.mrf.mxu0
      %v3236 = vadd.f32 %v3207, %v3235
      %v3237 = vpop.f32.mrf.mxu0
      %v3238 = vadd.f32 %v3209, %v3237
      %3239 = vmatmul.bf16.gmra.mxu0 %v2711
      %v3240 = vpop.f32.mrf.mxu0
      %v3241 = vadd.f32 %v3212, %v3240
      %v3242 = vpop.f32.mrf.mxu0
      %v3243 = vadd.f32 %v3214, %v3242
      %3244 = vmatmul.bf16.gmra.mxu0 %v2733
      %v3245 = vpop.f32.mrf.mxu0
      %v3246 = vadd.f32 %v3217, %v3245
      %v3247 = vpop.f32.mrf.mxu0
      %v3248 = vadd.f32 %v3219, %v3247
      %3249 = vdwg.mxu0
      %3250 = vmatpush.bf16.msra.mxu0 %v2995
      %3251 = vmatpush.bf16.msra.mxu0 %v2993
      %3252 = vmatpush.bf16.msra.mxu0 %v2991
      %3253 = vmatpush.bf16.msra.mxu0 %v2989
      %3254 = vmatpush.bf16.msra.mxu0 %v2987
      %3255 = vmatpush.bf16.msra.mxu0 %v2985
      %3256 = vmatpush.bf16.msra.mxu0 %v2983
      %3257 = vmatpush.bf16.msra.mxu0 %v2981
      %3258 = vmatmul.bf16.gmra.mxu0 %v2651
      %v3259 = vpop.f32.mrf.mxu0
      %v3260 = vadd.f32 %v3231, %v3259
      %v3261 = vpop.f32.mrf.mxu0
      %v3262 = vadd.f32 %v3233, %v3261
      %3263 = vmatmul.bf16.gmra.mxu0 %v2687
      %v3264 = vpop.f32.mrf.mxu0
      %v3265 = vadd.f32 %v3236, %v3264
      %v3266 = vpop.f32.mrf.mxu0
      %v3267 = vadd.f32 %v3238, %v3266
      %3268 = vmatmul.bf16.gmra.mxu0 %v2719
      %v3269 = vpop.f32.mrf.mxu0
      %v3270 = vadd.f32 %v3241, %v3269
      %v3271 = vpop.f32.mrf.mxu0
      %v3272 = vadd.f32 %v3243, %v3271
      %3273 = vmatmul.bf16.gmra.mxu0 %v2736
      %v3274 = vpop.f32.mrf.mxu0
      %v3275 = vadd.f32 %v3246, %v3274
      %v3276 = vpop.f32.mrf.mxu0
      %v3277 = vadd.f32 %v3248, %v3276
      %3278 = vdwg.mxu0
      %3279 = vmatpush.bf16.msra.mxu0 %v3011
      %3280 = vmatpush.bf16.msra.mxu0 %v3009
      %3281 = vmatpush.bf16.msra.mxu0 %v3007
      %3282 = vmatpush.bf16.msra.mxu0 %v3005
      %3283 = vmatpush.bf16.msra.mxu0 %v3003
      %3284 = vmatpush.bf16.msra.mxu0 %v3001
      %3285 = vmatpush.bf16.msra.mxu0 %v2999
      %3286 = vmatpush.bf16.msra.mxu0 %v2997
      %3287 = vmatmul.bf16.gmra.mxu0 %v2663
      %v3288 = vpop.f32.mrf.mxu0
      %v3289 = vadd.f32 %v3260, %v3288
      %v3290 = vpop.f32.mrf.mxu0
      %v3291 = vadd.f32 %v3262, %v3290
      %3292 = vmatmul.bf16.gmra.mxu0 %v2695
      %v3293 = vpop.f32.mrf.mxu0
      %v3294 = vadd.f32 %v3265, %v3293
      %v3295 = vpop.f32.mrf.mxu0
      %v3296 = vadd.f32 %v3267, %v3295
      %3297 = vmatmul.bf16.gmra.mxu0 %v2727
      %v3298 = vpop.f32.mrf.mxu0
      %v3299 = vadd.f32 %v3270, %v3298
      %v3300 = vpop.f32.mrf.mxu0
      %v3301 = vadd.f32 %v3272, %v3300
      %3302 = vmatmul.bf16.gmra.mxu0 %v2739
      %v3303 = vpop.f32.mrf.mxu0
      %v3304 = vadd.f32 %v3275, %v3303
      %v3305 = vpop.f32.mrf.mxu0
      %v3306 = vadd.f32 %v3277, %v3305
      %3307 = vdwg.mxu0
      %v3308 = vadd.f32 %v2511, %v3173
      %v3309 = vadd.f32 %v2512, %v3289
      %v3310 = vadd.f32 %v2513, %v3175
      %v3311 = vadd.f32 %v2514, %v3291
      %v3312 = vadd.f32 %v2515, %v3178
      %v3313 = vadd.f32 %v2516, %v3294
      %v3314 = vadd.f32 %v2517, %v3180
      %v3315 = vadd.f32 %v2518, %v3296
      %v3316 = vadd.f32 %v2519, %v3183
      %v3317 = vadd.f32 %v2520, %v3299
      %v3318 = vadd.f32 %v2521, %v3185
      %v3319 = vadd.f32 %v2522, %v3301
      %v3320 = vadd.f32 %v2523, %v3188
      %v3321 = vadd.f32 %v2524, %v3304
      %v3322 = vadd.f32 %v2525, %v3190
      %v3323 = vadd.f32 %v2526, %v3306
      %v3324 = vld [vmem:[%s272 + $0x10] sm:$0xee]
      %v3325 = vld [vmem:[%s272 + $0x18] sm:$0xee]
      %v3326 = vld [vmem:[%s272 + $0x20] sm:$0xff]
      %v3327 = vld [vmem:[%s272 + $0x28] sm:$0xff]
      %v3328 = vld [vmem:[%s272 + $0x30] sm:$0xff]
      %v3329 = vld [vmem:[%s272 + $0x38] sm:$0xff]
      %v3330 = vld [vmem:[%s272 + $0x40] sm:$0xff]
      %v3331 = vld [vmem:[%s272 + $0x48] sm:$0xff]
      %v3332 = vld [vmem:[%s272 + $0x50] sm:$0xff]
      %v3333 = vld [vmem:[%s272 + $0x58] sm:$0xff]
      %v3334 = vld [vmem:[%s272 + $0x60] sm:$0xff]
      %v3335 = vld [vmem:[%s272 + $0x68] sm:$0xff]
      %v3336 = vld [vmem:[%s272 + $0x70] sm:$0xff]
      %v3337 = vld [vmem:[%s272 + $0x78] sm:$0xff]
      %v3338 = vld [vmem:[%s272 + $0x80] sm:$0xff]
      %v3339 = vld [vmem:[%s272 + $0x88] sm:$0xff]
      %v3340 = vld [vmem:[%s272 + $0x90] sm:$0x11]
      %v3341 = vld [vmem:[%s272 + $0x98] sm:$0x11]
      %s3342 = scalar_lea.vmem %s2, 2048
      %v3343 = vld [vmem:[%s3342] sm:$0xff]
      %v3344 = vld [vmem:[%s3342 + $0x8] sm:$0xff]
      %v3345 = vld [vmem:[%s3342 + $0x10] sm:$0xff]
      %v3346 = vld [vmem:[%s3342 + $0x18] sm:$0xff]
      %v3347 = vld [vmem:[%s3342 + $0x20] sm:$0xff]
      %v3348 = vld [vmem:[%s3342 + $0x28] sm:$0xff]
      %v3349 = vld [vmem:[%s3342 + $0x30] sm:$0xff]
      %v3350 = vld [vmem:[%s3342 + $0x38] sm:$0xff]
      %v3351 = vld [vmem:[%s3342 + $0x40] sm:$0xff]
      %v3352 = vld [vmem:[%s3342 + $0x48] sm:$0xff]
      %v3353 = vld [vmem:[%s3342 + $0x50] sm:$0xff]
      %v3354 = vld [vmem:[%s3342 + $0x58] sm:$0xff]
      %v3355 = vld [vmem:[%s3342 + $0x60] sm:$0xff]
      %v3356 = vld [vmem:[%s3342 + $0x68] sm:$0xff]
      %v3357 = vld [vmem:[%s3342 + $0x70] sm:$0xff]
      %v3358 = vld [vmem:[%s3342 + $0x78] sm:$0xff]
      %v3359 = vld [vmem:[%s3342 + $0x80] sm:$0xff]
      %v3360 = vld [vmem:[%s3342 + $0x88] sm:$0xff]
      %v3361 = vld [vmem:[%s3342 + $0x90] sm:$0xff]
      %v3362 = vld [vmem:[%s3342 + $0x98] sm:$0xff]
      %v3363 = vld [vmem:[%s3342 + $0xa0] sm:$0xff]
      %v3364 = vld [vmem:[%s3342 + $0xa8] sm:$0xff]
      %v3365 = vld [vmem:[%s3342 + $0xb0] sm:$0xff]
      %v3366 = vld [vmem:[%s3342 + $0xb8] sm:$0xff]
      %v3367 = vld [vmem:[%s3342 + $0xc0] sm:$0xff]
      %v3368 = vld [vmem:[%s3342 + $0xc8] sm:$0xff]
      %v3369 = vld [vmem:[%s3342 + $0xd0] sm:$0xff]
      %v3370 = vld [vmem:[%s3342 + $0xd8] sm:$0xff]
      %v3371 = vld [vmem:[%s3342 + $0xe0] sm:$0xff]
      %v3372 = vld [vmem:[%s3342 + $0xe8] sm:$0xff]
      %v3373 = vld [vmem:[%s3342 + $0xf0] sm:$0xff]
      %v3374 = vld [vmem:[%s3342 + $0xf8] sm:$0xff]
      %v3375 = vld [vmem:[%s3342 + $0x100] sm:$0xff]
      %v3376 = vld [vmem:[%s3342 + $0x108] sm:$0xff]
      %v3377 = vld [vmem:[%s3342 + $0x110] sm:$0xff]
      %v3378 = vld [vmem:[%s3342 + $0x118] sm:$0xff]
      %v3379 = vld [vmem:[%s3342 + $0x120] sm:$0xff]
      %v3380 = vld [vmem:[%s3342 + $0x128] sm:$0xff]
      %v3381 = vld [vmem:[%s3342 + $0x130] sm:$0xff]
      %v3382 = vld [vmem:[%s3342 + $0x138] sm:$0xff]
      %v3383 = vld [vmem:[%s3342 + $0x140] sm:$0xff]
      %v3384 = vld [vmem:[%s3342 + $0x148] sm:$0xff]
      %v3385 = vld [vmem:[%s3342 + $0x150] sm:$0xff]
      %v3386 = vld [vmem:[%s3342 + $0x158] sm:$0xff]
      %v3387 = vld [vmem:[%s3342 + $0x160] sm:$0xff]
      %v3388 = vld [vmem:[%s3342 + $0x168] sm:$0xff]
      %v3389 = vld [vmem:[%s3342 + $0x170] sm:$0xff]
      %v3390 = vld [vmem:[%s3342 + $0x178] sm:$0xff]
      %v3391 = vld [vmem:[%s3342 + $0x180] sm:$0xff]
      %v3392 = vld [vmem:[%s3342 + $0x188] sm:$0xff]
      %v3393 = vld [vmem:[%s3342 + $0x190] sm:$0xff]
      %v3394 = vld [vmem:[%s3342 + $0x198] sm:$0xff]
      %v3395 = vld [vmem:[%s3342 + $0x1a0] sm:$0xff]
      %v3396 = vld [vmem:[%s3342 + $0x1a8] sm:$0xff]
      %v3397 = vld [vmem:[%s3342 + $0x1b0] sm:$0xff]
      %v3398 = vld [vmem:[%s3342 + $0x1b8] sm:$0xff]
      %v3399 = vld [vmem:[%s3342 + $0x1c0] sm:$0xff]
      %v3400 = vld [vmem:[%s3342 + $0x1c8] sm:$0xff]
      %v3401 = vld [vmem:[%s3342 + $0x1d0] sm:$0xff]
      %v3402 = vld [vmem:[%s3342 + $0x1d8] sm:$0xff]
      %v3403 = vld [vmem:[%s3342 + $0x1e0] sm:$0xff]
      %v3404 = vld [vmem:[%s3342 + $0x1e8] sm:$0xff]
      %v3405 = vld [vmem:[%s3342 + $0x1f0] sm:$0xff]
      %v3406 = vld [vmem:[%s3342 + $0x1f8] sm:$0xff]
      %v3425 = vunpack.c.l.b16 %v3324
      %v3426 = vunpack.c.h.b16 %v3324
      %v3427 = vunpack.c.l.b16 %v3325
      %v3428 = vunpack.c.h.b16 %v3325
      %v3429 = vunpack.c.l.b16 %v3326
      %v3430 = vunpack.c.h.b16 %v3326
      %v3431 = vunpack.c.l.b16 %v3327
      %v3432 = vunpack.c.h.b16 %v3327
      %v3433 = vunpack.c.l.b16 %v3328
      %v3434 = vunpack.c.h.b16 %v3328
      %v3435 = vunpack.c.l.b16 %v3329
      %v3436 = vunpack.c.h.b16 %v3329
      %v3437 = vunpack.c.l.b16 %v3330
      %v3438 = vunpack.c.h.b16 %v3330
      %v3439 = vunpack.c.l.b16 %v3331
      %v3440 = vunpack.c.h.b16 %v3331
      %v3441 = vunpack.c.l.b16 %v3332
      %v3442 = vunpack.c.h.b16 %v3332
      %v3443 = vunpack.c.l.b16 %v3333
      %v3444 = vunpack.c.h.b16 %v3333
      %v3445 = vunpack.c.l.b16 %v3334
      %v3446 = vunpack.c.h.b16 %v3334
      %v3447 = vunpack.c.l.b16 %v3335
      %v3448 = vunpack.c.h.b16 %v3335
      %v3449 = vunpack.c.l.b16 %v3336
      %v3450 = vunpack.c.h.b16 %v3336
      %v3451 = vunpack.c.l.b16 %v3337
      %v3452 = vunpack.c.h.b16 %v3337
      %v3453 = vunpack.c.l.b16 %v3338
      %v3454 = vunpack.c.h.b16 %v3338
      %v3455 = vunpack.c.l.b16 %v3339
      %v3456 = vunpack.c.h.b16 %v3339
      %v3457 = vunpack.c.l.b16 %v3340
      %v3458 = vunpack.c.h.b16 %v3340
      %v3459 = vunpack.c.l.b16 %v3341
      %v3460 = vunpack.c.h.b16 %v3341
      %v3461 = vpack.c.b16 %v3429, %v3425
      %v3462 = vpack.c.b16 %v3430, %v3426
      %v3463 = vpack.c.b16 %v3431, %v3427
      %v3464 = vpack.c.b16 %v3432, %v3428
      %v3465 = vpack.c.b16 %v3437, %v3433
      %v3466 = vpack.c.b16 %v3438, %v3434
      %v3467 = vpack.c.b16 %v3439, %v3435
      %v3468 = vpack.c.b16 %v3440, %v3436
      %v3469 = vpack.c.b16 %v3445, %v3441
      %v3470 = vpack.c.b16 %v3446, %v3442
      %v3471 = vpack.c.b16 %v3447, %v3443
      %v3472 = vpack.c.b16 %v3448, %v3444
      %v3473 = vpack.c.b16 %v3453, %v3449
      %v3474 = vpack.c.b16 %v3454, %v3450
      %v3475 = vpack.c.b16 %v3455, %v3451
      %v3476 = vpack.c.b16 %v3456, %v3452
      %v3477 = vpack.c.b16 %v3457, %v3457
      %v3478 = vpack.c.b16 %v3458, %v3458
      %v3479 = vpack.c.b16 %v3459, %v3459
      %v3480 = vpack.c.b16 %v3460, %v3460
      %v3481 = vrot.slane %v3461, 1
      %v3482 = vrot.slane %v3465, 1
      %v3483 = vsel %vm1906, %v3481, %v3482
      %v3484 = vrot.slane %v3462, 1
      %v3485 = vrot.slane %v3466, 1
      %v3486 = vsel %vm1906, %v3484, %v3485
      %v3487 = vrot.slane %v3463, 1
      %v3488 = vrot.slane %v3467, 1
      %v3489 = vsel %vm1906, %v3487, %v3488
      %v3490 = vrot.slane %v3464, 1
      %v3491 = vrot.slane %v3468, 1
      %v3492 = vsel %vm1906, %v3490, %v3491
      %v3493 = vrot.slane %v3469, 1
      %v3494 = vsel %vm1906, %v3482, %v3493
      %v3495 = vrot.slane %v3470, 1
      %v3496 = vsel %vm1906, %v3485, %v3495
      %v3497 = vrot.slane %v3471, 1
      %v3498 = vsel %vm1906, %v3488, %v3497
      %v3499 = vrot.slane %v3472, 1
      %v3500 = vsel %vm1906, %v3491, %v3499
      %v3501 = vrot.slane %v3473, 1
      %v3502 = vsel %vm1906, %v3493, %v3501
      %v3503 = vrot.slane %v3474, 1
      %v3504 = vsel %vm1906, %v3495, %v3503
      %v3505 = vrot.slane %v3475, 1
      %v3506 = vsel %vm1906, %v3497, %v3505
      %v3507 = vrot.slane %v3476, 1
      %v3508 = vsel %vm1906, %v3499, %v3507
      %v3509 = vrot.slane %v3477, 1
      %v3510 = vsel %vm1906, %v3501, %v3509
      %v3511 = vrot.slane %v3478, 1
      %v3512 = vsel %vm1906, %v3503, %v3511
      %v3513 = vrot.slane %v3479, 1
      %v3514 = vsel %vm1906, %v3505, %v3513
      %v3515 = vrot.slane %v3480, 1
      %v3516 = vsel %vm1906, %v3507, %v3515
      %v3597 = vunpack.c.l.b16 %v3343
      %v3598 = vunpack.c.h.b16 %v3343
      %v3599 = vunpack.c.l.b16 %v3344
      %v3600 = vunpack.c.h.b16 %v3344
      %v3601 = vunpack.c.l.b16 %v3345
      %v3602 = vunpack.c.h.b16 %v3345
      %v3603 = vunpack.c.l.b16 %v3346
      %v3604 = vunpack.c.h.b16 %v3346
      %v3605 = vunpack.c.l.b16 %v3347
      %v3606 = vunpack.c.h.b16 %v3347
      %v3607 = vunpack.c.l.b16 %v3348
      %v3608 = vunpack.c.h.b16 %v3348
      %v3609 = vunpack.c.l.b16 %v3349
      %v3610 = vunpack.c.h.b16 %v3349
      %v3611 = vunpack.c.l.b16 %v3350
      %v3612 = vunpack.c.h.b16 %v3350
      %v3613 = vunpack.c.l.b16 %v3351
      %v3614 = vunpack.c.h.b16 %v3351
      %v3615 = vunpack.c.l.b16 %v3352
      %v3616 = vunpack.c.h.b16 %v3352
      %v3617 = vunpack.c.l.b16 %v3353
      %v3618 = vunpack.c.h.b16 %v3353
      %v3619 = vunpack.c.l.b16 %v3354
      %v3620 = vunpack.c.h.b16 %v3354
      %v3621 = vunpack.c.l.b16 %v3355
      %v3622 = vunpack.c.h.b16 %v3355
      %v3623 = vunpack.c.l.b16 %v3356
      %v3624 = vunpack.c.h.b16 %v3356
      %v3625 = vunpack.c.l.b16 %v3357
      %v3626 = vunpack.c.h.b16 %v3357
      %v3627 = vunpack.c.l.b16 %v3358
      %v3628 = vunpack.c.h.b16 %v3358
      %v3629 = vunpack.c.l.b16 %v3359
      %v3630 = vunpack.c.h.b16 %v3359
      %v3631 = vunpack.c.l.b16 %v3360
      %v3632 = vunpack.c.h.b16 %v3360
      %v3633 = vunpack.c.l.b16 %v3361
      %v3634 = vunpack.c.h.b16 %v3361
      %v3635 = vunpack.c.l.b16 %v3362
      %v3636 = vunpack.c.h.b16 %v3362
      %v3637 = vunpack.c.l.b16 %v3363
      %v3638 = vunpack.c.h.b16 %v3363
      %v3639 = vunpack.c.l.b16 %v3364
      %v3640 = vunpack.c.h.b16 %v3364
      %v3641 = vunpack.c.l.b16 %v3365
      %v3642 = vunpack.c.h.b16 %v3365
      %v3643 = vunpack.c.l.b16 %v3366
      %v3644 = vunpack.c.h.b16 %v3366
      %v3645 = vunpack.c.l.b16 %v3367
      %v3646 = vunpack.c.h.b16 %v3367
      %v3647 = vunpack.c.l.b16 %v3368
      %v3648 = vunpack.c.h.b16 %v3368
      %v3649 = vunpack.c.l.b16 %v3369
      %v3650 = vunpack.c.h.b16 %v3369
      %v3651 = vunpack.c.l.b16 %v3370
      %v3652 = vunpack.c.h.b16 %v3370
      %v3653 = vunpack.c.l.b16 %v3371
      %v3654 = vunpack.c.h.b16 %v3371
      %v3655 = vunpack.c.l.b16 %v3372
      %v3656 = vunpack.c.h.b16 %v3372
      %v3657 = vunpack.c.l.b16 %v3373
      %v3658 = vunpack.c.h.b16 %v3373
      %v3659 = vunpack.c.l.b16 %v3374
      %v3660 = vunpack.c.h.b16 %v3374
      %v3661 = vunpack.c.l.b16 %v3375
      %v3662 = vunpack.c.h.b16 %v3375
      %v3663 = vunpack.c.l.b16 %v3376
      %v3664 = vunpack.c.h.b16 %v3376
      %v3665 = vunpack.c.l.b16 %v3377
      %v3666 = vunpack.c.h.b16 %v3377
      %v3667 = vunpack.c.l.b16 %v3378
      %v3668 = vunpack.c.h.b16 %v3378
      %v3669 = vunpack.c.l.b16 %v3379
      %v3670 = vunpack.c.h.b16 %v3379
      %v3671 = vunpack.c.l.b16 %v3380
      %v3672 = vunpack.c.h.b16 %v3380
      %v3673 = vunpack.c.l.b16 %v3381
      %v3674 = vunpack.c.h.b16 %v3381
      %v3675 = vunpack.c.l.b16 %v3382
      %v3676 = vunpack.c.h.b16 %v3382
      %v3677 = vunpack.c.l.b16 %v3383
      %v3678 = vunpack.c.h.b16 %v3383
      %v3679 = vunpack.c.l.b16 %v3384
      %v3680 = vunpack.c.h.b16 %v3384
      %v3681 = vunpack.c.l.b16 %v3385
      %v3682 = vunpack.c.h.b16 %v3385
      %v3683 = vunpack.c.l.b16 %v3386
      %v3684 = vunpack.c.h.b16 %v3386
      %v3685 = vunpack.c.l.b16 %v3387
      %v3686 = vunpack.c.h.b16 %v3387
      %v3687 = vunpack.c.l.b16 %v3388
      %v3688 = vunpack.c.h.b16 %v3388
      %v3689 = vunpack.c.l.b16 %v3389
      %v3690 = vunpack.c.h.b16 %v3389
      %v3691 = vunpack.c.l.b16 %v3390
      %v3692 = vunpack.c.h.b16 %v3390
      %v3693 = vunpack.c.l.b16 %v3391
      %v3694 = vunpack.c.h.b16 %v3391
      %v3695 = vunpack.c.l.b16 %v3392
      %v3696 = vunpack.c.h.b16 %v3392
      %v3697 = vunpack.c.l.b16 %v3393
      %v3698 = vunpack.c.h.b16 %v3393
      %v3699 = vunpack.c.l.b16 %v3394
      %v3700 = vunpack.c.h.b16 %v3394
      %v3701 = vunpack.c.l.b16 %v3395
      %v3702 = vunpack.c.h.b16 %v3395
      %v3703 = vunpack.c.l.b16 %v3396
      %v3704 = vunpack.c.h.b16 %v3396
      %v3705 = vunpack.c.l.b16 %v3397
      %v3706 = vunpack.c.h.b16 %v3397
      %v3707 = vunpack.c.l.b16 %v3398
      %v3708 = vunpack.c.h.b16 %v3398
      %v3709 = vunpack.c.l.b16 %v3399
      %v3710 = vunpack.c.h.b16 %v3399
      %v3711 = vunpack.c.l.b16 %v3400
      %v3712 = vunpack.c.h.b16 %v3400
      %v3713 = vunpack.c.l.b16 %v3401
      %v3714 = vunpack.c.h.b16 %v3401
      %v3715 = vunpack.c.l.b16 %v3402
      %v3716 = vunpack.c.h.b16 %v3402
      %v3717 = vunpack.c.l.b16 %v3403
      %v3718 = vunpack.c.h.b16 %v3403
      %v3719 = vunpack.c.l.b16 %v3404
      %v3720 = vunpack.c.h.b16 %v3404
      %v3721 = vunpack.c.l.b16 %v3405
      %v3722 = vunpack.c.h.b16 %v3405
      %v3723 = vunpack.c.l.b16 %v3406
      %v3724 = vunpack.c.h.b16 %v3406
      %v3725 = vpack.c.b16 %v3599, %v3597
      %v3726 = vpack.c.b16 %v3600, %v3598
      %v3727 = vpack.c.b16 %v3603, %v3601
      %v3728 = vpack.c.b16 %v3604, %v3602
      %v3729 = vpack.c.b16 %v3607, %v3605
      %v3730 = vpack.c.b16 %v3608, %v3606
      %v3731 = vpack.c.b16 %v3611, %v3609
      %v3732 = vpack.c.b16 %v3612, %v3610
      %v3733 = vpack.c.b16 %v3615, %v3613
      %v3734 = vpack.c.b16 %v3616, %v3614
      %v3735 = vpack.c.b16 %v3619, %v3617
      %v3736 = vpack.c.b16 %v3620, %v3618
      %v3737 = vpack.c.b16 %v3623, %v3621
      %v3738 = vpack.c.b16 %v3624, %v3622
      %v3739 = vpack.c.b16 %v3627, %v3625
      %v3740 = vpack.c.b16 %v3628, %v3626
      %v3741 = vpack.c.b16 %v3631, %v3629
      %v3742 = vpack.c.b16 %v3632, %v3630
      %v3743 = vpack.c.b16 %v3635, %v3633
      %v3744 = vpack.c.b16 %v3636, %v3634
      %v3745 = vpack.c.b16 %v3639, %v3637
      %v3746 = vpack.c.b16 %v3640, %v3638
      %v3747 = vpack.c.b16 %v3643, %v3641
      %v3748 = vpack.c.b16 %v3644, %v3642
      %v3749 = vpack.c.b16 %v3647, %v3645
      %v3750 = vpack.c.b16 %v3648, %v3646
      %v3751 = vpack.c.b16 %v3651, %v3649
      %v3752 = vpack.c.b16 %v3652, %v3650
      %v3753 = vpack.c.b16 %v3655, %v3653
      %v3754 = vpack.c.b16 %v3656, %v3654
      %v3755 = vpack.c.b16 %v3659, %v3657
      %v3756 = vpack.c.b16 %v3660, %v3658
      %v3757 = vpack.c.b16 %v3663, %v3661
      %v3758 = vpack.c.b16 %v3664, %v3662
      %v3759 = vpack.c.b16 %v3667, %v3665
      %v3760 = vpack.c.b16 %v3668, %v3666
      %v3761 = vpack.c.b16 %v3671, %v3669
      %v3762 = vpack.c.b16 %v3672, %v3670
      %v3763 = vpack.c.b16 %v3675, %v3673
      %v3764 = vpack.c.b16 %v3676, %v3674
      %v3765 = vpack.c.b16 %v3679, %v3677
      %v3766 = vpack.c.b16 %v3680, %v3678
      %v3767 = vpack.c.b16 %v3683, %v3681
      %v3768 = vpack.c.b16 %v3684, %v3682
      %v3769 = vpack.c.b16 %v3687, %v3685
      %v3770 = vpack.c.b16 %v3688, %v3686
      %v3771 = vpack.c.b16 %v3691, %v3689
      %v3772 = vpack.c.b16 %v3692, %v3690
      %v3773 = vpack.c.b16 %v3695, %v3693
      %v3774 = vpack.c.b16 %v3696, %v3694
      %v3775 = vpack.c.b16 %v3699, %v3697
      %v3776 = vpack.c.b16 %v3700, %v3698
      %v3777 = vpack.c.b16 %v3703, %v3701
      %v3778 = vpack.c.b16 %v3704, %v3702
      %v3779 = vpack.c.b16 %v3707, %v3705
      %v3780 = vpack.c.b16 %v3708, %v3706
      %v3781 = vpack.c.b16 %v3711, %v3709
      %v3782 = vpack.c.b16 %v3712, %v3710
      %v3783 = vpack.c.b16 %v3715, %v3713
      %v3784 = vpack.c.b16 %v3716, %v3714
      %v3785 = vpack.c.b16 %v3719, %v3717
      %v3786 = vpack.c.b16 %v3720, %v3718
      %v3787 = vpack.c.b16 %v3723, %v3721
      %v3788 = vpack.c.b16 %v3724, %v3722
      %3853 = vmatpush.bf16.msra.mxu0 %v3739
      %3854 = vmatpush.bf16.msra.mxu0 %v3737
      %3855 = vmatpush.bf16.msra.mxu0 %v3735
      %3856 = vmatpush.bf16.msra.mxu0 %v3733
      %3857 = vmatpush.bf16.msra.mxu0 %v3731
      %3858 = vmatpush.bf16.msra.mxu0 %v3729
      %3859 = vmatpush.bf16.msra.mxu0 %v3727
      %3860 = vmatpush.bf16.msra.mxu0 %v3725
      %3861 = vmatmul.bf16.gmra.mxu0 %v3483
      %v3862 = vpop.f32.mrf.mxu0
      %v3863 = vadd.f32 0.0, %v3862
      %v3864 = vpop.f32.mrf.mxu0
      %v3865 = vadd.f32 0.0, %v3864
      %3866 = vmatmul.bf16.gmra.mxu0 %v3494
      %v3867 = vpop.f32.mrf.mxu0
      %v3868 = vadd.f32 0.0, %v3867
      %v3869 = vpop.f32.mrf.mxu0
      %v3870 = vadd.f32 0.0, %v3869
      %3871 = vmatmul.bf16.gmra.mxu0 %v3502
      %v3872 = vpop.f32.mrf.mxu0
      %v3873 = vadd.f32 0.0, %v3872
      %v3874 = vpop.f32.mrf.mxu0
      %v3875 = vadd.f32 0.0, %v3874
      %3876 = vmatmul.bf16.gmra.mxu0 %v3510
      %v3877 = vpop.f32.mrf.mxu0
      %v3878 = vadd.f32 0.0, %v3877
      %v3879 = vpop.f32.mrf.mxu0
      %v3880 = vadd.f32 0.0, %v3879
      %3881 = vdwg.mxu0
      %3882 = vmatpush.bf16.msra.mxu0 %v3755
      %3883 = vmatpush.bf16.msra.mxu0 %v3753
      %3884 = vmatpush.bf16.msra.mxu0 %v3751
      %3885 = vmatpush.bf16.msra.mxu0 %v3749
      %3886 = vmatpush.bf16.msra.mxu0 %v3747
      %3887 = vmatpush.bf16.msra.mxu0 %v3745
      %3888 = vmatpush.bf16.msra.mxu0 %v3743
      %3889 = vmatpush.bf16.msra.mxu0 %v3741
      %3890 = vmatmul.bf16.gmra.mxu0 %v3486
      %v3891 = vpop.f32.mrf.mxu0
      %v3892 = vadd.f32 %v3863, %v3891
      %v3893 = vpop.f32.mrf.mxu0
      %v3894 = vadd.f32 %v3865, %v3893
      %3895 = vmatmul.bf16.gmra.mxu0 %v3496
      %v3896 = vpop.f32.mrf.mxu0
      %v3897 = vadd.f32 %v3868, %v3896
      %v3898 = vpop.f32.mrf.mxu0
      %v3899 = vadd.f32 %v3870, %v3898
      %3900 = vmatmul.bf16.gmra.mxu0 %v3504
      %v3901 = vpop.f32.mrf.mxu0
      %v3902 = vadd.f32 %v3873, %v3901
      %v3903 = vpop.f32.mrf.mxu0
      %v3904 = vadd.f32 %v3875, %v3903
      %3905 = vmatmul.bf16.gmra.mxu0 %v3512
      %v3906 = vpop.f32.mrf.mxu0
      %v3907 = vadd.f32 %v3878, %v3906
      %v3908 = vpop.f32.mrf.mxu0
      %v3909 = vadd.f32 %v3880, %v3908
      %3910 = vdwg.mxu0
      %3911 = vmatpush.bf16.msra.mxu0 %v3771
      %3912 = vmatpush.bf16.msra.mxu0 %v3769
      %3913 = vmatpush.bf16.msra.mxu0 %v3767
      %3914 = vmatpush.bf16.msra.mxu0 %v3765
      %3915 = vmatpush.bf16.msra.mxu0 %v3763
      %3916 = vmatpush.bf16.msra.mxu0 %v3761
      %3917 = vmatpush.bf16.msra.mxu0 %v3759
      %3918 = vmatpush.bf16.msra.mxu0 %v3757
      %3919 = vmatmul.bf16.gmra.mxu0 %v3489
      %v3920 = vpop.f32.mrf.mxu0
      %v3921 = vadd.f32 %v3892, %v3920
      %v3922 = vpop.f32.mrf.mxu0
      %v3923 = vadd.f32 %v3894, %v3922
      %3924 = vmatmul.bf16.gmra.mxu0 %v3498
      %v3925 = vpop.f32.mrf.mxu0
      %v3926 = vadd.f32 %v3897, %v3925
      %v3927 = vpop.f32.mrf.mxu0
      %v3928 = vadd.f32 %v3899, %v3927
      %3929 = vmatmul.bf16.gmra.mxu0 %v3506
      %v3930 = vpop.f32.mrf.mxu0
      %v3931 = vadd.f32 %v3902, %v3930
      %v3932 = vpop.f32.mrf.mxu0
      %v3933 = vadd.f32 %v3904, %v3932
      %3934 = vmatmul.bf16.gmra.mxu0 %v3514
      %v3935 = vpop.f32.mrf.mxu0
      %v3936 = vadd.f32 %v3907, %v3935
      %v3937 = vpop.f32.mrf.mxu0
      %v3938 = vadd.f32 %v3909, %v3937
      %3939 = vdwg.mxu0
      %3940 = vmatpush.bf16.msra.mxu0 %v3787
      %3941 = vmatpush.bf16.msra.mxu0 %v3785
      %3942 = vmatpush.bf16.msra.mxu0 %v3783
      %3943 = vmatpush.bf16.msra.mxu0 %v3781
      %3944 = vmatpush.bf16.msra.mxu0 %v3779
      %3945 = vmatpush.bf16.msra.mxu0 %v3777
      %3946 = vmatpush.bf16.msra.mxu0 %v3775
      %3947 = vmatpush.bf16.msra.mxu0 %v3773
      %3948 = vmatmul.bf16.gmra.mxu0 %v3492
      %v3949 = vpop.f32.mrf.mxu0
      %v3950 = vadd.f32 %v3921, %v3949
      %v3951 = vpop.f32.mrf.mxu0
      %v3952 = vadd.f32 %v3923, %v3951
      %3953 = vmatmul.bf16.gmra.mxu0 %v3500
      %v3954 = vpop.f32.mrf.mxu0
      %v3955 = vadd.f32 %v3926, %v3954
      %v3956 = vpop.f32.mrf.mxu0
      %v3957 = vadd.f32 %v3928, %v3956
      %3958 = vmatmul.bf16.gmra.mxu0 %v3508
      %v3959 = vpop.f32.mrf.mxu0
      %v3960 = vadd.f32 %v3931, %v3959
      %v3961 = vpop.f32.mrf.mxu0
      %v3962 = vadd.f32 %v3933, %v3961
      %3963 = vmatmul.bf16.gmra.mxu0 %v3516
      %v3964 = vpop.f32.mrf.mxu0
      %v3965 = vadd.f32 %v3936, %v3964
      %v3966 = vpop.f32.mrf.mxu0
      %v3967 = vadd.f32 %v3938, %v3966
      %3968 = vdwg.mxu0
      %3969 = vmatpush.bf16.msra.mxu0 %v3740
      %3970 = vmatpush.bf16.msra.mxu0 %v3738
      %3971 = vmatpush.bf16.msra.mxu0 %v3736
      %3972 = vmatpush.bf16.msra.mxu0 %v3734
      %3973 = vmatpush.bf16.msra.mxu0 %v3732
      %3974 = vmatpush.bf16.msra.mxu0 %v3730
      %3975 = vmatpush.bf16.msra.mxu0 %v3728
      %3976 = vmatpush.bf16.msra.mxu0 %v3726
      %3977 = vmatmul.bf16.gmra.mxu0 %v3483
      %v3978 = vpop.f32.mrf.mxu0
      %v3979 = vadd.f32 0.0, %v3978
      %v3980 = vpop.f32.mrf.mxu0
      %v3981 = vadd.f32 0.0, %v3980
      %3982 = vmatmul.bf16.gmra.mxu0 %v3494
      %v3983 = vpop.f32.mrf.mxu0
      %v3984 = vadd.f32 0.0, %v3983
      %v3985 = vpop.f32.mrf.mxu0
      %v3986 = vadd.f32 0.0, %v3985
      %3987 = vmatmul.bf16.gmra.mxu0 %v3502
      %v3988 = vpop.f32.mrf.mxu0
      %v3989 = vadd.f32 0.0, %v3988
      %v3990 = vpop.f32.mrf.mxu0
      %v3991 = vadd.f32 0.0, %v3990
      %3992 = vmatmul.bf16.gmra.mxu0 %v3510
      %v3993 = vpop.f32.mrf.mxu0
      %v3994 = vadd.f32 0.0, %v3993
      %v3995 = vpop.f32.mrf.mxu0
      %v3996 = vadd.f32 0.0, %v3995
      %3997 = vdwg.mxu0
      %3998 = vmatpush.bf16.msra.mxu0 %v3756
      %3999 = vmatpush.bf16.msra.mxu0 %v3754
      %4000 = vmatpush.bf16.msra.mxu0 %v3752
      %4001 = vmatpush.bf16.msra.mxu0 %v3750
      %4002 = vmatpush.bf16.msra.mxu0 %v3748
      %4003 = vmatpush.bf16.msra.mxu0 %v3746
      %4004 = vmatpush.bf16.msra.mxu0 %v3744
      %4005 = vmatpush.bf16.msra.mxu0 %v3742
      %4006 = vmatmul.bf16.gmra.mxu0 %v3486
      %v4007 = vpop.f32.mrf.mxu0
      %v4008 = vadd.f32 %v3979, %v4007
      %v4009 = vpop.f32.mrf.mxu0
      %v4010 = vadd.f32 %v3981, %v4009
      %4011 = vmatmul.bf16.gmra.mxu0 %v3496
      %v4012 = vpop.f32.mrf.mxu0
      %v4013 = vadd.f32 %v3984, %v4012
      %v4014 = vpop.f32.mrf.mxu0
      %v4015 = vadd.f32 %v3986, %v4014
      %4016 = vmatmul.bf16.gmra.mxu0 %v3504
      %v4017 = vpop.f32.mrf.mxu0
      %v4018 = vadd.f32 %v3989, %v4017
      %v4019 = vpop.f32.mrf.mxu0
      %v4020 = vadd.f32 %v3991, %v4019
      %4021 = vmatmul.bf16.gmra.mxu0 %v3512
      %v4022 = vpop.f32.mrf.mxu0
      %v4023 = vadd.f32 %v3994, %v4022
      %v4024 = vpop.f32.mrf.mxu0
      %v4025 = vadd.f32 %v3996, %v4024
      %4026 = vdwg.mxu0
      %4027 = vmatpush.bf16.msra.mxu0 %v3772
      %4028 = vmatpush.bf16.msra.mxu0 %v3770
      %4029 = vmatpush.bf16.msra.mxu0 %v3768
      %4030 = vmatpush.bf16.msra.mxu0 %v3766
      %4031 = vmatpush.bf16.msra.mxu0 %v3764
      %4032 = vmatpush.bf16.msra.mxu0 %v3762
      %4033 = vmatpush.bf16.msra.mxu0 %v3760
      %4034 = vmatpush.bf16.msra.mxu0 %v3758
      %4035 = vmatmul.bf16.gmra.mxu0 %v3489
      %v4036 = vpop.f32.mrf.mxu0
      %v4037 = vadd.f32 %v4008, %v4036
      %v4038 = vpop.f32.mrf.mxu0
      %v4039 = vadd.f32 %v4010, %v4038
      %4040 = vmatmul.bf16.gmra.mxu0 %v3498
      %v4041 = vpop.f32.mrf.mxu0
      %v4042 = vadd.f32 %v4013, %v4041
      %v4043 = vpop.f32.mrf.mxu0
      %v4044 = vadd.f32 %v4015, %v4043
      %4045 = vmatmul.bf16.gmra.mxu0 %v3506
      %v4046 = vpop.f32.mrf.mxu0
      %v4047 = vadd.f32 %v4018, %v4046
      %v4048 = vpop.f32.mrf.mxu0
      %v4049 = vadd.f32 %v4020, %v4048
      %4050 = vmatmul.bf16.gmra.mxu0 %v3514
      %v4051 = vpop.f32.mrf.mxu0
      %v4052 = vadd.f32 %v4023, %v4051
      %v4053 = vpop.f32.mrf.mxu0
      %v4054 = vadd.f32 %v4025, %v4053
      %4055 = vdwg.mxu0
      %4056 = vmatpush.bf16.msra.mxu0 %v3788
      %4057 = vmatpush.bf16.msra.mxu0 %v3786
      %4058 = vmatpush.bf16.msra.mxu0 %v3784
      %4059 = vmatpush.bf16.msra.mxu0 %v3782
      %4060 = vmatpush.bf16.msra.mxu0 %v3780
      %4061 = vmatpush.bf16.msra.mxu0 %v3778
      %4062 = vmatpush.bf16.msra.mxu0 %v3776
      %4063 = vmatpush.bf16.msra.mxu0 %v3774
      %4064 = vmatmul.bf16.gmra.mxu0 %v3492
      %v4065 = vpop.f32.mrf.mxu0
      %v4066 = vadd.f32 %v4037, %v4065
      %v4067 = vpop.f32.mrf.mxu0
      %v4068 = vadd.f32 %v4039, %v4067
      %4069 = vmatmul.bf16.gmra.mxu0 %v3500
      %v4070 = vpop.f32.mrf.mxu0
      %v4071 = vadd.f32 %v4042, %v4070
      %v4072 = vpop.f32.mrf.mxu0
      %v4073 = vadd.f32 %v4044, %v4072
      %4074 = vmatmul.bf16.gmra.mxu0 %v3508
      %v4075 = vpop.f32.mrf.mxu0
      %v4076 = vadd.f32 %v4047, %v4075
      %v4077 = vpop.f32.mrf.mxu0
      %v4078 = vadd.f32 %v4049, %v4077
      %4079 = vmatmul.bf16.gmra.mxu0 %v3516
      %v4080 = vpop.f32.mrf.mxu0
      %v4081 = vadd.f32 %v4052, %v4080
      %v4082 = vpop.f32.mrf.mxu0
      %v4083 = vadd.f32 %v4054, %v4082
      %4084 = vdwg.mxu0
      %v4085 = vadd.f32 %v3308, %v3950
      %v4086 = vadd.f32 %v3309, %v4066
      %v4087 = vadd.f32 %v3310, %v3952
      %v4088 = vadd.f32 %v3311, %v4068
      %v4089 = vadd.f32 %v3312, %v3955
      %v4090 = vadd.f32 %v3313, %v4071
      %v4091 = vadd.f32 %v3314, %v3957
      %v4092 = vadd.f32 %v3315, %v4073
      %v4093 = vadd.f32 %v3316, %v3960
      %v4094 = vadd.f32 %v3317, %v4076
      %v4095 = vadd.f32 %v3318, %v3962
      %v4096 = vadd.f32 %v3319, %v4078
      %v4097 = vadd.f32 %v3320, %v3965
      %v4098 = vadd.f32 %v3321, %v4081
      %v4099 = vadd.f32 %v3322, %v3967
      %v4100 = vadd.f32 %v3323, %v4083
      %s4101 = scalar_lea.vmem %s2, 2560
      %v4102 = vld [vmem:[%s4101] sm:$0xff]
      %v4103 = vld [vmem:[%s4101 + $0x8] sm:$0xff]
      %v4104 = vld [vmem:[%s4101 + $0x10] sm:$0xff]
      %v4105 = vld [vmem:[%s4101 + $0x18] sm:$0xff]
      %v4106 = vld [vmem:[%s4101 + $0x20] sm:$0xff]
      %v4107 = vld [vmem:[%s4101 + $0x28] sm:$0xff]
      %v4108 = vld [vmem:[%s4101 + $0x30] sm:$0xff]
      %v4109 = vld [vmem:[%s4101 + $0x38] sm:$0xff]
      %v4110 = vld [vmem:[%s4101 + $0x40] sm:$0xff]
      %v4111 = vld [vmem:[%s4101 + $0x48] sm:$0xff]
      %v4112 = vld [vmem:[%s4101 + $0x50] sm:$0xff]
      %v4113 = vld [vmem:[%s4101 + $0x58] sm:$0xff]
      %v4114 = vld [vmem:[%s4101 + $0x60] sm:$0xff]
      %v4115 = vld [vmem:[%s4101 + $0x68] sm:$0xff]
      %v4116 = vld [vmem:[%s4101 + $0x70] sm:$0xff]
      %v4117 = vld [vmem:[%s4101 + $0x78] sm:$0xff]
      %v4118 = vld [vmem:[%s4101 + $0x80] sm:$0xff]
      %v4119 = vld [vmem:[%s4101 + $0x88] sm:$0xff]
      %v4120 = vld [vmem:[%s4101 + $0x90] sm:$0xff]
      %v4121 = vld [vmem:[%s4101 + $0x98] sm:$0xff]
      %v4122 = vld [vmem:[%s4101 + $0xa0] sm:$0xff]
      %v4123 = vld [vmem:[%s4101 + $0xa8] sm:$0xff]
      %v4124 = vld [vmem:[%s4101 + $0xb0] sm:$0xff]
      %v4125 = vld [vmem:[%s4101 + $0xb8] sm:$0xff]
      %v4126 = vld [vmem:[%s4101 + $0xc0] sm:$0xff]
      %v4127 = vld [vmem:[%s4101 + $0xc8] sm:$0xff]
      %v4128 = vld [vmem:[%s4101 + $0xd0] sm:$0xff]
      %v4129 = vld [vmem:[%s4101 + $0xd8] sm:$0xff]
      %v4130 = vld [vmem:[%s4101 + $0xe0] sm:$0xff]
      %v4131 = vld [vmem:[%s4101 + $0xe8] sm:$0xff]
      %v4132 = vld [vmem:[%s4101 + $0xf0] sm:$0xff]
      %v4133 = vld [vmem:[%s4101 + $0xf8] sm:$0xff]
      %v4134 = vld [vmem:[%s4101 + $0x100] sm:$0xff]
      %v4135 = vld [vmem:[%s4101 + $0x108] sm:$0xff]
      %v4136 = vld [vmem:[%s4101 + $0x110] sm:$0xff]
      %v4137 = vld [vmem:[%s4101 + $0x118] sm:$0xff]
      %v4138 = vld [vmem:[%s4101 + $0x120] sm:$0xff]
      %v4139 = vld [vmem:[%s4101 + $0x128] sm:$0xff]
      %v4140 = vld [vmem:[%s4101 + $0x130] sm:$0xff]
      %v4141 = vld [vmem:[%s4101 + $0x138] sm:$0xff]
      %v4142 = vld [vmem:[%s4101 + $0x140] sm:$0xff]
      %v4143 = vld [vmem:[%s4101 + $0x148] sm:$0xff]
      %v4144 = vld [vmem:[%s4101 + $0x150] sm:$0xff]
      %v4145 = vld [vmem:[%s4101 + $0x158] sm:$0xff]
      %v4146 = vld [vmem:[%s4101 + $0x160] sm:$0xff]
      %v4147 = vld [vmem:[%s4101 + $0x168] sm:$0xff]
      %v4148 = vld [vmem:[%s4101 + $0x170] sm:$0xff]
      %v4149 = vld [vmem:[%s4101 + $0x178] sm:$0xff]
      %v4150 = vld [vmem:[%s4101 + $0x180] sm:$0xff]
      %v4151 = vld [vmem:[%s4101 + $0x188] sm:$0xff]
      %v4152 = vld [vmem:[%s4101 + $0x190] sm:$0xff]
      %v4153 = vld [vmem:[%s4101 + $0x198] sm:$0xff]
      %v4154 = vld [vmem:[%s4101 + $0x1a0] sm:$0xff]
      %v4155 = vld [vmem:[%s4101 + $0x1a8] sm:$0xff]
      %v4156 = vld [vmem:[%s4101 + $0x1b0] sm:$0xff]
      %v4157 = vld [vmem:[%s4101 + $0x1b8] sm:$0xff]
      %v4158 = vld [vmem:[%s4101 + $0x1c0] sm:$0xff]
      %v4159 = vld [vmem:[%s4101 + $0x1c8] sm:$0xff]
      %v4160 = vld [vmem:[%s4101 + $0x1d0] sm:$0xff]
      %v4161 = vld [vmem:[%s4101 + $0x1d8] sm:$0xff]
      %v4162 = vld [vmem:[%s4101 + $0x1e0] sm:$0xff]
      %v4163 = vld [vmem:[%s4101 + $0x1e8] sm:$0xff]
      %v4164 = vld [vmem:[%s4101 + $0x1f0] sm:$0xff]
      %v4165 = vld [vmem:[%s4101 + $0x1f8] sm:$0xff]
      %vm4166 = vsmask.f32 6400
      %v4168 = vshrl.u32 %v3461, 16
      %v4170 = vrot.slane %v4168, 1
      %v4171 = vshll.u32 %v3461, 16
      %v4173 = vrot.slane %v4171, 2
      %v4174 = vor.u32 %v4170, %v4173
      %v4176 = vshrl.u32 %v3465, 16
      %v4178 = vrot.slane %v4176, 1
      %v4179 = vshll.u32 %v3465, 16
      %v4181 = vrot.slane %v4179, 2
      %v4182 = vor.u32 %v4178, %v4181
      %v4183 = vsel %vm4166, %v4174, %v4182
      %v4185 = vshrl.u32 %v3462, 16
      %v4187 = vrot.slane %v4185, 1
      %v4188 = vshll.u32 %v3462, 16
      %v4190 = vrot.slane %v4188, 2
      %v4191 = vor.u32 %v4187, %v4190
      %v4193 = vshrl.u32 %v3466, 16
      %v4195 = vrot.slane %v4193, 1
      %v4196 = vshll.u32 %v3466, 16
      %v4198 = vrot.slane %v4196, 2
      %v4199 = vor.u32 %v4195, %v4198
      %v4200 = vsel %vm4166, %v4191, %v4199
      %v4202 = vshrl.u32 %v3463, 16
      %v4204 = vrot.slane %v4202, 1
      %v4205 = vshll.u32 %v3463, 16
      %v4207 = vrot.slane %v4205, 2
      %v4208 = vor.u32 %v4204, %v4207
      %v4210 = vshrl.u32 %v3467, 16
      %v4212 = vrot.slane %v4210, 1
      %v4213 = vshll.u32 %v3467, 16
      %v4215 = vrot.slane %v4213, 2
      %v4216 = vor.u32 %v4212, %v4215
      %v4217 = vsel %vm4166, %v4208, %v4216
      %v4219 = vshrl.u32 %v3464, 16
      %v4221 = vrot.slane %v4219, 1
      %v4222 = vshll.u32 %v3464, 16
      %v4224 = vrot.slane %v4222, 2
      %v4225 = vor.u32 %v4221, %v4224
      %v4227 = vshrl.u32 %v3468, 16
      %v4229 = vrot.slane %v4227, 1
      %v4230 = vshll.u32 %v3468, 16
      %v4232 = vrot.slane %v4230, 2
      %v4233 = vor.u32 %v4229, %v4232
      %v4234 = vsel %vm4166, %v4225, %v4233
      %v4236 = vshrl.u32 %v3469, 16
      %v4238 = vrot.slane %v4236, 1
      %v4239 = vshll.u32 %v3469, 16
      %v4241 = vrot.slane %v4239, 2
      %v4242 = vor.u32 %v4238, %v4241
      %v4243 = vsel %vm4166, %v4182, %v4242
      %v4245 = vshrl.u32 %v3470, 16
      %v4247 = vrot.slane %v4245, 1
      %v4248 = vshll.u32 %v3470, 16
      %v4250 = vrot.slane %v4248, 2
      %v4251 = vor.u32 %v4247, %v4250
      %v4252 = vsel %vm4166, %v4199, %v4251
      %v4254 = vshrl.u32 %v3471, 16
      %v4256 = vrot.slane %v4254, 1
      %v4257 = vshll.u32 %v3471, 16
      %v4259 = vrot.slane %v4257, 2
      %v4260 = vor.u32 %v4256, %v4259
      %v4261 = vsel %vm4166, %v4216, %v4260
      %v4263 = vshrl.u32 %v3472, 16
      %v4265 = vrot.slane %v4263, 1
      %v4266 = vshll.u32 %v3472, 16
      %v4268 = vrot.slane %v4266, 2
      %v4269 = vor.u32 %v4265, %v4268
      %v4270 = vsel %vm4166, %v4233, %v4269
      %v4272 = vshrl.u32 %v3473, 16
      %v4274 = vrot.slane %v4272, 1
      %v4275 = vshll.u32 %v3473, 16
      %v4277 = vrot.slane %v4275, 2
      %v4278 = vor.u32 %v4274, %v4277
      %v4279 = vsel %vm4166, %v4242, %v4278
      %v4281 = vshrl.u32 %v3474, 16
      %v4283 = vrot.slane %v4281, 1
      %v4284 = vshll.u32 %v3474, 16
      %v4286 = vrot.slane %v4284, 2
      %v4287 = vor.u32 %v4283, %v4286
      %v4288 = vsel %vm4166, %v4251, %v4287
      %v4290 = vshrl.u32 %v3475, 16
      %v4292 = vrot.slane %v4290, 1
      %v4293 = vshll.u32 %v3475, 16
      %v4295 = vrot.slane %v4293, 2
      %v4296 = vor.u32 %v4292, %v4295
      %v4297 = vsel %vm4166, %v4260, %v4296
      %v4299 = vshrl.u32 %v3476, 16
      %v4301 = vrot.slane %v4299, 1
      %v4302 = vshll.u32 %v3476, 16
      %v4304 = vrot.slane %v4302, 2
      %v4305 = vor.u32 %v4301, %v4304
      %v4306 = vsel %vm4166, %v4269, %v4305
      %v4308 = vshrl.u32 %v3477, 16
      %v4310 = vrot.slane %v4308, 1
      %v4311 = vshll.u32 %v3477, 16
      %v4313 = vrot.slane %v4311, 2
      %v4314 = vor.u32 %v4310, %v4313
      %v4315 = vsel %vm4166, %v4278, %v4314
      %v4317 = vshrl.u32 %v3478, 16
      %v4319 = vrot.slane %v4317, 1
      %v4320 = vshll.u32 %v3478, 16
      %v4322 = vrot.slane %v4320, 2
      %v4323 = vor.u32 %v4319, %v4322
      %v4324 = vsel %vm4166, %v4287, %v4323
      %v4326 = vshrl.u32 %v3479, 16
      %v4328 = vrot.slane %v4326, 1
      %v4329 = vshll.u32 %v3479, 16
      %v4331 = vrot.slane %v4329, 2
      %v4332 = vor.u32 %v4328, %v4331
      %v4333 = vsel %vm4166, %v4296, %v4332
      %v4335 = vshrl.u32 %v3480, 16
      %v4337 = vrot.slane %v4335, 1
      %v4338 = vshll.u32 %v3480, 16
      %v4340 = vrot.slane %v4338, 2
      %v4341 = vor.u32 %v4337, %v4340
      %v4342 = vsel %vm4166, %v4305, %v4341
      %v4423 = vunpack.c.l.b16 %v4102
      %v4424 = vunpack.c.h.b16 %v4102
      %v4425 = vunpack.c.l.b16 %v4103
      %v4426 = vunpack.c.h.b16 %v4103
      %v4427 = vunpack.c.l.b16 %v4104
      %v4428 = vunpack.c.h.b16 %v4104
      %v4429 = vunpack.c.l.b16 %v4105
      %v4430 = vunpack.c.h.b16 %v4105
      %v4431 = vunpack.c.l.b16 %v4106
      %v4432 = vunpack.c.h.b16 %v4106
      %v4433 = vunpack.c.l.b16 %v4107
      %v4434 = vunpack.c.h.b16 %v4107
      %v4435 = vunpack.c.l.b16 %v4108
      %v4436 = vunpack.c.h.b16 %v4108
      %v4437 = vunpack.c.l.b16 %v4109
      %v4438 = vunpack.c.h.b16 %v4109
      %v4439 = vunpack.c.l.b16 %v4110
      %v4440 = vunpack.c.h.b16 %v4110
      %v4441 = vunpack.c.l.b16 %v4111
      %v4442 = vunpack.c.h.b16 %v4111
      %v4443 = vunpack.c.l.b16 %v4112
      %v4444 = vunpack.c.h.b16 %v4112
      %v4445 = vunpack.c.l.b16 %v4113
      %v4446 = vunpack.c.h.b16 %v4113
      %v4447 = vunpack.c.l.b16 %v4114
      %v4448 = vunpack.c.h.b16 %v4114
      %v4449 = vunpack.c.l.b16 %v4115
      %v4450 = vunpack.c.h.b16 %v4115
      %v4451 = vunpack.c.l.b16 %v4116
      %v4452 = vunpack.c.h.b16 %v4116
      %v4453 = vunpack.c.l.b16 %v4117
      %v4454 = vunpack.c.h.b16 %v4117
      %v4455 = vunpack.c.l.b16 %v4118
      %v4456 = vunpack.c.h.b16 %v4118
      %v4457 = vunpack.c.l.b16 %v4119
      %v4458 = vunpack.c.h.b16 %v4119
      %v4459 = vunpack.c.l.b16 %v4120
      %v4460 = vunpack.c.h.b16 %v4120
      %v4461 = vunpack.c.l.b16 %v4121
      %v4462 = vunpack.c.h.b16 %v4121
      %v4463 = vunpack.c.l.b16 %v4122
      %v4464 = vunpack.c.h.b16 %v4122
      %v4465 = vunpack.c.l.b16 %v4123
      %v4466 = vunpack.c.h.b16 %v4123
      %v4467 = vunpack.c.l.b16 %v4124
      %v4468 = vunpack.c.h.b16 %v4124
      %v4469 = vunpack.c.l.b16 %v4125
      %v4470 = vunpack.c.h.b16 %v4125
      %v4471 = vunpack.c.l.b16 %v4126
      %v4472 = vunpack.c.h.b16 %v4126
      %v4473 = vunpack.c.l.b16 %v4127
      %v4474 = vunpack.c.h.b16 %v4127
      %v4475 = vunpack.c.l.b16 %v4128
      %v4476 = vunpack.c.h.b16 %v4128
      %v4477 = vunpack.c.l.b16 %v4129
      %v4478 = vunpack.c.h.b16 %v4129
      %v4479 = vunpack.c.l.b16 %v4130
      %v4480 = vunpack.c.h.b16 %v4130
      %v4481 = vunpack.c.l.b16 %v4131
      %v4482 = vunpack.c.h.b16 %v4131
      %v4483 = vunpack.c.l.b16 %v4132
      %v4484 = vunpack.c.h.b16 %v4132
      %v4485 = vunpack.c.l.b16 %v4133
      %v4486 = vunpack.c.h.b16 %v4133
      %v4487 = vunpack.c.l.b16 %v4134
      %v4488 = vunpack.c.h.b16 %v4134
      %v4489 = vunpack.c.l.b16 %v4135
      %v4490 = vunpack.c.h.b16 %v4135
      %v4491 = vunpack.c.l.b16 %v4136
      %v4492 = vunpack.c.h.b16 %v4136
      %v4493 = vunpack.c.l.b16 %v4137
      %v4494 = vunpack.c.h.b16 %v4137
      %v4495 = vunpack.c.l.b16 %v4138
      %v4496 = vunpack.c.h.b16 %v4138
      %v4497 = vunpack.c.l.b16 %v4139
      %v4498 = vunpack.c.h.b16 %v4139
      %v4499 = vunpack.c.l.b16 %v4140
      %v4500 = vunpack.c.h.b16 %v4140
      %v4501 = vunpack.c.l.b16 %v4141
      %v4502 = vunpack.c.h.b16 %v4141
      %v4503 = vunpack.c.l.b16 %v4142
      %v4504 = vunpack.c.h.b16 %v4142
      %v4505 = vunpack.c.l.b16 %v4143
      %v4506 = vunpack.c.h.b16 %v4143
      %v4507 = vunpack.c.l.b16 %v4144
      %v4508 = vunpack.c.h.b16 %v4144
      %v4509 = vunpack.c.l.b16 %v4145
      %v4510 = vunpack.c.h.b16 %v4145
      %v4511 = vunpack.c.l.b16 %v4146
      %v4512 = vunpack.c.h.b16 %v4146
      %v4513 = vunpack.c.l.b16 %v4147
      %v4514 = vunpack.c.h.b16 %v4147
      %v4515 = vunpack.c.l.b16 %v4148
      %v4516 = vunpack.c.h.b16 %v4148
      %v4517 = vunpack.c.l.b16 %v4149
      %v4518 = vunpack.c.h.b16 %v4149
      %v4519 = vunpack.c.l.b16 %v4150
      %v4520 = vunpack.c.h.b16 %v4150
      %v4521 = vunpack.c.l.b16 %v4151
      %v4522 = vunpack.c.h.b16 %v4151
      %v4523 = vunpack.c.l.b16 %v4152
      %v4524 = vunpack.c.h.b16 %v4152
      %v4525 = vunpack.c.l.b16 %v4153
      %v4526 = vunpack.c.h.b16 %v4153
      %v4527 = vunpack.c.l.b16 %v4154
      %v4528 = vunpack.c.h.b16 %v4154
      %v4529 = vunpack.c.l.b16 %v4155
      %v4530 = vunpack.c.h.b16 %v4155
      %v4531 = vunpack.c.l.b16 %v4156
      %v4532 = vunpack.c.h.b16 %v4156
      %v4533 = vunpack.c.l.b16 %v4157
      %v4534 = vunpack.c.h.b16 %v4157
      %v4535 = vunpack.c.l.b16 %v4158
      %v4536 = vunpack.c.h.b16 %v4158
      %v4537 = vunpack.c.l.b16 %v4159
      %v4538 = vunpack.c.h.b16 %v4159
      %v4539 = vunpack.c.l.b16 %v4160
      %v4540 = vunpack.c.h.b16 %v4160
      %v4541 = vunpack.c.l.b16 %v4161
      %v4542 = vunpack.c.h.b16 %v4161
      %v4543 = vunpack.c.l.b16 %v4162
      %v4544 = vunpack.c.h.b16 %v4162
      %v4545 = vunpack.c.l.b16 %v4163
      %v4546 = vunpack.c.h.b16 %v4163
      %v4547 = vunpack.c.l.b16 %v4164
      %v4548 = vunpack.c.h.b16 %v4164
      %v4549 = vunpack.c.l.b16 %v4165
      %v4550 = vunpack.c.h.b16 %v4165
      %v4551 = vpack.c.b16 %v4425, %v4423
      %v4552 = vpack.c.b16 %v4426, %v4424
      %v4553 = vpack.c.b16 %v4429, %v4427
      %v4554 = vpack.c.b16 %v4430, %v4428
      %v4555 = vpack.c.b16 %v4433, %v4431
      %v4556 = vpack.c.b16 %v4434, %v4432
      %v4557 = vpack.c.b16 %v4437, %v4435
      %v4558 = vpack.c.b16 %v4438, %v4436
      %v4559 = vpack.c.b16 %v4441, %v4439
      %v4560 = vpack.c.b16 %v4442, %v4440
      %v4561 = vpack.c.b16 %v4445, %v4443
      %v4562 = vpack.c.b16 %v4446, %v4444
      %v4563 = vpack.c.b16 %v4449, %v4447
      %v4564 = vpack.c.b16 %v4450, %v4448
      %v4565 = vpack.c.b16 %v4453, %v4451
      %v4566 = vpack.c.b16 %v4454, %v4452
      %v4567 = vpack.c.b16 %v4457, %v4455
      %v4568 = vpack.c.b16 %v4458, %v4456
      %v4569 = vpack.c.b16 %v4461, %v4459
      %v4570 = vpack.c.b16 %v4462, %v4460
      %v4571 = vpack.c.b16 %v4465, %v4463
      %v4572 = vpack.c.b16 %v4466, %v4464
      %v4573 = vpack.c.b16 %v4469, %v4467
      %v4574 = vpack.c.b16 %v4470, %v4468
      %v4575 = vpack.c.b16 %v4473, %v4471
      %v4576 = vpack.c.b16 %v4474, %v4472
      %v4577 = vpack.c.b16 %v4477, %v4475
      %v4578 = vpack.c.b16 %v4478, %v4476
      %v4579 = vpack.c.b16 %v4481, %v4479
      %v4580 = vpack.c.b16 %v4482, %v4480
      %v4581 = vpack.c.b16 %v4485, %v4483
      %v4582 = vpack.c.b16 %v4486, %v4484
      %v4583 = vpack.c.b16 %v4489, %v4487
      %v4584 = vpack.c.b16 %v4490, %v4488
      %v4585 = vpack.c.b16 %v4493, %v4491
      %v4586 = vpack.c.b16 %v4494, %v4492
      %v4587 = vpack.c.b16 %v4497, %v4495
      %v4588 = vpack.c.b16 %v4498, %v4496
      %v4589 = vpack.c.b16 %v4501, %v4499
      %v4590 = vpack.c.b16 %v4502, %v4500
      %v4591 = vpack.c.b16 %v4505, %v4503
      %v4592 = vpack.c.b16 %v4506, %v4504
      %v4593 = vpack.c.b16 %v4509, %v4507
      %v4594 = vpack.c.b16 %v4510, %v4508
      %v4595 = vpack.c.b16 %v4513, %v4511
      %v4596 = vpack.c.b16 %v4514, %v4512
      %v4597 = vpack.c.b16 %v4517, %v4515
      %v4598 = vpack.c.b16 %v4518, %v4516
      %v4599 = vpack.c.b16 %v4521, %v4519
      %v4600 = vpack.c.b16 %v4522, %v4520
      %v4601 = vpack.c.b16 %v4525, %v4523
      %v4602 = vpack.c.b16 %v4526, %v4524
      %v4603 = vpack.c.b16 %v4529, %v4527
      %v4604 = vpack.c.b16 %v4530, %v4528
      %v4605 = vpack.c.b16 %v4533, %v4531
      %v4606 = vpack.c.b16 %v4534, %v4532
      %v4607 = vpack.c.b16 %v4537, %v4535
      %v4608 = vpack.c.b16 %v4538, %v4536
      %v4609 = vpack.c.b16 %v4541, %v4539
      %v4610 = vpack.c.b16 %v4542, %v4540
      %v4611 = vpack.c.b16 %v4545, %v4543
      %v4612 = vpack.c.b16 %v4546, %v4544
      %v4613 = vpack.c.b16 %v4549, %v4547
      %v4614 = vpack.c.b16 %v4550, %v4548
      %4679 = vmatpush.bf16.msra.mxu0 %v4565
      %4680 = vmatpush.bf16.msra.mxu0 %v4563
      %4681 = vmatpush.bf16.msra.mxu0 %v4561
      %4682 = vmatpush.bf16.msra.mxu0 %v4559
      %4683 = vmatpush.bf16.msra.mxu0 %v4557
      %4684 = vmatpush.bf16.msra.mxu0 %v4555
      %4685 = vmatpush.bf16.msra.mxu0 %v4553
      %4686 = vmatpush.bf16.msra.mxu0 %v4551
      %4687 = vmatmul.bf16.gmra.mxu0 %v4183
      %v4688 = vpop.f32.mrf.mxu0
      %v4689 = vadd.f32 0.0, %v4688
      %v4690 = vpop.f32.mrf.mxu0
      %v4691 = vadd.f32 0.0, %v4690
      %4692 = vmatmul.bf16.gmra.mxu0 %v4243
      %v4693 = vpop.f32.mrf.mxu0
      %v4694 = vadd.f32 0.0, %v4693
      %v4695 = vpop.f32.mrf.mxu0
      %v4696 = vadd.f32 0.0, %v4695
      %4697 = vmatmul.bf16.gmra.mxu0 %v4279
      %v4698 = vpop.f32.mrf.mxu0
      %v4699 = vadd.f32 0.0, %v4698
      %v4700 = vpop.f32.mrf.mxu0
      %v4701 = vadd.f32 0.0, %v4700
      %4702 = vmatmul.bf16.gmra.mxu0 %v4315
      %v4703 = vpop.f32.mrf.mxu0
      %v4704 = vadd.f32 0.0, %v4703
      %v4705 = vpop.f32.mrf.mxu0
      %v4706 = vadd.f32 0.0, %v4705
      %4707 = vdwg.mxu0
      %4708 = vmatpush.bf16.msra.mxu0 %v4581
      %4709 = vmatpush.bf16.msra.mxu0 %v4579
      %4710 = vmatpush.bf16.msra.mxu0 %v4577
      %4711 = vmatpush.bf16.msra.mxu0 %v4575
      %4712 = vmatpush.bf16.msra.mxu0 %v4573
      %4713 = vmatpush.bf16.msra.mxu0 %v4571
      %4714 = vmatpush.bf16.msra.mxu0 %v4569
      %4715 = vmatpush.bf16.msra.mxu0 %v4567
      %4716 = vmatmul.bf16.gmra.mxu0 %v4200
      %v4717 = vpop.f32.mrf.mxu0
      %v4718 = vadd.f32 %v4689, %v4717
      %v4719 = vpop.f32.mrf.mxu0
      %v4720 = vadd.f32 %v4691, %v4719
      %4721 = vmatmul.bf16.gmra.mxu0 %v4252
      %v4722 = vpop.f32.mrf.mxu0
      %v4723 = vadd.f32 %v4694, %v4722
      %v4724 = vpop.f32.mrf.mxu0
      %v4725 = vadd.f32 %v4696, %v4724
      %4726 = vmatmul.bf16.gmra.mxu0 %v4288
      %v4727 = vpop.f32.mrf.mxu0
      %v4728 = vadd.f32 %v4699, %v4727
      %v4729 = vpop.f32.mrf.mxu0
      %v4730 = vadd.f32 %v4701, %v4729
      %4731 = vmatmul.bf16.gmra.mxu0 %v4324
      %v4732 = vpop.f32.mrf.mxu0
      %v4733 = vadd.f32 %v4704, %v4732
      %v4734 = vpop.f32.mrf.mxu0
      %v4735 = vadd.f32 %v4706, %v4734
      %4736 = vdwg.mxu0
      %4737 = vmatpush.bf16.msra.mxu0 %v4597
      %4738 = vmatpush.bf16.msra.mxu0 %v4595
      %4739 = vmatpush.bf16.msra.mxu0 %v4593
      %4740 = vmatpush.bf16.msra.mxu0 %v4591
      %4741 = vmatpush.bf16.msra.mxu0 %v4589
      %4742 = vmatpush.bf16.msra.mxu0 %v4587
      %4743 = vmatpush.bf16.msra.mxu0 %v4585
      %4744 = vmatpush.bf16.msra.mxu0 %v4583
      %4745 = vmatmul.bf16.gmra.mxu0 %v4217
      %v4746 = vpop.f32.mrf.mxu0
      %v4747 = vadd.f32 %v4718, %v4746
      %v4748 = vpop.f32.mrf.mxu0
      %v4749 = vadd.f32 %v4720, %v4748
      %4750 = vmatmul.bf16.gmra.mxu0 %v4261
      %v4751 = vpop.f32.mrf.mxu0
      %v4752 = vadd.f32 %v4723, %v4751
      %v4753 = vpop.f32.mrf.mxu0
      %v4754 = vadd.f32 %v4725, %v4753
      %4755 = vmatmul.bf16.gmra.mxu0 %v4297
      %v4756 = vpop.f32.mrf.mxu0
      %v4757 = vadd.f32 %v4728, %v4756
      %v4758 = vpop.f32.mrf.mxu0
      %v4759 = vadd.f32 %v4730, %v4758
      %4760 = vmatmul.bf16.gmra.mxu0 %v4333
      %v4761 = vpop.f32.mrf.mxu0
      %v4762 = vadd.f32 %v4733, %v4761
      %v4763 = vpop.f32.mrf.mxu0
      %v4764 = vadd.f32 %v4735, %v4763
      %4765 = vdwg.mxu0
      %4766 = vmatpush.bf16.msra.mxu0 %v4613
      %4767 = vmatpush.bf16.msra.mxu0 %v4611
      %4768 = vmatpush.bf16.msra.mxu0 %v4609
      %4769 = vmatpush.bf16.msra.mxu0 %v4607
      %4770 = vmatpush.bf16.msra.mxu0 %v4605
      %4771 = vmatpush.bf16.msra.mxu0 %v4603
      %4772 = vmatpush.bf16.msra.mxu0 %v4601
      %4773 = vmatpush.bf16.msra.mxu0 %v4599
      %4774 = vmatmul.bf16.gmra.mxu0 %v4234
      %v4775 = vpop.f32.mrf.mxu0
      %v4776 = vadd.f32 %v4747, %v4775
      %v4777 = vpop.f32.mrf.mxu0
      %v4778 = vadd.f32 %v4749, %v4777
      %4779 = vmatmul.bf16.gmra.mxu0 %v4270
      %v4780 = vpop.f32.mrf.mxu0
      %v4781 = vadd.f32 %v4752, %v4780
      %v4782 = vpop.f32.mrf.mxu0
      %v4783 = vadd.f32 %v4754, %v4782
      %4784 = vmatmul.bf16.gmra.mxu0 %v4306
      %v4785 = vpop.f32.mrf.mxu0
      %v4786 = vadd.f32 %v4757, %v4785
      %v4787 = vpop.f32.mrf.mxu0
      %v4788 = vadd.f32 %v4759, %v4787
      %4789 = vmatmul.bf16.gmra.mxu0 %v4342
      %v4790 = vpop.f32.mrf.mxu0
      %v4791 = vadd.f32 %v4762, %v4790
      %v4792 = vpop.f32.mrf.mxu0
      %v4793 = vadd.f32 %v4764, %v4792
      %4794 = vdwg.mxu0
      %4795 = vmatpush.bf16.msra.mxu0 %v4566
      %4796 = vmatpush.bf16.msra.mxu0 %v4564
      %4797 = vmatpush.bf16.msra.mxu0 %v4562
      %4798 = vmatpush.bf16.msra.mxu0 %v4560
      %4799 = vmatpush.bf16.msra.mxu0 %v4558
      %4800 = vmatpush.bf16.msra.mxu0 %v4556
      %4801 = vmatpush.bf16.msra.mxu0 %v4554
      %4802 = vmatpush.bf16.msra.mxu0 %v4552
      %4803 = vmatmul.bf16.gmra.mxu0 %v4183
      %v4804 = vpop.f32.mrf.mxu0
      %v4805 = vadd.f32 0.0, %v4804
      %v4806 = vpop.f32.mrf.mxu0
      %v4807 = vadd.f32 0.0, %v4806
      %4808 = vmatmul.bf16.gmra.mxu0 %v4243
      %v4809 = vpop.f32.mrf.mxu0
      %v4810 = vadd.f32 0.0, %v4809
      %v4811 = vpop.f32.mrf.mxu0
      %v4812 = vadd.f32 0.0, %v4811
      %4813 = vmatmul.bf16.gmra.mxu0 %v4279
      %v4814 = vpop.f32.mrf.mxu0
      %v4815 = vadd.f32 0.0, %v4814
      %v4816 = vpop.f32.mrf.mxu0
      %v4817 = vadd.f32 0.0, %v4816
      %4818 = vmatmul.bf16.gmra.mxu0 %v4315
      %v4819 = vpop.f32.mrf.mxu0
      %v4820 = vadd.f32 0.0, %v4819
      %v4821 = vpop.f32.mrf.mxu0
      %v4822 = vadd.f32 0.0, %v4821
      %4823 = vdwg.mxu0
      %4824 = vmatpush.bf16.msra.mxu0 %v4582
      %4825 = vmatpush.bf16.msra.mxu0 %v4580
      %4826 = vmatpush.bf16.msra.mxu0 %v4578
      %4827 = vmatpush.bf16.msra.mxu0 %v4576
      %4828 = vmatpush.bf16.msra.mxu0 %v4574
      %4829 = vmatpush.bf16.msra.mxu0 %v4572
      %4830 = vmatpush.bf16.msra.mxu0 %v4570
      %4831 = vmatpush.bf16.msra.mxu0 %v4568
      %4832 = vmatmul.bf16.gmra.mxu0 %v4200
      %v4833 = vpop.f32.mrf.mxu0
      %v4834 = vadd.f32 %v4805, %v4833
      %v4835 = vpop.f32.mrf.mxu0
      %v4836 = vadd.f32 %v4807, %v4835
      %4837 = vmatmul.bf16.gmra.mxu0 %v4252
      %v4838 = vpop.f32.mrf.mxu0
      %v4839 = vadd.f32 %v4810, %v4838
      %v4840 = vpop.f32.mrf.mxu0
      %v4841 = vadd.f32 %v4812, %v4840
      %4842 = vmatmul.bf16.gmra.mxu0 %v4288
      %v4843 = vpop.f32.mrf.mxu0
      %v4844 = vadd.f32 %v4815, %v4843
      %v4845 = vpop.f32.mrf.mxu0
      %v4846 = vadd.f32 %v4817, %v4845
      %4847 = vmatmul.bf16.gmra.mxu0 %v4324
      %v4848 = vpop.f32.mrf.mxu0
      %v4849 = vadd.f32 %v4820, %v4848
      %v4850 = vpop.f32.mrf.mxu0
      %v4851 = vadd.f32 %v4822, %v4850
      %4852 = vdwg.mxu0
      %4853 = vmatpush.bf16.msra.mxu0 %v4598
      %4854 = vmatpush.bf16.msra.mxu0 %v4596
      %4855 = vmatpush.bf16.msra.mxu0 %v4594
      %4856 = vmatpush.bf16.msra.mxu0 %v4592
      %4857 = vmatpush.bf16.msra.mxu0 %v4590
      %4858 = vmatpush.bf16.msra.mxu0 %v4588
      %4859 = vmatpush.bf16.msra.mxu0 %v4586
      %4860 = vmatpush.bf16.msra.mxu0 %v4584
      %4861 = vmatmul.bf16.gmra.mxu0 %v4217
      %v4862 = vpop.f32.mrf.mxu0
      %v4863 = vadd.f32 %v4834, %v4862
      %v4864 = vpop.f32.mrf.mxu0
      %v4865 = vadd.f32 %v4836, %v4864
      %4866 = vmatmul.bf16.gmra.mxu0 %v4261
      %v4867 = vpop.f32.mrf.mxu0
      %v4868 = vadd.f32 %v4839, %v4867
      %v4869 = vpop.f32.mrf.mxu0
      %v4870 = vadd.f32 %v4841, %v4869
      %4871 = vmatmul.bf16.gmra.mxu0 %v4297
      %v4872 = vpop.f32.mrf.mxu0
      %v4873 = vadd.f32 %v4844, %v4872
      %v4874 = vpop.f32.mrf.mxu0
      %v4875 = vadd.f32 %v4846, %v4874
      %4876 = vmatmul.bf16.gmra.mxu0 %v4333
      %v4877 = vpop.f32.mrf.mxu0
      %v4878 = vadd.f32 %v4849, %v4877
      %v4879 = vpop.f32.mrf.mxu0
      %v4880 = vadd.f32 %v4851, %v4879
      %4881 = vdwg.mxu0
      %4882 = vmatpush.bf16.msra.mxu0 %v4614
      %4883 = vmatpush.bf16.msra.mxu0 %v4612
      %4884 = vmatpush.bf16.msra.mxu0 %v4610
      %4885 = vmatpush.bf16.msra.mxu0 %v4608
      %4886 = vmatpush.bf16.msra.mxu0 %v4606
      %4887 = vmatpush.bf16.msra.mxu0 %v4604
      %4888 = vmatpush.bf16.msra.mxu0 %v4602
      %4889 = vmatpush.bf16.msra.mxu0 %v4600
      %4890 = vmatmul.bf16.gmra.mxu0 %v4234
      %v4891 = vpop.f32.mrf.mxu0
      %v4892 = vadd.f32 %v4863, %v4891
      %v4893 = vpop.f32.mrf.mxu0
      %v4894 = vadd.f32 %v4865, %v4893
      %4895 = vmatmul.bf16.gmra.mxu0 %v4270
      %v4896 = vpop.f32.mrf.mxu0
      %v4897 = vadd.f32 %v4868, %v4896
      %v4898 = vpop.f32.mrf.mxu0
      %v4899 = vadd.f32 %v4870, %v4898
      %4900 = vmatmul.bf16.gmra.mxu0 %v4306
      %v4901 = vpop.f32.mrf.mxu0
      %v4902 = vadd.f32 %v4873, %v4901
      %v4903 = vpop.f32.mrf.mxu0
      %v4904 = vadd.f32 %v4875, %v4903
      %4905 = vmatmul.bf16.gmra.mxu0 %v4342
      %v4906 = vpop.f32.mrf.mxu0
      %v4907 = vadd.f32 %v4878, %v4906
      %v4908 = vpop.f32.mrf.mxu0
      %v4909 = vadd.f32 %v4880, %v4908
      %4910 = vdwg.mxu0
      %v4911 = vadd.f32 %v4085, %v4776
      %v4912 = vadd.f32 %v4086, %v4892
      %v4913 = vadd.f32 %v4087, %v4778
      %v4914 = vadd.f32 %v4088, %v4894
      %v4915 = vadd.f32 %v4089, %v4781
      %v4916 = vadd.f32 %v4090, %v4897
      %v4917 = vadd.f32 %v4091, %v4783
      %v4918 = vadd.f32 %v4092, %v4899
      %v4919 = vadd.f32 %v4093, %v4786
      %v4920 = vadd.f32 %v4094, %v4902
      %v4921 = vadd.f32 %v4095, %v4788
      %v4922 = vadd.f32 %v4096, %v4904
      %v4923 = vadd.f32 %v4097, %v4791
      %v4924 = vadd.f32 %v4098, %v4907
      %v4925 = vadd.f32 %v4099, %v4793
      %v4926 = vadd.f32 %v4100, %v4909
      %v4927 = vld [vmem:[%s272 + $0x20] sm:$0xee]
      %v4928 = vld [vmem:[%s272 + $0x28] sm:$0xee]
      %v4929 = vld [vmem:[%s272 + $0x30] sm:$0xff]
      %v4930 = vld [vmem:[%s272 + $0x38] sm:$0xff]
      %v4931 = vld [vmem:[%s272 + $0x40] sm:$0xff]
      %v4932 = vld [vmem:[%s272 + $0x48] sm:$0xff]
      %v4933 = vld [vmem:[%s272 + $0x50] sm:$0xff]
      %v4934 = vld [vmem:[%s272 + $0x58] sm:$0xff]
      %v4935 = vld [vmem:[%s272 + $0x60] sm:$0xff]
      %v4936 = vld [vmem:[%s272 + $0x68] sm:$0xff]
      %v4937 = vld [vmem:[%s272 + $0x70] sm:$0xff]
      %v4938 = vld [vmem:[%s272 + $0x78] sm:$0xff]
      %v4939 = vld [vmem:[%s272 + $0x80] sm:$0xff]
      %v4940 = vld [vmem:[%s272 + $0x88] sm:$0xff]
      %v4941 = vld [vmem:[%s272 + $0x90] sm:$0xff]
      %v4942 = vld [vmem:[%s272 + $0x98] sm:$0xff]
      %v4943 = vld [vmem:[%s272 + $0xa0] sm:$0x11]
      %v4944 = vld [vmem:[%s272 + $0xa8] sm:$0x11]
      %s4945 = scalar_lea.vmem %s2, 3072
      %v4946 = vld [vmem:[%s4945] sm:$0xff]
      %v4947 = vld [vmem:[%s4945 + $0x8] sm:$0xff]
      %v4948 = vld [vmem:[%s4945 + $0x10] sm:$0xff]
      %v4949 = vld [vmem:[%s4945 + $0x18] sm:$0xff]
      %v4950 = vld [vmem:[%s4945 + $0x20] sm:$0xff]
      %v4951 = vld [vmem:[%s4945 + $0x28] sm:$0xff]
      %v4952 = vld [vmem:[%s4945 + $0x30] sm:$0xff]
      %v4953 = vld [vmem:[%s4945 + $0x38] sm:$0xff]
      %v4954 = vld [vmem:[%s4945 + $0x40] sm:$0xff]
      %v4955 = vld [vmem:[%s4945 + $0x48] sm:$0xff]
      %v4956 = vld [vmem:[%s4945 + $0x50] sm:$0xff]
      %v4957 = vld [vmem:[%s4945 + $0x58] sm:$0xff]
      %v4958 = vld [vmem:[%s4945 + $0x60] sm:$0xff]
      %v4959 = vld [vmem:[%s4945 + $0x68] sm:$0xff]
      %v4960 = vld [vmem:[%s4945 + $0x70] sm:$0xff]
      %v4961 = vld [vmem:[%s4945 + $0x78] sm:$0xff]
      %v4962 = vld [vmem:[%s4945 + $0x80] sm:$0xff]
      %v4963 = vld [vmem:[%s4945 + $0x88] sm:$0xff]
      %v4964 = vld [vmem:[%s4945 + $0x90] sm:$0xff]
      %v4965 = vld [vmem:[%s4945 + $0x98] sm:$0xff]
      %v4966 = vld [vmem:[%s4945 + $0xa0] sm:$0xff]
      %v4967 = vld [vmem:[%s4945 + $0xa8] sm:$0xff]
      %v4968 = vld [vmem:[%s4945 + $0xb0] sm:$0xff]
      %v4969 = vld [vmem:[%s4945 + $0xb8] sm:$0xff]
      %v4970 = vld [vmem:[%s4945 + $0xc0] sm:$0xff]
      %v4971 = vld [vmem:[%s4945 + $0xc8] sm:$0xff]
      %v4972 = vld [vmem:[%s4945 + $0xd0] sm:$0xff]
      %v4973 = vld [vmem:[%s4945 + $0xd8] sm:$0xff]
      %v4974 = vld [vmem:[%s4945 + $0xe0] sm:$0xff]
      %v4975 = vld [vmem:[%s4945 + $0xe8] sm:$0xff]
      %v4976 = vld [vmem:[%s4945 + $0xf0] sm:$0xff]
      %v4977 = vld [vmem:[%s4945 + $0xf8] sm:$0xff]
      %v4978 = vld [vmem:[%s4945 + $0x100] sm:$0xff]
      %v4979 = vld [vmem:[%s4945 + $0x108] sm:$0xff]
      %v4980 = vld [vmem:[%s4945 + $0x110] sm:$0xff]
      %v4981 = vld [vmem:[%s4945 + $0x118] sm:$0xff]
      %v4982 = vld [vmem:[%s4945 + $0x120] sm:$0xff]
      %v4983 = vld [vmem:[%s4945 + $0x128] sm:$0xff]
      %v4984 = vld [vmem:[%s4945 + $0x130] sm:$0xff]
      %v4985 = vld [vmem:[%s4945 + $0x138] sm:$0xff]
      %v4986 = vld [vmem:[%s4945 + $0x140] sm:$0xff]
      %v4987 = vld [vmem:[%s4945 + $0x148] sm:$0xff]
      %v4988 = vld [vmem:[%s4945 + $0x150] sm:$0xff]
      %v4989 = vld [vmem:[%s4945 + $0x158] sm:$0xff]
      %v4990 = vld [vmem:[%s4945 + $0x160] sm:$0xff]
      %v4991 = vld [vmem:[%s4945 + $0x168] sm:$0xff]
      %v4992 = vld [vmem:[%s4945 + $0x170] sm:$0xff]
      %v4993 = vld [vmem:[%s4945 + $0x178] sm:$0xff]
      %v4994 = vld [vmem:[%s4945 + $0x180] sm:$0xff]
      %v4995 = vld [vmem:[%s4945 + $0x188] sm:$0xff]
      %v4996 = vld [vmem:[%s4945 + $0x190] sm:$0xff]
      %v4997 = vld [vmem:[%s4945 + $0x198] sm:$0xff]
      %v4998 = vld [vmem:[%s4945 + $0x1a0] sm:$0xff]
      %v4999 = vld [vmem:[%s4945 + $0x1a8] sm:$0xff]
      %v5000 = vld [vmem:[%s4945 + $0x1b0] sm:$0xff]
      %v5001 = vld [vmem:[%s4945 + $0x1b8] sm:$0xff]
      %v5002 = vld [vmem:[%s4945 + $0x1c0] sm:$0xff]
      %v5003 = vld [vmem:[%s4945 + $0x1c8] sm:$0xff]
      %v5004 = vld [vmem:[%s4945 + $0x1d0] sm:$0xff]
      %v5005 = vld [vmem:[%s4945 + $0x1d8] sm:$0xff]
      %v5006 = vld [vmem:[%s4945 + $0x1e0] sm:$0xff]
      %v5007 = vld [vmem:[%s4945 + $0x1e8] sm:$0xff]
      %v5008 = vld [vmem:[%s4945 + $0x1f0] sm:$0xff]
      %v5009 = vld [vmem:[%s4945 + $0x1f8] sm:$0xff]
      %v5028 = vunpack.c.l.b16 %v4927
      %v5029 = vunpack.c.h.b16 %v4927
      %v5030 = vunpack.c.l.b16 %v4928
      %v5031 = vunpack.c.h.b16 %v4928
      %v5032 = vunpack.c.l.b16 %v4929
      %v5033 = vunpack.c.h.b16 %v4929
      %v5034 = vunpack.c.l.b16 %v4930
      %v5035 = vunpack.c.h.b16 %v4930
      %v5036 = vunpack.c.l.b16 %v4931
      %v5037 = vunpack.c.h.b16 %v4931
      %v5038 = vunpack.c.l.b16 %v4932
      %v5039 = vunpack.c.h.b16 %v4932
      %v5040 = vunpack.c.l.b16 %v4933
      %v5041 = vunpack.c.h.b16 %v4933
      %v5042 = vunpack.c.l.b16 %v4934
      %v5043 = vunpack.c.h.b16 %v4934
      %v5044 = vunpack.c.l.b16 %v4935
      %v5045 = vunpack.c.h.b16 %v4935
      %v5046 = vunpack.c.l.b16 %v4936
      %v5047 = vunpack.c.h.b16 %v4936
      %v5048 = vunpack.c.l.b16 %v4937
      %v5049 = vunpack.c.h.b16 %v4937
      %v5050 = vunpack.c.l.b16 %v4938
      %v5051 = vunpack.c.h.b16 %v4938
      %v5052 = vunpack.c.l.b16 %v4939
      %v5053 = vunpack.c.h.b16 %v4939
      %v5054 = vunpack.c.l.b16 %v4940
      %v5055 = vunpack.c.h.b16 %v4940
      %v5056 = vunpack.c.l.b16 %v4941
      %v5057 = vunpack.c.h.b16 %v4941
      %v5058 = vunpack.c.l.b16 %v4942
      %v5059 = vunpack.c.h.b16 %v4942
      %v5060 = vunpack.c.l.b16 %v4943
      %v5061 = vunpack.c.h.b16 %v4943
      %v5062 = vunpack.c.l.b16 %v4944
      %v5063 = vunpack.c.h.b16 %v4944
      %v5064 = vpack.c.b16 %v5032, %v5028
      %v5065 = vpack.c.b16 %v5033, %v5029
      %v5066 = vpack.c.b16 %v5034, %v5030
      %v5067 = vpack.c.b16 %v5035, %v5031
      %v5068 = vpack.c.b16 %v5040, %v5036
      %v5069 = vpack.c.b16 %v5041, %v5037
      %v5070 = vpack.c.b16 %v5042, %v5038
      %v5071 = vpack.c.b16 %v5043, %v5039
      %v5072 = vpack.c.b16 %v5048, %v5044
      %v5073 = vpack.c.b16 %v5049, %v5045
      %v5074 = vpack.c.b16 %v5050, %v5046
      %v5075 = vpack.c.b16 %v5051, %v5047
      %v5076 = vpack.c.b16 %v5056, %v5052
      %v5077 = vpack.c.b16 %v5057, %v5053
      %v5078 = vpack.c.b16 %v5058, %v5054
      %v5079 = vpack.c.b16 %v5059, %v5055
      %v5080 = vpack.c.b16 %v5060, %v5060
      %v5081 = vpack.c.b16 %v5061, %v5061
      %v5082 = vpack.c.b16 %v5062, %v5062
      %v5083 = vpack.c.b16 %v5063, %v5063
      %v5084 = vrot.slane %v5064, 1
      %v5085 = vrot.slane %v5068, 1
      %v5086 = vsel %vm1906, %v5084, %v5085
      %v5087 = vrot.slane %v5065, 1
      %v5088 = vrot.slane %v5069, 1
      %v5089 = vsel %vm1906, %v5087, %v5088
      %v5090 = vrot.slane %v5066, 1
      %v5091 = vrot.slane %v5070, 1
      %v5092 = vsel %vm1906, %v5090, %v5091
      %v5093 = vrot.slane %v5067, 1
      %v5094 = vrot.slane %v5071, 1
      %v5095 = vsel %vm1906, %v5093, %v5094
      %v5096 = vrot.slane %v5072, 1
      %v5097 = vsel %vm1906, %v5085, %v5096
      %v5098 = vrot.slane %v5073, 1
      %v5099 = vsel %vm1906, %v5088, %v5098
      %v5100 = vrot.slane %v5074, 1
      %v5101 = vsel %vm1906, %v5091, %v5100
      %v5102 = vrot.slane %v5075, 1
      %v5103 = vsel %vm1906, %v5094, %v5102
      %v5104 = vrot.slane %v5076, 1
      %v5105 = vsel %vm1906, %v5096, %v5104
      %v5106 = vrot.slane %v5077, 1
      %v5107 = vsel %vm1906, %v5098, %v5106
      %v5108 = vrot.slane %v5078, 1
      %v5109 = vsel %vm1906, %v5100, %v5108
      %v5110 = vrot.slane %v5079, 1
      %v5111 = vsel %vm1906, %v5102, %v5110
      %v5112 = vrot.slane %v5080, 1
      %v5113 = vsel %vm1906, %v5104, %v5112
      %v5114 = vrot.slane %v5081, 1
      %v5115 = vsel %vm1906, %v5106, %v5114
      %v5116 = vrot.slane %v5082, 1
      %v5117 = vsel %vm1906, %v5108, %v5116
      %v5118 = vrot.slane %v5083, 1
      %v5119 = vsel %vm1906, %v5110, %v5118
      %v5200 = vunpack.c.l.b16 %v4946
      %v5201 = vunpack.c.h.b16 %v4946
      %v5202 = vunpack.c.l.b16 %v4947
      %v5203 = vunpack.c.h.b16 %v4947
      %v5204 = vunpack.c.l.b16 %v4948
      %v5205 = vunpack.c.h.b16 %v4948
      %v5206 = vunpack.c.l.b16 %v4949
      %v5207 = vunpack.c.h.b16 %v4949
      %v5208 = vunpack.c.l.b16 %v4950
      %v5209 = vunpack.c.h.b16 %v4950
      %v5210 = vunpack.c.l.b16 %v4951
      %v5211 = vunpack.c.h.b16 %v4951
      %v5212 = vunpack.c.l.b16 %v4952
      %v5213 = vunpack.c.h.b16 %v4952
      %v5214 = vunpack.c.l.b16 %v4953
      %v5215 = vunpack.c.h.b16 %v4953
      %v5216 = vunpack.c.l.b16 %v4954
      %v5217 = vunpack.c.h.b16 %v4954
      %v5218 = vunpack.c.l.b16 %v4955
      %v5219 = vunpack.c.h.b16 %v4955
      %v5220 = vunpack.c.l.b16 %v4956
      %v5221 = vunpack.c.h.b16 %v4956
      %v5222 = vunpack.c.l.b16 %v4957
      %v5223 = vunpack.c.h.b16 %v4957
      %v5224 = vunpack.c.l.b16 %v4958
      %v5225 = vunpack.c.h.b16 %v4958
      %v5226 = vunpack.c.l.b16 %v4959
      %v5227 = vunpack.c.h.b16 %v4959
      %v5228 = vunpack.c.l.b16 %v4960
      %v5229 = vunpack.c.h.b16 %v4960
      %v5230 = vunpack.c.l.b16 %v4961
      %v5231 = vunpack.c.h.b16 %v4961
      %v5232 = vunpack.c.l.b16 %v4962
      %v5233 = vunpack.c.h.b16 %v4962
      %v5234 = vunpack.c.l.b16 %v4963
      %v5235 = vunpack.c.h.b16 %v4963
      %v5236 = vunpack.c.l.b16 %v4964
      %v5237 = vunpack.c.h.b16 %v4964
      %v5238 = vunpack.c.l.b16 %v4965
      %v5239 = vunpack.c.h.b16 %v4965
      %v5240 = vunpack.c.l.b16 %v4966
      %v5241 = vunpack.c.h.b16 %v4966
      %v5242 = vunpack.c.l.b16 %v4967
      %v5243 = vunpack.c.h.b16 %v4967
      %v5244 = vunpack.c.l.b16 %v4968
      %v5245 = vunpack.c.h.b16 %v4968
      %v5246 = vunpack.c.l.b16 %v4969
      %v5247 = vunpack.c.h.b16 %v4969
      %v5248 = vunpack.c.l.b16 %v4970
      %v5249 = vunpack.c.h.b16 %v4970
      %v5250 = vunpack.c.l.b16 %v4971
      %v5251 = vunpack.c.h.b16 %v4971
      %v5252 = vunpack.c.l.b16 %v4972
      %v5253 = vunpack.c.h.b16 %v4972
      %v5254 = vunpack.c.l.b16 %v4973
      %v5255 = vunpack.c.h.b16 %v4973
      %v5256 = vunpack.c.l.b16 %v4974
      %v5257 = vunpack.c.h.b16 %v4974
      %v5258 = vunpack.c.l.b16 %v4975
      %v5259 = vunpack.c.h.b16 %v4975
      %v5260 = vunpack.c.l.b16 %v4976
      %v5261 = vunpack.c.h.b16 %v4976
      %v5262 = vunpack.c.l.b16 %v4977
      %v5263 = vunpack.c.h.b16 %v4977
      %v5264 = vunpack.c.l.b16 %v4978
      %v5265 = vunpack.c.h.b16 %v4978
      %v5266 = vunpack.c.l.b16 %v4979
      %v5267 = vunpack.c.h.b16 %v4979
      %v5268 = vunpack.c.l.b16 %v4980
      %v5269 = vunpack.c.h.b16 %v4980
      %v5270 = vunpack.c.l.b16 %v4981
      %v5271 = vunpack.c.h.b16 %v4981
      %v5272 = vunpack.c.l.b16 %v4982
      %v5273 = vunpack.c.h.b16 %v4982
      %v5274 = vunpack.c.l.b16 %v4983
      %v5275 = vunpack.c.h.b16 %v4983
      %v5276 = vunpack.c.l.b16 %v4984
      %v5277 = vunpack.c.h.b16 %v4984
      %v5278 = vunpack.c.l.b16 %v4985
      %v5279 = vunpack.c.h.b16 %v4985
      %v5280 = vunpack.c.l.b16 %v4986
      %v5281 = vunpack.c.h.b16 %v4986
      %v5282 = vunpack.c.l.b16 %v4987
      %v5283 = vunpack.c.h.b16 %v4987
      %v5284 = vunpack.c.l.b16 %v4988
      %v5285 = vunpack.c.h.b16 %v4988
      %v5286 = vunpack.c.l.b16 %v4989
      %v5287 = vunpack.c.h.b16 %v4989
      %v5288 = vunpack.c.l.b16 %v4990
      %v5289 = vunpack.c.h.b16 %v4990
      %v5290 = vunpack.c.l.b16 %v4991
      %v5291 = vunpack.c.h.b16 %v4991
      %v5292 = vunpack.c.l.b16 %v4992
      %v5293 = vunpack.c.h.b16 %v4992
      %v5294 = vunpack.c.l.b16 %v4993
      %v5295 = vunpack.c.h.b16 %v4993
      %v5296 = vunpack.c.l.b16 %v4994
      %v5297 = vunpack.c.h.b16 %v4994
      %v5298 = vunpack.c.l.b16 %v4995
      %v5299 = vunpack.c.h.b16 %v4995
      %v5300 = vunpack.c.l.b16 %v4996
      %v5301 = vunpack.c.h.b16 %v4996
      %v5302 = vunpack.c.l.b16 %v4997
      %v5303 = vunpack.c.h.b16 %v4997
      %v5304 = vunpack.c.l.b16 %v4998
      %v5305 = vunpack.c.h.b16 %v4998
      %v5306 = vunpack.c.l.b16 %v4999
      %v5307 = vunpack.c.h.b16 %v4999
      %v5308 = vunpack.c.l.b16 %v5000
      %v5309 = vunpack.c.h.b16 %v5000
      %v5310 = vunpack.c.l.b16 %v5001
      %v5311 = vunpack.c.h.b16 %v5001
      %v5312 = vunpack.c.l.b16 %v5002
      %v5313 = vunpack.c.h.b16 %v5002
      %v5314 = vunpack.c.l.b16 %v5003
      %v5315 = vunpack.c.h.b16 %v5003
      %v5316 = vunpack.c.l.b16 %v5004
      %v5317 = vunpack.c.h.b16 %v5004
      %v5318 = vunpack.c.l.b16 %v5005
      %v5319 = vunpack.c.h.b16 %v5005
      %v5320 = vunpack.c.l.b16 %v5006
      %v5321 = vunpack.c.h.b16 %v5006
      %v5322 = vunpack.c.l.b16 %v5007
      %v5323 = vunpack.c.h.b16 %v5007
      %v5324 = vunpack.c.l.b16 %v5008
      %v5325 = vunpack.c.h.b16 %v5008
      %v5326 = vunpack.c.l.b16 %v5009
      %v5327 = vunpack.c.h.b16 %v5009
      %v5328 = vpack.c.b16 %v5202, %v5200
      %v5329 = vpack.c.b16 %v5203, %v5201
      %v5330 = vpack.c.b16 %v5206, %v5204
      %v5331 = vpack.c.b16 %v5207, %v5205
      %v5332 = vpack.c.b16 %v5210, %v5208
      %v5333 = vpack.c.b16 %v5211, %v5209
      %v5334 = vpack.c.b16 %v5214, %v5212
      %v5335 = vpack.c.b16 %v5215, %v5213
      %v5336 = vpack.c.b16 %v5218, %v5216
      %v5337 = vpack.c.b16 %v5219, %v5217
      %v5338 = vpack.c.b16 %v5222, %v5220
      %v5339 = vpack.c.b16 %v5223, %v5221
      %v5340 = vpack.c.b16 %v5226, %v5224
      %v5341 = vpack.c.b16 %v5227, %v5225
      %v5342 = vpack.c.b16 %v5230, %v5228
      %v5343 = vpack.c.b16 %v5231, %v5229
      %v5344 = vpack.c.b16 %v5234, %v5232
      %v5345 = vpack.c.b16 %v5235, %v5233
      %v5346 = vpack.c.b16 %v5238, %v5236
      %v5347 = vpack.c.b16 %v5239, %v5237
      %v5348 = vpack.c.b16 %v5242, %v5240
      %v5349 = vpack.c.b16 %v5243, %v5241
      %v5350 = vpack.c.b16 %v5246, %v5244
      %v5351 = vpack.c.b16 %v5247, %v5245
      %v5352 = vpack.c.b16 %v5250, %v5248
      %v5353 = vpack.c.b16 %v5251, %v5249
      %v5354 = vpack.c.b16 %v5254, %v5252
      %v5355 = vpack.c.b16 %v5255, %v5253
      %v5356 = vpack.c.b16 %v5258, %v5256
      %v5357 = vpack.c.b16 %v5259, %v5257
      %v5358 = vpack.c.b16 %v5262, %v5260
      %v5359 = vpack.c.b16 %v5263, %v5261
      %v5360 = vpack.c.b16 %v5266, %v5264
      %v5361 = vpack.c.b16 %v5267, %v5265
      %v5362 = vpack.c.b16 %v5270, %v5268
      %v5363 = vpack.c.b16 %v5271, %v5269
      %v5364 = vpack.c.b16 %v5274, %v5272
      %v5365 = vpack.c.b16 %v5275, %v5273
      %v5366 = vpack.c.b16 %v5278, %v5276
      %v5367 = vpack.c.b16 %v5279, %v5277
      %v5368 = vpack.c.b16 %v5282, %v5280
      %v5369 = vpack.c.b16 %v5283, %v5281
      %v5370 = vpack.c.b16 %v5286, %v5284
      %v5371 = vpack.c.b16 %v5287, %v5285
      %v5372 = vpack.c.b16 %v5290, %v5288
      %v5373 = vpack.c.b16 %v5291, %v5289
      %v5374 = vpack.c.b16 %v5294, %v5292
      %v5375 = vpack.c.b16 %v5295, %v5293
      %v5376 = vpack.c.b16 %v5298, %v5296
      %v5377 = vpack.c.b16 %v5299, %v5297
      %v5378 = vpack.c.b16 %v5302, %v5300
      %v5379 = vpack.c.b16 %v5303, %v5301
      %v5380 = vpack.c.b16 %v5306, %v5304
      %v5381 = vpack.c.b16 %v5307, %v5305
      %v5382 = vpack.c.b16 %v5310, %v5308
      %v5383 = vpack.c.b16 %v5311, %v5309
      %v5384 = vpack.c.b16 %v5314, %v5312
      %v5385 = vpack.c.b16 %v5315, %v5313
      %v5386 = vpack.c.b16 %v5318, %v5316
      %v5387 = vpack.c.b16 %v5319, %v5317
      %v5388 = vpack.c.b16 %v5322, %v5320
      %v5389 = vpack.c.b16 %v5323, %v5321
      %v5390 = vpack.c.b16 %v5326, %v5324
      %v5391 = vpack.c.b16 %v5327, %v5325
      %5456 = vmatpush.bf16.msra.mxu0 %v5342
      %5457 = vmatpush.bf16.msra.mxu0 %v5340
      %5458 = vmatpush.bf16.msra.mxu0 %v5338
      %5459 = vmatpush.bf16.msra.mxu0 %v5336
      %5460 = vmatpush.bf16.msra.mxu0 %v5334
      %5461 = vmatpush.bf16.msra.mxu0 %v5332
      %5462 = vmatpush.bf16.msra.mxu0 %v5330
      %5463 = vmatpush.bf16.msra.mxu0 %v5328
      %5464 = vmatmul.bf16.gmra.mxu0 %v5086
      %v5465 = vpop.f32.mrf.mxu0
      %v5466 = vadd.f32 0.0, %v5465
      %v5467 = vpop.f32.mrf.mxu0
      %v5468 = vadd.f32 0.0, %v5467
      %5469 = vmatmul.bf16.gmra.mxu0 %v5097
      %v5470 = vpop.f32.mrf.mxu0
      %v5471 = vadd.f32 0.0, %v5470
      %v5472 = vpop.f32.mrf.mxu0
      %v5473 = vadd.f32 0.0, %v5472
      %5474 = vmatmul.bf16.gmra.mxu0 %v5105
      %v5475 = vpop.f32.mrf.mxu0
      %v5476 = vadd.f32 0.0, %v5475
      %v5477 = vpop.f32.mrf.mxu0
      %v5478 = vadd.f32 0.0, %v5477
      %5479 = vmatmul.bf16.gmra.mxu0 %v5113
      %v5480 = vpop.f32.mrf.mxu0
      %v5481 = vadd.f32 0.0, %v5480
      %v5482 = vpop.f32.mrf.mxu0
      %v5483 = vadd.f32 0.0, %v5482
      %5484 = vdwg.mxu0
      %5485 = vmatpush.bf16.msra.mxu0 %v5358
      %5486 = vmatpush.bf16.msra.mxu0 %v5356
      %5487 = vmatpush.bf16.msra.mxu0 %v5354
      %5488 = vmatpush.bf16.msra.mxu0 %v5352
      %5489 = vmatpush.bf16.msra.mxu0 %v5350
      %5490 = vmatpush.bf16.msra.mxu0 %v5348
      %5491 = vmatpush.bf16.msra.mxu0 %v5346
      %5492 = vmatpush.bf16.msra.mxu0 %v5344
      %5493 = vmatmul.bf16.gmra.mxu0 %v5089
      %v5494 = vpop.f32.mrf.mxu0
      %v5495 = vadd.f32 %v5466, %v5494
      %v5496 = vpop.f32.mrf.mxu0
      %v5497 = vadd.f32 %v5468, %v5496
      %5498 = vmatmul.bf16.gmra.mxu0 %v5099
      %v5499 = vpop.f32.mrf.mxu0
      %v5500 = vadd.f32 %v5471, %v5499
      %v5501 = vpop.f32.mrf.mxu0
      %v5502 = vadd.f32 %v5473, %v5501
      %5503 = vmatmul.bf16.gmra.mxu0 %v5107
      %v5504 = vpop.f32.mrf.mxu0
      %v5505 = vadd.f32 %v5476, %v5504
      %v5506 = vpop.f32.mrf.mxu0
      %v5507 = vadd.f32 %v5478, %v5506
      %5508 = vmatmul.bf16.gmra.mxu0 %v5115
      %v5509 = vpop.f32.mrf.mxu0
      %v5510 = vadd.f32 %v5481, %v5509
      %v5511 = vpop.f32.mrf.mxu0
      %v5512 = vadd.f32 %v5483, %v5511
      %5513 = vdwg.mxu0
      %5514 = vmatpush.bf16.msra.mxu0 %v5374
      %5515 = vmatpush.bf16.msra.mxu0 %v5372
      %5516 = vmatpush.bf16.msra.mxu0 %v5370
      %5517 = vmatpush.bf16.msra.mxu0 %v5368
      %5518 = vmatpush.bf16.msra.mxu0 %v5366
      %5519 = vmatpush.bf16.msra.mxu0 %v5364
      %5520 = vmatpush.bf16.msra.mxu0 %v5362
      %5521 = vmatpush.bf16.msra.mxu0 %v5360
      %5522 = vmatmul.bf16.gmra.mxu0 %v5092
      %v5523 = vpop.f32.mrf.mxu0
      %v5524 = vadd.f32 %v5495, %v5523
      %v5525 = vpop.f32.mrf.mxu0
      %v5526 = vadd.f32 %v5497, %v5525
      %5527 = vmatmul.bf16.gmra.mxu0 %v5101
      %v5528 = vpop.f32.mrf.mxu0
      %v5529 = vadd.f32 %v5500, %v5528
      %v5530 = vpop.f32.mrf.mxu0
      %v5531 = vadd.f32 %v5502, %v5530
      %5532 = vmatmul.bf16.gmra.mxu0 %v5109
      %v5533 = vpop.f32.mrf.mxu0
      %v5534 = vadd.f32 %v5505, %v5533
      %v5535 = vpop.f32.mrf.mxu0
      %v5536 = vadd.f32 %v5507, %v5535
      %5537 = vmatmul.bf16.gmra.mxu0 %v5117
      %v5538 = vpop.f32.mrf.mxu0
      %v5539 = vadd.f32 %v5510, %v5538
      %v5540 = vpop.f32.mrf.mxu0
      %v5541 = vadd.f32 %v5512, %v5540
      %5542 = vdwg.mxu0
      %5543 = vmatpush.bf16.msra.mxu0 %v5390
      %5544 = vmatpush.bf16.msra.mxu0 %v5388
      %5545 = vmatpush.bf16.msra.mxu0 %v5386
      %5546 = vmatpush.bf16.msra.mxu0 %v5384
      %5547 = vmatpush.bf16.msra.mxu0 %v5382
      %5548 = vmatpush.bf16.msra.mxu0 %v5380
      %5549 = vmatpush.bf16.msra.mxu0 %v5378
      %5550 = vmatpush.bf16.msra.mxu0 %v5376
      %5551 = vmatmul.bf16.gmra.mxu0 %v5095
      %v5552 = vpop.f32.mrf.mxu0
      %v5553 = vadd.f32 %v5524, %v5552
      %v5554 = vpop.f32.mrf.mxu0
      %v5555 = vadd.f32 %v5526, %v5554
      %5556 = vmatmul.bf16.gmra.mxu0 %v5103
      %v5557 = vpop.f32.mrf.mxu0
      %v5558 = vadd.f32 %v5529, %v5557
      %v5559 = vpop.f32.mrf.mxu0
      %v5560 = vadd.f32 %v5531, %v5559
      %5561 = vmatmul.bf16.gmra.mxu0 %v5111
      %v5562 = vpop.f32.mrf.mxu0
      %v5563 = vadd.f32 %v5534, %v5562
      %v5564 = vpop.f32.mrf.mxu0
      %v5565 = vadd.f32 %v5536, %v5564
      %5566 = vmatmul.bf16.gmra.mxu0 %v5119
      %v5567 = vpop.f32.mrf.mxu0
      %v5568 = vadd.f32 %v5539, %v5567
      %v5569 = vpop.f32.mrf.mxu0
      %v5570 = vadd.f32 %v5541, %v5569
      %5571 = vdwg.mxu0
      %5572 = vmatpush.bf16.msra.mxu0 %v5343
      %5573 = vmatpush.bf16.msra.mxu0 %v5341
      %5574 = vmatpush.bf16.msra.mxu0 %v5339
      %5575 = vmatpush.bf16.msra.mxu0 %v5337
      %5576 = vmatpush.bf16.msra.mxu0 %v5335
      %5577 = vmatpush.bf16.msra.mxu0 %v5333
      %5578 = vmatpush.bf16.msra.mxu0 %v5331
      %5579 = vmatpush.bf16.msra.mxu0 %v5329
      %5580 = vmatmul.bf16.gmra.mxu0 %v5086
      %v5581 = vpop.f32.mrf.mxu0
      %v5582 = vadd.f32 0.0, %v5581
      %v5583 = vpop.f32.mrf.mxu0
      %v5584 = vadd.f32 0.0, %v5583
      %5585 = vmatmul.bf16.gmra.mxu0 %v5097
      %v5586 = vpop.f32.mrf.mxu0
      %v5587 = vadd.f32 0.0, %v5586
      %v5588 = vpop.f32.mrf.mxu0
      %v5589 = vadd.f32 0.0, %v5588
      %5590 = vmatmul.bf16.gmra.mxu0 %v5105
      %v5591 = vpop.f32.mrf.mxu0
      %v5592 = vadd.f32 0.0, %v5591
      %v5593 = vpop.f32.mrf.mxu0
      %v5594 = vadd.f32 0.0, %v5593
      %5595 = vmatmul.bf16.gmra.mxu0 %v5113
      %v5596 = vpop.f32.mrf.mxu0
      %v5597 = vadd.f32 0.0, %v5596
      %v5598 = vpop.f32.mrf.mxu0
      %v5599 = vadd.f32 0.0, %v5598
      %5600 = vdwg.mxu0
      %5601 = vmatpush.bf16.msra.mxu0 %v5359
      %5602 = vmatpush.bf16.msra.mxu0 %v5357
      %5603 = vmatpush.bf16.msra.mxu0 %v5355
      %5604 = vmatpush.bf16.msra.mxu0 %v5353
      %5605 = vmatpush.bf16.msra.mxu0 %v5351
      %5606 = vmatpush.bf16.msra.mxu0 %v5349
      %5607 = vmatpush.bf16.msra.mxu0 %v5347
      %5608 = vmatpush.bf16.msra.mxu0 %v5345
      %5609 = vmatmul.bf16.gmra.mxu0 %v5089
      %v5610 = vpop.f32.mrf.mxu0
      %v5611 = vadd.f32 %v5582, %v5610
      %v5612 = vpop.f32.mrf.mxu0
      %v5613 = vadd.f32 %v5584, %v5612
      %5614 = vmatmul.bf16.gmra.mxu0 %v5099
      %v5615 = vpop.f32.mrf.mxu0
      %v5616 = vadd.f32 %v5587, %v5615
      %v5617 = vpop.f32.mrf.mxu0
      %v5618 = vadd.f32 %v5589, %v5617
      %5619 = vmatmul.bf16.gmra.mxu0 %v5107
      %v5620 = vpop.f32.mrf.mxu0
      %v5621 = vadd.f32 %v5592, %v5620
      %v5622 = vpop.f32.mrf.mxu0
      %v5623 = vadd.f32 %v5594, %v5622
      %5624 = vmatmul.bf16.gmra.mxu0 %v5115
      %v5625 = vpop.f32.mrf.mxu0
      %v5626 = vadd.f32 %v5597, %v5625
      %v5627 = vpop.f32.mrf.mxu0
      %v5628 = vadd.f32 %v5599, %v5627
      %5629 = vdwg.mxu0
      %5630 = vmatpush.bf16.msra.mxu0 %v5375
      %5631 = vmatpush.bf16.msra.mxu0 %v5373
      %5632 = vmatpush.bf16.msra.mxu0 %v5371
      %5633 = vmatpush.bf16.msra.mxu0 %v5369
      %5634 = vmatpush.bf16.msra.mxu0 %v5367
      %5635 = vmatpush.bf16.msra.mxu0 %v5365
      %5636 = vmatpush.bf16.msra.mxu0 %v5363
      %5637 = vmatpush.bf16.msra.mxu0 %v5361
      %5638 = vmatmul.bf16.gmra.mxu0 %v5092
      %v5639 = vpop.f32.mrf.mxu0
      %v5640 = vadd.f32 %v5611, %v5639
      %v5641 = vpop.f32.mrf.mxu0
      %v5642 = vadd.f32 %v5613, %v5641
      %5643 = vmatmul.bf16.gmra.mxu0 %v5101
      %v5644 = vpop.f32.mrf.mxu0
      %v5645 = vadd.f32 %v5616, %v5644
      %v5646 = vpop.f32.mrf.mxu0
      %v5647 = vadd.f32 %v5618, %v5646
      %5648 = vmatmul.bf16.gmra.mxu0 %v5109
      %v5649 = vpop.f32.mrf.mxu0
      %v5650 = vadd.f32 %v5621, %v5649
      %v5651 = vpop.f32.mrf.mxu0
      %v5652 = vadd.f32 %v5623, %v5651
      %5653 = vmatmul.bf16.gmra.mxu0 %v5117
      %v5654 = vpop.f32.mrf.mxu0
      %v5655 = vadd.f32 %v5626, %v5654
      %v5656 = vpop.f32.mrf.mxu0
      %v5657 = vadd.f32 %v5628, %v5656
      %5658 = vdwg.mxu0
      %5659 = vmatpush.bf16.msra.mxu0 %v5391
      %5660 = vmatpush.bf16.msra.mxu0 %v5389
      %5661 = vmatpush.bf16.msra.mxu0 %v5387
      %5662 = vmatpush.bf16.msra.mxu0 %v5385
      %5663 = vmatpush.bf16.msra.mxu0 %v5383
      %5664 = vmatpush.bf16.msra.mxu0 %v5381
      %5665 = vmatpush.bf16.msra.mxu0 %v5379
      %5666 = vmatpush.bf16.msra.mxu0 %v5377
      %5667 = vmatmul.bf16.gmra.mxu0 %v5095
      %v5668 = vpop.f32.mrf.mxu0
      %v5669 = vadd.f32 %v5640, %v5668
      %v5670 = vpop.f32.mrf.mxu0
      %v5671 = vadd.f32 %v5642, %v5670
      %5672 = vmatmul.bf16.gmra.mxu0 %v5103
      %v5673 = vpop.f32.mrf.mxu0
      %v5674 = vadd.f32 %v5645, %v5673
      %v5675 = vpop.f32.mrf.mxu0
      %v5676 = vadd.f32 %v5647, %v5675
      %5677 = vmatmul.bf16.gmra.mxu0 %v5111
      %v5678 = vpop.f32.mrf.mxu0
      %v5679 = vadd.f32 %v5650, %v5678
      %v5680 = vpop.f32.mrf.mxu0
      %v5681 = vadd.f32 %v5652, %v5680
      %5682 = vmatmul.bf16.gmra.mxu0 %v5119
      %v5683 = vpop.f32.mrf.mxu0
      %v5684 = vadd.f32 %v5655, %v5683
      %v5685 = vpop.f32.mrf.mxu0
      %v5686 = vadd.f32 %v5657, %v5685
      %5687 = vdwg.mxu0
      %v5688 = vadd.f32 %v4911, %v5553
      %v5689 = vadd.f32 %v4912, %v5669
      %v5690 = vadd.f32 %v4913, %v5555
      %v5691 = vadd.f32 %v4914, %v5671
      %v5692 = vadd.f32 %v4915, %v5558
      %v5693 = vadd.f32 %v4916, %v5674
      %v5694 = vadd.f32 %v4917, %v5560
      %v5695 = vadd.f32 %v4918, %v5676
      %v5696 = vadd.f32 %v4919, %v5563
      %v5697 = vadd.f32 %v4920, %v5679
      %v5698 = vadd.f32 %v4921, %v5565
      %v5699 = vadd.f32 %v4922, %v5681
      %v5700 = vadd.f32 %v4923, %v5568
      %v5701 = vadd.f32 %v4924, %v5684
      %v5702 = vadd.f32 %v4925, %v5570
      %v5703 = vadd.f32 %v4926, %v5686
      %s5704 = scalar_lea.vmem %s2, 3584
      %v5705 = vld [vmem:[%s5704] sm:$0xff]
      %v5706 = vld [vmem:[%s5704 + $0x8] sm:$0xff]
      %v5707 = vld [vmem:[%s5704 + $0x10] sm:$0xff]
      %v5708 = vld [vmem:[%s5704 + $0x18] sm:$0xff]
      %v5709 = vld [vmem:[%s5704 + $0x20] sm:$0xff]
      %v5710 = vld [vmem:[%s5704 + $0x28] sm:$0xff]
      %v5711 = vld [vmem:[%s5704 + $0x30] sm:$0xff]
      %v5712 = vld [vmem:[%s5704 + $0x38] sm:$0xff]
      %v5713 = vld [vmem:[%s5704 + $0x40] sm:$0xff]
      %v5714 = vld [vmem:[%s5704 + $0x48] sm:$0xff]
      %v5715 = vld [vmem:[%s5704 + $0x50] sm:$0xff]
      %v5716 = vld [vmem:[%s5704 + $0x58] sm:$0xff]
      %v5717 = vld [vmem:[%s5704 + $0x60] sm:$0xff]
      %v5718 = vld [vmem:[%s5704 + $0x68] sm:$0xff]
      %v5719 = vld [vmem:[%s5704 + $0x70] sm:$0xff]
      %v5720 = vld [vmem:[%s5704 + $0x78] sm:$0xff]
      %v5721 = vld [vmem:[%s5704 + $0x80] sm:$0xff]
      %v5722 = vld [vmem:[%s5704 + $0x88] sm:$0xff]
      %v5723 = vld [vmem:[%s5704 + $0x90] sm:$0xff]
      %v5724 = vld [vmem:[%s5704 + $0x98] sm:$0xff]
      %v5725 = vld [vmem:[%s5704 + $0xa0] sm:$0xff]
      %v5726 = vld [vmem:[%s5704 + $0xa8] sm:$0xff]
      %v5727 = vld [vmem:[%s5704 + $0xb0] sm:$0xff]
      %v5728 = vld [vmem:[%s5704 + $0xb8] sm:$0xff]
      %v5729 = vld [vmem:[%s5704 + $0xc0] sm:$0xff]
      %v5730 = vld [vmem:[%s5704 + $0xc8] sm:$0xff]
      %v5731 = vld [vmem:[%s5704 + $0xd0] sm:$0xff]
      %v5732 = vld [vmem:[%s5704 + $0xd8] sm:$0xff]
      %v5733 = vld [vmem:[%s5704 + $0xe0] sm:$0xff]
      %v5734 = vld [vmem:[%s5704 + $0xe8] sm:$0xff]
      %v5735 = vld [vmem:[%s5704 + $0xf0] sm:$0xff]
      %v5736 = vld [vmem:[%s5704 + $0xf8] sm:$0xff]
      %v5737 = vld [vmem:[%s5704 + $0x100] sm:$0xff]
      %v5738 = vld [vmem:[%s5704 + $0x108] sm:$0xff]
      %v5739 = vld [vmem:[%s5704 + $0x110] sm:$0xff]
      %v5740 = vld [vmem:[%s5704 + $0x118] sm:$0xff]
      %v5741 = vld [vmem:[%s5704 + $0x120] sm:$0xff]
      %v5742 = vld [vmem:[%s5704 + $0x128] sm:$0xff]
      %v5743 = vld [vmem:[%s5704 + $0x130] sm:$0xff]
      %v5744 = vld [vmem:[%s5704 + $0x138] sm:$0xff]
      %v5745 = vld [vmem:[%s5704 + $0x140] sm:$0xff]
      %v5746 = vld [vmem:[%s5704 + $0x148] sm:$0xff]
      %v5747 = vld [vmem:[%s5704 + $0x150] sm:$0xff]
      %v5748 = vld [vmem:[%s5704 + $0x158] sm:$0xff]
      %v5749 = vld [vmem:[%s5704 + $0x160] sm:$0xff]
      %v5750 = vld [vmem:[%s5704 + $0x168] sm:$0xff]
      %v5751 = vld [vmem:[%s5704 + $0x170] sm:$0xff]
      %v5752 = vld [vmem:[%s5704 + $0x178] sm:$0xff]
      %v5753 = vld [vmem:[%s5704 + $0x180] sm:$0xff]
      %v5754 = vld [vmem:[%s5704 + $0x188] sm:$0xff]
      %v5755 = vld [vmem:[%s5704 + $0x190] sm:$0xff]
      %v5756 = vld [vmem:[%s5704 + $0x198] sm:$0xff]
      %v5757 = vld [vmem:[%s5704 + $0x1a0] sm:$0xff]
      %v5758 = vld [vmem:[%s5704 + $0x1a8] sm:$0xff]
      %v5759 = vld [vmem:[%s5704 + $0x1b0] sm:$0xff]
      %v5760 = vld [vmem:[%s5704 + $0x1b8] sm:$0xff]
      %v5761 = vld [vmem:[%s5704 + $0x1c0] sm:$0xff]
      %v5762 = vld [vmem:[%s5704 + $0x1c8] sm:$0xff]
      %v5763 = vld [vmem:[%s5704 + $0x1d0] sm:$0xff]
      %v5764 = vld [vmem:[%s5704 + $0x1d8] sm:$0xff]
      %v5765 = vld [vmem:[%s5704 + $0x1e0] sm:$0xff]
      %v5766 = vld [vmem:[%s5704 + $0x1e8] sm:$0xff]
      %v5767 = vld [vmem:[%s5704 + $0x1f0] sm:$0xff]
      %v5768 = vld [vmem:[%s5704 + $0x1f8] sm:$0xff]
      %v5770 = vshrl.u32 %v5064, 16
      %v5772 = vrot.slane %v5770, 1
      %v5773 = vshll.u32 %v5064, 16
      %v5775 = vrot.slane %v5773, 2
      %v5776 = vor.u32 %v5772, %v5775
      %v5778 = vshrl.u32 %v5068, 16
      %v5780 = vrot.slane %v5778, 1
      %v5781 = vshll.u32 %v5068, 16
      %v5783 = vrot.slane %v5781, 2
      %v5784 = vor.u32 %v5780, %v5783
      %v5785 = vsel %vm4166, %v5776, %v5784
      %v5787 = vshrl.u32 %v5065, 16
      %v5789 = vrot.slane %v5787, 1
      %v5790 = vshll.u32 %v5065, 16
      %v5792 = vrot.slane %v5790, 2
      %v5793 = vor.u32 %v5789, %v5792
      %v5795 = vshrl.u32 %v5069, 16
      %v5797 = vrot.slane %v5795, 1
      %v5798 = vshll.u32 %v5069, 16
      %v5800 = vrot.slane %v5798, 2
      %v5801 = vor.u32 %v5797, %v5800
      %v5802 = vsel %vm4166, %v5793, %v5801
      %v5804 = vshrl.u32 %v5066, 16
      %v5806 = vrot.slane %v5804, 1
      %v5807 = vshll.u32 %v5066, 16
      %v5809 = vrot.slane %v5807, 2
      %v5810 = vor.u32 %v5806, %v5809
      %v5812 = vshrl.u32 %v5070, 16
      %v5814 = vrot.slane %v5812, 1
      %v5815 = vshll.u32 %v5070, 16
      %v5817 = vrot.slane %v5815, 2
      %v5818 = vor.u32 %v5814, %v5817
      %v5819 = vsel %vm4166, %v5810, %v5818
      %v5821 = vshrl.u32 %v5067, 16
      %v5823 = vrot.slane %v5821, 1
      %v5824 = vshll.u32 %v5067, 16
      %v5826 = vrot.slane %v5824, 2
      %v5827 = vor.u32 %v5823, %v5826
      %v5829 = vshrl.u32 %v5071, 16
      %v5831 = vrot.slane %v5829, 1
      %v5832 = vshll.u32 %v5071, 16
      %v5834 = vrot.slane %v5832, 2
      %v5835 = vor.u32 %v5831, %v5834
      %v5836 = vsel %vm4166, %v5827, %v5835
      %v5838 = vshrl.u32 %v5072, 16
      %v5840 = vrot.slane %v5838, 1
      %v5841 = vshll.u32 %v5072, 16
      %v5843 = vrot.slane %v5841, 2
      %v5844 = vor.u32 %v5840, %v5843
      %v5845 = vsel %vm4166, %v5784, %v5844
      %v5847 = vshrl.u32 %v5073, 16
      %v5849 = vrot.slane %v5847, 1
      %v5850 = vshll.u32 %v5073, 16
      %v5852 = vrot.slane %v5850, 2
      %v5853 = vor.u32 %v5849, %v5852
      %v5854 = vsel %vm4166, %v5801, %v5853
      %v5856 = vshrl.u32 %v5074, 16
      %v5858 = vrot.slane %v5856, 1
      %v5859 = vshll.u32 %v5074, 16
      %v5861 = vrot.slane %v5859, 2
      %v5862 = vor.u32 %v5858, %v5861
      %v5863 = vsel %vm4166, %v5818, %v5862
      %v5865 = vshrl.u32 %v5075, 16
      %v5867 = vrot.slane %v5865, 1
      %v5868 = vshll.u32 %v5075, 16
      %v5870 = vrot.slane %v5868, 2
      %v5871 = vor.u32 %v5867, %v5870
      %v5872 = vsel %vm4166, %v5835, %v5871
      %v5874 = vshrl.u32 %v5076, 16
      %v5876 = vrot.slane %v5874, 1
      %v5877 = vshll.u32 %v5076, 16
      %v5879 = vrot.slane %v5877, 2
      %v5880 = vor.u32 %v5876, %v5879
      %v5881 = vsel %vm4166, %v5844, %v5880
      %v5883 = vshrl.u32 %v5077, 16
      %v5885 = vrot.slane %v5883, 1
      %v5886 = vshll.u32 %v5077, 16
      %v5888 = vrot.slane %v5886, 2
      %v5889 = vor.u32 %v5885, %v5888
      %v5890 = vsel %vm4166, %v5853, %v5889
      %v5892 = vshrl.u32 %v5078, 16
      %v5894 = vrot.slane %v5892, 1
      %v5895 = vshll.u32 %v5078, 16
      %v5897 = vrot.slane %v5895, 2
      %v5898 = vor.u32 %v5894, %v5897
      %v5899 = vsel %vm4166, %v5862, %v5898
      %v5901 = vshrl.u32 %v5079, 16
      %v5903 = vrot.slane %v5901, 1
      %v5904 = vshll.u32 %v5079, 16
      %v5906 = vrot.slane %v5904, 2
      %v5907 = vor.u32 %v5903, %v5906
      %v5908 = vsel %vm4166, %v5871, %v5907
      %v5910 = vshrl.u32 %v5080, 16
      %v5912 = vrot.slane %v5910, 1
      %v5913 = vshll.u32 %v5080, 16
      %v5915 = vrot.slane %v5913, 2
      %v5916 = vor.u32 %v5912, %v5915
      %v5917 = vsel %vm4166, %v5880, %v5916
      %v5919 = vshrl.u32 %v5081, 16
      %v5921 = vrot.slane %v5919, 1
      %v5922 = vshll.u32 %v5081, 16
      %v5924 = vrot.slane %v5922, 2
      %v5925 = vor.u32 %v5921, %v5924
      %v5926 = vsel %vm4166, %v5889, %v5925
      %v5928 = vshrl.u32 %v5082, 16
      %v5930 = vrot.slane %v5928, 1
      %v5931 = vshll.u32 %v5082, 16
      %v5933 = vrot.slane %v5931, 2
      %v5934 = vor.u32 %v5930, %v5933
      %v5935 = vsel %vm4166, %v5898, %v5934
      %v5937 = vshrl.u32 %v5083, 16
      %v5939 = vrot.slane %v5937, 1
      %v5940 = vshll.u32 %v5083, 16
      %v5942 = vrot.slane %v5940, 2
      %v5943 = vor.u32 %v5939, %v5942
      %v5944 = vsel %vm4166, %v5907, %v5943
      %v6025 = vunpack.c.l.b16 %v5705
      %v6026 = vunpack.c.h.b16 %v5705
      %v6027 = vunpack.c.l.b16 %v5706
      %v6028 = vunpack.c.h.b16 %v5706
      %v6029 = vunpack.c.l.b16 %v5707
      %v6030 = vunpack.c.h.b16 %v5707
      %v6031 = vunpack.c.l.b16 %v5708
      %v6032 = vunpack.c.h.b16 %v5708
      %v6033 = vunpack.c.l.b16 %v5709
      %v6034 = vunpack.c.h.b16 %v5709
      %v6035 = vunpack.c.l.b16 %v5710
      %v6036 = vunpack.c.h.b16 %v5710
      %v6037 = vunpack.c.l.b16 %v5711
      %v6038 = vunpack.c.h.b16 %v5711
      %v6039 = vunpack.c.l.b16 %v5712
      %v6040 = vunpack.c.h.b16 %v5712
      %v6041 = vunpack.c.l.b16 %v5713
      %v6042 = vunpack.c.h.b16 %v5713
      %v6043 = vunpack.c.l.b16 %v5714
      %v6044 = vunpack.c.h.b16 %v5714
      %v6045 = vunpack.c.l.b16 %v5715
      %v6046 = vunpack.c.h.b16 %v5715
      %v6047 = vunpack.c.l.b16 %v5716
      %v6048 = vunpack.c.h.b16 %v5716
      %v6049 = vunpack.c.l.b16 %v5717
      %v6050 = vunpack.c.h.b16 %v5717
      %v6051 = vunpack.c.l.b16 %v5718
      %v6052 = vunpack.c.h.b16 %v5718
      %v6053 = vunpack.c.l.b16 %v5719
      %v6054 = vunpack.c.h.b16 %v5719
      %v6055 = vunpack.c.l.b16 %v5720
      %v6056 = vunpack.c.h.b16 %v5720
      %v6057 = vunpack.c.l.b16 %v5721
      %v6058 = vunpack.c.h.b16 %v5721
      %v6059 = vunpack.c.l.b16 %v5722
      %v6060 = vunpack.c.h.b16 %v5722
      %v6061 = vunpack.c.l.b16 %v5723
      %v6062 = vunpack.c.h.b16 %v5723
      %v6063 = vunpack.c.l.b16 %v5724
      %v6064 = vunpack.c.h.b16 %v5724
      %v6065 = vunpack.c.l.b16 %v5725
      %v6066 = vunpack.c.h.b16 %v5725
      %v6067 = vunpack.c.l.b16 %v5726
      %v6068 = vunpack.c.h.b16 %v5726
      %v6069 = vunpack.c.l.b16 %v5727
      %v6070 = vunpack.c.h.b16 %v5727
      %v6071 = vunpack.c.l.b16 %v5728
      %v6072 = vunpack.c.h.b16 %v5728
      %v6073 = vunpack.c.l.b16 %v5729
      %v6074 = vunpack.c.h.b16 %v5729
      %v6075 = vunpack.c.l.b16 %v5730
      %v6076 = vunpack.c.h.b16 %v5730
      %v6077 = vunpack.c.l.b16 %v5731
      %v6078 = vunpack.c.h.b16 %v5731
      %v6079 = vunpack.c.l.b16 %v5732
      %v6080 = vunpack.c.h.b16 %v5732
      %v6081 = vunpack.c.l.b16 %v5733
      %v6082 = vunpack.c.h.b16 %v5733
      %v6083 = vunpack.c.l.b16 %v5734
      %v6084 = vunpack.c.h.b16 %v5734
      %v6085 = vunpack.c.l.b16 %v5735
      %v6086 = vunpack.c.h.b16 %v5735
      %v6087 = vunpack.c.l.b16 %v5736
      %v6088 = vunpack.c.h.b16 %v5736
      %v6089 = vunpack.c.l.b16 %v5737
      %v6090 = vunpack.c.h.b16 %v5737
      %v6091 = vunpack.c.l.b16 %v5738
      %v6092 = vunpack.c.h.b16 %v5738
      %v6093 = vunpack.c.l.b16 %v5739
      %v6094 = vunpack.c.h.b16 %v5739
      %v6095 = vunpack.c.l.b16 %v5740
      %v6096 = vunpack.c.h.b16 %v5740
      %v6097 = vunpack.c.l.b16 %v5741
      %v6098 = vunpack.c.h.b16 %v5741
      %v6099 = vunpack.c.l.b16 %v5742
      %v6100 = vunpack.c.h.b16 %v5742
      %v6101 = vunpack.c.l.b16 %v5743
      %v6102 = vunpack.c.h.b16 %v5743
      %v6103 = vunpack.c.l.b16 %v5744
      %v6104 = vunpack.c.h.b16 %v5744
      %v6105 = vunpack.c.l.b16 %v5745
      %v6106 = vunpack.c.h.b16 %v5745
      %v6107 = vunpack.c.l.b16 %v5746
      %v6108 = vunpack.c.h.b16 %v5746
      %v6109 = vunpack.c.l.b16 %v5747
      %v6110 = vunpack.c.h.b16 %v5747
      %v6111 = vunpack.c.l.b16 %v5748
      %v6112 = vunpack.c.h.b16 %v5748
      %v6113 = vunpack.c.l.b16 %v5749
      %v6114 = vunpack.c.h.b16 %v5749
      %v6115 = vunpack.c.l.b16 %v5750
      %v6116 = vunpack.c.h.b16 %v5750
      %v6117 = vunpack.c.l.b16 %v5751
      %v6118 = vunpack.c.h.b16 %v5751
      %v6119 = vunpack.c.l.b16 %v5752
      %v6120 = vunpack.c.h.b16 %v5752
      %v6121 = vunpack.c.l.b16 %v5753
      %v6122 = vunpack.c.h.b16 %v5753
      %v6123 = vunpack.c.l.b16 %v5754
      %v6124 = vunpack.c.h.b16 %v5754
      %v6125 = vunpack.c.l.b16 %v5755
      %v6126 = vunpack.c.h.b16 %v5755
      %v6127 = vunpack.c.l.b16 %v5756
      %v6128 = vunpack.c.h.b16 %v5756
      %v6129 = vunpack.c.l.b16 %v5757
      %v6130 = vunpack.c.h.b16 %v5757
      %v6131 = vunpack.c.l.b16 %v5758
      %v6132 = vunpack.c.h.b16 %v5758
      %v6133 = vunpack.c.l.b16 %v5759
      %v6134 = vunpack.c.h.b16 %v5759
      %v6135 = vunpack.c.l.b16 %v5760
      %v6136 = vunpack.c.h.b16 %v5760
      %v6137 = vunpack.c.l.b16 %v5761
      %v6138 = vunpack.c.h.b16 %v5761
      %v6139 = vunpack.c.l.b16 %v5762
      %v6140 = vunpack.c.h.b16 %v5762
      %v6141 = vunpack.c.l.b16 %v5763
      %v6142 = vunpack.c.h.b16 %v5763
      %v6143 = vunpack.c.l.b16 %v5764
      %v6144 = vunpack.c.h.b16 %v5764
      %v6145 = vunpack.c.l.b16 %v5765
      %v6146 = vunpack.c.h.b16 %v5765
      %v6147 = vunpack.c.l.b16 %v5766
      %v6148 = vunpack.c.h.b16 %v5766
      %v6149 = vunpack.c.l.b16 %v5767
      %v6150 = vunpack.c.h.b16 %v5767
      %v6151 = vunpack.c.l.b16 %v5768
      %v6152 = vunpack.c.h.b16 %v5768
      %v6153 = vpack.c.b16 %v6027, %v6025
      %v6154 = vpack.c.b16 %v6028, %v6026
      %v6155 = vpack.c.b16 %v6031, %v6029
      %v6156 = vpack.c.b16 %v6032, %v6030
      %v6157 = vpack.c.b16 %v6035, %v6033
      %v6158 = vpack.c.b16 %v6036, %v6034
      %v6159 = vpack.c.b16 %v6039, %v6037
      %v6160 = vpack.c.b16 %v6040, %v6038
      %v6161 = vpack.c.b16 %v6043, %v6041
      %v6162 = vpack.c.b16 %v6044, %v6042
      %v6163 = vpack.c.b16 %v6047, %v6045
      %v6164 = vpack.c.b16 %v6048, %v6046
      %v6165 = vpack.c.b16 %v6051, %v6049
      %v6166 = vpack.c.b16 %v6052, %v6050
      %v6167 = vpack.c.b16 %v6055, %v6053
      %v6168 = vpack.c.b16 %v6056, %v6054
      %v6169 = vpack.c.b16 %v6059, %v6057
      %v6170 = vpack.c.b16 %v6060, %v6058
      %v6171 = vpack.c.b16 %v6063, %v6061
      %v6172 = vpack.c.b16 %v6064, %v6062
      %v6173 = vpack.c.b16 %v6067, %v6065
      %v6174 = vpack.c.b16 %v6068, %v6066
      %v6175 = vpack.c.b16 %v6071, %v6069
      %v6176 = vpack.c.b16 %v6072, %v6070
      %v6177 = vpack.c.b16 %v6075, %v6073
      %v6178 = vpack.c.b16 %v6076, %v6074
      %v6179 = vpack.c.b16 %v6079, %v6077
      %v6180 = vpack.c.b16 %v6080, %v6078
      %v6181 = vpack.c.b16 %v6083, %v6081
      %v6182 = vpack.c.b16 %v6084, %v6082
      %v6183 = vpack.c.b16 %v6087, %v6085
      %v6184 = vpack.c.b16 %v6088, %v6086
      %v6185 = vpack.c.b16 %v6091, %v6089
      %v6186 = vpack.c.b16 %v6092, %v6090
      %v6187 = vpack.c.b16 %v6095, %v6093
      %v6188 = vpack.c.b16 %v6096, %v6094
      %v6189 = vpack.c.b16 %v6099, %v6097
      %v6190 = vpack.c.b16 %v6100, %v6098
      %v6191 = vpack.c.b16 %v6103, %v6101
      %v6192 = vpack.c.b16 %v6104, %v6102
      %v6193 = vpack.c.b16 %v6107, %v6105
      %v6194 = vpack.c.b16 %v6108, %v6106
      %v6195 = vpack.c.b16 %v6111, %v6109
      %v6196 = vpack.c.b16 %v6112, %v6110
      %v6197 = vpack.c.b16 %v6115, %v6113
      %v6198 = vpack.c.b16 %v6116, %v6114
      %v6199 = vpack.c.b16 %v6119, %v6117
      %v6200 = vpack.c.b16 %v6120, %v6118
      %v6201 = vpack.c.b16 %v6123, %v6121
      %v6202 = vpack.c.b16 %v6124, %v6122
      %v6203 = vpack.c.b16 %v6127, %v6125
      %v6204 = vpack.c.b16 %v6128, %v6126
      %v6205 = vpack.c.b16 %v6131, %v6129
      %v6206 = vpack.c.b16 %v6132, %v6130
      %v6207 = vpack.c.b16 %v6135, %v6133
      %v6208 = vpack.c.b16 %v6136, %v6134
      %v6209 = vpack.c.b16 %v6139, %v6137
      %v6210 = vpack.c.b16 %v6140, %v6138
      %v6211 = vpack.c.b16 %v6143, %v6141
      %v6212 = vpack.c.b16 %v6144, %v6142
      %v6213 = vpack.c.b16 %v6147, %v6145
      %v6214 = vpack.c.b16 %v6148, %v6146
      %v6215 = vpack.c.b16 %v6151, %v6149
      %v6216 = vpack.c.b16 %v6152, %v6150
      %6281 = vmatpush.bf16.msra.mxu0 %v6167
      %6282 = vmatpush.bf16.msra.mxu0 %v6165
      %6283 = vmatpush.bf16.msra.mxu0 %v6163
      %6284 = vmatpush.bf16.msra.mxu0 %v6161
      %6285 = vmatpush.bf16.msra.mxu0 %v6159
      %6286 = vmatpush.bf16.msra.mxu0 %v6157
      %6287 = vmatpush.bf16.msra.mxu0 %v6155
      %6288 = vmatpush.bf16.msra.mxu0 %v6153
      %6289 = vmatmul.bf16.gmra.mxu0 %v5785
      %v6290 = vpop.f32.mrf.mxu0
      %v6291 = vadd.f32 0.0, %v6290
      %v6292 = vpop.f32.mrf.mxu0
      %v6293 = vadd.f32 0.0, %v6292
      %6294 = vmatmul.bf16.gmra.mxu0 %v5845
      %v6295 = vpop.f32.mrf.mxu0
      %v6296 = vadd.f32 0.0, %v6295
      %v6297 = vpop.f32.mrf.mxu0
      %v6298 = vadd.f32 0.0, %v6297
      %6299 = vmatmul.bf16.gmra.mxu0 %v5881
      %v6300 = vpop.f32.mrf.mxu0
      %v6301 = vadd.f32 0.0, %v6300
      %v6302 = vpop.f32.mrf.mxu0
      %v6303 = vadd.f32 0.0, %v6302
      %6304 = vmatmul.bf16.gmra.mxu0 %v5917
      %v6305 = vpop.f32.mrf.mxu0
      %v6306 = vadd.f32 0.0, %v6305
      %v6307 = vpop.f32.mrf.mxu0
      %v6308 = vadd.f32 0.0, %v6307
      %6309 = vdwg.mxu0
      %6310 = vmatpush.bf16.msra.mxu0 %v6183
      %6311 = vmatpush.bf16.msra.mxu0 %v6181
      %6312 = vmatpush.bf16.msra.mxu0 %v6179
      %6313 = vmatpush.bf16.msra.mxu0 %v6177
      %6314 = vmatpush.bf16.msra.mxu0 %v6175
      %6315 = vmatpush.bf16.msra.mxu0 %v6173
      %6316 = vmatpush.bf16.msra.mxu0 %v6171
      %6317 = vmatpush.bf16.msra.mxu0 %v6169
      %6318 = vmatmul.bf16.gmra.mxu0 %v5802
      %v6319 = vpop.f32.mrf.mxu0
      %v6320 = vadd.f32 %v6291, %v6319
      %v6321 = vpop.f32.mrf.mxu0
      %v6322 = vadd.f32 %v6293, %v6321
      %6323 = vmatmul.bf16.gmra.mxu0 %v5854
      %v6324 = vpop.f32.mrf.mxu0
      %v6325 = vadd.f32 %v6296, %v6324
      %v6326 = vpop.f32.mrf.mxu0
      %v6327 = vadd.f32 %v6298, %v6326
      %6328 = vmatmul.bf16.gmra.mxu0 %v5890
      %v6329 = vpop.f32.mrf.mxu0
      %v6330 = vadd.f32 %v6301, %v6329
      %v6331 = vpop.f32.mrf.mxu0
      %v6332 = vadd.f32 %v6303, %v6331
      %6333 = vmatmul.bf16.gmra.mxu0 %v5926
      %v6334 = vpop.f32.mrf.mxu0
      %v6335 = vadd.f32 %v6306, %v6334
      %v6336 = vpop.f32.mrf.mxu0
      %v6337 = vadd.f32 %v6308, %v6336
      %6338 = vdwg.mxu0
      %6339 = vmatpush.bf16.msra.mxu0 %v6199
      %6340 = vmatpush.bf16.msra.mxu0 %v6197
      %6341 = vmatpush.bf16.msra.mxu0 %v6195
      %6342 = vmatpush.bf16.msra.mxu0 %v6193
      %6343 = vmatpush.bf16.msra.mxu0 %v6191
      %6344 = vmatpush.bf16.msra.mxu0 %v6189
      %6345 = vmatpush.bf16.msra.mxu0 %v6187
      %6346 = vmatpush.bf16.msra.mxu0 %v6185
      %6347 = vmatmul.bf16.gmra.mxu0 %v5819
      %v6348 = vpop.f32.mrf.mxu0
      %v6349 = vadd.f32 %v6320, %v6348
      %v6350 = vpop.f32.mrf.mxu0
      %v6351 = vadd.f32 %v6322, %v6350
      %6352 = vmatmul.bf16.gmra.mxu0 %v5863
      %v6353 = vpop.f32.mrf.mxu0
      %v6354 = vadd.f32 %v6325, %v6353
      %v6355 = vpop.f32.mrf.mxu0
      %v6356 = vadd.f32 %v6327, %v6355
      %6357 = vmatmul.bf16.gmra.mxu0 %v5899
      %v6358 = vpop.f32.mrf.mxu0
      %v6359 = vadd.f32 %v6330, %v6358
      %v6360 = vpop.f32.mrf.mxu0
      %v6361 = vadd.f32 %v6332, %v6360
      %6362 = vmatmul.bf16.gmra.mxu0 %v5935
      %v6363 = vpop.f32.mrf.mxu0
      %v6364 = vadd.f32 %v6335, %v6363
      %v6365 = vpop.f32.mrf.mxu0
      %v6366 = vadd.f32 %v6337, %v6365
      %6367 = vdwg.mxu0
      %6368 = vmatpush.bf16.msra.mxu0 %v6215
      %6369 = vmatpush.bf16.msra.mxu0 %v6213
      %6370 = vmatpush.bf16.msra.mxu0 %v6211
      %6371 = vmatpush.bf16.msra.mxu0 %v6209
      %6372 = vmatpush.bf16.msra.mxu0 %v6207
      %6373 = vmatpush.bf16.msra.mxu0 %v6205
      %6374 = vmatpush.bf16.msra.mxu0 %v6203
      %6375 = vmatpush.bf16.msra.mxu0 %v6201
      %6376 = vmatmul.bf16.gmra.mxu0 %v5836
      %v6377 = vpop.f32.mrf.mxu0
      %v6378 = vadd.f32 %v6349, %v6377
      %v6379 = vpop.f32.mrf.mxu0
      %v6380 = vadd.f32 %v6351, %v6379
      %6381 = vmatmul.bf16.gmra.mxu0 %v5872
      %v6382 = vpop.f32.mrf.mxu0
      %v6383 = vadd.f32 %v6354, %v6382
      %v6384 = vpop.f32.mrf.mxu0
      %v6385 = vadd.f32 %v6356, %v6384
      %6386 = vmatmul.bf16.gmra.mxu0 %v5908
      %v6387 = vpop.f32.mrf.mxu0
      %v6388 = vadd.f32 %v6359, %v6387
      %v6389 = vpop.f32.mrf.mxu0
      %v6390 = vadd.f32 %v6361, %v6389
      %6391 = vmatmul.bf16.gmra.mxu0 %v5944
      %v6392 = vpop.f32.mrf.mxu0
      %v6393 = vadd.f32 %v6364, %v6392
      %v6394 = vpop.f32.mrf.mxu0
      %v6395 = vadd.f32 %v6366, %v6394
      %6396 = vdwg.mxu0
      %6397 = vmatpush.bf16.msra.mxu0 %v6168
      %6398 = vmatpush.bf16.msra.mxu0 %v6166
      %6399 = vmatpush.bf16.msra.mxu0 %v6164
      %6400 = vmatpush.bf16.msra.mxu0 %v6162
      %6401 = vmatpush.bf16.msra.mxu0 %v6160
      %6402 = vmatpush.bf16.msra.mxu0 %v6158
      %6403 = vmatpush.bf16.msra.mxu0 %v6156
      %6404 = vmatpush.bf16.msra.mxu0 %v6154
      %6405 = vmatmul.bf16.gmra.mxu0 %v5785
      %v6406 = vpop.f32.mrf.mxu0
      %v6407 = vadd.f32 0.0, %v6406
      %v6408 = vpop.f32.mrf.mxu0
      %v6409 = vadd.f32 0.0, %v6408
      %6410 = vmatmul.bf16.gmra.mxu0 %v5845
      %v6411 = vpop.f32.mrf.mxu0
      %v6412 = vadd.f32 0.0, %v6411
      %v6413 = vpop.f32.mrf.mxu0
      %v6414 = vadd.f32 0.0, %v6413
      %6415 = vmatmul.bf16.gmra.mxu0 %v5881
      %v6416 = vpop.f32.mrf.mxu0
      %v6417 = vadd.f32 0.0, %v6416
      %v6418 = vpop.f32.mrf.mxu0
      %v6419 = vadd.f32 0.0, %v6418
      %6420 = vmatmul.bf16.gmra.mxu0 %v5917
      %v6421 = vpop.f32.mrf.mxu0
      %v6422 = vadd.f32 0.0, %v6421
      %v6423 = vpop.f32.mrf.mxu0
      %v6424 = vadd.f32 0.0, %v6423
      %6425 = vdwg.mxu0
      %6426 = vmatpush.bf16.msra.mxu0 %v6184
      %6427 = vmatpush.bf16.msra.mxu0 %v6182
      %6428 = vmatpush.bf16.msra.mxu0 %v6180
      %6429 = vmatpush.bf16.msra.mxu0 %v6178
      %6430 = vmatpush.bf16.msra.mxu0 %v6176
      %6431 = vmatpush.bf16.msra.mxu0 %v6174
      %6432 = vmatpush.bf16.msra.mxu0 %v6172
      %6433 = vmatpush.bf16.msra.mxu0 %v6170
      %6434 = vmatmul.bf16.gmra.mxu0 %v5802
      %v6435 = vpop.f32.mrf.mxu0
      %v6436 = vadd.f32 %v6407, %v6435
      %v6437 = vpop.f32.mrf.mxu0
      %v6438 = vadd.f32 %v6409, %v6437
      %6439 = vmatmul.bf16.gmra.mxu0 %v5854
      %v6440 = vpop.f32.mrf.mxu0
      %v6441 = vadd.f32 %v6412, %v6440
      %v6442 = vpop.f32.mrf.mxu0
      %v6443 = vadd.f32 %v6414, %v6442
      %6444 = vmatmul.bf16.gmra.mxu0 %v5890
      %v6445 = vpop.f32.mrf.mxu0
      %v6446 = vadd.f32 %v6417, %v6445
      %v6447 = vpop.f32.mrf.mxu0
      %v6448 = vadd.f32 %v6419, %v6447
      %6449 = vmatmul.bf16.gmra.mxu0 %v5926
      %v6450 = vpop.f32.mrf.mxu0
      %v6451 = vadd.f32 %v6422, %v6450
      %v6452 = vpop.f32.mrf.mxu0
      %v6453 = vadd.f32 %v6424, %v6452
      %6454 = vdwg.mxu0
      %6455 = vmatpush.bf16.msra.mxu0 %v6200
      %6456 = vmatpush.bf16.msra.mxu0 %v6198
      %6457 = vmatpush.bf16.msra.mxu0 %v6196
      %6458 = vmatpush.bf16.msra.mxu0 %v6194
      %6459 = vmatpush.bf16.msra.mxu0 %v6192
      %6460 = vmatpush.bf16.msra.mxu0 %v6190
      %6461 = vmatpush.bf16.msra.mxu0 %v6188
      %6462 = vmatpush.bf16.msra.mxu0 %v6186
      %6463 = vmatmul.bf16.gmra.mxu0 %v5819
      %v6464 = vpop.f32.mrf.mxu0
      %v6465 = vadd.f32 %v6436, %v6464
      %v6466 = vpop.f32.mrf.mxu0
      %v6467 = vadd.f32 %v6438, %v6466
      %6468 = vmatmul.bf16.gmra.mxu0 %v5863
      %v6469 = vpop.f32.mrf.mxu0
      %v6470 = vadd.f32 %v6441, %v6469
      %v6471 = vpop.f32.mrf.mxu0
      %v6472 = vadd.f32 %v6443, %v6471
      %6473 = vmatmul.bf16.gmra.mxu0 %v5899
      %v6474 = vpop.f32.mrf.mxu0
      %v6475 = vadd.f32 %v6446, %v6474
      %v6476 = vpop.f32.mrf.mxu0
      %v6477 = vadd.f32 %v6448, %v6476
      %6478 = vmatmul.bf16.gmra.mxu0 %v5935
      %v6479 = vpop.f32.mrf.mxu0
      %v6480 = vadd.f32 %v6451, %v6479
      %v6481 = vpop.f32.mrf.mxu0
      %v6482 = vadd.f32 %v6453, %v6481
      %6483 = vdwg.mxu0
      %6484 = vmatpush.bf16.msra.mxu0 %v6216
      %6485 = vmatpush.bf16.msra.mxu0 %v6214
      %6486 = vmatpush.bf16.msra.mxu0 %v6212
      %6487 = vmatpush.bf16.msra.mxu0 %v6210
      %6488 = vmatpush.bf16.msra.mxu0 %v6208
      %6489 = vmatpush.bf16.msra.mxu0 %v6206
      %6490 = vmatpush.bf16.msra.mxu0 %v6204
      %6491 = vmatpush.bf16.msra.mxu0 %v6202
      %6492 = vmatmul.bf16.gmra.mxu0 %v5836
      %v6493 = vpop.f32.mrf.mxu0
      %v6494 = vadd.f32 %v6465, %v6493
      %v6495 = vpop.f32.mrf.mxu0
      %v6496 = vadd.f32 %v6467, %v6495
      %6497 = vmatmul.bf16.gmra.mxu0 %v5872
      %v6498 = vpop.f32.mrf.mxu0
      %v6499 = vadd.f32 %v6470, %v6498
      %v6500 = vpop.f32.mrf.mxu0
      %v6501 = vadd.f32 %v6472, %v6500
      %6502 = vmatmul.bf16.gmra.mxu0 %v5908
      %v6503 = vpop.f32.mrf.mxu0
      %v6504 = vadd.f32 %v6475, %v6503
      %v6505 = vpop.f32.mrf.mxu0
      %v6506 = vadd.f32 %v6477, %v6505
      %6507 = vmatmul.bf16.gmra.mxu0 %v5944
      %v6508 = vpop.f32.mrf.mxu0
      %v6509 = vadd.f32 %v6480, %v6508
      %v6510 = vpop.f32.mrf.mxu0
      %v6511 = vadd.f32 %v6482, %v6510
      %6512 = vdwg.mxu0
      %v6513 = vadd.f32 %v5688, %v6378
      %v6514 = vadd.f32 %v5689, %v6494
      %v6515 = vadd.f32 %v5690, %v6380
      %v6516 = vadd.f32 %v5691, %v6496
      %v6517 = vadd.f32 %v5692, %v6383
      %v6518 = vadd.f32 %v5693, %v6499
      %v6519 = vadd.f32 %v5694, %v6385
      %v6520 = vadd.f32 %v5695, %v6501
      %v6521 = vadd.f32 %v5696, %v6388
      %v6522 = vadd.f32 %v5697, %v6504
      %v6523 = vadd.f32 %v5698, %v6390
      %v6524 = vadd.f32 %v5699, %v6506
      %v6525 = vadd.f32 %v5700, %v6393
      %v6526 = vadd.f32 %v5701, %v6509
      %v6527 = vadd.f32 %v5702, %v6395
      %v6528 = vadd.f32 %v5703, %v6511
      %v6529 = vld [vmem:[%s272 + $0x20] sm:$0xcc]
      %v6530 = vld [vmem:[%s272 + $0x28] sm:$0xcc]
      %v6531 = vld [vmem:[%s272 + $0xa0] sm:$0x33]
      %v6532 = vld [vmem:[%s272 + $0xa8] sm:$0x33]
      %s6533 = scalar_lea.vmem %s2, 4096
      %v6534 = vld [vmem:[%s6533] sm:$0xff]
      %v6535 = vld [vmem:[%s6533 + $0x8] sm:$0xff]
      %v6536 = vld [vmem:[%s6533 + $0x10] sm:$0xff]
      %v6537 = vld [vmem:[%s6533 + $0x18] sm:$0xff]
      %v6538 = vld [vmem:[%s6533 + $0x20] sm:$0xff]
      %v6539 = vld [vmem:[%s6533 + $0x28] sm:$0xff]
      %v6540 = vld [vmem:[%s6533 + $0x30] sm:$0xff]
      %v6541 = vld [vmem:[%s6533 + $0x38] sm:$0xff]
      %v6542 = vld [vmem:[%s6533 + $0x40] sm:$0xff]
      %v6543 = vld [vmem:[%s6533 + $0x48] sm:$0xff]
      %v6544 = vld [vmem:[%s6533 + $0x50] sm:$0xff]
      %v6545 = vld [vmem:[%s6533 + $0x58] sm:$0xff]
      %v6546 = vld [vmem:[%s6533 + $0x60] sm:$0xff]
      %v6547 = vld [vmem:[%s6533 + $0x68] sm:$0xff]
      %v6548 = vld [vmem:[%s6533 + $0x70] sm:$0xff]
      %v6549 = vld [vmem:[%s6533 + $0x78] sm:$0xff]
      %v6550 = vld [vmem:[%s6533 + $0x80] sm:$0xff]
      %v6551 = vld [vmem:[%s6533 + $0x88] sm:$0xff]
      %v6552 = vld [vmem:[%s6533 + $0x90] sm:$0xff]
      %v6553 = vld [vmem:[%s6533 + $0x98] sm:$0xff]
      %v6554 = vld [vmem:[%s6533 + $0xa0] sm:$0xff]
      %v6555 = vld [vmem:[%s6533 + $0xa8] sm:$0xff]
      %v6556 = vld [vmem:[%s6533 + $0xb0] sm:$0xff]
      %v6557 = vld [vmem:[%s6533 + $0xb8] sm:$0xff]
      %v6558 = vld [vmem:[%s6533 + $0xc0] sm:$0xff]
      %v6559 = vld [vmem:[%s6533 + $0xc8] sm:$0xff]
      %v6560 = vld [vmem:[%s6533 + $0xd0] sm:$0xff]
      %v6561 = vld [vmem:[%s6533 + $0xd8] sm:$0xff]
      %v6562 = vld [vmem:[%s6533 + $0xe0] sm:$0xff]
      %v6563 = vld [vmem:[%s6533 + $0xe8] sm:$0xff]
      %v6564 = vld [vmem:[%s6533 + $0xf0] sm:$0xff]
      %v6565 = vld [vmem:[%s6533 + $0xf8] sm:$0xff]
      %v6566 = vld [vmem:[%s6533 + $0x100] sm:$0xff]
      %v6567 = vld [vmem:[%s6533 + $0x108] sm:$0xff]
      %v6568 = vld [vmem:[%s6533 + $0x110] sm:$0xff]
      %v6569 = vld [vmem:[%s6533 + $0x118] sm:$0xff]
      %v6570 = vld [vmem:[%s6533 + $0x120] sm:$0xff]
      %v6571 = vld [vmem:[%s6533 + $0x128] sm:$0xff]
      %v6572 = vld [vmem:[%s6533 + $0x130] sm:$0xff]
      %v6573 = vld [vmem:[%s6533 + $0x138] sm:$0xff]
      %v6574 = vld [vmem:[%s6533 + $0x140] sm:$0xff]
      %v6575 = vld [vmem:[%s6533 + $0x148] sm:$0xff]
      %v6576 = vld [vmem:[%s6533 + $0x150] sm:$0xff]
      %v6577 = vld [vmem:[%s6533 + $0x158] sm:$0xff]
      %v6578 = vld [vmem:[%s6533 + $0x160] sm:$0xff]
      %v6579 = vld [vmem:[%s6533 + $0x168] sm:$0xff]
      %v6580 = vld [vmem:[%s6533 + $0x170] sm:$0xff]
      %v6581 = vld [vmem:[%s6533 + $0x178] sm:$0xff]
      %v6582 = vld [vmem:[%s6533 + $0x180] sm:$0xff]
      %v6583 = vld [vmem:[%s6533 + $0x188] sm:$0xff]
      %v6584 = vld [vmem:[%s6533 + $0x190] sm:$0xff]
      %v6585 = vld [vmem:[%s6533 + $0x198] sm:$0xff]
      %v6586 = vld [vmem:[%s6533 + $0x1a0] sm:$0xff]
      %v6587 = vld [vmem:[%s6533 + $0x1a8] sm:$0xff]
      %v6588 = vld [vmem:[%s6533 + $0x1b0] sm:$0xff]
      %v6589 = vld [vmem:[%s6533 + $0x1b8] sm:$0xff]
      %v6590 = vld [vmem:[%s6533 + $0x1c0] sm:$0xff]
      %v6591 = vld [vmem:[%s6533 + $0x1c8] sm:$0xff]
      %v6592 = vld [vmem:[%s6533 + $0x1d0] sm:$0xff]
      %v6593 = vld [vmem:[%s6533 + $0x1d8] sm:$0xff]
      %v6594 = vld [vmem:[%s6533 + $0x1e0] sm:$0xff]
      %v6595 = vld [vmem:[%s6533 + $0x1e8] sm:$0xff]
      %v6596 = vld [vmem:[%s6533 + $0x1f0] sm:$0xff]
      %v6597 = vld [vmem:[%s6533 + $0x1f8] sm:$0xff]
      %v6602 = vunpack.c.l.b16 %v6529
      %v6603 = vunpack.c.h.b16 %v6529
      %v6604 = vunpack.c.l.b16 %v6530
      %v6605 = vunpack.c.h.b16 %v6530
      %v6606 = vunpack.c.l.b16 %v6531
      %v6607 = vunpack.c.h.b16 %v6531
      %v6608 = vunpack.c.l.b16 %v6532
      %v6609 = vunpack.c.h.b16 %v6532
      %v6610 = vpack.c.b16 %v5032, %v6602
      %v6611 = vpack.c.b16 %v5033, %v6603
      %v6612 = vpack.c.b16 %v5034, %v6604
      %v6613 = vpack.c.b16 %v5035, %v6605
      %v6614 = vpack.c.b16 %v6606, %v6606
      %v6615 = vpack.c.b16 %v6607, %v6607
      %v6616 = vpack.c.b16 %v6608, %v6608
      %v6617 = vpack.c.b16 %v6609, %v6609
      %vm6618 = vcmask 1045504
      %v6619 = vrot.slane %v6610, 2
      %v6620 = vrot.slane %v5068, 2
      %v6621 = vsel %vm6618, %v6619, %v6620
      %v6622 = vrot.slane %v6611, 2
      %v6623 = vrot.slane %v5069, 2
      %v6624 = vsel %vm6618, %v6622, %v6623
      %v6625 = vrot.slane %v6612, 2
      %v6626 = vrot.slane %v5070, 2
      %v6627 = vsel %vm6618, %v6625, %v6626
      %v6628 = vrot.slane %v6613, 2
      %v6629 = vrot.slane %v5071, 2
      %v6630 = vsel %vm6618, %v6628, %v6629
      %v6631 = vrot.slane %v5072, 2
      %v6632 = vsel %vm6618, %v6620, %v6631
      %v6633 = vrot.slane %v5073, 2
      %v6634 = vsel %vm6618, %v6623, %v6633
      %v6635 = vrot.slane %v5074, 2
      %v6636 = vsel %vm6618, %v6626, %v6635
      %v6637 = vrot.slane %v5075, 2
      %v6638 = vsel %vm6618, %v6629, %v6637
      %v6639 = vrot.slane %v5076, 2
      %v6640 = vsel %vm6618, %v6631, %v6639
      %v6641 = vrot.slane %v5077, 2
      %v6642 = vsel %vm6618, %v6633, %v6641
      %v6643 = vrot.slane %v5078, 2
      %v6644 = vsel %vm6618, %v6635, %v6643
      %v6645 = vrot.slane %v5079, 2
      %v6646 = vsel %vm6618, %v6637, %v6645
      %v6647 = vrot.slane %v6614, 2
      %v6648 = vsel %vm6618, %v6639, %v6647
      %v6649 = vrot.slane %v6615, 2
      %v6650 = vsel %vm6618, %v6641, %v6649
      %v6651 = vrot.slane %v6616, 2
      %v6652 = vsel %vm6618, %v6643, %v6651
      %v6653 = vrot.slane %v6617, 2
      %v6654 = vsel %vm6618, %v6645, %v6653
      %v6735 = vunpack.c.l.b16 %v6534
      %v6736 = vunpack.c.h.b16 %v6534
      %v6737 = vunpack.c.l.b16 %v6535
      %v6738 = vunpack.c.h.b16 %v6535
      %v6739 = vunpack.c.l.b16 %v6536
      %v6740 = vunpack.c.h.b16 %v6536
      %v6741 = vunpack.c.l.b16 %v6537
      %v6742 = vunpack.c.h.b16 %v6537
      %v6743 = vunpack.c.l.b16 %v6538
      %v6744 = vunpack.c.h.b16 %v6538
      %v6745 = vunpack.c.l.b16 %v6539
      %v6746 = vunpack.c.h.b16 %v6539
      %v6747 = vunpack.c.l.b16 %v6540
      %v6748 = vunpack.c.h.b16 %v6540
      %v6749 = vunpack.c.l.b16 %v6541
      %v6750 = vunpack.c.h.b16 %v6541
      %v6751 = vunpack.c.l.b16 %v6542
      %v6752 = vunpack.c.h.b16 %v6542
      %v6753 = vunpack.c.l.b16 %v6543
      %v6754 = vunpack.c.h.b16 %v6543
      %v6755 = vunpack.c.l.b16 %v6544
      %v6756 = vunpack.c.h.b16 %v6544
      %v6757 = vunpack.c.l.b16 %v6545
      %v6758 = vunpack.c.h.b16 %v6545
      %v6759 = vunpack.c.l.b16 %v6546
      %v6760 = vunpack.c.h.b16 %v6546
      %v6761 = vunpack.c.l.b16 %v6547
      %v6762 = vunpack.c.h.b16 %v6547
      %v6763 = vunpack.c.l.b16 %v6548
      %v6764 = vunpack.c.h.b16 %v6548
      %v6765 = vunpack.c.l.b16 %v6549
      %v6766 = vunpack.c.h.b16 %v6549
      %v6767 = vunpack.c.l.b16 %v6550
      %v6768 = vunpack.c.h.b16 %v6550
      %v6769 = vunpack.c.l.b16 %v6551
      %v6770 = vunpack.c.h.b16 %v6551
      %v6771 = vunpack.c.l.b16 %v6552
      %v6772 = vunpack.c.h.b16 %v6552
      %v6773 = vunpack.c.l.b16 %v6553
      %v6774 = vunpack.c.h.b16 %v6553
      %v6775 = vunpack.c.l.b16 %v6554
      %v6776 = vunpack.c.h.b16 %v6554
      %v6777 = vunpack.c.l.b16 %v6555
      %v6778 = vunpack.c.h.b16 %v6555
      %v6779 = vunpack.c.l.b16 %v6556
      %v6780 = vunpack.c.h.b16 %v6556
      %v6781 = vunpack.c.l.b16 %v6557
      %v6782 = vunpack.c.h.b16 %v6557
      %v6783 = vunpack.c.l.b16 %v6558
      %v6784 = vunpack.c.h.b16 %v6558
      %v6785 = vunpack.c.l.b16 %v6559
      %v6786 = vunpack.c.h.b16 %v6559
      %v6787 = vunpack.c.l.b16 %v6560
      %v6788 = vunpack.c.h.b16 %v6560
      %v6789 = vunpack.c.l.b16 %v6561
      %v6790 = vunpack.c.h.b16 %v6561
      %v6791 = vunpack.c.l.b16 %v6562
      %v6792 = vunpack.c.h.b16 %v6562
      %v6793 = vunpack.c.l.b16 %v6563
      %v6794 = vunpack.c.h.b16 %v6563
      %v6795 = vunpack.c.l.b16 %v6564
      %v6796 = vunpack.c.h.b16 %v6564
      %v6797 = vunpack.c.l.b16 %v6565
      %v6798 = vunpack.c.h.b16 %v6565
      %v6799 = vunpack.c.l.b16 %v6566
      %v6800 = vunpack.c.h.b16 %v6566
      %v6801 = vunpack.c.l.b16 %v6567
      %v6802 = vunpack.c.h.b16 %v6567
      %v6803 = vunpack.c.l.b16 %v6568
      %v6804 = vunpack.c.h.b16 %v6568
      %v6805 = vunpack.c.l.b16 %v6569
      %v6806 = vunpack.c.h.b16 %v6569
      %v6807 = vunpack.c.l.b16 %v6570
      %v6808 = vunpack.c.h.b16 %v6570
      %v6809 = vunpack.c.l.b16 %v6571
      %v6810 = vunpack.c.h.b16 %v6571
      %v6811 = vunpack.c.l.b16 %v6572
      %v6812 = vunpack.c.h.b16 %v6572
      %v6813 = vunpack.c.l.b16 %v6573
      %v6814 = vunpack.c.h.b16 %v6573
      %v6815 = vunpack.c.l.b16 %v6574
      %v6816 = vunpack.c.h.b16 %v6574
      %v6817 = vunpack.c.l.b16 %v6575
      %v6818 = vunpack.c.h.b16 %v6575
      %v6819 = vunpack.c.l.b16 %v6576
      %v6820 = vunpack.c.h.b16 %v6576
      %v6821 = vunpack.c.l.b16 %v6577
      %v6822 = vunpack.c.h.b16 %v6577
      %v6823 = vunpack.c.l.b16 %v6578
      %v6824 = vunpack.c.h.b16 %v6578
      %v6825 = vunpack.c.l.b16 %v6579
      %v6826 = vunpack.c.h.b16 %v6579
      %v6827 = vunpack.c.l.b16 %v6580
      %v6828 = vunpack.c.h.b16 %v6580
      %v6829 = vunpack.c.l.b16 %v6581
      %v6830 = vunpack.c.h.b16 %v6581
      %v6831 = vunpack.c.l.b16 %v6582
      %v6832 = vunpack.c.h.b16 %v6582
      %v6833 = vunpack.c.l.b16 %v6583
      %v6834 = vunpack.c.h.b16 %v6583
      %v6835 = vunpack.c.l.b16 %v6584
      %v6836 = vunpack.c.h.b16 %v6584
      %v6837 = vunpack.c.l.b16 %v6585
      %v6838 = vunpack.c.h.b16 %v6585
      %v6839 = vunpack.c.l.b16 %v6586
      %v6840 = vunpack.c.h.b16 %v6586
      %v6841 = vunpack.c.l.b16 %v6587
      %v6842 = vunpack.c.h.b16 %v6587
      %v6843 = vunpack.c.l.b16 %v6588
      %v6844 = vunpack.c.h.b16 %v6588
      %v6845 = vunpack.c.l.b16 %v6589
      %v6846 = vunpack.c.h.b16 %v6589
      %v6847 = vunpack.c.l.b16 %v6590
      %v6848 = vunpack.c.h.b16 %v6590
      %v6849 = vunpack.c.l.b16 %v6591
      %v6850 = vunpack.c.h.b16 %v6591
      %v6851 = vunpack.c.l.b16 %v6592
      %v6852 = vunpack.c.h.b16 %v6592
      %v6853 = vunpack.c.l.b16 %v6593
      %v6854 = vunpack.c.h.b16 %v6593
      %v6855 = vunpack.c.l.b16 %v6594
      %v6856 = vunpack.c.h.b16 %v6594
      %v6857 = vunpack.c.l.b16 %v6595
      %v6858 = vunpack.c.h.b16 %v6595
      %v6859 = vunpack.c.l.b16 %v6596
      %v6860 = vunpack.c.h.b16 %v6596
      %v6861 = vunpack.c.l.b16 %v6597
      %v6862 = vunpack.c.h.b16 %v6597
      %v6863 = vpack.c.b16 %v6737, %v6735
      %v6864 = vpack.c.b16 %v6738, %v6736
      %v6865 = vpack.c.b16 %v6741, %v6739
      %v6866 = vpack.c.b16 %v6742, %v6740
      %v6867 = vpack.c.b16 %v6745, %v6743
      %v6868 = vpack.c.b16 %v6746, %v6744
      %v6869 = vpack.c.b16 %v6749, %v6747
      %v6870 = vpack.c.b16 %v6750, %v6748
      %v6871 = vpack.c.b16 %v6753, %v6751
      %v6872 = vpack.c.b16 %v6754, %v6752
      %v6873 = vpack.c.b16 %v6757, %v6755
      %v6874 = vpack.c.b16 %v6758, %v6756
      %v6875 = vpack.c.b16 %v6761, %v6759
      %v6876 = vpack.c.b16 %v6762, %v6760
      %v6877 = vpack.c.b16 %v6765, %v6763
      %v6878 = vpack.c.b16 %v6766, %v6764
      %v6879 = vpack.c.b16 %v6769, %v6767
      %v6880 = vpack.c.b16 %v6770, %v6768
      %v6881 = vpack.c.b16 %v6773, %v6771
      %v6882 = vpack.c.b16 %v6774, %v6772
      %v6883 = vpack.c.b16 %v6777, %v6775
      %v6884 = vpack.c.b16 %v6778, %v6776
      %v6885 = vpack.c.b16 %v6781, %v6779
      %v6886 = vpack.c.b16 %v6782, %v6780
      %v6887 = vpack.c.b16 %v6785, %v6783
      %v6888 = vpack.c.b16 %v6786, %v6784
      %v6889 = vpack.c.b16 %v6789, %v6787
      %v6890 = vpack.c.b16 %v6790, %v6788
      %v6891 = vpack.c.b16 %v6793, %v6791
      %v6892 = vpack.c.b16 %v6794, %v6792
      %v6893 = vpack.c.b16 %v6797, %v6795
      %v6894 = vpack.c.b16 %v6798, %v6796
      %v6895 = vpack.c.b16 %v6801, %v6799
      %v6896 = vpack.c.b16 %v6802, %v6800
      %v6897 = vpack.c.b16 %v6805, %v6803
      %v6898 = vpack.c.b16 %v6806, %v6804
      %v6899 = vpack.c.b16 %v6809, %v6807
      %v6900 = vpack.c.b16 %v6810, %v6808
      %v6901 = vpack.c.b16 %v6813, %v6811
      %v6902 = vpack.c.b16 %v6814, %v6812
      %v6903 = vpack.c.b16 %v6817, %v6815
      %v6904 = vpack.c.b16 %v6818, %v6816
      %v6905 = vpack.c.b16 %v6821, %v6819
      %v6906 = vpack.c.b16 %v6822, %v6820
      %v6907 = vpack.c.b16 %v6825, %v6823
      %v6908 = vpack.c.b16 %v6826, %v6824
      %v6909 = vpack.c.b16 %v6829, %v6827
      %v6910 = vpack.c.b16 %v6830, %v6828
      %v6911 = vpack.c.b16 %v6833, %v6831
      %v6912 = vpack.c.b16 %v6834, %v6832
      %v6913 = vpack.c.b16 %v6837, %v6835
      %v6914 = vpack.c.b16 %v6838, %v6836
      %v6915 = vpack.c.b16 %v6841, %v6839
      %v6916 = vpack.c.b16 %v6842, %v6840
      %v6917 = vpack.c.b16 %v6845, %v6843
      %v6918 = vpack.c.b16 %v6846, %v6844
      %v6919 = vpack.c.b16 %v6849, %v6847
      %v6920 = vpack.c.b16 %v6850, %v6848
      %v6921 = vpack.c.b16 %v6853, %v6851
      %v6922 = vpack.c.b16 %v6854, %v6852
      %v6923 = vpack.c.b16 %v6857, %v6855
      %v6924 = vpack.c.b16 %v6858, %v6856
      %v6925 = vpack.c.b16 %v6861, %v6859
      %v6926 = vpack.c.b16 %v6862, %v6860
      %6991 = vmatpush.bf16.msra.mxu0 %v6877
      %6992 = vmatpush.bf16.msra.mxu0 %v6875
      %6993 = vmatpush.bf16.msra.mxu0 %v6873
      %6994 = vmatpush.bf16.msra.mxu0 %v6871
      %6995 = vmatpush.bf16.msra.mxu0 %v6869
      %6996 = vmatpush.bf16.msra.mxu0 %v6867
      %6997 = vmatpush.bf16.msra.mxu0 %v6865
      %6998 = vmatpush.bf16.msra.mxu0 %v6863
      %6999 = vmatmul.bf16.gmra.mxu0 %v6621
      %v7000 = vpop.f32.mrf.mxu0
      %v7001 = vadd.f32 0.0, %v7000
      %v7002 = vpop.f32.mrf.mxu0
      %v7003 = vadd.f32 0.0, %v7002
      %7004 = vmatmul.bf16.gmra.mxu0 %v6632
      %v7005 = vpop.f32.mrf.mxu0
      %v7006 = vadd.f32 0.0, %v7005
      %v7007 = vpop.f32.mrf.mxu0
      %v7008 = vadd.f32 0.0, %v7007
      %7009 = vmatmul.bf16.gmra.mxu0 %v6640
      %v7010 = vpop.f32.mrf.mxu0
      %v7011 = vadd.f32 0.0, %v7010
      %v7012 = vpop.f32.mrf.mxu0
      %v7013 = vadd.f32 0.0, %v7012
      %7014 = vmatmul.bf16.gmra.mxu0 %v6648
      %v7015 = vpop.f32.mrf.mxu0
      %v7016 = vadd.f32 0.0, %v7015
      %v7017 = vpop.f32.mrf.mxu0
      %v7018 = vadd.f32 0.0, %v7017
      %7019 = vdwg.mxu0
      %7020 = vmatpush.bf16.msra.mxu0 %v6893
      %7021 = vmatpush.bf16.msra.mxu0 %v6891
      %7022 = vmatpush.bf16.msra.mxu0 %v6889
      %7023 = vmatpush.bf16.msra.mxu0 %v6887
      %7024 = vmatpush.bf16.msra.mxu0 %v6885
      %7025 = vmatpush.bf16.msra.mxu0 %v6883
      %7026 = vmatpush.bf16.msra.mxu0 %v6881
      %7027 = vmatpush.bf16.msra.mxu0 %v6879
      %7028 = vmatmul.bf16.gmra.mxu0 %v6624
      %v7029 = vpop.f32.mrf.mxu0
      %v7030 = vadd.f32 %v7001, %v7029
      %v7031 = vpop.f32.mrf.mxu0
      %v7032 = vadd.f32 %v7003, %v7031
      %7033 = vmatmul.bf16.gmra.mxu0 %v6634
      %v7034 = vpop.f32.mrf.mxu0
      %v7035 = vadd.f32 %v7006, %v7034
      %v7036 = vpop.f32.mrf.mxu0
      %v7037 = vadd.f32 %v7008, %v7036
      %7038 = vmatmul.bf16.gmra.mxu0 %v6642
      %v7039 = vpop.f32.mrf.mxu0
      %v7040 = vadd.f32 %v7011, %v7039
      %v7041 = vpop.f32.mrf.mxu0
      %v7042 = vadd.f32 %v7013, %v7041
      %7043 = vmatmul.bf16.gmra.mxu0 %v6650
      %v7044 = vpop.f32.mrf.mxu0
      %v7045 = vadd.f32 %v7016, %v7044
      %v7046 = vpop.f32.mrf.mxu0
      %v7047 = vadd.f32 %v7018, %v7046
      %7048 = vdwg.mxu0
      %7049 = vmatpush.bf16.msra.mxu0 %v6909
      %7050 = vmatpush.bf16.msra.mxu0 %v6907
      %7051 = vmatpush.bf16.msra.mxu0 %v6905
      %7052 = vmatpush.bf16.msra.mxu0 %v6903
      %7053 = vmatpush.bf16.msra.mxu0 %v6901
      %7054 = vmatpush.bf16.msra.mxu0 %v6899
      %7055 = vmatpush.bf16.msra.mxu0 %v6897
      %7056 = vmatpush.bf16.msra.mxu0 %v6895
      %7057 = vmatmul.bf16.gmra.mxu0 %v6627
      %v7058 = vpop.f32.mrf.mxu0
      %v7059 = vadd.f32 %v7030, %v7058
      %v7060 = vpop.f32.mrf.mxu0
      %v7061 = vadd.f32 %v7032, %v7060
      %7062 = vmatmul.bf16.gmra.mxu0 %v6636
      %v7063 = vpop.f32.mrf.mxu0
      %v7064 = vadd.f32 %v7035, %v7063
      %v7065 = vpop.f32.mrf.mxu0
      %v7066 = vadd.f32 %v7037, %v7065
      %7067 = vmatmul.bf16.gmra.mxu0 %v6644
      %v7068 = vpop.f32.mrf.mxu0
      %v7069 = vadd.f32 %v7040, %v7068
      %v7070 = vpop.f32.mrf.mxu0
      %v7071 = vadd.f32 %v7042, %v7070
      %7072 = vmatmul.bf16.gmra.mxu0 %v6652
      %v7073 = vpop.f32.mrf.mxu0
      %v7074 = vadd.f32 %v7045, %v7073
      %v7075 = vpop.f32.mrf.mxu0
      %v7076 = vadd.f32 %v7047, %v7075
      %7077 = vdwg.mxu0
      %7078 = vmatpush.bf16.msra.mxu0 %v6925
      %7079 = vmatpush.bf16.msra.mxu0 %v6923
      %7080 = vmatpush.bf16.msra.mxu0 %v6921
      %7081 = vmatpush.bf16.msra.mxu0 %v6919
      %7082 = vmatpush.bf16.msra.mxu0 %v6917
      %7083 = vmatpush.bf16.msra.mxu0 %v6915
      %7084 = vmatpush.bf16.msra.mxu0 %v6913
      %7085 = vmatpush.bf16.msra.mxu0 %v6911
      %7086 = vmatmul.bf16.gmra.mxu0 %v6630
      %v7087 = vpop.f32.mrf.mxu0
      %v7088 = vadd.f32 %v7059, %v7087
      %v7089 = vpop.f32.mrf.mxu0
      %v7090 = vadd.f32 %v7061, %v7089
      %7091 = vmatmul.bf16.gmra.mxu0 %v6638
      %v7092 = vpop.f32.mrf.mxu0
      %v7093 = vadd.f32 %v7064, %v7092
      %v7094 = vpop.f32.mrf.mxu0
      %v7095 = vadd.f32 %v7066, %v7094
      %7096 = vmatmul.bf16.gmra.mxu0 %v6646
      %v7097 = vpop.f32.mrf.mxu0
      %v7098 = vadd.f32 %v7069, %v7097
      %v7099 = vpop.f32.mrf.mxu0
      %v7100 = vadd.f32 %v7071, %v7099
      %7101 = vmatmul.bf16.gmra.mxu0 %v6654
      %v7102 = vpop.f32.mrf.mxu0
      %v7103 = vadd.f32 %v7074, %v7102
      %v7104 = vpop.f32.mrf.mxu0
      %v7105 = vadd.f32 %v7076, %v7104
      %7106 = vdwg.mxu0
      %7107 = vmatpush.bf16.msra.mxu0 %v6878
      %7108 = vmatpush.bf16.msra.mxu0 %v6876
      %7109 = vmatpush.bf16.msra.mxu0 %v6874
      %7110 = vmatpush.bf16.msra.mxu0 %v6872
      %7111 = vmatpush.bf16.msra.mxu0 %v6870
      %7112 = vmatpush.bf16.msra.mxu0 %v6868
      %7113 = vmatpush.bf16.msra.mxu0 %v6866
      %7114 = vmatpush.bf16.msra.mxu0 %v6864
      %7115 = vmatmul.bf16.gmra.mxu0 %v6621
      %v7116 = vpop.f32.mrf.mxu0
      %v7117 = vadd.f32 0.0, %v7116
      %v7118 = vpop.f32.mrf.mxu0
      %v7119 = vadd.f32 0.0, %v7118
      %7120 = vmatmul.bf16.gmra.mxu0 %v6632
      %v7121 = vpop.f32.mrf.mxu0
      %v7122 = vadd.f32 0.0, %v7121
      %v7123 = vpop.f32.mrf.mxu0
      %v7124 = vadd.f32 0.0, %v7123
      %7125 = vmatmul.bf16.gmra.mxu0 %v6640
      %v7126 = vpop.f32.mrf.mxu0
      %v7127 = vadd.f32 0.0, %v7126
      %v7128 = vpop.f32.mrf.mxu0
      %v7129 = vadd.f32 0.0, %v7128
      %7130 = vmatmul.bf16.gmra.mxu0 %v6648
      %v7131 = vpop.f32.mrf.mxu0
      %v7132 = vadd.f32 0.0, %v7131
      %v7133 = vpop.f32.mrf.mxu0
      %v7134 = vadd.f32 0.0, %v7133
      %7135 = vdwg.mxu0
      %7136 = vmatpush.bf16.msra.mxu0 %v6894
      %7137 = vmatpush.bf16.msra.mxu0 %v6892
      %7138 = vmatpush.bf16.msra.mxu0 %v6890
      %7139 = vmatpush.bf16.msra.mxu0 %v6888
      %7140 = vmatpush.bf16.msra.mxu0 %v6886
      %7141 = vmatpush.bf16.msra.mxu0 %v6884
      %7142 = vmatpush.bf16.msra.mxu0 %v6882
      %7143 = vmatpush.bf16.msra.mxu0 %v6880
      %7144 = vmatmul.bf16.gmra.mxu0 %v6624
      %v7145 = vpop.f32.mrf.mxu0
      %v7146 = vadd.f32 %v7117, %v7145
      %v7147 = vpop.f32.mrf.mxu0
      %v7148 = vadd.f32 %v7119, %v7147
      %7149 = vmatmul.bf16.gmra.mxu0 %v6634
      %v7150 = vpop.f32.mrf.mxu0
      %v7151 = vadd.f32 %v7122, %v7150
      %v7152 = vpop.f32.mrf.mxu0
      %v7153 = vadd.f32 %v7124, %v7152
      %7154 = vmatmul.bf16.gmra.mxu0 %v6642
      %v7155 = vpop.f32.mrf.mxu0
      %v7156 = vadd.f32 %v7127, %v7155
      %v7157 = vpop.f32.mrf.mxu0
      %v7158 = vadd.f32 %v7129, %v7157
      %7159 = vmatmul.bf16.gmra.mxu0 %v6650
      %v7160 = vpop.f32.mrf.mxu0
      %v7161 = vadd.f32 %v7132, %v7160
      %v7162 = vpop.f32.mrf.mxu0
      %v7163 = vadd.f32 %v7134, %v7162
      %7164 = vdwg.mxu0
      %7165 = vmatpush.bf16.msra.mxu0 %v6910
      %7166 = vmatpush.bf16.msra.mxu0 %v6908
      %7167 = vmatpush.bf16.msra.mxu0 %v6906
      %7168 = vmatpush.bf16.msra.mxu0 %v6904
      %7169 = vmatpush.bf16.msra.mxu0 %v6902
      %7170 = vmatpush.bf16.msra.mxu0 %v6900
      %7171 = vmatpush.bf16.msra.mxu0 %v6898
      %7172 = vmatpush.bf16.msra.mxu0 %v6896
      %7173 = vmatmul.bf16.gmra.mxu0 %v6627
      %v7174 = vpop.f32.mrf.mxu0
      %v7175 = vadd.f32 %v7146, %v7174
      %v7176 = vpop.f32.mrf.mxu0
      %v7177 = vadd.f32 %v7148, %v7176
      %7178 = vmatmul.bf16.gmra.mxu0 %v6636
      %v7179 = vpop.f32.mrf.mxu0
      %v7180 = vadd.f32 %v7151, %v7179
      %v7181 = vpop.f32.mrf.mxu0
      %v7182 = vadd.f32 %v7153, %v7181
      %7183 = vmatmul.bf16.gmra.mxu0 %v6644
      %v7184 = vpop.f32.mrf.mxu0
      %v7185 = vadd.f32 %v7156, %v7184
      %v7186 = vpop.f32.mrf.mxu0
      %v7187 = vadd.f32 %v7158, %v7186
      %7188 = vmatmul.bf16.gmra.mxu0 %v6652
      %v7189 = vpop.f32.mrf.mxu0
      %v7190 = vadd.f32 %v7161, %v7189
      %v7191 = vpop.f32.mrf.mxu0
      %v7192 = vadd.f32 %v7163, %v7191
      %7193 = vdwg.mxu0
      %7194 = vmatpush.bf16.msra.mxu0 %v6926
      %7195 = vmatpush.bf16.msra.mxu0 %v6924
      %7196 = vmatpush.bf16.msra.mxu0 %v6922
      %7197 = vmatpush.bf16.msra.mxu0 %v6920
      %7198 = vmatpush.bf16.msra.mxu0 %v6918
      %7199 = vmatpush.bf16.msra.mxu0 %v6916
      %7200 = vmatpush.bf16.msra.mxu0 %v6914
      %7201 = vmatpush.bf16.msra.mxu0 %v6912
      %7202 = vmatmul.bf16.gmra.mxu0 %v6630
      %v7203 = vpop.f32.mrf.mxu0
      %v7204 = vadd.f32 %v7175, %v7203
      %v7205 = vpop.f32.mrf.mxu0
      %v7206 = vadd.f32 %v7177, %v7205
      %7207 = vmatmul.bf16.gmra.mxu0 %v6638
      %v7208 = vpop.f32.mrf.mxu0
      %v7209 = vadd.f32 %v7180, %v7208
      %v7210 = vpop.f32.mrf.mxu0
      %v7211 = vadd.f32 %v7182, %v7210
      %7212 = vmatmul.bf16.gmra.mxu0 %v6646
      %v7213 = vpop.f32.mrf.mxu0
      %v7214 = vadd.f32 %v7185, %v7213
      %v7215 = vpop.f32.mrf.mxu0
      %v7216 = vadd.f32 %v7187, %v7215
      %7217 = vmatmul.bf16.gmra.mxu0 %v6654
      %v7218 = vpop.f32.mrf.mxu0
      %v7219 = vadd.f32 %v7190, %v7218
      %v7220 = vpop.f32.mrf.mxu0
      %v7221 = vadd.f32 %v7192, %v7220
      %7222 = vdwg.mxu0
      %v7223 = vadd.f32 %v6513, %v7088
      %v7224 = vadd.f32 %v6514, %v7204
      %v7225 = vadd.f32 %v6515, %v7090
      %v7226 = vadd.f32 %v6516, %v7206
      %v7227 = vadd.f32 %v6517, %v7093
      %v7228 = vadd.f32 %v6518, %v7209
      %v7229 = vadd.f32 %v6519, %v7095
      %v7230 = vadd.f32 %v6520, %v7211
      %v7231 = vadd.f32 %v6521, %v7098
      %v7232 = vadd.f32 %v6522, %v7214
      %v7233 = vadd.f32 %v6523, %v7100
      %v7234 = vadd.f32 %v6524, %v7216
      %v7235 = vadd.f32 %v6525, %v7103
      %v7236 = vadd.f32 %v6526, %v7219
      %v7237 = vadd.f32 %v6527, %v7105
      %v7238 = vadd.f32 %v6528, %v7221
      %v7239 = vld [vmem:[%s3] sm:$0x3]
      %v7241 = vperm.slane %v7239, 0
      %v7242 = vperm.slane %v7239, 1
      %v7245 = vadd.f32 %v7223, %v7241
      %v7246 = vadd.f32 %v7224, %v7242
      %v7247 = vadd.f32 %v7225, %v7241
      %v7248 = vadd.f32 %v7226, %v7242
      %v7249 = vadd.f32 %v7227, %v7241
      %v7250 = vadd.f32 %v7228, %v7242
      %v7251 = vadd.f32 %v7229, %v7241
      %v7252 = vadd.f32 %v7230, %v7242
      %v7253 = vadd.f32 %v7231, %v7241
      %v7254 = vadd.f32 %v7232, %v7242
      %v7255 = vadd.f32 %v7233, %v7241
      %v7256 = vadd.f32 %v7234, %v7242
      %v7257 = vadd.f32 %v7235, %v7241
      %v7258 = vadd.f32 %v7236, %v7242
      %v7259 = vadd.f32 %v7237, %v7241
      %v7260 = vadd.f32 %v7238, %v7242
      %v7261 = vmax.f32 %v7245, 0.0
      %v7262 = vmax.f32 %v7246, 0.0
      %v7263 = vmax.f32 %v7247, 0.0
      %v7264 = vmax.f32 %v7248, 0.0
      %v7265 = vmax.f32 %v7249, 0.0
      %v7266 = vmax.f32 %v7250, 0.0
      %v7267 = vmax.f32 %v7251, 0.0
      %v7268 = vmax.f32 %v7252, 0.0
      %v7269 = vmax.f32 %v7253, 0.0
      %v7270 = vmax.f32 %v7254, 0.0
      %v7271 = vmax.f32 %v7255, 0.0
      %v7272 = vmax.f32 %v7256, 0.0
      %v7273 = vmax.f32 %v7257, 0.0
      %v7274 = vmax.f32 %v7258, 0.0
      %v7275 = vmax.f32 %v7259, 0.0
      %v7276 = vmax.f32 %v7260, 0.0
      %v7277 = vld [vmem:[%s1] sm:$0xff]
      %v7278 = vld [vmem:[%s1 + $0x8] sm:$0xff]
      %v7279 = vld [vmem:[%s1 + $0x10] sm:$0xff]
      %v7280 = vld [vmem:[%s1 + $0x18] sm:$0xff]
      %v7281 = vld [vmem:[%s1 + $0x20] sm:$0xff]
      %v7282 = vld [vmem:[%s1 + $0x28] sm:$0xff]
      %v7283 = vld [vmem:[%s1 + $0x30] sm:$0xff]
      %v7284 = vld [vmem:[%s1 + $0x38] sm:$0xff]
      %v7285 = vld [vmem:[%s1 + $0x40] sm:$0xff]
      %v7286 = vld [vmem:[%s1 + $0x48] sm:$0xff]
      %v7287 = vld [vmem:[%s1 + $0x50] sm:$0xff]
      %v7288 = vld [vmem:[%s1 + $0x58] sm:$0xff]
      %v7289 = vld [vmem:[%s1 + $0x60] sm:$0xff]
      %v7290 = vld [vmem:[%s1 + $0x68] sm:$0xff]
      %v7291 = vld [vmem:[%s1 + $0x70] sm:$0x7f]
      %v7292 = vld [vmem:[%s1 + $0x78] sm:$0x7f]
      %v7293 = vmul.f32 %v7261, %v7277
      %v7294 = vmul.f32 %v7262, %v7278
      %v7295 = vmul.f32 %v7263, %v7279
      %v7296 = vmul.f32 %v7264, %v7280
      %v7297 = vmul.f32 %v7265, %v7281
      %v7298 = vmul.f32 %v7266, %v7282
      %v7299 = vmul.f32 %v7267, %v7283
      %v7300 = vmul.f32 %v7268, %v7284
      %v7301 = vmul.f32 %v7269, %v7285
      %v7302 = vmul.f32 %v7270, %v7286
      %v7303 = vmul.f32 %v7271, %v7287
      %v7304 = vmul.f32 %v7272, %v7288
      %v7305 = vmul.f32 %v7273, %v7289
      %v7306 = vmul.f32 %v7274, %v7290
      %v7307 = vmul.f32 %v7275, %v7291
      %v7308 = vmul.f32 %v7276, %v7292
      %v7309 = vpack.c.bf16 %v7294, %v7293
      %v7310 = vpack.c.bf16 %v7296, %v7295
      %v7311 = vpack.c.bf16 %v7298, %v7297
      %v7312 = vpack.c.bf16 %v7300, %v7299
      %v7313 = vpack.c.bf16 %v7302, %v7301
      %v7314 = vpack.c.bf16 %v7304, %v7303
      %v7315 = vpack.c.bf16 %v7306, %v7305
      %v7316 = vpack.c.bf16 %v7308, %v7307
      %7317 = vst [vmem:[#allocation2] sm:$0xff] %v7309
      %7318 = vst [vmem:[#allocation2 + $0x8] sm:$0xff] %v7310
      %7319 = vst [vmem:[#allocation2 + $0x10] sm:$0xff] %v7311
      %7320 = vst [vmem:[#allocation2 + $0x18] sm:$0xff] %v7312
      %7321 = vst [vmem:[#allocation2 + $0x20] sm:$0xff] %v7313
      %7322 = vst [vmem:[#allocation2 + $0x28] sm:$0xff] %v7314
      %7323 = vst [vmem:[#allocation2 + $0x30] sm:$0xff] %v7315
      %vm7324 = vcmask 1043456
      %vm7325 = vsmask.f32 3328
      %vm7326 = vmand %vm7324, %vm7325
      %vm7327 = vcmask 1047556
      %vm7328 = vmand %vm7327, %vm488
      %vm7329 = vmor %vm7328, %vm7326
      %v7330 = vld [vmem:[#allocation2 + $0x38] sm:$0xff]
      %v7331 = vsel %vm7329, %v7316, %v7330
      %7332 = vst [vmem:[#allocation2 + $0x38] sm:$0xff] %v7331
      %vm7333 = vcmask 1043459
      %vm7334 = vsmask.f32 7950
      %vm7335 = vmand %vm7333, %vm7334
      %vm7336 = vcmask 1047559
      %vm7337 = vsmask.f32 7966
      %vm7338 = vmand %vm7336, %vm7337
      %vm7339 = vmor %vm7338, %vm7335
      %v7340 = vld [vmem:[#allocation2 + $0x38] sm:$0x88]
      %v7341 = vsel %vm7339, 0, %v7340
      %7342 = vst [vmem:[#allocation2 + $0x38] sm:$0x88] %v7341
      %7343 = vst [vmem:[#allocation2 + $0x40] sm:$0xff] 0
      %7344 = vst [vmem:[#allocation2 + $0x48] sm:$0xff] 0
      %vm7345 = vcmask 1040384
      %vm7346 = vsmask.f32 256
      %vm7347 = vmand %vm7345, %vm7346
      %vm7348 = vcmask 1044484
      %vm7349 = vsmask.f32 4352
      %vm7350 = vmand %vm7348, %vm7349
      %vm7351 = vmor %vm7350, %vm7347
      %v7352 = vld [vmem:[#allocation2 + $0x50] sm:$0x11]
      %v7353 = vsel %vm7351, 0, %v7352
      %7354 = vst [vmem:[#allocation2 + $0x50] sm:$0x11] %v7353
      %v7355 = vld [vmem:[#allocation2] sm:$0xff]
      %v7356 = vld [vmem:[#allocation2 + $0x8] sm:$0xff]
      %v7357 = vld [vmem:[#allocation2 + $0x10] sm:$0xff]
      %v7358 = vld [vmem:[#allocation2 + $0x18] sm:$0xff]
      %v7359 = vld [vmem:[#allocation2 + $0x20] sm:$0xff]
      %v7360 = vld [vmem:[#allocation2 + $0x28] sm:$0xff]
      %v7361 = vld [vmem:[#allocation2 + $0x30] sm:$0xff]
      %v7362 = vld [vmem:[#allocation2 + $0x38] sm:$0xff]
      %v7363 = vld [vmem:[#allocation2 + $0x40] sm:$0xff]
      %v7364 = vld [vmem:[#allocation2 + $0x8] sm:$0xee]
      %v7365 = vld [vmem:[#allocation2 + $0x48] sm:$0x11]
      %v7366 = vld [vmem:[%s5] sm:$0x3]
      %s7367 = scalar_lea.vmem %s4, 1024
      %v7368 = vld [vmem:[%s7367] sm:$0xff]
      %v7369 = vld [vmem:[%s7367 + $0x8] sm:$0xff]
      %v7370 = vld [vmem:[%s7367 + $0x10] sm:$0xff]
      %v7371 = vld [vmem:[%s7367 + $0x18] sm:$0xff]
      %v7372 = vld [vmem:[%s7367 + $0x20] sm:$0xff]
      %v7373 = vld [vmem:[%s7367 + $0x28] sm:$0xff]
      %v7374 = vld [vmem:[%s7367 + $0x30] sm:$0xff]
      %v7375 = vld [vmem:[%s7367 + $0x38] sm:$0xff]
      %v7376 = vld [vmem:[%s7367 + $0x40] sm:$0xff]
      %v7377 = vld [vmem:[%s7367 + $0x48] sm:$0xff]
      %v7378 = vld [vmem:[%s7367 + $0x50] sm:$0xff]
      %v7379 = vld [vmem:[%s7367 + $0x58] sm:$0xff]
      %v7380 = vld [vmem:[%s7367 + $0x60] sm:$0xff]
      %v7381 = vld [vmem:[%s7367 + $0x68] sm:$0xff]
      %v7382 = vld [vmem:[%s7367 + $0x70] sm:$0xff]
      %v7383 = vld [vmem:[%s7367 + $0x78] sm:$0xff]
      %v7384 = vld [vmem:[%s7367 + $0x80] sm:$0xff]
      %v7385 = vld [vmem:[%s7367 + $0x88] sm:$0xff]
      %v7386 = vld [vmem:[%s7367 + $0x90] sm:$0xff]
      %v7387 = vld [vmem:[%s7367 + $0x98] sm:$0xff]
      %v7388 = vld [vmem:[%s7367 + $0xa0] sm:$0xff]
      %v7389 = vld [vmem:[%s7367 + $0xa8] sm:$0xff]
      %v7390 = vld [vmem:[%s7367 + $0xb0] sm:$0xff]
      %v7391 = vld [vmem:[%s7367 + $0xb8] sm:$0xff]
      %v7392 = vld [vmem:[%s7367 + $0xc0] sm:$0xff]
      %v7393 = vld [vmem:[%s7367 + $0xc8] sm:$0xff]
      %v7394 = vld [vmem:[%s7367 + $0xd0] sm:$0xff]
      %v7395 = vld [vmem:[%s7367 + $0xd8] sm:$0xff]
      %v7396 = vld [vmem:[%s7367 + $0xe0] sm:$0xff]
      %v7397 = vld [vmem:[%s7367 + $0xe8] sm:$0xff]
      %v7398 = vld [vmem:[%s7367 + $0xf0] sm:$0xff]
      %v7399 = vld [vmem:[%s7367 + $0xf8] sm:$0xff]
      %v7401 = vperm.slane %v7366, 0
      %v7402 = vperm.slane %v7366, 1
      %v7413 = vunpack.c.l.b16 %v7355
      %v7414 = vunpack.c.h.b16 %v7355
      %v7415 = vunpack.c.l.b16 %v7356
      %v7416 = vunpack.c.h.b16 %v7356
      %v7417 = vunpack.c.l.b16 %v7357
      %v7418 = vunpack.c.h.b16 %v7357
      %v7419 = vunpack.c.l.b16 %v7358
      %v7420 = vunpack.c.h.b16 %v7358
      %v7421 = vunpack.c.l.b16 %v7359
      %v7422 = vunpack.c.h.b16 %v7359
      %v7423 = vunpack.c.l.b16 %v7360
      %v7424 = vunpack.c.h.b16 %v7360
      %v7425 = vunpack.c.l.b16 %v7361
      %v7426 = vunpack.c.h.b16 %v7361
      %v7427 = vunpack.c.l.b16 %v7362
      %v7428 = vunpack.c.h.b16 %v7362
      %v7429 = vpack.c.b16 %v7415, %v7413
      %v7430 = vpack.c.b16 %v7416, %v7414
      %v7431 = vpack.c.b16 %v7419, %v7417
      %v7432 = vpack.c.b16 %v7420, %v7418
      %v7433 = vpack.c.b16 %v7423, %v7421
      %v7434 = vpack.c.b16 %v7424, %v7422
      %v7435 = vpack.c.b16 %v7427, %v7425
      %v7436 = vpack.c.b16 %v7428, %v7426
      %v7477 = vunpack.c.l.b16 %v7368
      %v7478 = vunpack.c.h.b16 %v7368
      %v7479 = vunpack.c.l.b16 %v7369
      %v7480 = vunpack.c.h.b16 %v7369
      %v7481 = vunpack.c.l.b16 %v7370
      %v7482 = vunpack.c.h.b16 %v7370
      %v7483 = vunpack.c.l.b16 %v7371
      %v7484 = vunpack.c.h.b16 %v7371
      %v7485 = vunpack.c.l.b16 %v7372
      %v7486 = vunpack.c.h.b16 %v7372
      %v7487 = vunpack.c.l.b16 %v7373
      %v7488 = vunpack.c.h.b16 %v7373
      %v7489 = vunpack.c.l.b16 %v7374
      %v7490 = vunpack.c.h.b16 %v7374
      %v7491 = vunpack.c.l.b16 %v7375
      %v7492 = vunpack.c.h.b16 %v7375
      %v7493 = vunpack.c.l.b16 %v7376
      %v7494 = vunpack.c.h.b16 %v7376
      %v7495 = vunpack.c.l.b16 %v7377
      %v7496 = vunpack.c.h.b16 %v7377
      %v7497 = vunpack.c.l.b16 %v7378
      %v7498 = vunpack.c.h.b16 %v7378
      %v7499 = vunpack.c.l.b16 %v7379
      %v7500 = vunpack.c.h.b16 %v7379
      %v7501 = vunpack.c.l.b16 %v7380
      %v7502 = vunpack.c.h.b16 %v7380
      %v7503 = vunpack.c.l.b16 %v7381
      %v7504 = vunpack.c.h.b16 %v7381
      %v7505 = vunpack.c.l.b16 %v7382
      %v7506 = vunpack.c.h.b16 %v7382
      %v7507 = vunpack.c.l.b16 %v7383
      %v7508 = vunpack.c.h.b16 %v7383
      %v7509 = vunpack.c.l.b16 %v7384
      %v7510 = vunpack.c.h.b16 %v7384
      %v7511 = vunpack.c.l.b16 %v7385
      %v7512 = vunpack.c.h.b16 %v7385
      %v7513 = vunpack.c.l.b16 %v7386
      %v7514 = vunpack.c.h.b16 %v7386
      %v7515 = vunpack.c.l.b16 %v7387
      %v7516 = vunpack.c.h.b16 %v7387
      %v7517 = vunpack.c.l.b16 %v7388
      %v7518 = vunpack.c.h.b16 %v7388
      %v7519 = vunpack.c.l.b16 %v7389
      %v7520 = vunpack.c.h.b16 %v7389
      %v7521 = vunpack.c.l.b16 %v7390
      %v7522 = vunpack.c.h.b16 %v7390
      %v7523 = vunpack.c.l.b16 %v7391
      %v7524 = vunpack.c.h.b16 %v7391
      %v7525 = vunpack.c.l.b16 %v7392
      %v7526 = vunpack.c.h.b16 %v7392
      %v7527 = vunpack.c.l.b16 %v7393
      %v7528 = vunpack.c.h.b16 %v7393
      %v7529 = vunpack.c.l.b16 %v7394
      %v7530 = vunpack.c.h.b16 %v7394
      %v7531 = vunpack.c.l.b16 %v7395
      %v7532 = vunpack.c.h.b16 %v7395
      %v7533 = vunpack.c.l.b16 %v7396
      %v7534 = vunpack.c.h.b16 %v7396
      %v7535 = vunpack.c.l.b16 %v7397
      %v7536 = vunpack.c.h.b16 %v7397
      %v7537 = vunpack.c.l.b16 %v7398
      %v7538 = vunpack.c.h.b16 %v7398
      %v7539 = vunpack.c.l.b16 %v7399
      %v7540 = vunpack.c.h.b16 %v7399
      %v7541 = vpack.c.b16 %v7479, %v7477
      %v7542 = vpack.c.b16 %v7480, %v7478
      %v7543 = vpack.c.b16 %v7483, %v7481
      %v7544 = vpack.c.b16 %v7484, %v7482
      %v7545 = vpack.c.b16 %v7487, %v7485
      %v7546 = vpack.c.b16 %v7488, %v7486
      %v7547 = vpack.c.b16 %v7491, %v7489
      %v7548 = vpack.c.b16 %v7492, %v7490
      %v7549 = vpack.c.b16 %v7495, %v7493
      %v7550 = vpack.c.b16 %v7496, %v7494
      %v7551 = vpack.c.b16 %v7499, %v7497
      %v7552 = vpack.c.b16 %v7500, %v7498
      %v7553 = vpack.c.b16 %v7503, %v7501
      %v7554 = vpack.c.b16 %v7504, %v7502
      %v7555 = vpack.c.b16 %v7507, %v7505
      %v7556 = vpack.c.b16 %v7508, %v7506
      %v7557 = vpack.c.b16 %v7511, %v7509
      %v7558 = vpack.c.b16 %v7512, %v7510
      %v7559 = vpack.c.b16 %v7515, %v7513
      %v7560 = vpack.c.b16 %v7516, %v7514
      %v7561 = vpack.c.b16 %v7519, %v7517
      %v7562 = vpack.c.b16 %v7520, %v7518
      %v7563 = vpack.c.b16 %v7523, %v7521
      %v7564 = vpack.c.b16 %v7524, %v7522
      %v7565 = vpack.c.b16 %v7527, %v7525
      %v7566 = vpack.c.b16 %v7528, %v7526
      %v7567 = vpack.c.b16 %v7531, %v7529
      %v7568 = vpack.c.b16 %v7532, %v7530
      %v7569 = vpack.c.b16 %v7535, %v7533
      %v7570 = vpack.c.b16 %v7536, %v7534
      %v7571 = vpack.c.b16 %v7539, %v7537
      %v7572 = vpack.c.b16 %v7540, %v7538
      %7605 = vmatpush.bf16.msra.mxu0 %v7555
      %7606 = vmatpush.bf16.msra.mxu0 %v7553
      %7607 = vmatpush.bf16.msra.mxu0 %v7551
      %7608 = vmatpush.bf16.msra.mxu0 %v7549
      %7609 = vmatpush.bf16.msra.mxu0 %v7547
      %7610 = vmatpush.bf16.msra.mxu0 %v7545
      %7611 = vmatpush.bf16.msra.mxu0 %v7543
      %7612 = vmatpush.bf16.msra.mxu0 %v7541
      %7613 = vmatmul.bf16.gmra.mxu0 %v7429
      %v7614 = vpop.f32.mrf.mxu0
      %v7615 = vadd.f32 %v7401, %v7614
      %v7616 = vpop.f32.mrf.mxu0
      %v7617 = vadd.f32 %v7401, %v7616
      %7618 = vmatmul.bf16.gmra.mxu0 %v7431
      %v7619 = vpop.f32.mrf.mxu0
      %v7620 = vadd.f32 %v7401, %v7619
      %v7621 = vpop.f32.mrf.mxu0
      %v7622 = vadd.f32 %v7401, %v7621
      %7623 = vmatmul.bf16.gmra.mxu0 %v7433
      %v7624 = vpop.f32.mrf.mxu0
      %v7625 = vadd.f32 %v7401, %v7624
      %v7626 = vpop.f32.mrf.mxu0
      %v7627 = vadd.f32 %v7401, %v7626
      %7628 = vmatmul.bf16.gmra.mxu0 %v7435
      %v7629 = vpop.f32.mrf.mxu0
      %v7630 = vadd.f32 %v7401, %v7629
      %v7631 = vpop.f32.mrf.mxu0
      %v7632 = vadd.f32 %v7401, %v7631
      %7633 = vdwg.mxu0
      %7634 = vmatpush.bf16.msra.mxu0 %v7571
      %7635 = vmatpush.bf16.msra.mxu0 %v7569
      %7636 = vmatpush.bf16.msra.mxu0 %v7567
      %7637 = vmatpush.bf16.msra.mxu0 %v7565
      %7638 = vmatpush.bf16.msra.mxu0 %v7563
      %7639 = vmatpush.bf16.msra.mxu0 %v7561
      %7640 = vmatpush.bf16.msra.mxu0 %v7559
      %7641 = vmatpush.bf16.msra.mxu0 %v7557
      %7642 = vmatmul.bf16.gmra.mxu0 %v7430
      %v7643 = vpop.f32.mrf.mxu0
      %v7644 = vadd.f32 %v7615, %v7643
      %v7645 = vpop.f32.mrf.mxu0
      %v7646 = vadd.f32 %v7617, %v7645
      %7647 = vmatmul.bf16.gmra.mxu0 %v7432
      %v7648 = vpop.f32.mrf.mxu0
      %v7649 = vadd.f32 %v7620, %v7648
      %v7650 = vpop.f32.mrf.mxu0
      %v7651 = vadd.f32 %v7622, %v7650
      %7652 = vmatmul.bf16.gmra.mxu0 %v7434
      %v7653 = vpop.f32.mrf.mxu0
      %v7654 = vadd.f32 %v7625, %v7653
      %v7655 = vpop.f32.mrf.mxu0
      %v7656 = vadd.f32 %v7627, %v7655
      %7657 = vmatmul.bf16.gmra.mxu0 %v7436
      %v7658 = vpop.f32.mrf.mxu0
      %v7659 = vadd.f32 %v7630, %v7658
      %v7660 = vpop.f32.mrf.mxu0
      %v7661 = vadd.f32 %v7632, %v7660
      %7662 = vdwg.mxu0
      %7663 = vmatpush.bf16.msra.mxu0 %v7556
      %7664 = vmatpush.bf16.msra.mxu0 %v7554
      %7665 = vmatpush.bf16.msra.mxu0 %v7552
      %7666 = vmatpush.bf16.msra.mxu0 %v7550
      %7667 = vmatpush.bf16.msra.mxu0 %v7548
      %7668 = vmatpush.bf16.msra.mxu0 %v7546
      %7669 = vmatpush.bf16.msra.mxu0 %v7544
      %7670 = vmatpush.bf16.msra.mxu0 %v7542
      %7671 = vmatmul.bf16.gmra.mxu0 %v7429
      %v7672 = vpop.f32.mrf.mxu0
      %v7673 = vadd.f32 %v7402, %v7672
      %v7674 = vpop.f32.mrf.mxu0
      %v7675 = vadd.f32 %v7402, %v7674
      %7676 = vmatmul.bf16.gmra.mxu0 %v7431
      %v7677 = vpop.f32.mrf.mxu0
      %v7678 = vadd.f32 %v7402, %v7677
      %v7679 = vpop.f32.mrf.mxu0
      %v7680 = vadd.f32 %v7402, %v7679
      %7681 = vmatmul.bf16.gmra.mxu0 %v7433
      %v7682 = vpop.f32.mrf.mxu0
      %v7683 = vadd.f32 %v7402, %v7682
      %v7684 = vpop.f32.mrf.mxu0
      %v7685 = vadd.f32 %v7402, %v7684
      %7686 = vmatmul.bf16.gmra.mxu0 %v7435
      %v7687 = vpop.f32.mrf.mxu0
      %v7688 = vadd.f32 %v7402, %v7687
      %v7689 = vpop.f32.mrf.mxu0
      %v7690 = vadd.f32 %v7402, %v7689
      %7691 = vdwg.mxu0
      %7692 = vmatpush.bf16.msra.mxu0 %v7572
      %7693 = vmatpush.bf16.msra.mxu0 %v7570
      %7694 = vmatpush.bf16.msra.mxu0 %v7568
      %7695 = vmatpush.bf16.msra.mxu0 %v7566
      %7696 = vmatpush.bf16.msra.mxu0 %v7564
      %7697 = vmatpush.bf16.msra.mxu0 %v7562
      %7698 = vmatpush.bf16.msra.mxu0 %v7560
      %7699 = vmatpush.bf16.msra.mxu0 %v7558
      %7700 = vmatmul.bf16.gmra.mxu0 %v7430
      %v7701 = vpop.f32.mrf.mxu0
      %v7702 = vadd.f32 %v7673, %v7701
      %v7703 = vpop.f32.mrf.mxu0
      %v7704 = vadd.f32 %v7675, %v7703
      %7705 = vmatmul.bf16.gmra.mxu0 %v7432
      %v7706 = vpop.f32.mrf.mxu0
      %v7707 = vadd.f32 %v7678, %v7706
      %v7708 = vpop.f32.mrf.mxu0
      %v7709 = vadd.f32 %v7680, %v7708
      %7710 = vmatmul.bf16.gmra.mxu0 %v7434
      %v7711 = vpop.f32.mrf.mxu0
      %v7712 = vadd.f32 %v7683, %v7711
      %v7713 = vpop.f32.mrf.mxu0
      %v7714 = vadd.f32 %v7685, %v7713
      %7715 = vmatmul.bf16.gmra.mxu0 %v7436
      %v7716 = vpop.f32.mrf.mxu0
      %v7717 = vadd.f32 %v7688, %v7716
      %v7718 = vpop.f32.mrf.mxu0
      %v7719 = vadd.f32 %v7690, %v7718
      %7720 = vdwg.mxu0
      %v7721 = vmax.f32 %v7644, 0.0
      %v7722 = vmax.f32 %v7702, 0.0
      %v7723 = vmax.f32 %v7646, 0.0
      %v7724 = vmax.f32 %v7704, 0.0
      %v7725 = vmax.f32 %v7649, 0.0
      %v7726 = vmax.f32 %v7707, 0.0
      %v7727 = vmax.f32 %v7651, 0.0
      %v7728 = vmax.f32 %v7709, 0.0
      %v7729 = vmax.f32 %v7654, 0.0
      %v7730 = vmax.f32 %v7712, 0.0
      %v7731 = vmax.f32 %v7656, 0.0
      %v7732 = vmax.f32 %v7714, 0.0
      %v7733 = vmax.f32 %v7659, 0.0
      %v7734 = vmax.f32 %v7717, 0.0
      %v7735 = vmax.f32 %v7661, 0.0
      %v7736 = vmax.f32 %v7719, 0.0
      %s7737 = scalar_lea.vmem %s4, 768
      %v7738 = vld [vmem:[%s7737] sm:$0xff]
      %v7739 = vld [vmem:[%s7737 + $0x8] sm:$0xff]
      %v7740 = vld [vmem:[%s7737 + $0x10] sm:$0xff]
      %v7741 = vld [vmem:[%s7737 + $0x18] sm:$0xff]
      %v7742 = vld [vmem:[%s7737 + $0x20] sm:$0xff]
      %v7743 = vld [vmem:[%s7737 + $0x28] sm:$0xff]
      %v7744 = vld [vmem:[%s7737 + $0x30] sm:$0xff]
      %v7745 = vld [vmem:[%s7737 + $0x38] sm:$0xff]
      %v7746 = vld [vmem:[%s7737 + $0x40] sm:$0xff]
      %v7747 = vld [vmem:[%s7737 + $0x48] sm:$0xff]
      %v7748 = vld [vmem:[%s7737 + $0x50] sm:$0xff]
      %v7749 = vld [vmem:[%s7737 + $0x58] sm:$0xff]
      %v7750 = vld [vmem:[%s7737 + $0x60] sm:$0xff]
      %v7751 = vld [vmem:[%s7737 + $0x68] sm:$0xff]
      %v7752 = vld [vmem:[%s7737 + $0x70] sm:$0xff]
      %v7753 = vld [vmem:[%s7737 + $0x78] sm:$0xff]
      %v7754 = vld [vmem:[%s7737 + $0x80] sm:$0xff]
      %v7755 = vld [vmem:[%s7737 + $0x88] sm:$0xff]
      %v7756 = vld [vmem:[%s7737 + $0x90] sm:$0xff]
      %v7757 = vld [vmem:[%s7737 + $0x98] sm:$0xff]
      %v7758 = vld [vmem:[%s7737 + $0xa0] sm:$0xff]
      %v7759 = vld [vmem:[%s7737 + $0xa8] sm:$0xff]
      %v7760 = vld [vmem:[%s7737 + $0xb0] sm:$0xff]
      %v7761 = vld [vmem:[%s7737 + $0xb8] sm:$0xff]
      %v7762 = vld [vmem:[%s7737 + $0xc0] sm:$0xff]
      %v7763 = vld [vmem:[%s7737 + $0xc8] sm:$0xff]
      %v7764 = vld [vmem:[%s7737 + $0xd0] sm:$0xff]
      %v7765 = vld [vmem:[%s7737 + $0xd8] sm:$0xff]
      %v7766 = vld [vmem:[%s7737 + $0xe0] sm:$0xff]
      %v7767 = vld [vmem:[%s7737 + $0xe8] sm:$0xff]
      %v7768 = vld [vmem:[%s7737 + $0xf0] sm:$0xff]
      %v7769 = vld [vmem:[%s7737 + $0xf8] sm:$0xff]
      %s7770 = scalar_lea.vmem %s4, 1280
      %v7771 = vld [vmem:[%s7770] sm:$0xff]
      %v7772 = vld [vmem:[%s7770 + $0x8] sm:$0xff]
      %v7773 = vld [vmem:[%s7770 + $0x10] sm:$0xff]
      %v7774 = vld [vmem:[%s7770 + $0x18] sm:$0xff]
      %v7775 = vld [vmem:[%s7770 + $0x20] sm:$0xff]
      %v7776 = vld [vmem:[%s7770 + $0x28] sm:$0xff]
      %v7777 = vld [vmem:[%s7770 + $0x30] sm:$0xff]
      %v7778 = vld [vmem:[%s7770 + $0x38] sm:$0xff]
      %v7779 = vld [vmem:[%s7770 + $0x40] sm:$0xff]
      %v7780 = vld [vmem:[%s7770 + $0x48] sm:$0xff]
      %v7781 = vld [vmem:[%s7770 + $0x50] sm:$0xff]
      %v7782 = vld [vmem:[%s7770 + $0x58] sm:$0xff]
      %v7783 = vld [vmem:[%s7770 + $0x60] sm:$0xff]
      %v7784 = vld [vmem:[%s7770 + $0x68] sm:$0xff]
      %v7785 = vld [vmem:[%s7770 + $0x70] sm:$0xff]
      %v7786 = vld [vmem:[%s7770 + $0x78] sm:$0xff]
      %v7787 = vld [vmem:[%s7770 + $0x80] sm:$0xff]
      %v7788 = vld [vmem:[%s7770 + $0x88] sm:$0xff]
      %v7789 = vld [vmem:[%s7770 + $0x90] sm:$0xff]
      %v7790 = vld [vmem:[%s7770 + $0x98] sm:$0xff]
      %v7791 = vld [vmem:[%s7770 + $0xa0] sm:$0xff]
      %v7792 = vld [vmem:[%s7770 + $0xa8] sm:$0xff]
      %v7793 = vld [vmem:[%s7770 + $0xb0] sm:$0xff]
      %v7794 = vld [vmem:[%s7770 + $0xb8] sm:$0xff]
      %v7795 = vld [vmem:[%s7770 + $0xc0] sm:$0xff]
      %v7796 = vld [vmem:[%s7770 + $0xc8] sm:$0xff]
      %v7797 = vld [vmem:[%s7770 + $0xd0] sm:$0xff]
      %v7798 = vld [vmem:[%s7770 + $0xd8] sm:$0xff]
      %v7799 = vld [vmem:[%s7770 + $0xe0] sm:$0xff]
      %v7800 = vld [vmem:[%s7770 + $0xe8] sm:$0xff]
      %v7801 = vld [vmem:[%s7770 + $0xf0] sm:$0xff]
      %v7802 = vld [vmem:[%s7770 + $0xf8] sm:$0xff]
      %v7835 = vunpack.c.l.b16 %v7771
      %v7836 = vunpack.c.h.b16 %v7771
      %v7837 = vunpack.c.l.b16 %v7772
      %v7838 = vunpack.c.h.b16 %v7772
      %v7839 = vunpack.c.l.b16 %v7773
      %v7840 = vunpack.c.h.b16 %v7773
      %v7841 = vunpack.c.l.b16 %v7774
      %v7842 = vunpack.c.h.b16 %v7774
      %v7843 = vunpack.c.l.b16 %v7775
      %v7844 = vunpack.c.h.b16 %v7775
      %v7845 = vunpack.c.l.b16 %v7776
      %v7846 = vunpack.c.h.b16 %v7776
      %v7847 = vunpack.c.l.b16 %v7777
      %v7848 = vunpack.c.h.b16 %v7777
      %v7849 = vunpack.c.l.b16 %v7778
      %v7850 = vunpack.c.h.b16 %v7778
      %v7851 = vunpack.c.l.b16 %v7779
      %v7852 = vunpack.c.h.b16 %v7779
      %v7853 = vunpack.c.l.b16 %v7780
      %v7854 = vunpack.c.h.b16 %v7780
      %v7855 = vunpack.c.l.b16 %v7781
      %v7856 = vunpack.c.h.b16 %v7781
      %v7857 = vunpack.c.l.b16 %v7782
      %v7858 = vunpack.c.h.b16 %v7782
      %v7859 = vunpack.c.l.b16 %v7783
      %v7860 = vunpack.c.h.b16 %v7783
      %v7861 = vunpack.c.l.b16 %v7784
      %v7862 = vunpack.c.h.b16 %v7784
      %v7863 = vunpack.c.l.b16 %v7785
      %v7864 = vunpack.c.h.b16 %v7785
      %v7865 = vunpack.c.l.b16 %v7786
      %v7866 = vunpack.c.h.b16 %v7786
      %v7867 = vunpack.c.l.b16 %v7787
      %v7868 = vunpack.c.h.b16 %v7787
      %v7869 = vunpack.c.l.b16 %v7788
      %v7870 = vunpack.c.h.b16 %v7788
      %v7871 = vunpack.c.l.b16 %v7789
      %v7872 = vunpack.c.h.b16 %v7789
      %v7873 = vunpack.c.l.b16 %v7790
      %v7874 = vunpack.c.h.b16 %v7790
      %v7875 = vunpack.c.l.b16 %v7791
      %v7876 = vunpack.c.h.b16 %v7791
      %v7877 = vunpack.c.l.b16 %v7792
      %v7878 = vunpack.c.h.b16 %v7792
      %v7879 = vunpack.c.l.b16 %v7793
      %v7880 = vunpack.c.h.b16 %v7793
      %v7881 = vunpack.c.l.b16 %v7794
      %v7882 = vunpack.c.h.b16 %v7794
      %v7883 = vunpack.c.l.b16 %v7795
      %v7884 = vunpack.c.h.b16 %v7795
      %v7885 = vunpack.c.l.b16 %v7796
      %v7886 = vunpack.c.h.b16 %v7796
      %v7887 = vunpack.c.l.b16 %v7797
      %v7888 = vunpack.c.h.b16 %v7797
      %v7889 = vunpack.c.l.b16 %v7798
      %v7890 = vunpack.c.h.b16 %v7798
      %v7891 = vunpack.c.l.b16 %v7799
      %v7892 = vunpack.c.h.b16 %v7799
      %v7893 = vunpack.c.l.b16 %v7800
      %v7894 = vunpack.c.h.b16 %v7800
      %v7895 = vunpack.c.l.b16 %v7801
      %v7896 = vunpack.c.h.b16 %v7801
      %v7897 = vunpack.c.l.b16 %v7802
      %v7898 = vunpack.c.h.b16 %v7802
      %v7899 = vpack.c.b16 %v7837, %v7835
      %v7900 = vpack.c.b16 %v7838, %v7836
      %v7901 = vpack.c.b16 %v7841, %v7839
      %v7902 = vpack.c.b16 %v7842, %v7840
      %v7903 = vpack.c.b16 %v7845, %v7843
      %v7904 = vpack.c.b16 %v7846, %v7844
      %v7905 = vpack.c.b16 %v7849, %v7847
      %v7906 = vpack.c.b16 %v7850, %v7848
      %v7907 = vpack.c.b16 %v7853, %v7851
      %v7908 = vpack.c.b16 %v7854, %v7852
      %v7909 = vpack.c.b16 %v7857, %v7855
      %v7910 = vpack.c.b16 %v7858, %v7856
      %v7911 = vpack.c.b16 %v7861, %v7859
      %v7912 = vpack.c.b16 %v7862, %v7860
      %v7913 = vpack.c.b16 %v7865, %v7863
      %v7914 = vpack.c.b16 %v7866, %v7864
      %v7915 = vpack.c.b16 %v7869, %v7867
      %v7916 = vpack.c.b16 %v7870, %v7868
      %v7917 = vpack.c.b16 %v7873, %v7871
      %v7918 = vpack.c.b16 %v7874, %v7872
      %v7919 = vpack.c.b16 %v7877, %v7875
      %v7920 = vpack.c.b16 %v7878, %v7876
      %v7921 = vpack.c.b16 %v7881, %v7879
      %v7922 = vpack.c.b16 %v7882, %v7880
      %v7923 = vpack.c.b16 %v7885, %v7883
      %v7924 = vpack.c.b16 %v7886, %v7884
      %v7925 = vpack.c.b16 %v7889, %v7887
      %v7926 = vpack.c.b16 %v7890, %v7888
      %v7927 = vpack.c.b16 %v7893, %v7891
      %v7928 = vpack.c.b16 %v7894, %v7892
      %v7929 = vpack.c.b16 %v7897, %v7895
      %v7930 = vpack.c.b16 %v7898, %v7896
      %7963 = vmatpush.bf16.msra.mxu0 %v7913
      %7964 = vmatpush.bf16.msra.mxu0 %v7911
      %7965 = vmatpush.bf16.msra.mxu0 %v7909
      %7966 = vmatpush.bf16.msra.mxu0 %v7907
      %7967 = vmatpush.bf16.msra.mxu0 %v7905
      %7968 = vmatpush.bf16.msra.mxu0 %v7903
      %7969 = vmatpush.bf16.msra.mxu0 %v7901
      %7970 = vmatpush.bf16.msra.mxu0 %v7899
      %7971 = vmatmul.bf16.gmra.mxu0 %v7429
      %v7972 = vpop.f32.mrf.mxu0
      %v7973 = vadd.f32 0.0, %v7972
      %v7974 = vpop.f32.mrf.mxu0
      %v7975 = vadd.f32 0.0, %v7974
      %7976 = vmatmul.bf16.gmra.mxu0 %v7431
      %v7977 = vpop.f32.mrf.mxu0
      %v7978 = vadd.f32 0.0, %v7977
      %v7979 = vpop.f32.mrf.mxu0
      %v7980 = vadd.f32 0.0, %v7979
      %7981 = vmatmul.bf16.gmra.mxu0 %v7433
      %v7982 = vpop.f32.mrf.mxu0
      %v7983 = vadd.f32 0.0, %v7982
      %v7984 = vpop.f32.mrf.mxu0
      %v7985 = vadd.f32 0.0, %v7984
      %7986 = vmatmul.bf16.gmra.mxu0 %v7435
      %v7987 = vpop.f32.mrf.mxu0
      %v7988 = vadd.f32 0.0, %v7987
      %v7989 = vpop.f32.mrf.mxu0
      %v7990 = vadd.f32 0.0, %v7989
      %7991 = vdwg.mxu0
      %7992 = vmatpush.bf16.msra.mxu0 %v7929
      %7993 = vmatpush.bf16.msra.mxu0 %v7927
      %7994 = vmatpush.bf16.msra.mxu0 %v7925
      %7995 = vmatpush.bf16.msra.mxu0 %v7923
      %7996 = vmatpush.bf16.msra.mxu0 %v7921
      %7997 = vmatpush.bf16.msra.mxu0 %v7919
      %7998 = vmatpush.bf16.msra.mxu0 %v7917
      %7999 = vmatpush.bf16.msra.mxu0 %v7915
      %8000 = vmatmul.bf16.gmra.mxu0 %v7430
      %v8001 = vpop.f32.mrf.mxu0
      %v8002 = vadd.f32 %v7973, %v8001
      %v8003 = vpop.f32.mrf.mxu0
      %v8004 = vadd.f32 %v7975, %v8003
      %8005 = vmatmul.bf16.gmra.mxu0 %v7432
      %v8006 = vpop.f32.mrf.mxu0
      %v8007 = vadd.f32 %v7978, %v8006
      %v8008 = vpop.f32.mrf.mxu0
      %v8009 = vadd.f32 %v7980, %v8008
      %8010 = vmatmul.bf16.gmra.mxu0 %v7434
      %v8011 = vpop.f32.mrf.mxu0
      %v8012 = vadd.f32 %v7983, %v8011
      %v8013 = vpop.f32.mrf.mxu0
      %v8014 = vadd.f32 %v7985, %v8013
      %8015 = vmatmul.bf16.gmra.mxu0 %v7436
      %v8016 = vpop.f32.mrf.mxu0
      %v8017 = vadd.f32 %v7988, %v8016
      %v8018 = vpop.f32.mrf.mxu0
      %v8019 = vadd.f32 %v7990, %v8018
      %8020 = vdwg.mxu0
      %8021 = vmatpush.bf16.msra.mxu0 %v7914
      %8022 = vmatpush.bf16.msra.mxu0 %v7912
      %8023 = vmatpush.bf16.msra.mxu0 %v7910
      %8024 = vmatpush.bf16.msra.mxu0 %v7908
      %8025 = vmatpush.bf16.msra.mxu0 %v7906
      %8026 = vmatpush.bf16.msra.mxu0 %v7904
      %8027 = vmatpush.bf16.msra.mxu0 %v7902
      %8028 = vmatpush.bf16.msra.mxu0 %v7900
      %8029 = vmatmul.bf16.gmra.mxu0 %v7429
      %v8030 = vpop.f32.mrf.mxu0
      %v8031 = vadd.f32 0.0, %v8030
      %v8032 = vpop.f32.mrf.mxu0
      %v8033 = vadd.f32 0.0, %v8032
      %8034 = vmatmul.bf16.gmra.mxu0 %v7431
      %v8035 = vpop.f32.mrf.mxu0
      %v8036 = vadd.f32 0.0, %v8035
      %v8037 = vpop.f32.mrf.mxu0
      %v8038 = vadd.f32 0.0, %v8037
      %8039 = vmatmul.bf16.gmra.mxu0 %v7433
      %v8040 = vpop.f32.mrf.mxu0
      %v8041 = vadd.f32 0.0, %v8040
      %v8042 = vpop.f32.mrf.mxu0
      %v8043 = vadd.f32 0.0, %v8042
      %8044 = vmatmul.bf16.gmra.mxu0 %v7435
      %v8045 = vpop.f32.mrf.mxu0
      %v8046 = vadd.f32 0.0, %v8045
      %v8047 = vpop.f32.mrf.mxu0
      %v8048 = vadd.f32 0.0, %v8047
      %8049 = vdwg.mxu0
      %8050 = vmatpush.bf16.msra.mxu0 %v7930
      %8051 = vmatpush.bf16.msra.mxu0 %v7928
      %8052 = vmatpush.bf16.msra.mxu0 %v7926
      %8053 = vmatpush.bf16.msra.mxu0 %v7924
      %8054 = vmatpush.bf16.msra.mxu0 %v7922
      %8055 = vmatpush.bf16.msra.mxu0 %v7920
      %8056 = vmatpush.bf16.msra.mxu0 %v7918
      %8057 = vmatpush.bf16.msra.mxu0 %v7916
      %8058 = vmatmul.bf16.gmra.mxu0 %v7430
      %v8059 = vpop.f32.mrf.mxu0
      %v8060 = vadd.f32 %v8031, %v8059
      %v8061 = vpop.f32.mrf.mxu0
      %v8062 = vadd.f32 %v8033, %v8061
      %8063 = vmatmul.bf16.gmra.mxu0 %v7432
      %v8064 = vpop.f32.mrf.mxu0
      %v8065 = vadd.f32 %v8036, %v8064
      %v8066 = vpop.f32.mrf.mxu0
      %v8067 = vadd.f32 %v8038, %v8066
      %8068 = vmatmul.bf16.gmra.mxu0 %v7434
      %v8069 = vpop.f32.mrf.mxu0
      %v8070 = vadd.f32 %v8041, %v8069
      %v8071 = vpop.f32.mrf.mxu0
      %v8072 = vadd.f32 %v8043, %v8071
      %8073 = vmatmul.bf16.gmra.mxu0 %v7436
      %v8074 = vpop.f32.mrf.mxu0
      %v8075 = vadd.f32 %v8046, %v8074
      %v8076 = vpop.f32.mrf.mxu0
      %v8077 = vadd.f32 %v8048, %v8076
      %8078 = vdwg.mxu0
      %v8080 = vshrl.u32 %v7429, 16
      %v8082 = vshll.u32 %v7429, 16
      %v8084 = vrot.slane %v8082, 1
      %v8085 = vor.u32 %v8080, %v8084
      %v8087 = vshll.u32 %v7431, 16
      %v8089 = vrot.slane %v8087, 1
      %v8090 = vsel %vm488, %v8085, %v8089
      %v8092 = vshrl.u32 %v7430, 16
      %v8094 = vshll.u32 %v7430, 16
      %v8096 = vrot.slane %v8094, 1
      %v8097 = vor.u32 %v8092, %v8096
      %v8099 = vshll.u32 %v7432, 16
      %v8101 = vrot.slane %v8099, 1
      %v8102 = vsel %vm488, %v8097, %v8101
      %v8103 = vshrl.u32 %v7431, 16
      %v8105 = vor.u32 %v8103, %v8089
      %v8107 = vshll.u32 %v7433, 16
      %v8109 = vrot.slane %v8107, 1
      %v8110 = vsel %vm488, %v8105, %v8109
      %v8111 = vshrl.u32 %v7432, 16
      %v8113 = vor.u32 %v8111, %v8101
      %v8115 = vshll.u32 %v7434, 16
      %v8117 = vrot.slane %v8115, 1
      %v8118 = vsel %vm488, %v8113, %v8117
      %v8119 = vshrl.u32 %v7433, 16
      %v8121 = vor.u32 %v8119, %v8109
      %v8123 = vshll.u32 %v7435, 16
      %v8125 = vrot.slane %v8123, 1
      %v8126 = vsel %vm488, %v8121, %v8125
      %v8127 = vshrl.u32 %v7434, 16
      %v8129 = vor.u32 %v8127, %v8117
      %v8131 = vshll.u32 %v7436, 16
      %v8133 = vrot.slane %v8131, 1
      %v8134 = vsel %vm488, %v8129, %v8133
      %v8135 = vshrl.u32 %v7435, 16
      %v8137 = vor.u32 %v8135, %v8125
      %v8138 = vshrl.u32 %v7436, 16
      %v8140 = vor.u32 %v8138, %v8133
      %v8181 = vunpack.c.l.b16 %v7738
      %v8182 = vunpack.c.h.b16 %v7738
      %v8183 = vunpack.c.l.b16 %v7739
      %v8184 = vunpack.c.h.b16 %v7739
      %v8185 = vunpack.c.l.b16 %v7740
      %v8186 = vunpack.c.h.b16 %v7740
      %v8187 = vunpack.c.l.b16 %v7741
      %v8188 = vunpack.c.h.b16 %v7741
      %v8189 = vunpack.c.l.b16 %v7742
      %v8190 = vunpack.c.h.b16 %v7742
      %v8191 = vunpack.c.l.b16 %v7743
      %v8192 = vunpack.c.h.b16 %v7743
      %v8193 = vunpack.c.l.b16 %v7744
      %v8194 = vunpack.c.h.b16 %v7744
      %v8195 = vunpack.c.l.b16 %v7745
      %v8196 = vunpack.c.h.b16 %v7745
      %v8197 = vunpack.c.l.b16 %v7746
      %v8198 = vunpack.c.h.b16 %v7746
      %v8199 = vunpack.c.l.b16 %v7747
      %v8200 = vunpack.c.h.b16 %v7747
      %v8201 = vunpack.c.l.b16 %v7748
      %v8202 = vunpack.c.h.b16 %v7748
      %v8203 = vunpack.c.l.b16 %v7749
      %v8204 = vunpack.c.h.b16 %v7749
      %v8205 = vunpack.c.l.b16 %v7750
      %v8206 = vunpack.c.h.b16 %v7750
      %v8207 = vunpack.c.l.b16 %v7751
      %v8208 = vunpack.c.h.b16 %v7751
      %v8209 = vunpack.c.l.b16 %v7752
      %v8210 = vunpack.c.h.b16 %v7752
      %v8211 = vunpack.c.l.b16 %v7753
      %v8212 = vunpack.c.h.b16 %v7753
      %v8213 = vunpack.c.l.b16 %v7754
      %v8214 = vunpack.c.h.b16 %v7754
      %v8215 = vunpack.c.l.b16 %v7755
      %v8216 = vunpack.c.h.b16 %v7755
      %v8217 = vunpack.c.l.b16 %v7756
      %v8218 = vunpack.c.h.b16 %v7756
      %v8219 = vunpack.c.l.b16 %v7757
      %v8220 = vunpack.c.h.b16 %v7757
      %v8221 = vunpack.c.l.b16 %v7758
      %v8222 = vunpack.c.h.b16 %v7758
      %v8223 = vunpack.c.l.b16 %v7759
      %v8224 = vunpack.c.h.b16 %v7759
      %v8225 = vunpack.c.l.b16 %v7760
      %v8226 = vunpack.c.h.b16 %v7760
      %v8227 = vunpack.c.l.b16 %v7761
      %v8228 = vunpack.c.h.b16 %v7761
      %v8229 = vunpack.c.l.b16 %v7762
      %v8230 = vunpack.c.h.b16 %v7762
      %v8231 = vunpack.c.l.b16 %v7763
      %v8232 = vunpack.c.h.b16 %v7763
      %v8233 = vunpack.c.l.b16 %v7764
      %v8234 = vunpack.c.h.b16 %v7764
      %v8235 = vunpack.c.l.b16 %v7765
      %v8236 = vunpack.c.h.b16 %v7765
      %v8237 = vunpack.c.l.b16 %v7766
      %v8238 = vunpack.c.h.b16 %v7766
      %v8239 = vunpack.c.l.b16 %v7767
      %v8240 = vunpack.c.h.b16 %v7767
      %v8241 = vunpack.c.l.b16 %v7768
      %v8242 = vunpack.c.h.b16 %v7768
      %v8243 = vunpack.c.l.b16 %v7769
      %v8244 = vunpack.c.h.b16 %v7769
      %v8245 = vpack.c.b16 %v8183, %v8181
      %v8246 = vpack.c.b16 %v8184, %v8182
      %v8247 = vpack.c.b16 %v8187, %v8185
      %v8248 = vpack.c.b16 %v8188, %v8186
      %v8249 = vpack.c.b16 %v8191, %v8189
      %v8250 = vpack.c.b16 %v8192, %v8190
      %v8251 = vpack.c.b16 %v8195, %v8193
      %v8252 = vpack.c.b16 %v8196, %v8194
      %v8253 = vpack.c.b16 %v8199, %v8197
      %v8254 = vpack.c.b16 %v8200, %v8198
      %v8255 = vpack.c.b16 %v8203, %v8201
      %v8256 = vpack.c.b16 %v8204, %v8202
      %v8257 = vpack.c.b16 %v8207, %v8205
      %v8258 = vpack.c.b16 %v8208, %v8206
      %v8259 = vpack.c.b16 %v8211, %v8209
      %v8260 = vpack.c.b16 %v8212, %v8210
      %v8261 = vpack.c.b16 %v8215, %v8213
      %v8262 = vpack.c.b16 %v8216, %v8214
      %v8263 = vpack.c.b16 %v8219, %v8217
      %v8264 = vpack.c.b16 %v8220, %v8218
      %v8265 = vpack.c.b16 %v8223, %v8221
      %v8266 = vpack.c.b16 %v8224, %v8222
      %v8267 = vpack.c.b16 %v8227, %v8225
      %v8268 = vpack.c.b16 %v8228, %v8226
      %v8269 = vpack.c.b16 %v8231, %v8229
      %v8270 = vpack.c.b16 %v8232, %v8230
      %v8271 = vpack.c.b16 %v8235, %v8233
      %v8272 = vpack.c.b16 %v8236, %v8234
      %v8273 = vpack.c.b16 %v8239, %v8237
      %v8274 = vpack.c.b16 %v8240, %v8238
      %v8275 = vpack.c.b16 %v8243, %v8241
      %v8276 = vpack.c.b16 %v8244, %v8242
      %8309 = vmatpush.bf16.msra.mxu0 %v8259
      %8310 = vmatpush.bf16.msra.mxu0 %v8257
      %8311 = vmatpush.bf16.msra.mxu0 %v8255
      %8312 = vmatpush.bf16.msra.mxu0 %v8253
      %8313 = vmatpush.bf16.msra.mxu0 %v8251
      %8314 = vmatpush.bf16.msra.mxu0 %v8249
      %8315 = vmatpush.bf16.msra.mxu0 %v8247
      %8316 = vmatpush.bf16.msra.mxu0 %v8245
      %8317 = vmatmul.bf16.gmra.mxu0 %v8090
      %v8318 = vpop.f32.mrf.mxu0
      %v8319 = vadd.f32 %v8002, %v8318
      %v8320 = vpop.f32.mrf.mxu0
      %v8321 = vadd.f32 %v8004, %v8320
      %8322 = vmatmul.bf16.gmra.mxu0 %v8110
      %v8323 = vpop.f32.mrf.mxu0
      %v8324 = vadd.f32 %v8007, %v8323
      %v8325 = vpop.f32.mrf.mxu0
      %v8326 = vadd.f32 %v8009, %v8325
      %8327 = vmatmul.bf16.gmra.mxu0 %v8126
      %v8328 = vpop.f32.mrf.mxu0
      %v8329 = vadd.f32 %v8012, %v8328
      %v8330 = vpop.f32.mrf.mxu0
      %v8331 = vadd.f32 %v8014, %v8330
      %8332 = vmatmul.bf16.gmra.mxu0 %v8137
      %v8333 = vpop.f32.mrf.mxu0
      %v8334 = vadd.f32 %v8017, %v8333
      %v8335 = vpop.f32.mrf.mxu0
      %v8336 = vadd.f32 %v8019, %v8335
      %8337 = vdwg.mxu0
      %8338 = vmatpush.bf16.msra.mxu0 %v8275
      %8339 = vmatpush.bf16.msra.mxu0 %v8273
      %8340 = vmatpush.bf16.msra.mxu0 %v8271
      %8341 = vmatpush.bf16.msra.mxu0 %v8269
      %8342 = vmatpush.bf16.msra.mxu0 %v8267
      %8343 = vmatpush.bf16.msra.mxu0 %v8265
      %8344 = vmatpush.bf16.msra.mxu0 %v8263
      %8345 = vmatpush.bf16.msra.mxu0 %v8261
      %8346 = vmatmul.bf16.gmra.mxu0 %v8102
      %v8347 = vpop.f32.mrf.mxu0
      %v8348 = vadd.f32 %v8319, %v8347
      %v8349 = vpop.f32.mrf.mxu0
      %v8350 = vadd.f32 %v8321, %v8349
      %8351 = vmatmul.bf16.gmra.mxu0 %v8118
      %v8352 = vpop.f32.mrf.mxu0
      %v8353 = vadd.f32 %v8324, %v8352
      %v8354 = vpop.f32.mrf.mxu0
      %v8355 = vadd.f32 %v8326, %v8354
      %8356 = vmatmul.bf16.gmra.mxu0 %v8134
      %v8357 = vpop.f32.mrf.mxu0
      %v8358 = vadd.f32 %v8329, %v8357
      %v8359 = vpop.f32.mrf.mxu0
      %v8360 = vadd.f32 %v8331, %v8359
      %8361 = vmatmul.bf16.gmra.mxu0 %v8140
      %v8362 = vpop.f32.mrf.mxu0
      %v8363 = vadd.f32 %v8334, %v8362
      %v8364 = vpop.f32.mrf.mxu0
      %v8365 = vadd.f32 %v8336, %v8364
      %8366 = vdwg.mxu0
      %8367 = vmatpush.bf16.msra.mxu0 %v8260
      %8368 = vmatpush.bf16.msra.mxu0 %v8258
      %8369 = vmatpush.bf16.msra.mxu0 %v8256
      %8370 = vmatpush.bf16.msra.mxu0 %v8254
      %8371 = vmatpush.bf16.msra.mxu0 %v8252
      %8372 = vmatpush.bf16.msra.mxu0 %v8250
      %8373 = vmatpush.bf16.msra.mxu0 %v8248
      %8374 = vmatpush.bf16.msra.mxu0 %v8246
      %8375 = vmatmul.bf16.gmra.mxu0 %v8090
      %v8376 = vpop.f32.mrf.mxu0
      %v8377 = vadd.f32 %v8060, %v8376
      %v8378 = vpop.f32.mrf.mxu0
      %v8379 = vadd.f32 %v8062, %v8378
      %8380 = vmatmul.bf16.gmra.mxu0 %v8110
      %v8381 = vpop.f32.mrf.mxu0
      %v8382 = vadd.f32 %v8065, %v8381
      %v8383 = vpop.f32.mrf.mxu0
      %v8384 = vadd.f32 %v8067, %v8383
      %8385 = vmatmul.bf16.gmra.mxu0 %v8126
      %v8386 = vpop.f32.mrf.mxu0
      %v8387 = vadd.f32 %v8070, %v8386
      %v8388 = vpop.f32.mrf.mxu0
      %v8389 = vadd.f32 %v8072, %v8388
      %8390 = vmatmul.bf16.gmra.mxu0 %v8137
      %v8391 = vpop.f32.mrf.mxu0
      %v8392 = vadd.f32 %v8075, %v8391
      %v8393 = vpop.f32.mrf.mxu0
      %v8394 = vadd.f32 %v8077, %v8393
      %8395 = vdwg.mxu0
      %8396 = vmatpush.bf16.msra.mxu0 %v8276
      %8397 = vmatpush.bf16.msra.mxu0 %v8274
      %8398 = vmatpush.bf16.msra.mxu0 %v8272
      %8399 = vmatpush.bf16.msra.mxu0 %v8270
      %8400 = vmatpush.bf16.msra.mxu0 %v8268
      %8401 = vmatpush.bf16.msra.mxu0 %v8266
      %8402 = vmatpush.bf16.msra.mxu0 %v8264
      %8403 = vmatpush.bf16.msra.mxu0 %v8262
      %8404 = vmatmul.bf16.gmra.mxu0 %v8102
      %v8405 = vpop.f32.mrf.mxu0
      %v8406 = vadd.f32 %v8377, %v8405
      %v8407 = vpop.f32.mrf.mxu0
      %v8408 = vadd.f32 %v8379, %v8407
      %8409 = vmatmul.bf16.gmra.mxu0 %v8118
      %v8410 = vpop.f32.mrf.mxu0
      %v8411 = vadd.f32 %v8382, %v8410
      %v8412 = vpop.f32.mrf.mxu0
      %v8413 = vadd.f32 %v8384, %v8412
      %8414 = vmatmul.bf16.gmra.mxu0 %v8134
      %v8415 = vpop.f32.mrf.mxu0
      %v8416 = vadd.f32 %v8387, %v8415
      %v8417 = vpop.f32.mrf.mxu0
      %v8418 = vadd.f32 %v8389, %v8417
      %8419 = vmatmul.bf16.gmra.mxu0 %v8140
      %v8420 = vpop.f32.mrf.mxu0
      %v8421 = vadd.f32 %v8392, %v8420
      %v8422 = vpop.f32.mrf.mxu0
      %v8423 = vadd.f32 %v8394, %v8422
      %8424 = vdwg.mxu0
      %v8425 = vadd.f32 %v8348, %v7401
      %v8426 = vadd.f32 %v8406, %v7402
      %v8427 = vadd.f32 %v8350, %v7401
      %v8428 = vadd.f32 %v8408, %v7402
      %v8429 = vadd.f32 %v8353, %v7401
      %v8430 = vadd.f32 %v8411, %v7402
      %v8431 = vadd.f32 %v8355, %v7401
      %v8432 = vadd.f32 %v8413, %v7402
      %v8433 = vadd.f32 %v8358, %v7401
      %v8434 = vadd.f32 %v8416, %v7402
      %v8435 = vadd.f32 %v8360, %v7401
      %v8436 = vadd.f32 %v8418, %v7402
      %v8437 = vadd.f32 %v8363, %v7401
      %v8438 = vadd.f32 %v8421, %v7402
      %v8439 = vadd.f32 %v8365, %v7401
      %v8440 = vadd.f32 %v8423, %v7402
      %v8441 = vmax.f32 %v8425, 0.0
      %v8442 = vmax.f32 %v8426, 0.0
      %v8443 = vmax.f32 %v8427, 0.0
      %v8444 = vmax.f32 %v8428, 0.0
      %v8445 = vmax.f32 %v8429, 0.0
      %v8446 = vmax.f32 %v8430, 0.0
      %v8447 = vmax.f32 %v8431, 0.0
      %v8448 = vmax.f32 %v8432, 0.0
      %v8449 = vmax.f32 %v8433, 0.0
      %v8450 = vmax.f32 %v8434, 0.0
      %v8451 = vmax.f32 %v8435, 0.0
      %v8452 = vmax.f32 %v8436, 0.0
      %v8453 = vmax.f32 %v8437, 0.0
      %v8454 = vmax.f32 %v8438, 0.0
      %v8455 = vmax.f32 %v8439, 0.0
      %v8456 = vmax.f32 %v8440, 0.0
      %s8457 = scalar_lea.vmem %s4, 256
      %v8458 = vld [vmem:[%s8457] sm:$0xff]
      %v8459 = vld [vmem:[%s8457 + $0x8] sm:$0xff]
      %v8460 = vld [vmem:[%s8457 + $0x10] sm:$0xff]
      %v8461 = vld [vmem:[%s8457 + $0x18] sm:$0xff]
      %v8462 = vld [vmem:[%s8457 + $0x20] sm:$0xff]
      %v8463 = vld [vmem:[%s8457 + $0x28] sm:$0xff]
      %v8464 = vld [vmem:[%s8457 + $0x30] sm:$0xff]
      %v8465 = vld [vmem:[%s8457 + $0x38] sm:$0xff]
      %v8466 = vld [vmem:[%s8457 + $0x40] sm:$0xff]
      %v8467 = vld [vmem:[%s8457 + $0x48] sm:$0xff]
      %v8468 = vld [vmem:[%s8457 + $0x50] sm:$0xff]
      %v8469 = vld [vmem:[%s8457 + $0x58] sm:$0xff]
      %v8470 = vld [vmem:[%s8457 + $0x60] sm:$0xff]
      %v8471 = vld [vmem:[%s8457 + $0x68] sm:$0xff]
      %v8472 = vld [vmem:[%s8457 + $0x70] sm:$0xff]
      %v8473 = vld [vmem:[%s8457 + $0x78] sm:$0xff]
      %v8474 = vld [vmem:[%s8457 + $0x80] sm:$0xff]
      %v8475 = vld [vmem:[%s8457 + $0x88] sm:$0xff]
      %v8476 = vld [vmem:[%s8457 + $0x90] sm:$0xff]
      %v8477 = vld [vmem:[%s8457 + $0x98] sm:$0xff]
      %v8478 = vld [vmem:[%s8457 + $0xa0] sm:$0xff]
      %v8479 = vld [vmem:[%s8457 + $0xa8] sm:$0xff]
      %v8480 = vld [vmem:[%s8457 + $0xb0] sm:$0xff]
      %v8481 = vld [vmem:[%s8457 + $0xb8] sm:$0xff]
      %v8482 = vld [vmem:[%s8457 + $0xc0] sm:$0xff]
      %v8483 = vld [vmem:[%s8457 + $0xc8] sm:$0xff]
      %v8484 = vld [vmem:[%s8457 + $0xd0] sm:$0xff]
      %v8485 = vld [vmem:[%s8457 + $0xd8] sm:$0xff]
      %v8486 = vld [vmem:[%s8457 + $0xe0] sm:$0xff]
      %v8487 = vld [vmem:[%s8457 + $0xe8] sm:$0xff]
      %v8488 = vld [vmem:[%s8457 + $0xf0] sm:$0xff]
      %v8489 = vld [vmem:[%s8457 + $0xf8] sm:$0xff]
      %s8490 = scalar_lea.vmem %s4, 1792
      %v8491 = vld [vmem:[%s8490] sm:$0xff]
      %v8492 = vld [vmem:[%s8490 + $0x8] sm:$0xff]
      %v8493 = vld [vmem:[%s8490 + $0x10] sm:$0xff]
      %v8494 = vld [vmem:[%s8490 + $0x18] sm:$0xff]
      %v8495 = vld [vmem:[%s8490 + $0x20] sm:$0xff]
      %v8496 = vld [vmem:[%s8490 + $0x28] sm:$0xff]
      %v8497 = vld [vmem:[%s8490 + $0x30] sm:$0xff]
      %v8498 = vld [vmem:[%s8490 + $0x38] sm:$0xff]
      %v8499 = vld [vmem:[%s8490 + $0x40] sm:$0xff]
      %v8500 = vld [vmem:[%s8490 + $0x48] sm:$0xff]
      %v8501 = vld [vmem:[%s8490 + $0x50] sm:$0xff]
      %v8502 = vld [vmem:[%s8490 + $0x58] sm:$0xff]
      %v8503 = vld [vmem:[%s8490 + $0x60] sm:$0xff]
      %v8504 = vld [vmem:[%s8490 + $0x68] sm:$0xff]
      %v8505 = vld [vmem:[%s8490 + $0x70] sm:$0xff]
      %v8506 = vld [vmem:[%s8490 + $0x78] sm:$0xff]
      %v8507 = vld [vmem:[%s8490 + $0x80] sm:$0xff]
      %v8508 = vld [vmem:[%s8490 + $0x88] sm:$0xff]
      %v8509 = vld [vmem:[%s8490 + $0x90] sm:$0xff]
      %v8510 = vld [vmem:[%s8490 + $0x98] sm:$0xff]
      %v8511 = vld [vmem:[%s8490 + $0xa0] sm:$0xff]
      %v8512 = vld [vmem:[%s8490 + $0xa8] sm:$0xff]
      %v8513 = vld [vmem:[%s8490 + $0xb0] sm:$0xff]
      %v8514 = vld [vmem:[%s8490 + $0xb8] sm:$0xff]
      %v8515 = vld [vmem:[%s8490 + $0xc0] sm:$0xff]
      %v8516 = vld [vmem:[%s8490 + $0xc8] sm:$0xff]
      %v8517 = vld [vmem:[%s8490 + $0xd0] sm:$0xff]
      %v8518 = vld [vmem:[%s8490 + $0xd8] sm:$0xff]
      %v8519 = vld [vmem:[%s8490 + $0xe0] sm:$0xff]
      %v8520 = vld [vmem:[%s8490 + $0xe8] sm:$0xff]
      %v8521 = vld [vmem:[%s8490 + $0xf0] sm:$0xff]
      %v8522 = vld [vmem:[%s8490 + $0xf8] sm:$0xff]
      %v8555 = vunpack.c.l.b16 %v8491
      %v8556 = vunpack.c.h.b16 %v8491
      %v8557 = vunpack.c.l.b16 %v8492
      %v8558 = vunpack.c.h.b16 %v8492
      %v8559 = vunpack.c.l.b16 %v8493
      %v8560 = vunpack.c.h.b16 %v8493
      %v8561 = vunpack.c.l.b16 %v8494
      %v8562 = vunpack.c.h.b16 %v8494
      %v8563 = vunpack.c.l.b16 %v8495
      %v8564 = vunpack.c.h.b16 %v8495
      %v8565 = vunpack.c.l.b16 %v8496
      %v8566 = vunpack.c.h.b16 %v8496
      %v8567 = vunpack.c.l.b16 %v8497
      %v8568 = vunpack.c.h.b16 %v8497
      %v8569 = vunpack.c.l.b16 %v8498
      %v8570 = vunpack.c.h.b16 %v8498
      %v8571 = vunpack.c.l.b16 %v8499
      %v8572 = vunpack.c.h.b16 %v8499
      %v8573 = vunpack.c.l.b16 %v8500
      %v8574 = vunpack.c.h.b16 %v8500
      %v8575 = vunpack.c.l.b16 %v8501
      %v8576 = vunpack.c.h.b16 %v8501
      %v8577 = vunpack.c.l.b16 %v8502
      %v8578 = vunpack.c.h.b16 %v8502
      %v8579 = vunpack.c.l.b16 %v8503
      %v8580 = vunpack.c.h.b16 %v8503
      %v8581 = vunpack.c.l.b16 %v8504
      %v8582 = vunpack.c.h.b16 %v8504
      %v8583 = vunpack.c.l.b16 %v8505
      %v8584 = vunpack.c.h.b16 %v8505
      %v8585 = vunpack.c.l.b16 %v8506
      %v8586 = vunpack.c.h.b16 %v8506
      %v8587 = vunpack.c.l.b16 %v8507
      %v8588 = vunpack.c.h.b16 %v8507
      %v8589 = vunpack.c.l.b16 %v8508
      %v8590 = vunpack.c.h.b16 %v8508
      %v8591 = vunpack.c.l.b16 %v8509
      %v8592 = vunpack.c.h.b16 %v8509
      %v8593 = vunpack.c.l.b16 %v8510
      %v8594 = vunpack.c.h.b16 %v8510
      %v8595 = vunpack.c.l.b16 %v8511
      %v8596 = vunpack.c.h.b16 %v8511
      %v8597 = vunpack.c.l.b16 %v8512
      %v8598 = vunpack.c.h.b16 %v8512
      %v8599 = vunpack.c.l.b16 %v8513
      %v8600 = vunpack.c.h.b16 %v8513
      %v8601 = vunpack.c.l.b16 %v8514
      %v8602 = vunpack.c.h.b16 %v8514
      %v8603 = vunpack.c.l.b16 %v8515
      %v8604 = vunpack.c.h.b16 %v8515
      %v8605 = vunpack.c.l.b16 %v8516
      %v8606 = vunpack.c.h.b16 %v8516
      %v8607 = vunpack.c.l.b16 %v8517
      %v8608 = vunpack.c.h.b16 %v8517
      %v8609 = vunpack.c.l.b16 %v8518
      %v8610 = vunpack.c.h.b16 %v8518
      %v8611 = vunpack.c.l.b16 %v8519
      %v8612 = vunpack.c.h.b16 %v8519
      %v8613 = vunpack.c.l.b16 %v8520
      %v8614 = vunpack.c.h.b16 %v8520
      %v8615 = vunpack.c.l.b16 %v8521
      %v8616 = vunpack.c.h.b16 %v8521
      %v8617 = vunpack.c.l.b16 %v8522
      %v8618 = vunpack.c.h.b16 %v8522
      %v8619 = vpack.c.b16 %v8557, %v8555
      %v8620 = vpack.c.b16 %v8558, %v8556
      %v8621 = vpack.c.b16 %v8561, %v8559
      %v8622 = vpack.c.b16 %v8562, %v8560
      %v8623 = vpack.c.b16 %v8565, %v8563
      %v8624 = vpack.c.b16 %v8566, %v8564
      %v8625 = vpack.c.b16 %v8569, %v8567
      %v8626 = vpack.c.b16 %v8570, %v8568
      %v8627 = vpack.c.b16 %v8573, %v8571
      %v8628 = vpack.c.b16 %v8574, %v8572
      %v8629 = vpack.c.b16 %v8577, %v8575
      %v8630 = vpack.c.b16 %v8578, %v8576
      %v8631 = vpack.c.b16 %v8581, %v8579
      %v8632 = vpack.c.b16 %v8582, %v8580
      %v8633 = vpack.c.b16 %v8585, %v8583
      %v8634 = vpack.c.b16 %v8586, %v8584
      %v8635 = vpack.c.b16 %v8589, %v8587
      %v8636 = vpack.c.b16 %v8590, %v8588
      %v8637 = vpack.c.b16 %v8593, %v8591
      %v8638 = vpack.c.b16 %v8594, %v8592
      %v8639 = vpack.c.b16 %v8597, %v8595
      %v8640 = vpack.c.b16 %v8598, %v8596
      %v8641 = vpack.c.b16 %v8601, %v8599
      %v8642 = vpack.c.b16 %v8602, %v8600
      %v8643 = vpack.c.b16 %v8605, %v8603
      %v8644 = vpack.c.b16 %v8606, %v8604
      %v8645 = vpack.c.b16 %v8609, %v8607
      %v8646 = vpack.c.b16 %v8610, %v8608
      %v8647 = vpack.c.b16 %v8613, %v8611
      %v8648 = vpack.c.b16 %v8614, %v8612
      %v8649 = vpack.c.b16 %v8617, %v8615
      %v8650 = vpack.c.b16 %v8618, %v8616
      %8683 = vmatpush.bf16.msra.mxu0 %v8633
      %8684 = vmatpush.bf16.msra.mxu0 %v8631
      %8685 = vmatpush.bf16.msra.mxu0 %v8629
      %8686 = vmatpush.bf16.msra.mxu0 %v8627
      %8687 = vmatpush.bf16.msra.mxu0 %v8625
      %8688 = vmatpush.bf16.msra.mxu0 %v8623
      %8689 = vmatpush.bf16.msra.mxu0 %v8621
      %8690 = vmatpush.bf16.msra.mxu0 %v8619
      %8691 = vmatmul.bf16.gmra.mxu0 %v7429
      %v8692 = vpop.f32.mrf.mxu0
      %v8693 = vadd.f32 0.0, %v8692
      %v8694 = vpop.f32.mrf.mxu0
      %v8695 = vadd.f32 0.0, %v8694
      %8696 = vmatmul.bf16.gmra.mxu0 %v7431
      %v8697 = vpop.f32.mrf.mxu0
      %v8698 = vadd.f32 0.0, %v8697
      %v8699 = vpop.f32.mrf.mxu0
      %v8700 = vadd.f32 0.0, %v8699
      %8701 = vmatmul.bf16.gmra.mxu0 %v7433
      %v8702 = vpop.f32.mrf.mxu0
      %v8703 = vadd.f32 0.0, %v8702
      %v8704 = vpop.f32.mrf.mxu0
      %v8705 = vadd.f32 0.0, %v8704
      %8706 = vmatmul.bf16.gmra.mxu0 %v7435
      %v8707 = vpop.f32.mrf.mxu0
      %v8708 = vadd.f32 0.0, %v8707
      %v8709 = vpop.f32.mrf.mxu0
      %v8710 = vadd.f32 0.0, %v8709
      %8711 = vdwg.mxu0
      %8712 = vmatpush.bf16.msra.mxu0 %v8649
      %8713 = vmatpush.bf16.msra.mxu0 %v8647
      %8714 = vmatpush.bf16.msra.mxu0 %v8645
      %8715 = vmatpush.bf16.msra.mxu0 %v8643
      %8716 = vmatpush.bf16.msra.mxu0 %v8641
      %8717 = vmatpush.bf16.msra.mxu0 %v8639
      %8718 = vmatpush.bf16.msra.mxu0 %v8637
      %8719 = vmatpush.bf16.msra.mxu0 %v8635
      %8720 = vmatmul.bf16.gmra.mxu0 %v7430
      %v8721 = vpop.f32.mrf.mxu0
      %v8722 = vadd.f32 %v8693, %v8721
      %v8723 = vpop.f32.mrf.mxu0
      %v8724 = vadd.f32 %v8695, %v8723
      %8725 = vmatmul.bf16.gmra.mxu0 %v7432
      %v8726 = vpop.f32.mrf.mxu0
      %v8727 = vadd.f32 %v8698, %v8726
      %v8728 = vpop.f32.mrf.mxu0
      %v8729 = vadd.f32 %v8700, %v8728
      %8730 = vmatmul.bf16.gmra.mxu0 %v7434
      %v8731 = vpop.f32.mrf.mxu0
      %v8732 = vadd.f32 %v8703, %v8731
      %v8733 = vpop.f32.mrf.mxu0
      %v8734 = vadd.f32 %v8705, %v8733
      %8735 = vmatmul.bf16.gmra.mxu0 %v7436
      %v8736 = vpop.f32.mrf.mxu0
      %v8737 = vadd.f32 %v8708, %v8736
      %v8738 = vpop.f32.mrf.mxu0
      %v8739 = vadd.f32 %v8710, %v8738
      %8740 = vdwg.mxu0
      %8741 = vmatpush.bf16.msra.mxu0 %v8634
      %8742 = vmatpush.bf16.msra.mxu0 %v8632
      %8743 = vmatpush.bf16.msra.mxu0 %v8630
      %8744 = vmatpush.bf16.msra.mxu0 %v8628
      %8745 = vmatpush.bf16.msra.mxu0 %v8626
      %8746 = vmatpush.bf16.msra.mxu0 %v8624
      %8747 = vmatpush.bf16.msra.mxu0 %v8622
      %8748 = vmatpush.bf16.msra.mxu0 %v8620
      %8749 = vmatmul.bf16.gmra.mxu0 %v7429
      %v8750 = vpop.f32.mrf.mxu0
      %v8751 = vadd.f32 0.0, %v8750
      %v8752 = vpop.f32.mrf.mxu0
      %v8753 = vadd.f32 0.0, %v8752
      %8754 = vmatmul.bf16.gmra.mxu0 %v7431
      %v8755 = vpop.f32.mrf.mxu0
      %v8756 = vadd.f32 0.0, %v8755
      %v8757 = vpop.f32.mrf.mxu0
      %v8758 = vadd.f32 0.0, %v8757
      %8759 = vmatmul.bf16.gmra.mxu0 %v7433
      %v8760 = vpop.f32.mrf.mxu0
      %v8761 = vadd.f32 0.0, %v8760
      %v8762 = vpop.f32.mrf.mxu0
      %v8763 = vadd.f32 0.0, %v8762
      %8764 = vmatmul.bf16.gmra.mxu0 %v7435
      %v8765 = vpop.f32.mrf.mxu0
      %v8766 = vadd.f32 0.0, %v8765
      %v8767 = vpop.f32.mrf.mxu0
      %v8768 = vadd.f32 0.0, %v8767
      %8769 = vdwg.mxu0
      %8770 = vmatpush.bf16.msra.mxu0 %v8650
      %8771 = vmatpush.bf16.msra.mxu0 %v8648
      %8772 = vmatpush.bf16.msra.mxu0 %v8646
      %8773 = vmatpush.bf16.msra.mxu0 %v8644
      %8774 = vmatpush.bf16.msra.mxu0 %v8642
      %8775 = vmatpush.bf16.msra.mxu0 %v8640
      %8776 = vmatpush.bf16.msra.mxu0 %v8638
      %8777 = vmatpush.bf16.msra.mxu0 %v8636
      %8778 = vmatmul.bf16.gmra.mxu0 %v7430
      %v8779 = vpop.f32.mrf.mxu0
      %v8780 = vadd.f32 %v8751, %v8779
      %v8781 = vpop.f32.mrf.mxu0
      %v8782 = vadd.f32 %v8753, %v8781
      %8783 = vmatmul.bf16.gmra.mxu0 %v7432
      %v8784 = vpop.f32.mrf.mxu0
      %v8785 = vadd.f32 %v8756, %v8784
      %v8786 = vpop.f32.mrf.mxu0
      %v8787 = vadd.f32 %v8758, %v8786
      %8788 = vmatmul.bf16.gmra.mxu0 %v7434
      %v8789 = vpop.f32.mrf.mxu0
      %v8790 = vadd.f32 %v8761, %v8789
      %v8791 = vpop.f32.mrf.mxu0
      %v8792 = vadd.f32 %v8763, %v8791
      %8793 = vmatmul.bf16.gmra.mxu0 %v7436
      %v8794 = vpop.f32.mrf.mxu0
      %v8795 = vadd.f32 %v8766, %v8794
      %v8796 = vpop.f32.mrf.mxu0
      %v8797 = vadd.f32 %v8768, %v8796
      %8798 = vdwg.mxu0
      %v8800 = vunpack.c.l.b16 %v7363
      %v8801 = vunpack.c.h.b16 %v7363
      %v8802 = vpack.c.b16 %v7417, %v7415
      %v8803 = vpack.c.b16 %v7418, %v7416
      %v8804 = vpack.c.b16 %v7421, %v7419
      %v8805 = vpack.c.b16 %v7422, %v7420
      %v8806 = vpack.c.b16 %v7425, %v7423
      %v8807 = vpack.c.b16 %v7426, %v7424
      %v8808 = vpack.c.b16 %v8800, %v7427
      %v8809 = vpack.c.b16 %v8801, %v7428
      %v8811 = vshrl.u32 %v8802, 16
      %v8813 = vshll.u32 %v8802, 16
      %v8815 = vrot.slane %v8813, 1
      %v8816 = vor.u32 %v8811, %v8815
      %v8818 = vshll.u32 %v8804, 16
      %v8820 = vrot.slane %v8818, 1
      %v8821 = vsel %vm488, %v8816, %v8820
      %v8823 = vshrl.u32 %v8803, 16
      %v8825 = vshll.u32 %v8803, 16
      %v8827 = vrot.slane %v8825, 1
      %v8828 = vor.u32 %v8823, %v8827
      %v8830 = vshll.u32 %v8805, 16
      %v8832 = vrot.slane %v8830, 1
      %v8833 = vsel %vm488, %v8828, %v8832
      %v8834 = vshrl.u32 %v8804, 16
      %v8836 = vor.u32 %v8834, %v8820
      %v8838 = vshll.u32 %v8806, 16
      %v8840 = vrot.slane %v8838, 1
      %v8841 = vsel %vm488, %v8836, %v8840
      %v8842 = vshrl.u32 %v8805, 16
      %v8844 = vor.u32 %v8842, %v8832
      %v8846 = vshll.u32 %v8807, 16
      %v8848 = vrot.slane %v8846, 1
      %v8849 = vsel %vm488, %v8844, %v8848
      %v8850 = vshrl.u32 %v8806, 16
      %v8852 = vor.u32 %v8850, %v8840
      %v8854 = vshll.u32 %v8808, 16
      %v8856 = vrot.slane %v8854, 1
      %v8857 = vsel %vm488, %v8852, %v8856
      %v8858 = vshrl.u32 %v8807, 16
      %v8860 = vor.u32 %v8858, %v8848
      %v8862 = vshll.u32 %v8809, 16
      %v8864 = vrot.slane %v8862, 1
      %v8865 = vsel %vm488, %v8860, %v8864
      %v8866 = vshrl.u32 %v8808, 16
      %v8868 = vor.u32 %v8866, %v8856
      %v8869 = vshrl.u32 %v8809, 16
      %v8871 = vor.u32 %v8869, %v8864
      %v8912 = vunpack.c.l.b16 %v8458
      %v8913 = vunpack.c.h.b16 %v8458
      %v8914 = vunpack.c.l.b16 %v8459
      %v8915 = vunpack.c.h.b16 %v8459
      %v8916 = vunpack.c.l.b16 %v8460
      %v8917 = vunpack.c.h.b16 %v8460
      %v8918 = vunpack.c.l.b16 %v8461
      %v8919 = vunpack.c.h.b16 %v8461
      %v8920 = vunpack.c.l.b16 %v8462
      %v8921 = vunpack.c.h.b16 %v8462
      %v8922 = vunpack.c.l.b16 %v8463
      %v8923 = vunpack.c.h.b16 %v8463
      %v8924 = vunpack.c.l.b16 %v8464
      %v8925 = vunpack.c.h.b16 %v8464
      %v8926 = vunpack.c.l.b16 %v8465
      %v8927 = vunpack.c.h.b16 %v8465
      %v8928 = vunpack.c.l.b16 %v8466
      %v8929 = vunpack.c.h.b16 %v8466
      %v8930 = vunpack.c.l.b16 %v8467
      %v8931 = vunpack.c.h.b16 %v8467
      %v8932 = vunpack.c.l.b16 %v8468
      %v8933 = vunpack.c.h.b16 %v8468
      %v8934 = vunpack.c.l.b16 %v8469
      %v8935 = vunpack.c.h.b16 %v8469
      %v8936 = vunpack.c.l.b16 %v8470
      %v8937 = vunpack.c.h.b16 %v8470
      %v8938 = vunpack.c.l.b16 %v8471
      %v8939 = vunpack.c.h.b16 %v8471
      %v8940 = vunpack.c.l.b16 %v8472
      %v8941 = vunpack.c.h.b16 %v8472
      %v8942 = vunpack.c.l.b16 %v8473
      %v8943 = vunpack.c.h.b16 %v8473
      %v8944 = vunpack.c.l.b16 %v8474
      %v8945 = vunpack.c.h.b16 %v8474
      %v8946 = vunpack.c.l.b16 %v8475
      %v8947 = vunpack.c.h.b16 %v8475
      %v8948 = vunpack.c.l.b16 %v8476
      %v8949 = vunpack.c.h.b16 %v8476
      %v8950 = vunpack.c.l.b16 %v8477
      %v8951 = vunpack.c.h.b16 %v8477
      %v8952 = vunpack.c.l.b16 %v8478
      %v8953 = vunpack.c.h.b16 %v8478
      %v8954 = vunpack.c.l.b16 %v8479
      %v8955 = vunpack.c.h.b16 %v8479
      %v8956 = vunpack.c.l.b16 %v8480
      %v8957 = vunpack.c.h.b16 %v8480
      %v8958 = vunpack.c.l.b16 %v8481
      %v8959 = vunpack.c.h.b16 %v8481
      %v8960 = vunpack.c.l.b16 %v8482
      %v8961 = vunpack.c.h.b16 %v8482
      %v8962 = vunpack.c.l.b16 %v8483
      %v8963 = vunpack.c.h.b16 %v8483
      %v8964 = vunpack.c.l.b16 %v8484
      %v8965 = vunpack.c.h.b16 %v8484
      %v8966 = vunpack.c.l.b16 %v8485
      %v8967 = vunpack.c.h.b16 %v8485
      %v8968 = vunpack.c.l.b16 %v8486
      %v8969 = vunpack.c.h.b16 %v8486
      %v8970 = vunpack.c.l.b16 %v8487
      %v8971 = vunpack.c.h.b16 %v8487
      %v8972 = vunpack.c.l.b16 %v8488
      %v8973 = vunpack.c.h.b16 %v8488
      %v8974 = vunpack.c.l.b16 %v8489
      %v8975 = vunpack.c.h.b16 %v8489
      %v8976 = vpack.c.b16 %v8914, %v8912
      %v8977 = vpack.c.b16 %v8915, %v8913
      %v8978 = vpack.c.b16 %v8918, %v8916
      %v8979 = vpack.c.b16 %v8919, %v8917
      %v8980 = vpack.c.b16 %v8922, %v8920
      %v8981 = vpack.c.b16 %v8923, %v8921
      %v8982 = vpack.c.b16 %v8926, %v8924
      %v8983 = vpack.c.b16 %v8927, %v8925
      %v8984 = vpack.c.b16 %v8930, %v8928
      %v8985 = vpack.c.b16 %v8931, %v8929
      %v8986 = vpack.c.b16 %v8934, %v8932
      %v8987 = vpack.c.b16 %v8935, %v8933
      %v8988 = vpack.c.b16 %v8938, %v8936
      %v8989 = vpack.c.b16 %v8939, %v8937
      %v8990 = vpack.c.b16 %v8942, %v8940
      %v8991 = vpack.c.b16 %v8943, %v8941
      %v8992 = vpack.c.b16 %v8946, %v8944
      %v8993 = vpack.c.b16 %v8947, %v8945
      %v8994 = vpack.c.b16 %v8950, %v8948
      %v8995 = vpack.c.b16 %v8951, %v8949
      %v8996 = vpack.c.b16 %v8954, %v8952
      %v8997 = vpack.c.b16 %v8955, %v8953
      %v8998 = vpack.c.b16 %v8958, %v8956
      %v8999 = vpack.c.b16 %v8959, %v8957
      %v9000 = vpack.c.b16 %v8962, %v8960
      %v9001 = vpack.c.b16 %v8963, %v8961
      %v9002 = vpack.c.b16 %v8966, %v8964
      %v9003 = vpack.c.b16 %v8967, %v8965
      %v9004 = vpack.c.b16 %v8970, %v8968
      %v9005 = vpack.c.b16 %v8971, %v8969
      %v9006 = vpack.c.b16 %v8974, %v8972
      %v9007 = vpack.c.b16 %v8975, %v8973
      %9040 = vmatpush.bf16.msra.mxu0 %v8990
      %9041 = vmatpush.bf16.msra.mxu0 %v8988
      %9042 = vmatpush.bf16.msra.mxu0 %v8986
      %9043 = vmatpush.bf16.msra.mxu0 %v8984
      %9044 = vmatpush.bf16.msra.mxu0 %v8982
      %9045 = vmatpush.bf16.msra.mxu0 %v8980
      %9046 = vmatpush.bf16.msra.mxu0 %v8978
      %9047 = vmatpush.bf16.msra.mxu0 %v8976
      %9048 = vmatmul.bf16.gmra.mxu0 %v8821
      %v9049 = vpop.f32.mrf.mxu0
      %v9050 = vadd.f32 %v8722, %v9049
      %v9051 = vpop.f32.mrf.mxu0
      %v9052 = vadd.f32 %v8724, %v9051
      %9053 = vmatmul.bf16.gmra.mxu0 %v8841
      %v9054 = vpop.f32.mrf.mxu0
      %v9055 = vadd.f32 %v8727, %v9054
      %v9056 = vpop.f32.mrf.mxu0
      %v9057 = vadd.f32 %v8729, %v9056
      %9058 = vmatmul.bf16.gmra.mxu0 %v8857
      %v9059 = vpop.f32.mrf.mxu0
      %v9060 = vadd.f32 %v8732, %v9059
      %v9061 = vpop.f32.mrf.mxu0
      %v9062 = vadd.f32 %v8734, %v9061
      %9063 = vmatmul.bf16.gmra.mxu0 %v8868
      %v9064 = vpop.f32.mrf.mxu0
      %v9065 = vadd.f32 %v8737, %v9064
      %v9066 = vpop.f32.mrf.mxu0
      %v9067 = vadd.f32 %v8739, %v9066
      %9068 = vdwg.mxu0
      %9069 = vmatpush.bf16.msra.mxu0 %v9006
      %9070 = vmatpush.bf16.msra.mxu0 %v9004
      %9071 = vmatpush.bf16.msra.mxu0 %v9002
      %9072 = vmatpush.bf16.msra.mxu0 %v9000
      %9073 = vmatpush.bf16.msra.mxu0 %v8998
      %9074 = vmatpush.bf16.msra.mxu0 %v8996
      %9075 = vmatpush.bf16.msra.mxu0 %v8994
      %9076 = vmatpush.bf16.msra.mxu0 %v8992
      %9077 = vmatmul.bf16.gmra.mxu0 %v8833
      %v9078 = vpop.f32.mrf.mxu0
      %v9079 = vadd.f32 %v9050, %v9078
      %v9080 = vpop.f32.mrf.mxu0
      %v9081 = vadd.f32 %v9052, %v9080
      %9082 = vmatmul.bf16.gmra.mxu0 %v8849
      %v9083 = vpop.f32.mrf.mxu0
      %v9084 = vadd.f32 %v9055, %v9083
      %v9085 = vpop.f32.mrf.mxu0
      %v9086 = vadd.f32 %v9057, %v9085
      %9087 = vmatmul.bf16.gmra.mxu0 %v8865
      %v9088 = vpop.f32.mrf.mxu0
      %v9089 = vadd.f32 %v9060, %v9088
      %v9090 = vpop.f32.mrf.mxu0
      %v9091 = vadd.f32 %v9062, %v9090
      %9092 = vmatmul.bf16.gmra.mxu0 %v8871
      %v9093 = vpop.f32.mrf.mxu0
      %v9094 = vadd.f32 %v9065, %v9093
      %v9095 = vpop.f32.mrf.mxu0
      %v9096 = vadd.f32 %v9067, %v9095
      %9097 = vdwg.mxu0
      %9098 = vmatpush.bf16.msra.mxu0 %v8991
      %9099 = vmatpush.bf16.msra.mxu0 %v8989
      %9100 = vmatpush.bf16.msra.mxu0 %v8987
      %9101 = vmatpush.bf16.msra.mxu0 %v8985
      %9102 = vmatpush.bf16.msra.mxu0 %v8983
      %9103 = vmatpush.bf16.msra.mxu0 %v8981
      %9104 = vmatpush.bf16.msra.mxu0 %v8979
      %9105 = vmatpush.bf16.msra.mxu0 %v8977
      %9106 = vmatmul.bf16.gmra.mxu0 %v8821
      %v9107 = vpop.f32.mrf.mxu0
      %v9108 = vadd.f32 %v8780, %v9107
      %v9109 = vpop.f32.mrf.mxu0
      %v9110 = vadd.f32 %v8782, %v9109
      %9111 = vmatmul.bf16.gmra.mxu0 %v8841
      %v9112 = vpop.f32.mrf.mxu0
      %v9113 = vadd.f32 %v8785, %v9112
      %v9114 = vpop.f32.mrf.mxu0
      %v9115 = vadd.f32 %v8787, %v9114
      %9116 = vmatmul.bf16.gmra.mxu0 %v8857
      %v9117 = vpop.f32.mrf.mxu0
      %v9118 = vadd.f32 %v8790, %v9117
      %v9119 = vpop.f32.mrf.mxu0
      %v9120 = vadd.f32 %v8792, %v9119
      %9121 = vmatmul.bf16.gmra.mxu0 %v8868
      %v9122 = vpop.f32.mrf.mxu0
      %v9123 = vadd.f32 %v8795, %v9122
      %v9124 = vpop.f32.mrf.mxu0
      %v9125 = vadd.f32 %v8797, %v9124
      %9126 = vdwg.mxu0
      %9127 = vmatpush.bf16.msra.mxu0 %v9007
      %9128 = vmatpush.bf16.msra.mxu0 %v9005
      %9129 = vmatpush.bf16.msra.mxu0 %v9003
      %9130 = vmatpush.bf16.msra.mxu0 %v9001
      %9131 = vmatpush.bf16.msra.mxu0 %v8999
      %9132 = vmatpush.bf16.msra.mxu0 %v8997
      %9133 = vmatpush.bf16.msra.mxu0 %v8995
      %9134 = vmatpush.bf16.msra.mxu0 %v8993
      %9135 = vmatmul.bf16.gmra.mxu0 %v8833
      %v9136 = vpop.f32.mrf.mxu0
      %v9137 = vadd.f32 %v9108, %v9136
      %v9138 = vpop.f32.mrf.mxu0
      %v9139 = vadd.f32 %v9110, %v9138
      %9140 = vmatmul.bf16.gmra.mxu0 %v8849
      %v9141 = vpop.f32.mrf.mxu0
      %v9142 = vadd.f32 %v9113, %v9141
      %v9143 = vpop.f32.mrf.mxu0
      %v9144 = vadd.f32 %v9115, %v9143
      %9145 = vmatmul.bf16.gmra.mxu0 %v8865
      %v9146 = vpop.f32.mrf.mxu0
      %v9147 = vadd.f32 %v9118, %v9146
      %v9148 = vpop.f32.mrf.mxu0
      %v9149 = vadd.f32 %v9120, %v9148
      %9150 = vmatmul.bf16.gmra.mxu0 %v8871
      %v9151 = vpop.f32.mrf.mxu0
      %v9152 = vadd.f32 %v9123, %v9151
      %v9153 = vpop.f32.mrf.mxu0
      %v9154 = vadd.f32 %v9125, %v9153
      %9155 = vdwg.mxu0
      %v9156 = vadd.f32 %v9079, %v7401
      %v9157 = vadd.f32 %v9137, %v7402
      %v9158 = vadd.f32 %v9081, %v7401
      %v9159 = vadd.f32 %v9139, %v7402
      %v9160 = vadd.f32 %v9084, %v7401
      %v9161 = vadd.f32 %v9142, %v7402
      %v9162 = vadd.f32 %v9086, %v7401
      %v9163 = vadd.f32 %v9144, %v7402
      %v9164 = vadd.f32 %v9089, %v7401
      %v9165 = vadd.f32 %v9147, %v7402
      %v9166 = vadd.f32 %v9091, %v7401
      %v9167 = vadd.f32 %v9149, %v7402
      %v9168 = vadd.f32 %v9094, %v7401
      %v9169 = vadd.f32 %v9152, %v7402
      %v9170 = vadd.f32 %v9096, %v7401
      %v9171 = vadd.f32 %v9154, %v7402
      %v9172 = vmax.f32 %v9156, 0.0
      %v9173 = vmax.f32 %v9157, 0.0
      %v9174 = vmax.f32 %v9158, 0.0
      %v9175 = vmax.f32 %v9159, 0.0
      %v9176 = vmax.f32 %v9160, 0.0
      %v9177 = vmax.f32 %v9161, 0.0
      %v9178 = vmax.f32 %v9162, 0.0
      %v9179 = vmax.f32 %v9163, 0.0
      %v9180 = vmax.f32 %v9164, 0.0
      %v9181 = vmax.f32 %v9165, 0.0
      %v9182 = vmax.f32 %v9166, 0.0
      %v9183 = vmax.f32 %v9167, 0.0
      %v9184 = vmax.f32 %v9168, 0.0
      %v9185 = vmax.f32 %v9169, 0.0
      %v9186 = vmax.f32 %v9170, 0.0
      %v9187 = vmax.f32 %v9171, 0.0
      %v9188 = vld [vmem:[%s4] sm:$0xff]
      %v9189 = vld [vmem:[%s4 + $0x8] sm:$0xff]
      %v9190 = vld [vmem:[%s4 + $0x10] sm:$0xff]
      %v9191 = vld [vmem:[%s4 + $0x18] sm:$0xff]
      %v9192 = vld [vmem:[%s4 + $0x20] sm:$0xff]
      %v9193 = vld [vmem:[%s4 + $0x28] sm:$0xff]
      %v9194 = vld [vmem:[%s4 + $0x30] sm:$0xff]
      %v9195 = vld [vmem:[%s4 + $0x38] sm:$0xff]
      %v9196 = vld [vmem:[%s4 + $0x40] sm:$0xff]
      %v9197 = vld [vmem:[%s4 + $0x48] sm:$0xff]
      %v9198 = vld [vmem:[%s4 + $0x50] sm:$0xff]
      %v9199 = vld [vmem:[%s4 + $0x58] sm:$0xff]
      %v9200 = vld [vmem:[%s4 + $0x60] sm:$0xff]
      %v9201 = vld [vmem:[%s4 + $0x68] sm:$0xff]
      %v9202 = vld [vmem:[%s4 + $0x70] sm:$0xff]
      %v9203 = vld [vmem:[%s4 + $0x78] sm:$0xff]
      %v9204 = vld [vmem:[%s4 + $0x80] sm:$0xff]
      %v9205 = vld [vmem:[%s4 + $0x88] sm:$0xff]
      %v9206 = vld [vmem:[%s4 + $0x90] sm:$0xff]
      %v9207 = vld [vmem:[%s4 + $0x98] sm:$0xff]
      %v9208 = vld [vmem:[%s4 + $0xa0] sm:$0xff]
      %v9209 = vld [vmem:[%s4 + $0xa8] sm:$0xff]
      %v9210 = vld [vmem:[%s4 + $0xb0] sm:$0xff]
      %v9211 = vld [vmem:[%s4 + $0xb8] sm:$0xff]
      %v9212 = vld [vmem:[%s4 + $0xc0] sm:$0xff]
      %v9213 = vld [vmem:[%s4 + $0xc8] sm:$0xff]
      %v9214 = vld [vmem:[%s4 + $0xd0] sm:$0xff]
      %v9215 = vld [vmem:[%s4 + $0xd8] sm:$0xff]
      %v9216 = vld [vmem:[%s4 + $0xe0] sm:$0xff]
      %v9217 = vld [vmem:[%s4 + $0xe8] sm:$0xff]
      %v9218 = vld [vmem:[%s4 + $0xf0] sm:$0xff]
      %v9219 = vld [vmem:[%s4 + $0xf8] sm:$0xff]
      %s9220 = scalar_lea.vmem %s4, 512
      %v9221 = vld [vmem:[%s9220] sm:$0xff]
      %v9222 = vld [vmem:[%s9220 + $0x8] sm:$0xff]
      %v9223 = vld [vmem:[%s9220 + $0x10] sm:$0xff]
      %v9224 = vld [vmem:[%s9220 + $0x18] sm:$0xff]
      %v9225 = vld [vmem:[%s9220 + $0x20] sm:$0xff]
      %v9226 = vld [vmem:[%s9220 + $0x28] sm:$0xff]
      %v9227 = vld [vmem:[%s9220 + $0x30] sm:$0xff]
      %v9228 = vld [vmem:[%s9220 + $0x38] sm:$0xff]
      %v9229 = vld [vmem:[%s9220 + $0x40] sm:$0xff]
      %v9230 = vld [vmem:[%s9220 + $0x48] sm:$0xff]
      %v9231 = vld [vmem:[%s9220 + $0x50] sm:$0xff]
      %v9232 = vld [vmem:[%s9220 + $0x58] sm:$0xff]
      %v9233 = vld [vmem:[%s9220 + $0x60] sm:$0xff]
      %v9234 = vld [vmem:[%s9220 + $0x68] sm:$0xff]
      %v9235 = vld [vmem:[%s9220 + $0x70] sm:$0xff]
      %v9236 = vld [vmem:[%s9220 + $0x78] sm:$0xff]
      %v9237 = vld [vmem:[%s9220 + $0x80] sm:$0xff]
      %v9238 = vld [vmem:[%s9220 + $0x88] sm:$0xff]
      %v9239 = vld [vmem:[%s9220 + $0x90] sm:$0xff]
      %v9240 = vld [vmem:[%s9220 + $0x98] sm:$0xff]
      %v9241 = vld [vmem:[%s9220 + $0xa0] sm:$0xff]
      %v9242 = vld [vmem:[%s9220 + $0xa8] sm:$0xff]
      %v9243 = vld [vmem:[%s9220 + $0xb0] sm:$0xff]
      %v9244 = vld [vmem:[%s9220 + $0xb8] sm:$0xff]
      %v9245 = vld [vmem:[%s9220 + $0xc0] sm:$0xff]
      %v9246 = vld [vmem:[%s9220 + $0xc8] sm:$0xff]
      %v9247 = vld [vmem:[%s9220 + $0xd0] sm:$0xff]
      %v9248 = vld [vmem:[%s9220 + $0xd8] sm:$0xff]
      %v9249 = vld [vmem:[%s9220 + $0xe0] sm:$0xff]
      %v9250 = vld [vmem:[%s9220 + $0xe8] sm:$0xff]
      %v9251 = vld [vmem:[%s9220 + $0xf0] sm:$0xff]
      %v9252 = vld [vmem:[%s9220 + $0xf8] sm:$0xff]
      %v9285 = vunpack.c.l.b16 %v9221
      %v9286 = vunpack.c.h.b16 %v9221
      %v9287 = vunpack.c.l.b16 %v9222
      %v9288 = vunpack.c.h.b16 %v9222
      %v9289 = vunpack.c.l.b16 %v9223
      %v9290 = vunpack.c.h.b16 %v9223
      %v9291 = vunpack.c.l.b16 %v9224
      %v9292 = vunpack.c.h.b16 %v9224
      %v9293 = vunpack.c.l.b16 %v9225
      %v9294 = vunpack.c.h.b16 %v9225
      %v9295 = vunpack.c.l.b16 %v9226
      %v9296 = vunpack.c.h.b16 %v9226
      %v9297 = vunpack.c.l.b16 %v9227
      %v9298 = vunpack.c.h.b16 %v9227
      %v9299 = vunpack.c.l.b16 %v9228
      %v9300 = vunpack.c.h.b16 %v9228
      %v9301 = vunpack.c.l.b16 %v9229
      %v9302 = vunpack.c.h.b16 %v9229
      %v9303 = vunpack.c.l.b16 %v9230
      %v9304 = vunpack.c.h.b16 %v9230
      %v9305 = vunpack.c.l.b16 %v9231
      %v9306 = vunpack.c.h.b16 %v9231
      %v9307 = vunpack.c.l.b16 %v9232
      %v9308 = vunpack.c.h.b16 %v9232
      %v9309 = vunpack.c.l.b16 %v9233
      %v9310 = vunpack.c.h.b16 %v9233
      %v9311 = vunpack.c.l.b16 %v9234
      %v9312 = vunpack.c.h.b16 %v9234
      %v9313 = vunpack.c.l.b16 %v9235
      %v9314 = vunpack.c.h.b16 %v9235
      %v9315 = vunpack.c.l.b16 %v9236
      %v9316 = vunpack.c.h.b16 %v9236
      %v9317 = vunpack.c.l.b16 %v9237
      %v9318 = vunpack.c.h.b16 %v9237
      %v9319 = vunpack.c.l.b16 %v9238
      %v9320 = vunpack.c.h.b16 %v9238
      %v9321 = vunpack.c.l.b16 %v9239
      %v9322 = vunpack.c.h.b16 %v9239
      %v9323 = vunpack.c.l.b16 %v9240
      %v9324 = vunpack.c.h.b16 %v9240
      %v9325 = vunpack.c.l.b16 %v9241
      %v9326 = vunpack.c.h.b16 %v9241
      %v9327 = vunpack.c.l.b16 %v9242
      %v9328 = vunpack.c.h.b16 %v9242
      %v9329 = vunpack.c.l.b16 %v9243
      %v9330 = vunpack.c.h.b16 %v9243
      %v9331 = vunpack.c.l.b16 %v9244
      %v9332 = vunpack.c.h.b16 %v9244
      %v9333 = vunpack.c.l.b16 %v9245
      %v9334 = vunpack.c.h.b16 %v9245
      %v9335 = vunpack.c.l.b16 %v9246
      %v9336 = vunpack.c.h.b16 %v9246
      %v9337 = vunpack.c.l.b16 %v9247
      %v9338 = vunpack.c.h.b16 %v9247
      %v9339 = vunpack.c.l.b16 %v9248
      %v9340 = vunpack.c.h.b16 %v9248
      %v9341 = vunpack.c.l.b16 %v9249
      %v9342 = vunpack.c.h.b16 %v9249
      %v9343 = vunpack.c.l.b16 %v9250
      %v9344 = vunpack.c.h.b16 %v9250
      %v9345 = vunpack.c.l.b16 %v9251
      %v9346 = vunpack.c.h.b16 %v9251
      %v9347 = vunpack.c.l.b16 %v9252
      %v9348 = vunpack.c.h.b16 %v9252
      %v9349 = vpack.c.b16 %v9287, %v9285
      %v9350 = vpack.c.b16 %v9288, %v9286
      %v9351 = vpack.c.b16 %v9291, %v9289
      %v9352 = vpack.c.b16 %v9292, %v9290
      %v9353 = vpack.c.b16 %v9295, %v9293
      %v9354 = vpack.c.b16 %v9296, %v9294
      %v9355 = vpack.c.b16 %v9299, %v9297
      %v9356 = vpack.c.b16 %v9300, %v9298
      %v9357 = vpack.c.b16 %v9303, %v9301
      %v9358 = vpack.c.b16 %v9304, %v9302
      %v9359 = vpack.c.b16 %v9307, %v9305
      %v9360 = vpack.c.b16 %v9308, %v9306
      %v9361 = vpack.c.b16 %v9311, %v9309
      %v9362 = vpack.c.b16 %v9312, %v9310
      %v9363 = vpack.c.b16 %v9315, %v9313
      %v9364 = vpack.c.b16 %v9316, %v9314
      %v9365 = vpack.c.b16 %v9319, %v9317
      %v9366 = vpack.c.b16 %v9320, %v9318
      %v9367 = vpack.c.b16 %v9323, %v9321
      %v9368 = vpack.c.b16 %v9324, %v9322
      %v9369 = vpack.c.b16 %v9327, %v9325
      %v9370 = vpack.c.b16 %v9328, %v9326
      %v9371 = vpack.c.b16 %v9331, %v9329
      %v9372 = vpack.c.b16 %v9332, %v9330
      %v9373 = vpack.c.b16 %v9335, %v9333
      %v9374 = vpack.c.b16 %v9336, %v9334
      %v9375 = vpack.c.b16 %v9339, %v9337
      %v9376 = vpack.c.b16 %v9340, %v9338
      %v9377 = vpack.c.b16 %v9343, %v9341
      %v9378 = vpack.c.b16 %v9344, %v9342
      %v9379 = vpack.c.b16 %v9347, %v9345
      %v9380 = vpack.c.b16 %v9348, %v9346
      %9413 = vmatpush.bf16.msra.mxu0 %v9363
      %9414 = vmatpush.bf16.msra.mxu0 %v9361
      %9415 = vmatpush.bf16.msra.mxu0 %v9359
      %9416 = vmatpush.bf16.msra.mxu0 %v9357
      %9417 = vmatpush.bf16.msra.mxu0 %v9355
      %9418 = vmatpush.bf16.msra.mxu0 %v9353
      %9419 = vmatpush.bf16.msra.mxu0 %v9351
      %9420 = vmatpush.bf16.msra.mxu0 %v9349
      %9421 = vmatmul.bf16.gmra.mxu0 %v8821
      %v9422 = vpop.f32.mrf.mxu0
      %v9423 = vadd.f32 0.0, %v9422
      %v9424 = vpop.f32.mrf.mxu0
      %v9425 = vadd.f32 0.0, %v9424
      %9426 = vmatmul.bf16.gmra.mxu0 %v8841
      %v9427 = vpop.f32.mrf.mxu0
      %v9428 = vadd.f32 0.0, %v9427
      %v9429 = vpop.f32.mrf.mxu0
      %v9430 = vadd.f32 0.0, %v9429
      %9431 = vmatmul.bf16.gmra.mxu0 %v8857
      %v9432 = vpop.f32.mrf.mxu0
      %v9433 = vadd.f32 0.0, %v9432
      %v9434 = vpop.f32.mrf.mxu0
      %v9435 = vadd.f32 0.0, %v9434
      %9436 = vmatmul.bf16.gmra.mxu0 %v8868
      %v9437 = vpop.f32.mrf.mxu0
      %v9438 = vadd.f32 0.0, %v9437
      %v9439 = vpop.f32.mrf.mxu0
      %v9440 = vadd.f32 0.0, %v9439
      %9441 = vdwg.mxu0
      %9442 = vmatpush.bf16.msra.mxu0 %v9379
      %9443 = vmatpush.bf16.msra.mxu0 %v9377
      %9444 = vmatpush.bf16.msra.mxu0 %v9375
      %9445 = vmatpush.bf16.msra.mxu0 %v9373
      %9446 = vmatpush.bf16.msra.mxu0 %v9371
      %9447 = vmatpush.bf16.msra.mxu0 %v9369
      %9448 = vmatpush.bf16.msra.mxu0 %v9367
      %9449 = vmatpush.bf16.msra.mxu0 %v9365
      %9450 = vmatmul.bf16.gmra.mxu0 %v8833
      %v9451 = vpop.f32.mrf.mxu0
      %v9452 = vadd.f32 %v9423, %v9451
      %v9453 = vpop.f32.mrf.mxu0
      %v9454 = vadd.f32 %v9425, %v9453
      %9455 = vmatmul.bf16.gmra.mxu0 %v8849
      %v9456 = vpop.f32.mrf.mxu0
      %v9457 = vadd.f32 %v9428, %v9456
      %v9458 = vpop.f32.mrf.mxu0
      %v9459 = vadd.f32 %v9430, %v9458
      %9460 = vmatmul.bf16.gmra.mxu0 %v8865
      %v9461 = vpop.f32.mrf.mxu0
      %v9462 = vadd.f32 %v9433, %v9461
      %v9463 = vpop.f32.mrf.mxu0
      %v9464 = vadd.f32 %v9435, %v9463
      %9465 = vmatmul.bf16.gmra.mxu0 %v8871
      %v9466 = vpop.f32.mrf.mxu0
      %v9467 = vadd.f32 %v9438, %v9466
      %v9468 = vpop.f32.mrf.mxu0
      %v9469 = vadd.f32 %v9440, %v9468
      %9470 = vdwg.mxu0
      %9471 = vmatpush.bf16.msra.mxu0 %v9364
      %9472 = vmatpush.bf16.msra.mxu0 %v9362
      %9473 = vmatpush.bf16.msra.mxu0 %v9360
      %9474 = vmatpush.bf16.msra.mxu0 %v9358
      %9475 = vmatpush.bf16.msra.mxu0 %v9356
      %9476 = vmatpush.bf16.msra.mxu0 %v9354
      %9477 = vmatpush.bf16.msra.mxu0 %v9352
      %9478 = vmatpush.bf16.msra.mxu0 %v9350
      %9479 = vmatmul.bf16.gmra.mxu0 %v8821
      %v9480 = vpop.f32.mrf.mxu0
      %v9481 = vadd.f32 0.0, %v9480
      %v9482 = vpop.f32.mrf.mxu0
      %v9483 = vadd.f32 0.0, %v9482
      %9484 = vmatmul.bf16.gmra.mxu0 %v8841
      %v9485 = vpop.f32.mrf.mxu0
      %v9486 = vadd.f32 0.0, %v9485
      %v9487 = vpop.f32.mrf.mxu0
      %v9488 = vadd.f32 0.0, %v9487
      %9489 = vmatmul.bf16.gmra.mxu0 %v8857
      %v9490 = vpop.f32.mrf.mxu0
      %v9491 = vadd.f32 0.0, %v9490
      %v9492 = vpop.f32.mrf.mxu0
      %v9493 = vadd.f32 0.0, %v9492
      %9494 = vmatmul.bf16.gmra.mxu0 %v8868
      %v9495 = vpop.f32.mrf.mxu0
      %v9496 = vadd.f32 0.0, %v9495
      %v9497 = vpop.f32.mrf.mxu0
      %v9498 = vadd.f32 0.0, %v9497
      %9499 = vdwg.mxu0
      %9500 = vmatpush.bf16.msra.mxu0 %v9380
      %9501 = vmatpush.bf16.msra.mxu0 %v9378
      %9502 = vmatpush.bf16.msra.mxu0 %v9376
      %9503 = vmatpush.bf16.msra.mxu0 %v9374
      %9504 = vmatpush.bf16.msra.mxu0 %v9372
      %9505 = vmatpush.bf16.msra.mxu0 %v9370
      %9506 = vmatpush.bf16.msra.mxu0 %v9368
      %9507 = vmatpush.bf16.msra.mxu0 %v9366
      %9508 = vmatmul.bf16.gmra.mxu0 %v8833
      %v9509 = vpop.f32.mrf.mxu0
      %v9510 = vadd.f32 %v9481, %v9509
      %v9511 = vpop.f32.mrf.mxu0
      %v9512 = vadd.f32 %v9483, %v9511
      %9513 = vmatmul.bf16.gmra.mxu0 %v8849
      %v9514 = vpop.f32.mrf.mxu0
      %v9515 = vadd.f32 %v9486, %v9514
      %v9516 = vpop.f32.mrf.mxu0
      %v9517 = vadd.f32 %v9488, %v9516
      %9518 = vmatmul.bf16.gmra.mxu0 %v8865
      %v9519 = vpop.f32.mrf.mxu0
      %v9520 = vadd.f32 %v9491, %v9519
      %v9521 = vpop.f32.mrf.mxu0
      %v9522 = vadd.f32 %v9493, %v9521
      %9523 = vmatmul.bf16.gmra.mxu0 %v8871
      %v9524 = vpop.f32.mrf.mxu0
      %v9525 = vadd.f32 %v9496, %v9524
      %v9526 = vpop.f32.mrf.mxu0
      %v9527 = vadd.f32 %v9498, %v9526
      %9528 = vdwg.mxu0
      %v9531 = vunpack.c.l.b16 %v7364
      %v9532 = vunpack.c.h.b16 %v7364
      %v9533 = vunpack.c.l.b16 %v7365
      %v9534 = vunpack.c.h.b16 %v7365
      %v9535 = vpack.c.b16 %v7417, %v9531
      %v9536 = vpack.c.b16 %v7418, %v9532
      %v9537 = vpack.c.b16 %v9533, %v9533
      %v9538 = vpack.c.b16 %v9534, %v9534
      %v9539 = vrot.slane %v9535, 1
      %v9540 = vrot.slane %v8804, 1
      %v9541 = vsel %vm1906, %v9539, %v9540
      %v9542 = vrot.slane %v9536, 1
      %v9543 = vrot.slane %v8805, 1
      %v9544 = vsel %vm1906, %v9542, %v9543
      %v9545 = vrot.slane %v8806, 1
      %v9546 = vsel %vm1906, %v9540, %v9545
      %v9547 = vrot.slane %v8807, 1
      %v9548 = vsel %vm1906, %v9543, %v9547
      %v9549 = vrot.slane %v8808, 1
      %v9550 = vsel %vm1906, %v9545, %v9549
      %v9551 = vrot.slane %v8809, 1
      %v9552 = vsel %vm1906, %v9547, %v9551
      %v9553 = vrot.slane %v9537, 1
      %v9554 = vsel %vm1906, %v9549, %v9553
      %v9555 = vrot.slane %v9538, 1
      %v9556 = vsel %vm1906, %v9551, %v9555
      %v9597 = vunpack.c.l.b16 %v9188
      %v9598 = vunpack.c.h.b16 %v9188
      %v9599 = vunpack.c.l.b16 %v9189
      %v9600 = vunpack.c.h.b16 %v9189
      %v9601 = vunpack.c.l.b16 %v9190
      %v9602 = vunpack.c.h.b16 %v9190
      %v9603 = vunpack.c.l.b16 %v9191
      %v9604 = vunpack.c.h.b16 %v9191
      %v9605 = vunpack.c.l.b16 %v9192
      %v9606 = vunpack.c.h.b16 %v9192
      %v9607 = vunpack.c.l.b16 %v9193
      %v9608 = vunpack.c.h.b16 %v9193
      %v9609 = vunpack.c.l.b16 %v9194
      %v9610 = vunpack.c.h.b16 %v9194
      %v9611 = vunpack.c.l.b16 %v9195
      %v9612 = vunpack.c.h.b16 %v9195
      %v9613 = vunpack.c.l.b16 %v9196
      %v9614 = vunpack.c.h.b16 %v9196
      %v9615 = vunpack.c.l.b16 %v9197
      %v9616 = vunpack.c.h.b16 %v9197
      %v9617 = vunpack.c.l.b16 %v9198
      %v9618 = vunpack.c.h.b16 %v9198
      %v9619 = vunpack.c.l.b16 %v9199
      %v9620 = vunpack.c.h.b16 %v9199
      %v9621 = vunpack.c.l.b16 %v9200
      %v9622 = vunpack.c.h.b16 %v9200
      %v9623 = vunpack.c.l.b16 %v9201
      %v9624 = vunpack.c.h.b16 %v9201
      %v9625 = vunpack.c.l.b16 %v9202
      %v9626 = vunpack.c.h.b16 %v9202
      %v9627 = vunpack.c.l.b16 %v9203
      %v9628 = vunpack.c.h.b16 %v9203
      %v9629 = vunpack.c.l.b16 %v9204
      %v9630 = vunpack.c.h.b16 %v9204
      %v9631 = vunpack.c.l.b16 %v9205
      %v9632 = vunpack.c.h.b16 %v9205
      %v9633 = vunpack.c.l.b16 %v9206
      %v9634 = vunpack.c.h.b16 %v9206
      %v9635 = vunpack.c.l.b16 %v9207
      %v9636 = vunpack.c.h.b16 %v9207
      %v9637 = vunpack.c.l.b16 %v9208
      %v9638 = vunpack.c.h.b16 %v9208
      %v9639 = vunpack.c.l.b16 %v9209
      %v9640 = vunpack.c.h.b16 %v9209
      %v9641 = vunpack.c.l.b16 %v9210
      %v9642 = vunpack.c.h.b16 %v9210
      %v9643 = vunpack.c.l.b16 %v9211
      %v9644 = vunpack.c.h.b16 %v9211
      %v9645 = vunpack.c.l.b16 %v9212
      %v9646 = vunpack.c.h.b16 %v9212
      %v9647 = vunpack.c.l.b16 %v9213
      %v9648 = vunpack.c.h.b16 %v9213
      %v9649 = vunpack.c.l.b16 %v9214
      %v9650 = vunpack.c.h.b16 %v9214
      %v9651 = vunpack.c.l.b16 %v9215
      %v9652 = vunpack.c.h.b16 %v9215
      %v9653 = vunpack.c.l.b16 %v9216
      %v9654 = vunpack.c.h.b16 %v9216
      %v9655 = vunpack.c.l.b16 %v9217
      %v9656 = vunpack.c.h.b16 %v9217
      %v9657 = vunpack.c.l.b16 %v9218
      %v9658 = vunpack.c.h.b16 %v9218
      %v9659 = vunpack.c.l.b16 %v9219
      %v9660 = vunpack.c.h.b16 %v9219
      %v9661 = vpack.c.b16 %v9599, %v9597
      %v9662 = vpack.c.b16 %v9600, %v9598
      %v9663 = vpack.c.b16 %v9603, %v9601
      %v9664 = vpack.c.b16 %v9604, %v9602
      %v9665 = vpack.c.b16 %v9607, %v9605
      %v9666 = vpack.c.b16 %v9608, %v9606
      %v9667 = vpack.c.b16 %v9611, %v9609
      %v9668 = vpack.c.b16 %v9612, %v9610
      %v9669 = vpack.c.b16 %v9615, %v9613
      %v9670 = vpack.c.b16 %v9616, %v9614
      %v9671 = vpack.c.b16 %v9619, %v9617
      %v9672 = vpack.c.b16 %v9620, %v9618
      %v9673 = vpack.c.b16 %v9623, %v9621
      %v9674 = vpack.c.b16 %v9624, %v9622
      %v9675 = vpack.c.b16 %v9627, %v9625
      %v9676 = vpack.c.b16 %v9628, %v9626
      %v9677 = vpack.c.b16 %v9631, %v9629
      %v9678 = vpack.c.b16 %v9632, %v9630
      %v9679 = vpack.c.b16 %v9635, %v9633
      %v9680 = vpack.c.b16 %v9636, %v9634
      %v9681 = vpack.c.b16 %v9639, %v9637
      %v9682 = vpack.c.b16 %v9640, %v9638
      %v9683 = vpack.c.b16 %v9643, %v9641
      %v9684 = vpack.c.b16 %v9644, %v9642
      %v9685 = vpack.c.b16 %v9647, %v9645
      %v9686 = vpack.c.b16 %v9648, %v9646
      %v9687 = vpack.c.b16 %v9651, %v9649
      %v9688 = vpack.c.b16 %v9652, %v9650
      %v9689 = vpack.c.b16 %v9655, %v9653
      %v9690 = vpack.c.b16 %v9656, %v9654
      %v9691 = vpack.c.b16 %v9659, %v9657
      %v9692 = vpack.c.b16 %v9660, %v9658
      %9725 = vmatpush.bf16.msra.mxu0 %v9675
      %9726 = vmatpush.bf16.msra.mxu0 %v9673
      %9727 = vmatpush.bf16.msra.mxu0 %v9671
      %9728 = vmatpush.bf16.msra.mxu0 %v9669
      %9729 = vmatpush.bf16.msra.mxu0 %v9667
      %9730 = vmatpush.bf16.msra.mxu0 %v9665
      %9731 = vmatpush.bf16.msra.mxu0 %v9663
      %9732 = vmatpush.bf16.msra.mxu0 %v9661
      %9733 = vmatmul.bf16.gmra.mxu0 %v9541
      %v9734 = vpop.f32.mrf.mxu0
      %v9735 = vadd.f32 %v9452, %v9734
      %v9736 = vpop.f32.mrf.mxu0
      %v9737 = vadd.f32 %v9454, %v9736
      %9738 = vmatmul.bf16.gmra.mxu0 %v9546
      %v9739 = vpop.f32.mrf.mxu0
      %v9740 = vadd.f32 %v9457, %v9739
      %v9741 = vpop.f32.mrf.mxu0
      %v9742 = vadd.f32 %v9459, %v9741
      %9743 = vmatmul.bf16.gmra.mxu0 %v9550
      %v9744 = vpop.f32.mrf.mxu0
      %v9745 = vadd.f32 %v9462, %v9744
      %v9746 = vpop.f32.mrf.mxu0
      %v9747 = vadd.f32 %v9464, %v9746
      %9748 = vmatmul.bf16.gmra.mxu0 %v9554
      %v9749 = vpop.f32.mrf.mxu0
      %v9750 = vadd.f32 %v9467, %v9749
      %v9751 = vpop.f32.mrf.mxu0
      %v9752 = vadd.f32 %v9469, %v9751
      %9753 = vdwg.mxu0
      %9754 = vmatpush.bf16.msra.mxu0 %v9691
      %9755 = vmatpush.bf16.msra.mxu0 %v9689
      %9756 = vmatpush.bf16.msra.mxu0 %v9687
      %9757 = vmatpush.bf16.msra.mxu0 %v9685
      %9758 = vmatpush.bf16.msra.mxu0 %v9683
      %9759 = vmatpush.bf16.msra.mxu0 %v9681
      %9760 = vmatpush.bf16.msra.mxu0 %v9679
      %9761 = vmatpush.bf16.msra.mxu0 %v9677
      %9762 = vmatmul.bf16.gmra.mxu0 %v9544
      %v9763 = vpop.f32.mrf.mxu0
      %v9764 = vadd.f32 %v9735, %v9763
      %v9765 = vpop.f32.mrf.mxu0
      %v9766 = vadd.f32 %v9737, %v9765
      %9767 = vmatmul.bf16.gmra.mxu0 %v9548
      %v9768 = vpop.f32.mrf.mxu0
      %v9769 = vadd.f32 %v9740, %v9768
      %v9770 = vpop.f32.mrf.mxu0
      %v9771 = vadd.f32 %v9742, %v9770
      %9772 = vmatmul.bf16.gmra.mxu0 %v9552
      %v9773 = vpop.f32.mrf.mxu0
      %v9774 = vadd.f32 %v9745, %v9773
      %v9775 = vpop.f32.mrf.mxu0
      %v9776 = vadd.f32 %v9747, %v9775
      %9777 = vmatmul.bf16.gmra.mxu0 %v9556
      %v9778 = vpop.f32.mrf.mxu0
      %v9779 = vadd.f32 %v9750, %v9778
      %v9780 = vpop.f32.mrf.mxu0
      %v9781 = vadd.f32 %v9752, %v9780
      %9782 = vdwg.mxu0
      %9783 = vmatpush.bf16.msra.mxu0 %v9676
      %9784 = vmatpush.bf16.msra.mxu0 %v9674
      %9785 = vmatpush.bf16.msra.mxu0 %v9672
      %9786 = vmatpush.bf16.msra.mxu0 %v9670
      %9787 = vmatpush.bf16.msra.mxu0 %v9668
      %9788 = vmatpush.bf16.msra.mxu0 %v9666
      %9789 = vmatpush.bf16.msra.mxu0 %v9664
      %9790 = vmatpush.bf16.msra.mxu0 %v9662
      %9791 = vmatmul.bf16.gmra.mxu0 %v9541
      %v9792 = vpop.f32.mrf.mxu0
      %v9793 = vadd.f32 %v9510, %v9792
      %v9794 = vpop.f32.mrf.mxu0
      %v9795 = vadd.f32 %v9512, %v9794
      %9796 = vmatmul.bf16.gmra.mxu0 %v9546
      %v9797 = vpop.f32.mrf.mxu0
      %v9798 = vadd.f32 %v9515, %v9797
      %v9799 = vpop.f32.mrf.mxu0
      %v9800 = vadd.f32 %v9517, %v9799
      %9801 = vmatmul.bf16.gmra.mxu0 %v9550
      %v9802 = vpop.f32.mrf.mxu0
      %v9803 = vadd.f32 %v9520, %v9802
      %v9804 = vpop.f32.mrf.mxu0
      %v9805 = vadd.f32 %v9522, %v9804
      %9806 = vmatmul.bf16.gmra.mxu0 %v9554
      %v9807 = vpop.f32.mrf.mxu0
      %v9808 = vadd.f32 %v9525, %v9807
      %v9809 = vpop.f32.mrf.mxu0
      %v9810 = vadd.f32 %v9527, %v9809
      %9811 = vdwg.mxu0
      %9812 = vmatpush.bf16.msra.mxu0 %v9692
      %9813 = vmatpush.bf16.msra.mxu0 %v9690
      %9814 = vmatpush.bf16.msra.mxu0 %v9688
      %9815 = vmatpush.bf16.msra.mxu0 %v9686
      %9816 = vmatpush.bf16.msra.mxu0 %v9684
      %9817 = vmatpush.bf16.msra.mxu0 %v9682
      %9818 = vmatpush.bf16.msra.mxu0 %v9680
      %9819 = vmatpush.bf16.msra.mxu0 %v9678
      %9820 = vmatmul.bf16.gmra.mxu0 %v9544
      %v9821 = vpop.f32.mrf.mxu0
      %v9822 = vadd.f32 %v9793, %v9821
      %v9823 = vpop.f32.mrf.mxu0
      %v9824 = vadd.f32 %v9795, %v9823
      %9825 = vmatmul.bf16.gmra.mxu0 %v9548
      %v9826 = vpop.f32.mrf.mxu0
      %v9827 = vadd.f32 %v9798, %v9826
      %v9828 = vpop.f32.mrf.mxu0
      %v9829 = vadd.f32 %v9800, %v9828
      %9830 = vmatmul.bf16.gmra.mxu0 %v9552
      %v9831 = vpop.f32.mrf.mxu0
      %v9832 = vadd.f32 %v9803, %v9831
      %v9833 = vpop.f32.mrf.mxu0
      %v9834 = vadd.f32 %v9805, %v9833
      %9835 = vmatmul.bf16.gmra.mxu0 %v9556
      %v9836 = vpop.f32.mrf.mxu0
      %v9837 = vadd.f32 %v9808, %v9836
      %v9838 = vpop.f32.mrf.mxu0
      %v9839 = vadd.f32 %v9810, %v9838
      %9840 = vdwg.mxu0
      %s9841 = scalar_lea.vmem %s4, 1536
      %v9842 = vld [vmem:[%s9841] sm:$0xff]
      %v9843 = vld [vmem:[%s9841 + $0x8] sm:$0xff]
      %v9844 = vld [vmem:[%s9841 + $0x10] sm:$0xff]
      %v9845 = vld [vmem:[%s9841 + $0x18] sm:$0xff]
      %v9846 = vld [vmem:[%s9841 + $0x20] sm:$0xff]
      %v9847 = vld [vmem:[%s9841 + $0x28] sm:$0xff]
      %v9848 = vld [vmem:[%s9841 + $0x30] sm:$0xff]
      %v9849 = vld [vmem:[%s9841 + $0x38] sm:$0xff]
      %v9850 = vld [vmem:[%s9841 + $0x40] sm:$0xff]
      %v9851 = vld [vmem:[%s9841 + $0x48] sm:$0xff]
      %v9852 = vld [vmem:[%s9841 + $0x50] sm:$0xff]
      %v9853 = vld [vmem:[%s9841 + $0x58] sm:$0xff]
      %v9854 = vld [vmem:[%s9841 + $0x60] sm:$0xff]
      %v9855 = vld [vmem:[%s9841 + $0x68] sm:$0xff]
      %v9856 = vld [vmem:[%s9841 + $0x70] sm:$0xff]
      %v9857 = vld [vmem:[%s9841 + $0x78] sm:$0xff]
      %v9858 = vld [vmem:[%s9841 + $0x80] sm:$0xff]
      %v9859 = vld [vmem:[%s9841 + $0x88] sm:$0xff]
      %v9860 = vld [vmem:[%s9841 + $0x90] sm:$0xff]
      %v9861 = vld [vmem:[%s9841 + $0x98] sm:$0xff]
      %v9862 = vld [vmem:[%s9841 + $0xa0] sm:$0xff]
      %v9863 = vld [vmem:[%s9841 + $0xa8] sm:$0xff]
      %v9864 = vld [vmem:[%s9841 + $0xb0] sm:$0xff]
      %v9865 = vld [vmem:[%s9841 + $0xb8] sm:$0xff]
      %v9866 = vld [vmem:[%s9841 + $0xc0] sm:$0xff]
      %v9867 = vld [vmem:[%s9841 + $0xc8] sm:$0xff]
      %v9868 = vld [vmem:[%s9841 + $0xd0] sm:$0xff]
      %v9869 = vld [vmem:[%s9841 + $0xd8] sm:$0xff]
      %v9870 = vld [vmem:[%s9841 + $0xe0] sm:$0xff]
      %v9871 = vld [vmem:[%s9841 + $0xe8] sm:$0xff]
      %v9872 = vld [vmem:[%s9841 + $0xf0] sm:$0xff]
      %v9873 = vld [vmem:[%s9841 + $0xf8] sm:$0xff]
      %v9906 = vunpack.c.l.b16 %v9842
      %v9907 = vunpack.c.h.b16 %v9842
      %v9908 = vunpack.c.l.b16 %v9843
      %v9909 = vunpack.c.h.b16 %v9843
      %v9910 = vunpack.c.l.b16 %v9844
      %v9911 = vunpack.c.h.b16 %v9844
      %v9912 = vunpack.c.l.b16 %v9845
      %v9913 = vunpack.c.h.b16 %v9845
      %v9914 = vunpack.c.l.b16 %v9846
      %v9915 = vunpack.c.h.b16 %v9846
      %v9916 = vunpack.c.l.b16 %v9847
      %v9917 = vunpack.c.h.b16 %v9847
      %v9918 = vunpack.c.l.b16 %v9848
      %v9919 = vunpack.c.h.b16 %v9848
      %v9920 = vunpack.c.l.b16 %v9849
      %v9921 = vunpack.c.h.b16 %v9849
      %v9922 = vunpack.c.l.b16 %v9850
      %v9923 = vunpack.c.h.b16 %v9850
      %v9924 = vunpack.c.l.b16 %v9851
      %v9925 = vunpack.c.h.b16 %v9851
      %v9926 = vunpack.c.l.b16 %v9852
      %v9927 = vunpack.c.h.b16 %v9852
      %v9928 = vunpack.c.l.b16 %v9853
      %v9929 = vunpack.c.h.b16 %v9853
      %v9930 = vunpack.c.l.b16 %v9854
      %v9931 = vunpack.c.h.b16 %v9854
      %v9932 = vunpack.c.l.b16 %v9855
      %v9933 = vunpack.c.h.b16 %v9855
      %v9934 = vunpack.c.l.b16 %v9856
      %v9935 = vunpack.c.h.b16 %v9856
      %v9936 = vunpack.c.l.b16 %v9857
      %v9937 = vunpack.c.h.b16 %v9857
      %v9938 = vunpack.c.l.b16 %v9858
      %v9939 = vunpack.c.h.b16 %v9858
      %v9940 = vunpack.c.l.b16 %v9859
      %v9941 = vunpack.c.h.b16 %v9859
      %v9942 = vunpack.c.l.b16 %v9860
      %v9943 = vunpack.c.h.b16 %v9860
      %v9944 = vunpack.c.l.b16 %v9861
      %v9945 = vunpack.c.h.b16 %v9861
      %v9946 = vunpack.c.l.b16 %v9862
      %v9947 = vunpack.c.h.b16 %v9862
      %v9948 = vunpack.c.l.b16 %v9863
      %v9949 = vunpack.c.h.b16 %v9863
      %v9950 = vunpack.c.l.b16 %v9864
      %v9951 = vunpack.c.h.b16 %v9864
      %v9952 = vunpack.c.l.b16 %v9865
      %v9953 = vunpack.c.h.b16 %v9865
      %v9954 = vunpack.c.l.b16 %v9866
      %v9955 = vunpack.c.h.b16 %v9866
      %v9956 = vunpack.c.l.b16 %v9867
      %v9957 = vunpack.c.h.b16 %v9867
      %v9958 = vunpack.c.l.b16 %v9868
      %v9959 = vunpack.c.h.b16 %v9868
      %v9960 = vunpack.c.l.b16 %v9869
      %v9961 = vunpack.c.h.b16 %v9869
      %v9962 = vunpack.c.l.b16 %v9870
      %v9963 = vunpack.c.h.b16 %v9870
      %v9964 = vunpack.c.l.b16 %v9871
      %v9965 = vunpack.c.h.b16 %v9871
      %v9966 = vunpack.c.l.b16 %v9872
      %v9967 = vunpack.c.h.b16 %v9872
      %v9968 = vunpack.c.l.b16 %v9873
      %v9969 = vunpack.c.h.b16 %v9873
      %v9970 = vpack.c.b16 %v9908, %v9906
      %v9971 = vpack.c.b16 %v9909, %v9907
      %v9972 = vpack.c.b16 %v9912, %v9910
      %v9973 = vpack.c.b16 %v9913, %v9911
      %v9974 = vpack.c.b16 %v9916, %v9914
      %v9975 = vpack.c.b16 %v9917, %v9915
      %v9976 = vpack.c.b16 %v9920, %v9918
      %v9977 = vpack.c.b16 %v9921, %v9919
      %v9978 = vpack.c.b16 %v9924, %v9922
      %v9979 = vpack.c.b16 %v9925, %v9923
      %v9980 = vpack.c.b16 %v9928, %v9926
      %v9981 = vpack.c.b16 %v9929, %v9927
      %v9982 = vpack.c.b16 %v9932, %v9930
      %v9983 = vpack.c.b16 %v9933, %v9931
      %v9984 = vpack.c.b16 %v9936, %v9934
      %v9985 = vpack.c.b16 %v9937, %v9935
      %v9986 = vpack.c.b16 %v9940, %v9938
      %v9987 = vpack.c.b16 %v9941, %v9939
      %v9988 = vpack.c.b16 %v9944, %v9942
      %v9989 = vpack.c.b16 %v9945, %v9943
      %v9990 = vpack.c.b16 %v9948, %v9946
      %v9991 = vpack.c.b16 %v9949, %v9947
      %v9992 = vpack.c.b16 %v9952, %v9950
      %v9993 = vpack.c.b16 %v9953, %v9951
      %v9994 = vpack.c.b16 %v9956, %v9954
      %v9995 = vpack.c.b16 %v9957, %v9955
      %v9996 = vpack.c.b16 %v9960, %v9958
      %v9997 = vpack.c.b16 %v9961, %v9959
      %v9998 = vpack.c.b16 %v9964, %v9962
      %v9999 = vpack.c.b16 %v9965, %v9963
      %v10000 = vpack.c.b16 %v9968, %v9966
      %v10001 = vpack.c.b16 %v9969, %v9967
      %10034 = vmatpush.bf16.msra.mxu0 %v9984
      %10035 = vmatpush.bf16.msra.mxu0 %v9982
      %10036 = vmatpush.bf16.msra.mxu0 %v9980
      %10037 = vmatpush.bf16.msra.mxu0 %v9978
      %10038 = vmatpush.bf16.msra.mxu0 %v9976
      %10039 = vmatpush.bf16.msra.mxu0 %v9974
      %10040 = vmatpush.bf16.msra.mxu0 %v9972
      %10041 = vmatpush.bf16.msra.mxu0 %v9970
      %10042 = vmatmul.bf16.gmra.mxu0 %v8090
      %v10043 = vpop.f32.mrf.mxu0
      %v10044 = vadd.f32 0.0, %v10043
      %v10045 = vpop.f32.mrf.mxu0
      %v10046 = vadd.f32 0.0, %v10045
      %10047 = vmatmul.bf16.gmra.mxu0 %v8110
      %v10048 = vpop.f32.mrf.mxu0
      %v10049 = vadd.f32 0.0, %v10048
      %v10050 = vpop.f32.mrf.mxu0
      %v10051 = vadd.f32 0.0, %v10050
      %10052 = vmatmul.bf16.gmra.mxu0 %v8126
      %v10053 = vpop.f32.mrf.mxu0
      %v10054 = vadd.f32 0.0, %v10053
      %v10055 = vpop.f32.mrf.mxu0
      %v10056 = vadd.f32 0.0, %v10055
      %10057 = vmatmul.bf16.gmra.mxu0 %v8137
      %v10058 = vpop.f32.mrf.mxu0
      %v10059 = vadd.f32 0.0, %v10058
      %v10060 = vpop.f32.mrf.mxu0
      %v10061 = vadd.f32 0.0, %v10060
      %10062 = vdwg.mxu0
      %10063 = vmatpush.bf16.msra.mxu0 %v10000
      %10064 = vmatpush.bf16.msra.mxu0 %v9998
      %10065 = vmatpush.bf16.msra.mxu0 %v9996
      %10066 = vmatpush.bf16.msra.mxu0 %v9994
      %10067 = vmatpush.bf16.msra.mxu0 %v9992
      %10068 = vmatpush.bf16.msra.mxu0 %v9990
      %10069 = vmatpush.bf16.msra.mxu0 %v9988
      %10070 = vmatpush.bf16.msra.mxu0 %v9986
      %10071 = vmatmul.bf16.gmra.mxu0 %v8102
      %v10072 = vpop.f32.mrf.mxu0
      %v10073 = vadd.f32 %v10044, %v10072
      %v10074 = vpop.f32.mrf.mxu0
      %v10075 = vadd.f32 %v10046, %v10074
      %10076 = vmatmul.bf16.gmra.mxu0 %v8118
      %v10077 = vpop.f32.mrf.mxu0
      %v10078 = vadd.f32 %v10049, %v10077
      %v10079 = vpop.f32.mrf.mxu0
      %v10080 = vadd.f32 %v10051, %v10079
      %10081 = vmatmul.bf16.gmra.mxu0 %v8134
      %v10082 = vpop.f32.mrf.mxu0
      %v10083 = vadd.f32 %v10054, %v10082
      %v10084 = vpop.f32.mrf.mxu0
      %v10085 = vadd.f32 %v10056, %v10084
      %10086 = vmatmul.bf16.gmra.mxu0 %v8140
      %v10087 = vpop.f32.mrf.mxu0
      %v10088 = vadd.f32 %v10059, %v10087
      %v10089 = vpop.f32.mrf.mxu0
      %v10090 = vadd.f32 %v10061, %v10089
      %10091 = vdwg.mxu0
      %10092 = vmatpush.bf16.msra.mxu0 %v9985
      %10093 = vmatpush.bf16.msra.mxu0 %v9983
      %10094 = vmatpush.bf16.msra.mxu0 %v9981
      %10095 = vmatpush.bf16.msra.mxu0 %v9979
      %10096 = vmatpush.bf16.msra.mxu0 %v9977
      %10097 = vmatpush.bf16.msra.mxu0 %v9975
      %10098 = vmatpush.bf16.msra.mxu0 %v9973
      %10099 = vmatpush.bf16.msra.mxu0 %v9971
      %10100 = vmatmul.bf16.gmra.mxu0 %v8090
      %v10101 = vpop.f32.mrf.mxu0
      %v10102 = vadd.f32 0.0, %v10101
      %v10103 = vpop.f32.mrf.mxu0
      %v10104 = vadd.f32 0.0, %v10103
      %10105 = vmatmul.bf16.gmra.mxu0 %v8110
      %v10106 = vpop.f32.mrf.mxu0
      %v10107 = vadd.f32 0.0, %v10106
      %v10108 = vpop.f32.mrf.mxu0
      %v10109 = vadd.f32 0.0, %v10108
      %10110 = vmatmul.bf16.gmra.mxu0 %v8126
      %v10111 = vpop.f32.mrf.mxu0
      %v10112 = vadd.f32 0.0, %v10111
      %v10113 = vpop.f32.mrf.mxu0
      %v10114 = vadd.f32 0.0, %v10113
      %10115 = vmatmul.bf16.gmra.mxu0 %v8137
      %v10116 = vpop.f32.mrf.mxu0
      %v10117 = vadd.f32 0.0, %v10116
      %v10118 = vpop.f32.mrf.mxu0
      %v10119 = vadd.f32 0.0, %v10118
      %10120 = vdwg.mxu0
      %10121 = vmatpush.bf16.msra.mxu0 %v10001
      %10122 = vmatpush.bf16.msra.mxu0 %v9999
      %10123 = vmatpush.bf16.msra.mxu0 %v9997
      %10124 = vmatpush.bf16.msra.mxu0 %v9995
      %10125 = vmatpush.bf16.msra.mxu0 %v9993
      %10126 = vmatpush.bf16.msra.mxu0 %v9991
      %10127 = vmatpush.bf16.msra.mxu0 %v9989
      %10128 = vmatpush.bf16.msra.mxu0 %v9987
      %10129 = vmatmul.bf16.gmra.mxu0 %v8102
      %v10130 = vpop.f32.mrf.mxu0
      %v10131 = vadd.f32 %v10102, %v10130
      %v10132 = vpop.f32.mrf.mxu0
      %v10133 = vadd.f32 %v10104, %v10132
      %10134 = vmatmul.bf16.gmra.mxu0 %v8118
      %v10135 = vpop.f32.mrf.mxu0
      %v10136 = vadd.f32 %v10107, %v10135
      %v10137 = vpop.f32.mrf.mxu0
      %v10138 = vadd.f32 %v10109, %v10137
      %10139 = vmatmul.bf16.gmra.mxu0 %v8134
      %v10140 = vpop.f32.mrf.mxu0
      %v10141 = vadd.f32 %v10112, %v10140
      %v10142 = vpop.f32.mrf.mxu0
      %v10143 = vadd.f32 %v10114, %v10142
      %10144 = vmatmul.bf16.gmra.mxu0 %v8140
      %v10145 = vpop.f32.mrf.mxu0
      %v10146 = vadd.f32 %v10117, %v10145
      %v10147 = vpop.f32.mrf.mxu0
      %v10148 = vadd.f32 %v10119, %v10147
      %10149 = vdwg.mxu0
      %v10150 = vadd.f32 %v9764, %v10073
      %v10151 = vadd.f32 %v9822, %v10131
      %v10152 = vadd.f32 %v9766, %v10075
      %v10153 = vadd.f32 %v9824, %v10133
      %v10154 = vadd.f32 %v9769, %v10078
      %v10155 = vadd.f32 %v9827, %v10136
      %v10156 = vadd.f32 %v9771, %v10080
      %v10157 = vadd.f32 %v9829, %v10138
      %v10158 = vadd.f32 %v9774, %v10083
      %v10159 = vadd.f32 %v9832, %v10141
      %v10160 = vadd.f32 %v9776, %v10085
      %v10161 = vadd.f32 %v9834, %v10143
      %v10162 = vadd.f32 %v9779, %v10088
      %v10163 = vadd.f32 %v9837, %v10146
      %v10164 = vadd.f32 %v9781, %v10090
      %v10165 = vadd.f32 %v9839, %v10148
      %s10166 = scalar_lea.vmem %s4, 2048
      %v10167 = vld [vmem:[%s10166] sm:$0xff]
      %v10168 = vld [vmem:[%s10166 + $0x8] sm:$0xff]
      %v10169 = vld [vmem:[%s10166 + $0x10] sm:$0xff]
      %v10170 = vld [vmem:[%s10166 + $0x18] sm:$0xff]
      %v10171 = vld [vmem:[%s10166 + $0x20] sm:$0xff]
      %v10172 = vld [vmem:[%s10166 + $0x28] sm:$0xff]
      %v10173 = vld [vmem:[%s10166 + $0x30] sm:$0xff]
      %v10174 = vld [vmem:[%s10166 + $0x38] sm:$0xff]
      %v10175 = vld [vmem:[%s10166 + $0x40] sm:$0xff]
      %v10176 = vld [vmem:[%s10166 + $0x48] sm:$0xff]
      %v10177 = vld [vmem:[%s10166 + $0x50] sm:$0xff]
      %v10178 = vld [vmem:[%s10166 + $0x58] sm:$0xff]
      %v10179 = vld [vmem:[%s10166 + $0x60] sm:$0xff]
      %v10180 = vld [vmem:[%s10166 + $0x68] sm:$0xff]
      %v10181 = vld [vmem:[%s10166 + $0x70] sm:$0xff]
      %v10182 = vld [vmem:[%s10166 + $0x78] sm:$0xff]
      %v10183 = vld [vmem:[%s10166 + $0x80] sm:$0xff]
      %v10184 = vld [vmem:[%s10166 + $0x88] sm:$0xff]
      %v10185 = vld [vmem:[%s10166 + $0x90] sm:$0xff]
      %v10186 = vld [vmem:[%s10166 + $0x98] sm:$0xff]
      %v10187 = vld [vmem:[%s10166 + $0xa0] sm:$0xff]
      %v10188 = vld [vmem:[%s10166 + $0xa8] sm:$0xff]
      %v10189 = vld [vmem:[%s10166 + $0xb0] sm:$0xff]
      %v10190 = vld [vmem:[%s10166 + $0xb8] sm:$0xff]
      %v10191 = vld [vmem:[%s10166 + $0xc0] sm:$0xff]
      %v10192 = vld [vmem:[%s10166 + $0xc8] sm:$0xff]
      %v10193 = vld [vmem:[%s10166 + $0xd0] sm:$0xff]
      %v10194 = vld [vmem:[%s10166 + $0xd8] sm:$0xff]
      %v10195 = vld [vmem:[%s10166 + $0xe0] sm:$0xff]
      %v10196 = vld [vmem:[%s10166 + $0xe8] sm:$0xff]
      %v10197 = vld [vmem:[%s10166 + $0xf0] sm:$0xff]
      %v10198 = vld [vmem:[%s10166 + $0xf8] sm:$0xff]
      %v10231 = vunpack.c.l.b16 %v10167
      %v10232 = vunpack.c.h.b16 %v10167
      %v10233 = vunpack.c.l.b16 %v10168
      %v10234 = vunpack.c.h.b16 %v10168
      %v10235 = vunpack.c.l.b16 %v10169
      %v10236 = vunpack.c.h.b16 %v10169
      %v10237 = vunpack.c.l.b16 %v10170
      %v10238 = vunpack.c.h.b16 %v10170
      %v10239 = vunpack.c.l.b16 %v10171
      %v10240 = vunpack.c.h.b16 %v10171
      %v10241 = vunpack.c.l.b16 %v10172
      %v10242 = vunpack.c.h.b16 %v10172
      %v10243 = vunpack.c.l.b16 %v10173
      %v10244 = vunpack.c.h.b16 %v10173
      %v10245 = vunpack.c.l.b16 %v10174
      %v10246 = vunpack.c.h.b16 %v10174
      %v10247 = vunpack.c.l.b16 %v10175
      %v10248 = vunpack.c.h.b16 %v10175
      %v10249 = vunpack.c.l.b16 %v10176
      %v10250 = vunpack.c.h.b16 %v10176
      %v10251 = vunpack.c.l.b16 %v10177
      %v10252 = vunpack.c.h.b16 %v10177
      %v10253 = vunpack.c.l.b16 %v10178
      %v10254 = vunpack.c.h.b16 %v10178
      %v10255 = vunpack.c.l.b16 %v10179
      %v10256 = vunpack.c.h.b16 %v10179
      %v10257 = vunpack.c.l.b16 %v10180
      %v10258 = vunpack.c.h.b16 %v10180
      %v10259 = vunpack.c.l.b16 %v10181
      %v10260 = vunpack.c.h.b16 %v10181
      %v10261 = vunpack.c.l.b16 %v10182
      %v10262 = vunpack.c.h.b16 %v10182
      %v10263 = vunpack.c.l.b16 %v10183
      %v10264 = vunpack.c.h.b16 %v10183
      %v10265 = vunpack.c.l.b16 %v10184
      %v10266 = vunpack.c.h.b16 %v10184
      %v10267 = vunpack.c.l.b16 %v10185
      %v10268 = vunpack.c.h.b16 %v10185
      %v10269 = vunpack.c.l.b16 %v10186
      %v10270 = vunpack.c.h.b16 %v10186
      %v10271 = vunpack.c.l.b16 %v10187
      %v10272 = vunpack.c.h.b16 %v10187
      %v10273 = vunpack.c.l.b16 %v10188
      %v10274 = vunpack.c.h.b16 %v10188
      %v10275 = vunpack.c.l.b16 %v10189
      %v10276 = vunpack.c.h.b16 %v10189
      %v10277 = vunpack.c.l.b16 %v10190
      %v10278 = vunpack.c.h.b16 %v10190
      %v10279 = vunpack.c.l.b16 %v10191
      %v10280 = vunpack.c.h.b16 %v10191
      %v10281 = vunpack.c.l.b16 %v10192
      %v10282 = vunpack.c.h.b16 %v10192
      %v10283 = vunpack.c.l.b16 %v10193
      %v10284 = vunpack.c.h.b16 %v10193
      %v10285 = vunpack.c.l.b16 %v10194
      %v10286 = vunpack.c.h.b16 %v10194
      %v10287 = vunpack.c.l.b16 %v10195
      %v10288 = vunpack.c.h.b16 %v10195
      %v10289 = vunpack.c.l.b16 %v10196
      %v10290 = vunpack.c.h.b16 %v10196
      %v10291 = vunpack.c.l.b16 %v10197
      %v10292 = vunpack.c.h.b16 %v10197
      %v10293 = vunpack.c.l.b16 %v10198
      %v10294 = vunpack.c.h.b16 %v10198
      %v10295 = vpack.c.b16 %v10233, %v10231
      %v10296 = vpack.c.b16 %v10234, %v10232
      %v10297 = vpack.c.b16 %v10237, %v10235
      %v10298 = vpack.c.b16 %v10238, %v10236
      %v10299 = vpack.c.b16 %v10241, %v10239
      %v10300 = vpack.c.b16 %v10242, %v10240
      %v10301 = vpack.c.b16 %v10245, %v10243
      %v10302 = vpack.c.b16 %v10246, %v10244
      %v10303 = vpack.c.b16 %v10249, %v10247
      %v10304 = vpack.c.b16 %v10250, %v10248
      %v10305 = vpack.c.b16 %v10253, %v10251
      %v10306 = vpack.c.b16 %v10254, %v10252
      %v10307 = vpack.c.b16 %v10257, %v10255
      %v10308 = vpack.c.b16 %v10258, %v10256
      %v10309 = vpack.c.b16 %v10261, %v10259
      %v10310 = vpack.c.b16 %v10262, %v10260
      %v10311 = vpack.c.b16 %v10265, %v10263
      %v10312 = vpack.c.b16 %v10266, %v10264
      %v10313 = vpack.c.b16 %v10269, %v10267
      %v10314 = vpack.c.b16 %v10270, %v10268
      %v10315 = vpack.c.b16 %v10273, %v10271
      %v10316 = vpack.c.b16 %v10274, %v10272
      %v10317 = vpack.c.b16 %v10277, %v10275
      %v10318 = vpack.c.b16 %v10278, %v10276
      %v10319 = vpack.c.b16 %v10281, %v10279
      %v10320 = vpack.c.b16 %v10282, %v10280
      %v10321 = vpack.c.b16 %v10285, %v10283
      %v10322 = vpack.c.b16 %v10286, %v10284
      %v10323 = vpack.c.b16 %v10289, %v10287
      %v10324 = vpack.c.b16 %v10290, %v10288
      %v10325 = vpack.c.b16 %v10293, %v10291
      %v10326 = vpack.c.b16 %v10294, %v10292
      %10359 = vmatpush.bf16.msra.mxu0 %v10309
      %10360 = vmatpush.bf16.msra.mxu0 %v10307
      %10361 = vmatpush.bf16.msra.mxu0 %v10305
      %10362 = vmatpush.bf16.msra.mxu0 %v10303
      %10363 = vmatpush.bf16.msra.mxu0 %v10301
      %10364 = vmatpush.bf16.msra.mxu0 %v10299
      %10365 = vmatpush.bf16.msra.mxu0 %v10297
      %10366 = vmatpush.bf16.msra.mxu0 %v10295
      %10367 = vmatmul.bf16.gmra.mxu0 %v7429
      %v10368 = vpop.f32.mrf.mxu0
      %v10369 = vadd.f32 0.0, %v10368
      %v10370 = vpop.f32.mrf.mxu0
      %v10371 = vadd.f32 0.0, %v10370
      %10372 = vmatmul.bf16.gmra.mxu0 %v7431
      %v10373 = vpop.f32.mrf.mxu0
      %v10374 = vadd.f32 0.0, %v10373
      %v10375 = vpop.f32.mrf.mxu0
      %v10376 = vadd.f32 0.0, %v10375
      %10377 = vmatmul.bf16.gmra.mxu0 %v7433
      %v10378 = vpop.f32.mrf.mxu0
      %v10379 = vadd.f32 0.0, %v10378
      %v10380 = vpop.f32.mrf.mxu0
      %v10381 = vadd.f32 0.0, %v10380
      %10382 = vmatmul.bf16.gmra.mxu0 %v7435
      %v10383 = vpop.f32.mrf.mxu0
      %v10384 = vadd.f32 0.0, %v10383
      %v10385 = vpop.f32.mrf.mxu0
      %v10386 = vadd.f32 0.0, %v10385
      %10387 = vdwg.mxu0
      %10388 = vmatpush.bf16.msra.mxu0 %v10325
      %10389 = vmatpush.bf16.msra.mxu0 %v10323
      %10390 = vmatpush.bf16.msra.mxu0 %v10321
      %10391 = vmatpush.bf16.msra.mxu0 %v10319
      %10392 = vmatpush.bf16.msra.mxu0 %v10317
      %10393 = vmatpush.bf16.msra.mxu0 %v10315
      %10394 = vmatpush.bf16.msra.mxu0 %v10313
      %10395 = vmatpush.bf16.msra.mxu0 %v10311
      %10396 = vmatmul.bf16.gmra.mxu0 %v7430
      %v10397 = vpop.f32.mrf.mxu0
      %v10398 = vadd.f32 %v10369, %v10397
      %v10399 = vpop.f32.mrf.mxu0
      %v10400 = vadd.f32 %v10371, %v10399
      %10401 = vmatmul.bf16.gmra.mxu0 %v7432
      %v10402 = vpop.f32.mrf.mxu0
      %v10403 = vadd.f32 %v10374, %v10402
      %v10404 = vpop.f32.mrf.mxu0
      %v10405 = vadd.f32 %v10376, %v10404
      %10406 = vmatmul.bf16.gmra.mxu0 %v7434
      %v10407 = vpop.f32.mrf.mxu0
      %v10408 = vadd.f32 %v10379, %v10407
      %v10409 = vpop.f32.mrf.mxu0
      %v10410 = vadd.f32 %v10381, %v10409
      %10411 = vmatmul.bf16.gmra.mxu0 %v7436
      %v10412 = vpop.f32.mrf.mxu0
      %v10413 = vadd.f32 %v10384, %v10412
      %v10414 = vpop.f32.mrf.mxu0
      %v10415 = vadd.f32 %v10386, %v10414
      %10416 = vdwg.mxu0
      %10417 = vmatpush.bf16.msra.mxu0 %v10310
      %10418 = vmatpush.bf16.msra.mxu0 %v10308
      %10419 = vmatpush.bf16.msra.mxu0 %v10306
      %10420 = vmatpush.bf16.msra.mxu0 %v10304
      %10421 = vmatpush.bf16.msra.mxu0 %v10302
      %10422 = vmatpush.bf16.msra.mxu0 %v10300
      %10423 = vmatpush.bf16.msra.mxu0 %v10298
      %10424 = vmatpush.bf16.msra.mxu0 %v10296
      %10425 = vmatmul.bf16.gmra.mxu0 %v7429
      %v10426 = vpop.f32.mrf.mxu0
      %v10427 = vadd.f32 0.0, %v10426
      %v10428 = vpop.f32.mrf.mxu0
      %v10429 = vadd.f32 0.0, %v10428
      %10430 = vmatmul.bf16.gmra.mxu0 %v7431
      %v10431 = vpop.f32.mrf.mxu0
      %v10432 = vadd.f32 0.0, %v10431
      %v10433 = vpop.f32.mrf.mxu0
      %v10434 = vadd.f32 0.0, %v10433
      %10435 = vmatmul.bf16.gmra.mxu0 %v7433
      %v10436 = vpop.f32.mrf.mxu0
      %v10437 = vadd.f32 0.0, %v10436
      %v10438 = vpop.f32.mrf.mxu0
      %v10439 = vadd.f32 0.0, %v10438
      %10440 = vmatmul.bf16.gmra.mxu0 %v7435
      %v10441 = vpop.f32.mrf.mxu0
      %v10442 = vadd.f32 0.0, %v10441
      %v10443 = vpop.f32.mrf.mxu0
      %v10444 = vadd.f32 0.0, %v10443
      %10445 = vdwg.mxu0
      %10446 = vmatpush.bf16.msra.mxu0 %v10326
      %10447 = vmatpush.bf16.msra.mxu0 %v10324
      %10448 = vmatpush.bf16.msra.mxu0 %v10322
      %10449 = vmatpush.bf16.msra.mxu0 %v10320
      %10450 = vmatpush.bf16.msra.mxu0 %v10318
      %10451 = vmatpush.bf16.msra.mxu0 %v10316
      %10452 = vmatpush.bf16.msra.mxu0 %v10314
      %10453 = vmatpush.bf16.msra.mxu0 %v10312
      %10454 = vmatmul.bf16.gmra.mxu0 %v7430
      %v10455 = vpop.f32.mrf.mxu0
      %v10456 = vadd.f32 %v10427, %v10455
      %v10457 = vpop.f32.mrf.mxu0
      %v10458 = vadd.f32 %v10429, %v10457
      %10459 = vmatmul.bf16.gmra.mxu0 %v7432
      %v10460 = vpop.f32.mrf.mxu0
      %v10461 = vadd.f32 %v10432, %v10460
      %v10462 = vpop.f32.mrf.mxu0
      %v10463 = vadd.f32 %v10434, %v10462
      %10464 = vmatmul.bf16.gmra.mxu0 %v7434
      %v10465 = vpop.f32.mrf.mxu0
      %v10466 = vadd.f32 %v10437, %v10465
      %v10467 = vpop.f32.mrf.mxu0
      %v10468 = vadd.f32 %v10439, %v10467
      %10469 = vmatmul.bf16.gmra.mxu0 %v7436
      %v10470 = vpop.f32.mrf.mxu0
      %v10471 = vadd.f32 %v10442, %v10470
      %v10472 = vpop.f32.mrf.mxu0
      %v10473 = vadd.f32 %v10444, %v10472
      %10474 = vdwg.mxu0
      %v10475 = vadd.f32 %v10150, %v10398
      %v10476 = vadd.f32 %v10151, %v10456
      %v10477 = vadd.f32 %v10152, %v10400
      %v10478 = vadd.f32 %v10153, %v10458
      %v10479 = vadd.f32 %v10154, %v10403
      %v10480 = vadd.f32 %v10155, %v10461
      %v10481 = vadd.f32 %v10156, %v10405
      %v10482 = vadd.f32 %v10157, %v10463
      %v10483 = vadd.f32 %v10158, %v10408
      %v10484 = vadd.f32 %v10159, %v10466
      %v10485 = vadd.f32 %v10160, %v10410
      %v10486 = vadd.f32 %v10161, %v10468
      %v10487 = vadd.f32 %v10162, %v10413
      %v10488 = vadd.f32 %v10163, %v10471
      %v10489 = vadd.f32 %v10164, %v10415
      %v10490 = vadd.f32 %v10165, %v10473
      %v10491 = vadd.f32 %v10475, %v7401
      %v10492 = vadd.f32 %v10476, %v7402
      %v10493 = vadd.f32 %v10477, %v7401
      %v10494 = vadd.f32 %v10478, %v7402
      %v10495 = vadd.f32 %v10479, %v7401
      %v10496 = vadd.f32 %v10480, %v7402
      %v10497 = vadd.f32 %v10481, %v7401
      %v10498 = vadd.f32 %v10482, %v7402
      %v10499 = vadd.f32 %v10483, %v7401
      %v10500 = vadd.f32 %v10484, %v7402
      %v10501 = vadd.f32 %v10485, %v7401
      %v10502 = vadd.f32 %v10486, %v7402
      %v10503 = vadd.f32 %v10487, %v7401
      %v10504 = vadd.f32 %v10488, %v7402
      %v10505 = vadd.f32 %v10489, %v7401
      %v10506 = vadd.f32 %v10490, %v7402
      %v10507 = vmax.f32 %v10491, 0.0
      %v10508 = vmax.f32 %v10492, 0.0
      %v10509 = vmax.f32 %v10493, 0.0
      %v10510 = vmax.f32 %v10494, 0.0
      %v10511 = vmax.f32 %v10495, 0.0
      %v10512 = vmax.f32 %v10496, 0.0
      %v10513 = vmax.f32 %v10497, 0.0
      %v10514 = vmax.f32 %v10498, 0.0
      %v10515 = vmax.f32 %v10499, 0.0
      %v10516 = vmax.f32 %v10500, 0.0
      %v10517 = vmax.f32 %v10501, 0.0
      %v10518 = vmax.f32 %v10502, 0.0
      %v10519 = vmax.f32 %v10503, 0.0
      %v10520 = vmax.f32 %v10504, 0.0
      %v10521 = vmax.f32 %v10505, 0.0
      %v10522 = vmax.f32 %v10506, 0.0
      %p10523 = scmp.eq.s32.totalorder %s22, 0
      // Predicated region
      $region45: #{block_processor_forward.1} parent=43 // pred_check
        %p10524 = pneg %p10523
      $region46: #{block_processor_forward.1} parent=43 // pred_check_branch
        %10526 = sbr.rel (%p10524) target = $region48
      $region47: #{block_processor_forward.1} parent=43 // pred_region
        %10527 = vst [vmem:[%s277] sm:$0xff] %v7721
        %10528 = vst [vmem:[%s277 + $0x8] sm:$0xff] %v7722
        %10529 = vst [vmem:[%s277 + $0x10] sm:$0xff] %v7723
        %10530 = vst [vmem:[%s277 + $0x18] sm:$0xff] %v7724
        %10531 = vst [vmem:[%s277 + $0x20] sm:$0xff] %v7725
        %10532 = vst [vmem:[%s277 + $0x28] sm:$0xff] %v7726
        %10533 = vst [vmem:[%s277 + $0x30] sm:$0xff] %v7727
        %10534 = vst [vmem:[%s277 + $0x38] sm:$0xff] %v7728
        %10535 = vst [vmem:[%s277 + $0x40] sm:$0xff] %v7729
        %10536 = vst [vmem:[%s277 + $0x48] sm:$0xff] %v7730
        %10537 = vst [vmem:[%s277 + $0x50] sm:$0xff] %v7731
        %10538 = vst [vmem:[%s277 + $0x58] sm:$0xff] %v7732
        %10539 = vst [vmem:[%s277 + $0x60] sm:$0xff] %v7733
        %10540 = vst [vmem:[%s277 + $0x68] sm:$0xff] %v7734
        %10541 = vst [vmem:[%s277 + $0x70] sm:$0x7f] %v7735
        %10542 = vst [vmem:[%s277 + $0x78] sm:$0x7f] %v7736
        %s10543 = scalar_lea.vmem %s277, 128
        %10544 = vst [vmem:[%s10543] sm:$0xff] %v8441
        %10545 = vst [vmem:[%s10543 + $0x8] sm:$0xff] %v8442
        %10546 = vst [vmem:[%s10543 + $0x10] sm:$0xff] %v8443
        %10547 = vst [vmem:[%s10543 + $0x18] sm:$0xff] %v8444
        %10548 = vst [vmem:[%s10543 + $0x20] sm:$0xff] %v8445
        %10549 = vst [vmem:[%s10543 + $0x28] sm:$0xff] %v8446
        %10550 = vst [vmem:[%s10543 + $0x30] sm:$0xff] %v8447
        %10551 = vst [vmem:[%s10543 + $0x38] sm:$0xff] %v8448
        %10552 = vst [vmem:[%s10543 + $0x40] sm:$0xff] %v8449
        %10553 = vst [vmem:[%s10543 + $0x48] sm:$0xff] %v8450
        %10554 = vst [vmem:[%s10543 + $0x50] sm:$0xff] %v8451
        %10555 = vst [vmem:[%s10543 + $0x58] sm:$0xff] %v8452
        %10556 = vst [vmem:[%s10543 + $0x60] sm:$0xff] %v8453
        %10557 = vst [vmem:[%s10543 + $0x68] sm:$0xff] %v8454
        %10558 = vst [vmem:[%s10543 + $0x70] sm:$0x7f] %v8455
        %10559 = vst [vmem:[%s10543 + $0x78] sm:$0x7f] %v8456
        %s10560 = scalar_lea.vmem %s277, 256
        %10561 = vst [vmem:[%s10560] sm:$0xff] %v9172
        %10562 = vst [vmem:[%s10560 + $0x8] sm:$0xff] %v9173
        %10563 = vst [vmem:[%s10560 + $0x10] sm:$0xff] %v9174
        %10564 = vst [vmem:[%s10560 + $0x18] sm:$0xff] %v9175
        %10565 = vst [vmem:[%s10560 + $0x20] sm:$0xff] %v9176
        %10566 = vst [vmem:[%s10560 + $0x28] sm:$0xff] %v9177
        %10567 = vst [vmem:[%s10560 + $0x30] sm:$0xff] %v9178
        %10568 = vst [vmem:[%s10560 + $0x38] sm:$0xff] %v9179
        %10569 = vst [vmem:[%s10560 + $0x40] sm:$0xff] %v9180
        %10570 = vst [vmem:[%s10560 + $0x48] sm:$0xff] %v9181
        %10571 = vst [vmem:[%s10560 + $0x50] sm:$0xff] %v9182
        %10572 = vst [vmem:[%s10560 + $0x58] sm:$0xff] %v9183
        %10573 = vst [vmem:[%s10560 + $0x60] sm:$0xff] %v9184
        %10574 = vst [vmem:[%s10560 + $0x68] sm:$0xff] %v9185
        %10575 = vst [vmem:[%s10560 + $0x70] sm:$0x7f] %v9186
        %10576 = vst [vmem:[%s10560 + $0x78] sm:$0x7f] %v9187
        %s10577 = scalar_lea.vmem %s277, 384
        %10578 = vst [vmem:[%s10577] sm:$0xff] %v10507
        %10579 = vst [vmem:[%s10577 + $0x8] sm:$0xff] %v10508
        %10580 = vst [vmem:[%s10577 + $0x10] sm:$0xff] %v10509
        %10581 = vst [vmem:[%s10577 + $0x18] sm:$0xff] %v10510
        %10582 = vst [vmem:[%s10577 + $0x20] sm:$0xff] %v10511
        %10583 = vst [vmem:[%s10577 + $0x28] sm:$0xff] %v10512
        %10584 = vst [vmem:[%s10577 + $0x30] sm:$0xff] %v10513
        %10585 = vst [vmem:[%s10577 + $0x38] sm:$0xff] %v10514
        %10586 = vst [vmem:[%s10577 + $0x40] sm:$0xff] %v10515
        %10587 = vst [vmem:[%s10577 + $0x48] sm:$0xff] %v10516
        %10588 = vst [vmem:[%s10577 + $0x50] sm:$0xff] %v10517
        %10589 = vst [vmem:[%s10577 + $0x58] sm:$0xff] %v10518
        %10590 = vst [vmem:[%s10577 + $0x60] sm:$0xff] %v10519
        %10591 = vst [vmem:[%s10577 + $0x68] sm:$0xff] %v10520
        %10592 = vst [vmem:[%s10577 + $0x70] sm:$0x7f] %v10521
        %10593 = vst [vmem:[%s10577 + $0x78] sm:$0x7f] %v10522
      $region48: #{block_processor_forward.1} parent=43 // pred_fallthru
        _
      %p10594 = scmp.gt.s32.totalorder %s22, 0
      // Predicated region
      $region49: #{block_processor_forward.1} parent=43 // pred_check
        %p10595 = pneg %p10594
      $region50: #{block_processor_forward.1} parent=43 // pred_check_branch
        %10597 = sbr.rel (%p10595) target = $region52
      $region51: #{block_processor_forward.1} parent=43 // pred_region
        %v10598 = vld [vmem:[%s277] sm:$0xff]
        %v10599 = vld [vmem:[%s277 + $0x8] sm:$0xff]
        %v10600 = vld [vmem:[%s277 + $0x10] sm:$0xff]
        %v10601 = vld [vmem:[%s277 + $0x18] sm:$0xff]
        %v10602 = vld [vmem:[%s277 + $0x20] sm:$0xff]
        %v10603 = vld [vmem:[%s277 + $0x28] sm:$0xff]
        %v10604 = vld [vmem:[%s277 + $0x30] sm:$0xff]
        %v10605 = vld [vmem:[%s277 + $0x38] sm:$0xff]
        %v10606 = vld [vmem:[%s277 + $0x40] sm:$0xff]
        %v10607 = vld [vmem:[%s277 + $0x48] sm:$0xff]
        %v10608 = vld [vmem:[%s277 + $0x50] sm:$0xff]
        %v10609 = vld [vmem:[%s277 + $0x58] sm:$0xff]
        %v10610 = vld [vmem:[%s277 + $0x60] sm:$0xff]
        %v10611 = vld [vmem:[%s277 + $0x68] sm:$0xff]
        %v10612 = vld [vmem:[%s277 + $0x70] sm:$0x7f]
        %v10613 = vld [vmem:[%s277 + $0x78] sm:$0x7f]
        %v10614 = vmax.f32 %v10598, %v7721
        %v10615 = vmax.f32 %v10599, %v7722
        %v10616 = vmax.f32 %v10600, %v7723
        %v10617 = vmax.f32 %v10601, %v7724
        %v10618 = vmax.f32 %v10602, %v7725
        %v10619 = vmax.f32 %v10603, %v7726
        %v10620 = vmax.f32 %v10604, %v7727
        %v10621 = vmax.f32 %v10605, %v7728
        %v10622 = vmax.f32 %v10606, %v7729
        %v10623 = vmax.f32 %v10607, %v7730
        %v10624 = vmax.f32 %v10608, %v7731
        %v10625 = vmax.f32 %v10609, %v7732
        %v10626 = vmax.f32 %v10610, %v7733
        %v10627 = vmax.f32 %v10611, %v7734
        %v10628 = vmax.f32 %v10612, %v7735
        %v10629 = vmax.f32 %v10613, %v7736
        %10630 = vst [vmem:[%s277] sm:$0xff] %v10614
        %10631 = vst [vmem:[%s277 + $0x8] sm:$0xff] %v10615
        %10632 = vst [vmem:[%s277 + $0x10] sm:$0xff] %v10616
        %10633 = vst [vmem:[%s277 + $0x18] sm:$0xff] %v10617
        %10634 = vst [vmem:[%s277 + $0x20] sm:$0xff] %v10618
        %10635 = vst [vmem:[%s277 + $0x28] sm:$0xff] %v10619
        %10636 = vst [vmem:[%s277 + $0x30] sm:$0xff] %v10620
        %10637 = vst [vmem:[%s277 + $0x38] sm:$0xff] %v10621
        %10638 = vst [vmem:[%s277 + $0x40] sm:$0xff] %v10622
        %10639 = vst [vmem:[%s277 + $0x48] sm:$0xff] %v10623
        %10640 = vst [vmem:[%s277 + $0x50] sm:$0xff] %v10624
        %10641 = vst [vmem:[%s277 + $0x58] sm:$0xff] %v10625
        %10642 = vst [vmem:[%s277 + $0x60] sm:$0xff] %v10626
        %10643 = vst [vmem:[%s277 + $0x68] sm:$0xff] %v10627
        %10644 = vst [vmem:[%s277 + $0x70] sm:$0x7f] %v10628
        %10645 = vst [vmem:[%s277 + $0x78] sm:$0x7f] %v10629
        %s10646 = scalar_lea.vmem %s277, 128
        %v10647 = vld [vmem:[%s10646] sm:$0xff]
        %v10648 = vld [vmem:[%s10646 + $0x8] sm:$0xff]
        %v10649 = vld [vmem:[%s10646 + $0x10] sm:$0xff]
        %v10650 = vld [vmem:[%s10646 + $0x18] sm:$0xff]
        %v10651 = vld [vmem:[%s10646 + $0x20] sm:$0xff]
        %v10652 = vld [vmem:[%s10646 + $0x28] sm:$0xff]
        %v10653 = vld [vmem:[%s10646 + $0x30] sm:$0xff]
        %v10654 = vld [vmem:[%s10646 + $0x38] sm:$0xff]
        %v10655 = vld [vmem:[%s10646 + $0x40] sm:$0xff]
        %v10656 = vld [vmem:[%s10646 + $0x48] sm:$0xff]
        %v10657 = vld [vmem:[%s10646 + $0x50] sm:$0xff]
        %v10658 = vld [vmem:[%s10646 + $0x58] sm:$0xff]
        %v10659 = vld [vmem:[%s10646 + $0x60] sm:$0xff]
        %v10660 = vld [vmem:[%s10646 + $0x68] sm:$0xff]
        %v10661 = vld [vmem:[%s10646 + $0x70] sm:$0x7f]
        %v10662 = vld [vmem:[%s10646 + $0x78] sm:$0x7f]
        %v10663 = vmax.f32 %v10647, %v8441
        %v10664 = vmax.f32 %v10648, %v8442
        %v10665 = vmax.f32 %v10649, %v8443
        %v10666 = vmax.f32 %v10650, %v8444
        %v10667 = vmax.f32 %v10651, %v8445
        %v10668 = vmax.f32 %v10652, %v8446
        %v10669 = vmax.f32 %v10653, %v8447
        %v10670 = vmax.f32 %v10654, %v8448
        %v10671 = vmax.f32 %v10655, %v8449
        %v10672 = vmax.f32 %v10656, %v8450
        %v10673 = vmax.f32 %v10657, %v8451
        %v10674 = vmax.f32 %v10658, %v8452
        %v10675 = vmax.f32 %v10659, %v8453
        %v10676 = vmax.f32 %v10660, %v8454
        %v10677 = vmax.f32 %v10661, %v8455
        %v10678 = vmax.f32 %v10662, %v8456
        %10679 = vst [vmem:[%s10646] sm:$0xff] %v10663
        %10680 = vst [vmem:[%s10646 + $0x8] sm:$0xff] %v10664
        %10681 = vst [vmem:[%s10646 + $0x10] sm:$0xff] %v10665
        %10682 = vst [vmem:[%s10646 + $0x18] sm:$0xff] %v10666
        %10683 = vst [vmem:[%s10646 + $0x20] sm:$0xff] %v10667
        %10684 = vst [vmem:[%s10646 + $0x28] sm:$0xff] %v10668
        %10685 = vst [vmem:[%s10646 + $0x30] sm:$0xff] %v10669
        %10686 = vst [vmem:[%s10646 + $0x38] sm:$0xff] %v10670
        %10687 = vst [vmem:[%s10646 + $0x40] sm:$0xff] %v10671
        %10688 = vst [vmem:[%s10646 + $0x48] sm:$0xff] %v10672
        %10689 = vst [vmem:[%s10646 + $0x50] sm:$0xff] %v10673
        %10690 = vst [vmem:[%s10646 + $0x58] sm:$0xff] %v10674
        %10691 = vst [vmem:[%s10646 + $0x60] sm:$0xff] %v10675
        %10692 = vst [vmem:[%s10646 + $0x68] sm:$0xff] %v10676
        %10693 = vst [vmem:[%s10646 + $0x70] sm:$0x7f] %v10677
        %10694 = vst [vmem:[%s10646 + $0x78] sm:$0x7f] %v10678
        %s10695 = scalar_lea.vmem %s277, 256
        %v10696 = vld [vmem:[%s10695] sm:$0xff]
        %v10697 = vld [vmem:[%s10695 + $0x8] sm:$0xff]
        %v10698 = vld [vmem:[%s10695 + $0x10] sm:$0xff]
        %v10699 = vld [vmem:[%s10695 + $0x18] sm:$0xff]
        %v10700 = vld [vmem:[%s10695 + $0x20] sm:$0xff]
        %v10701 = vld [vmem:[%s10695 + $0x28] sm:$0xff]
        %v10702 = vld [vmem:[%s10695 + $0x30] sm:$0xff]
        %v10703 = vld [vmem:[%s10695 + $0x38] sm:$0xff]
        %v10704 = vld [vmem:[%s10695 + $0x40] sm:$0xff]
        %v10705 = vld [vmem:[%s10695 + $0x48] sm:$0xff]
        %v10706 = vld [vmem:[%s10695 + $0x50] sm:$0xff]
        %v10707 = vld [vmem:[%s10695 + $0x58] sm:$0xff]
        %v10708 = vld [vmem:[%s10695 + $0x60] sm:$0xff]
        %v10709 = vld [vmem:[%s10695 + $0x68] sm:$0xff]
        %v10710 = vld [vmem:[%s10695 + $0x70] sm:$0x7f]
        %v10711 = vld [vmem:[%s10695 + $0x78] sm:$0x7f]
        %v10712 = vmax.f32 %v10696, %v9172
        %v10713 = vmax.f32 %v10697, %v9173
        %v10714 = vmax.f32 %v10698, %v9174
        %v10715 = vmax.f32 %v10699, %v9175
        %v10716 = vmax.f32 %v10700, %v9176
        %v10717 = vmax.f32 %v10701, %v9177
        %v10718 = vmax.f32 %v10702, %v9178
        %v10719 = vmax.f32 %v10703, %v9179
        %v10720 = vmax.f32 %v10704, %v9180
        %v10721 = vmax.f32 %v10705, %v9181
        %v10722 = vmax.f32 %v10706, %v9182
        %v10723 = vmax.f32 %v10707, %v9183
        %v10724 = vmax.f32 %v10708, %v9184
        %v10725 = vmax.f32 %v10709, %v9185
        %v10726 = vmax.f32 %v10710, %v9186
        %v10727 = vmax.f32 %v10711, %v9187
        %10728 = vst [vmem:[%s10695] sm:$0xff] %v10712
        %10729 = vst [vmem:[%s10695 + $0x8] sm:$0xff] %v10713
        %10730 = vst [vmem:[%s10695 + $0x10] sm:$0xff] %v10714
        %10731 = vst [vmem:[%s10695 + $0x18] sm:$0xff] %v10715
        %10732 = vst [vmem:[%s10695 + $0x20] sm:$0xff] %v10716
        %10733 = vst [vmem:[%s10695 + $0x28] sm:$0xff] %v10717
        %10734 = vst [vmem:[%s10695 + $0x30] sm:$0xff] %v10718
        %10735 = vst [vmem:[%s10695 + $0x38] sm:$0xff] %v10719
        %10736 = vst [vmem:[%s10695 + $0x40] sm:$0xff] %v10720
        %10737 = vst [vmem:[%s10695 + $0x48] sm:$0xff] %v10721
        %10738 = vst [vmem:[%s10695 + $0x50] sm:$0xff] %v10722
        %10739 = vst [vmem:[%s10695 + $0x58] sm:$0xff] %v10723
        %10740 = vst [vmem:[%s10695 + $0x60] sm:$0xff] %v10724
        %10741 = vst [vmem:[%s10695 + $0x68] sm:$0xff] %v10725
        %10742 = vst [vmem:[%s10695 + $0x70] sm:$0x7f] %v10726
        %10743 = vst [vmem:[%s10695 + $0x78] sm:$0x7f] %v10727
        %s10744 = scalar_lea.vmem %s277, 384
        %v10745 = vld [vmem:[%s10744] sm:$0xff]
        %v10746 = vld [vmem:[%s10744 + $0x8] sm:$0xff]
        %v10747 = vld [vmem:[%s10744 + $0x10] sm:$0xff]
        %v10748 = vld [vmem:[%s10744 + $0x18] sm:$0xff]
        %v10749 = vld [vmem:[%s10744 + $0x20] sm:$0xff]
        %v10750 = vld [vmem:[%s10744 + $0x28] sm:$0xff]
        %v10751 = vld [vmem:[%s10744 + $0x30] sm:$0xff]
        %v10752 = vld [vmem:[%s10744 + $0x38] sm:$0xff]
        %v10753 = vld [vmem:[%s10744 + $0x40] sm:$0xff]
        %v10754 = vld [vmem:[%s10744 + $0x48] sm:$0xff]
        %v10755 = vld [vmem:[%s10744 + $0x50] sm:$0xff]
        %v10756 = vld [vmem:[%s10744 + $0x58] sm:$0xff]
        %v10757 = vld [vmem:[%s10744 + $0x60] sm:$0xff]
        %v10758 = vld [vmem:[%s10744 + $0x68] sm:$0xff]
        %v10759 = vld [vmem:[%s10744 + $0x70] sm:$0x7f]
        %v10760 = vld [vmem:[%s10744 + $0x78] sm:$0x7f]
        %v10761 = vmax.f32 %v10745, %v10507
        %v10762 = vmax.f32 %v10746, %v10508
        %v10763 = vmax.f32 %v10747, %v10509
        %v10764 = vmax.f32 %v10748, %v10510
        %v10765 = vmax.f32 %v10749, %v10511
        %v10766 = vmax.f32 %v10750, %v10512
        %v10767 = vmax.f32 %v10751, %v10513
        %v10768 = vmax.f32 %v10752, %v10514
        %v10769 = vmax.f32 %v10753, %v10515
        %v10770 = vmax.f32 %v10754, %v10516
        %v10771 = vmax.f32 %v10755, %v10517
        %v10772 = vmax.f32 %v10756, %v10518
        %v10773 = vmax.f32 %v10757, %v10519
        %v10774 = vmax.f32 %v10758, %v10520
        %v10775 = vmax.f32 %v10759, %v10521
        %v10776 = vmax.f32 %v10760, %v10522
        %10777 = vst [vmem:[%s10744] sm:$0xff] %v10761
        %10778 = vst [vmem:[%s10744 + $0x8] sm:$0xff] %v10762
        %10779 = vst [vmem:[%s10744 + $0x10] sm:$0xff] %v10763
        %10780 = vst [vmem:[%s10744 + $0x18] sm:$0xff] %v10764
        %10781 = vst [vmem:[%s10744 + $0x20] sm:$0xff] %v10765
        %10782 = vst [vmem:[%s10744 + $0x28] sm:$0xff] %v10766
        %10783 = vst [vmem:[%s10744 + $0x30] sm:$0xff] %v10767
        %10784 = vst [vmem:[%s10744 + $0x38] sm:$0xff] %v10768
        %10785 = vst [vmem:[%s10744 + $0x40] sm:$0xff] %v10769
        %10786 = vst [vmem:[%s10744 + $0x48] sm:$0xff] %v10770
        %10787 = vst [vmem:[%s10744 + $0x50] sm:$0xff] %v10771
        %10788 = vst [vmem:[%s10744 + $0x58] sm:$0xff] %v10772
        %10789 = vst [vmem:[%s10744 + $0x60] sm:$0xff] %v10773
        %10790 = vst [vmem:[%s10744 + $0x68] sm:$0xff] %v10774
        %10791 = vst [vmem:[%s10744 + $0x70] sm:$0x7f] %v10775
        %10792 = vst [vmem:[%s10744 + $0x78] sm:$0x7f] %v10776
      $region52: #{block_processor_forward.1} parent=43 // pred_fallthru
        _
      %p10793 = scmp.lt.s32.totalorder %s21, 1
      %s10794 = scalar_select %p10793, %s21, 1
      %s10795 = smul.addr %s10794, 64
      %s10796 = smul.addr %s10795, 8
      %s10797 = scalar_lea.vmem %s6, %s10796
      // Predicated region
      $region53: #{block_processor_forward.1} parent=43 // pred_check
        %p10798 = pneg %p180
      $region54: #{block_processor_forward.1} parent=43 // pred_check_branch
        %10800 = sbr.rel (%p10798) target = $region56
      $region55: #{block_processor_forward.1} parent=43 // pred_region
        _
      $region56: #{block_processor_forward.1} parent=43 // pred_fallthru
        _
    $region44: #{block_processor_forward.1} parent=5 // pred_fallthru
      _
    %p10801 = scmp.le.s32.totalorder 2, %s12
    // Predicated region
    $region57: #{block_processor_forward.1} parent=5 // pred_check
      %p10802 = pneg %p10801
    $region58: #{block_processor_forward.1} parent=5 // pred_check_branch
      %10804 = sbr.rel (%p10802) target = $region60
    $region59: #{block_processor_forward.1} parent=5 // pred_region
      %s10805 = ssub.s32 %s12, 2
      // Predicated region
      $region61: #{block_processor_forward.1} parent=59 // pred_check
        %p10806 = pneg %p186
      $region62: #{block_processor_forward.1} parent=59 // pred_check_branch
        %10808 = sbr.rel (%p10806) target = $region64
      $region63: #{block_processor_forward.1} parent=59 // pred_region
        %p10809 = scmp.lt.s32.totalorder %s23, 1
        %s10810 = scalar_select %p10809, %s23, 1
        %s10811 = smul.addr %s10810, 64
        %s10812 = smul.addr %s10811, 8
        %s10813 = scalar_lea.vmem %s6, %s10812
      $region64: #{block_processor_forward.1} parent=59 // pred_fallthru
        _
    $region60: #{block_processor_forward.1} parent=5 // pred_fallthru
      _
  $region6: #{block_processor_forward.1} parent=0 // loop_footer
    %s16 = sadd.s32 1, %s12
  $region7: #{block_processor_forward.1} parent=0 // loop_footer_branch
    %11 = sbr.rel target = $region3
  $region8: #{block_processor_forward.1} parent=0 // loop_exit
    _

</llo_original>
